<compile_context>
chip_gen: v7x
topology: tpu7x:2x2x1
jax: 0.10.0
libtpu: 0.0.40
codegen_flags: <defaults>
</compile_context>

<pallas_src>
import functools

import jax
import jax.numpy as jnp
import numpy as np
from jax.experimental import pallas as pl
from jax.experimental.pallas import tpu as pltpu

_PARAM_ORDER = ('s1', 'b1', 'wq', 'bq', 'wkv', 'bkv', 'wo', 'bo',
                's2', 'b2', 'wf1', 'bf1', 'wf2', 'bf2')


# ----------------------------------------------------------------------------
# One LinearAttNFFN layer — shared VERBATIM by the Pallas kernel body and the
# pure-JAX reference so both paths are op-for-op identical (bf16 rounding
# boundaries are order sensitive; this is what made the previous check flaky).
# ----------------------------------------------------------------------------
def _layer(x, p):
    """x: f32 activation shaped (..., N, D). Returns same shape."""
    s1, b1, wq, bq, wkv, bkv, wo, bo, s2, b2, wf1, bf1, wf2, bf2 = p
    D = x.shape[-1]
    lead = x.shape[:-1]
    bf = jnp.bfloat16

    # ---- PreBatchNorm (eval, folded affine) + LinearSelfAttention ----
    y = x * s1 + b1                                              # f32
    kv = jnp.dot(y.reshape(-1, D).astype(bf), wkv,               # fused k|v proj
                 preferred_element_type=jnp.float32) + bkv
    kv = kv.reshape(lead + (2 * D,))
    k, v = kv[..., :D], kv[..., D:]
    # q projection (D -> 1): VPU lane reduction, keeps the MXU free.
    # TODO(synk): softmax chain is lane-sparse ((..., N, 1)); a Mosaic-safe
    #             rank-increasing broadcast would let it run lane-dense at (..., N).
    q = jnp.sum(y * wq, axis=-1, keepdims=True) + bq             # (..., N, 1)
    q = q - jnp.max(q, axis=-2, keepdims=True)
    e = jnp.exp(q)
    scores = e / jnp.sum(e, axis=-2, keepdims=True)              # softmax over N
    ctx = jnp.sum(k * scores, axis=-2, keepdims=True)            # (..., 1, D)
    # relu(v) * ctx directly in bf16: it feeds the bf16 out_proj matmul anyway,
    # so no (..., N, D) f32 temporary is materialized.
    att_in = jnp.maximum(v, 0.0).astype(bf) * ctx.astype(bf)
    att = jnp.dot(att_in.reshape(-1, D), wo,
                  preferred_element_type=jnp.float32) + bo
    x = x + att.reshape(x.shape)                                 # residual

    # ---- PreBatchNorm (eval) + ConvFFN ----
    y2 = (x * s2 + b2).reshape(-1, D).astype(bf)
    h = jnp.dot(y2, wf1, preferred_element_type=jnp.float32) + bf1
    f = jnp.dot(jnp.maximum(h, 0.0).astype(bf), wf2,
                preferred_element_type=jnp.float32) + bf2
    return x + f.reshape(x.shape)                                # residual


# ----------------------------------------------------------------------------
# Pallas kernel: all `depth` layers for one (TB, N, D) tile
# ----------------------------------------------------------------------------
def linear_attn_ffn_kernel(x_ref,
                           s1_ref, b1_ref,        # (depth, 1, D)  BN1 scale/shift
                           wq_ref, bq_ref,        # (depth, 1, D), (depth, 1, 1)
                           wkv_ref, bkv_ref,      # (depth, D, 2D) bf16, (depth, 1, 2D)
                           wo_ref, bo_ref,        # (depth, D, D) bf16, (depth, 1, D)
                           s2_ref, b2_ref,        # (depth, 1, D)  BN2 scale/shift
                           wf1_ref, bf1_ref,      # (depth, D, M) bf16, (depth, 1, M)
                           wf2_ref, bf2_ref,      # (depth, M, D) bf16, (depth, 1, D)
                           o_ref):
    depth = wkv_ref.shape[0]
    refs = (s1_ref, b1_ref, wq_ref, bq_ref, wkv_ref, bkv_ref, wo_ref, bo_ref,
            s2_ref, b2_ref, wf1_ref, bf1_ref, wf2_ref, bf2_ref)

    x = x_ref[...].astype(jnp.float32)     # activation tile stays VMEM-resident
    # Static unroll is fine for small depth.
    # TODO(synk): for depth > 2, switch to lax.fori_loop(..., unroll=True) with
    #             dynamic ref[l] indexing (bounds live ranges), or move `depth`
    #             onto an "arbitrary" grid axis so only ~2 layers of weights are
    #             in flight (matters on v7x's 64 MiB VMEM at large dims).
    for l in range(depth):
        x = _layer(x, tuple(r[l] for r in refs))
    o_ref[...] = x.astype(o_ref.dtype)


# ----------------------------------------------------------------------------
# Wrapper
# ----------------------------------------------------------------------------
def _const_spec(shape):
    """Grid-invariant weight block: constant index_map + single-buffered."""
    nd = len(shape)
    return pl.BlockSpec(shape, lambda i, _nd=nd: (0,) * _nd,
                        pipeline_mode=pl.Buffered(1))


@functools.partial(jax.jit, static_argnames=("max_tb", "min_grid"))
def linear_attn_ffn_forward(x_nchw, params, max_tb=16, min_grid=4):
    """x_nchw: (B, dim, P, N) exactly like the PyTorch module; returns same shape.

    max_tb:   (batch, pixel) slices fused per grid step.  16 is VMEM-safe on all
              generations at MobileViT-ish dims; raise toward 32 on v5e/v6e.
    min_grid: keep at least this many grid steps so dimension_semantics=
              ("parallel",) can split work across v7x's two TensorCores.
    """
    B, D, P, N = x_nchw.shape
    BP = B * P

    # NCHW -> (BP, N, D): channels land on lanes (MXU-friendly).  The transpose
    # is marked fusible into the pallas_call operand (allow_input_fusion) so XLA
    # can avoid materializing an extra HBM pass for it.
    # TODO(synk): emit (D, N) output blocks in-kernel to also kill the output
    #             transpose below if it shows up in profiles.
    t = jnp.transpose(x_nchw, (0, 2, 3, 1)).reshape(BP, N, D)

    # Tile selection: biggest tile <= max_tb that still leaves >= min_grid steps;
    # pad BP up to a multiple of TB instead of falling back to tiny tiles.
    TB = max(1, min(max_tb, pl.cdiv(BP, min_grid)))
    BPp = TB * pl.cdiv(BP, TB)
    if BPp != BP:
        t = jnp.pad(t, ((0, BPp - BP), (0, 0), (0, 0)))

    n_inputs = 1 + len(_PARAM_ORDER)

    out = pl.pallas_call(
        linear_attn_ffn_kernel,
        out_shape=jax.ShapeDtypeStruct((BPp, N, D), jnp.float32),
        grid=(BPp // TB,),
        in_specs=[pl.BlockSpec((TB, N, D), lambda i: (i, 0, 0))] +
                 [_const_spec(tuple(params[k].shape)) for k in _PARAM_ORDER],
        out_specs=pl.BlockSpec((TB, N, D), lambda i: (i, 0, 0)),
        compiler_params=pltpu.CompilerParams(
            dimension_semantics=("parallel",),          # slices are independent
            vmem_limit_bytes=48 * 1024 * 1024,          # > default scoped, < v7x 64 MiB
            allow_input_fusion=[True] + [False] * (n_inputs - 1),
        ),
    )(t, *(params[k] for k in _PARAM_ORDER))

    out = out[:BP]
    # TODO(synk): optionally emit bf16 output (halves writeback) if numerics allow.
    return jnp.transpose(out.reshape(B, P, N, D), (0, 3, 1, 2))


# ----------------------------------------------------------------------------
# Pure-JAX reference (shares _layer with the kernel -> op-for-op identical math)
# ----------------------------------------------------------------------------
def reference_forward(x_nchw, params):
    B, D, P, N = x_nchw.shape
    t = jnp.transpose(x_nchw, (0, 2, 3, 1)).reshape(B * P, N, D).astype(jnp.float32)
    depth = params['wkv'].shape[0]
    for l in range(depth):
        t = _layer(t, tuple(params[k][l] for k in _PARAM_ORDER))
    return jnp.transpose(t.reshape(B, P, N, D), (0, 3, 1, 2))


# ----------------------------------------------------------------------------
# Deterministic parameter init (stacked along a leading `depth` axis)
# ----------------------------------------------------------------------------
def init_params(key, D, M, depth):
    keys = iter(jax.random.split(key, 18 * depth + 2))

    def nrm(shape, scale=0.1):
        return (scale * jax.random.normal(next(keys), shape)).astype(jnp.float32)

    def bn(dim):
        gamma = 1.0 + 0.1 * jax.random.normal(next(keys), (1, dim))
        beta = 0.1 * jax.random.normal(next(keys), (1, dim))
        mean = 0.1 * jax.random.normal(next(keys), (1, dim))
        var = 1.0 + 0.5 * jax.random.uniform(next(keys), (1, dim))
        scale = gamma / jnp.sqrt(var + 1e-5)
        shift = beta - mean * scale
        return scale.astype(jnp.float32), shift.astype(jnp.float32)

    acc = {k: [] for k in _PARAM_ORDER}
    for _ in range(depth):
        s, b = bn(D); acc['s1'].append(s); acc['b1'].append(b)
        acc['wq'].append(nrm((1, D)));       acc['bq'].append(nrm((1, 1)))
        acc['wkv'].append(nrm((D, 2 * D)));  acc['bkv'].append(nrm((1, 2 * D)))
        acc['wo'].append(nrm((D, D)));       acc['bo'].append(nrm((1, D)))
        s, b = bn(D); acc['s2'].append(s); acc['b2'].append(b)
        acc['wf1'].append(nrm((D, M)));      acc['bf1'].append(nrm((1, M)))
        acc['wf2'].append(nrm((M, D)));      acc['bf2'].append(nrm((1, D)))

    bf16_keys = ('wkv', 'wo', 'wf1', 'wf2')          # matmul weights stored bf16
    return {k: jnp.stack(v).astype(jnp.bfloat16 if k in bf16_keys else jnp.float32)
            for k, v in acc.items()}


# ----------------------------------------------------------------------------
if __name__ == "__main__":
    key = jax.random.PRNGKey(0)
    kx, kp = jax.random.split(key)

    # (B, dim, P=pixels-per-patch, N=num-patches), like the PyTorch module input.
    B, D, P, N = 2, 128, 16, 64
    depth, M = 2, 256

    x = jax.random.normal(kx, (B, D, P, N), dtype=jnp.float32)
    params = init_params(kp, D, M, depth)

    out = jax.block_until_ready(linear_attn_ffn_forward(x, params))
    assert out.shape == (B, D, P, N)

    ref = jax.block_until_ready(reference_forward(x, params))
    # Kernel and reference share _layer(), so the only residual divergence is
    # tile-local vs full-array scheduling of the f32 reductions/matmuls hitting
    # bf16 rounding boundaries; 5e-2 covers the rare per-element outliers.
    np.testing.assert_allclose(np.asarray(out), np.asarray(ref), rtol=5e-2, atol=5e-2)

    print("KERNEL_OK")
</pallas_src>

<mosaic_0001>
module attributes {stable_mosaic.version = 11 : i64} {
  func.func @linear_attn_ffn_kernel(%arg0: i32, %arg1: memref<8x64x128xf32, #tpu.memory_space<vmem>>, %arg2: memref<2x1x128xf32, #tpu.memory_space<vmem>>, %arg3: memref<2x1x128xf32, #tpu.memory_space<vmem>>, %arg4: memref<2x1x128xf32, #tpu.memory_space<vmem>>, %arg5: memref<2x1x1xf32, #tpu.memory_space<vmem>>, %arg6: memref<2x128x256xbf16, #tpu.memory_space<vmem>>, %arg7: memref<2x1x256xf32, #tpu.memory_space<vmem>>, %arg8: memref<2x128x128xbf16, #tpu.memory_space<vmem>>, %arg9: memref<2x1x128xf32, #tpu.memory_space<vmem>>, %arg10: memref<2x1x128xf32, #tpu.memory_space<vmem>>, %arg11: memref<2x1x128xf32, #tpu.memory_space<vmem>>, %arg12: memref<2x128x256xbf16, #tpu.memory_space<vmem>>, %arg13: memref<2x1x256xf32, #tpu.memory_space<vmem>>, %arg14: memref<2x256x128xbf16, #tpu.memory_space<vmem>>, %arg15: memref<2x1x128xf32, #tpu.memory_space<vmem>>, %arg16: memref<8x64x128xf32, #tpu.memory_space<vmem>>) attributes {dimension_semantics = [#tpu.dimension_semantics<parallel>], iteration_bounds = array<i64: 4>, scalar_prefetch = 0 : i64, scratch_operands = 0 : i64, tpu.core_type = #tpu.core_type<tc>, window_params = [{transform_indices = @transform_0, window_bounds = array<i64: 8, 64, 128>}, {pipeline_mode = #tpu.pipeline_mode<synchronous>, transform_indices = @transform_1, window_bounds = array<i64: 2, 1, 128>}, {pipeline_mode = #tpu.pipeline_mode<synchronous>, transform_indices = @transform_2, window_bounds = array<i64: 2, 1, 128>}, {pipeline_mode = #tpu.pipeline_mode<synchronous>, transform_indices = @transform_3, window_bounds = array<i64: 2, 1, 128>}, {pipeline_mode = #tpu.pipeline_mode<synchronous>, transform_indices = @transform_4, window_bounds = array<i64: 2, 1, 1>}, {pipeline_mode = #tpu.pipeline_mode<synchronous>, transform_indices = @transform_5, window_bounds = array<i64: 2, 128, 256>}, {pipeline_mode = #tpu.pipeline_mode<synchronous>, transform_indices = @transform_6, window_bounds = array<i64: 2, 1, 256>}, {pipeline_mode = #tpu.pipeline_mode<synchronous>, transform_indices = @transform_7, window_bounds = array<i64: 2, 128, 128>}, {pipeline_mode = #tpu.pipeline_mode<synchronous>, transform_indices = @transform_8, window_bounds = array<i64: 2, 1, 128>}, {pipeline_mode = #tpu.pipeline_mode<synchronous>, transform_indices = @transform_9, window_bounds = array<i64: 2, 1, 128>}, {pipeline_mode = #tpu.pipeline_mode<synchronous>, transform_indices = @transform_10, window_bounds = array<i64: 2, 1, 128>}, {pipeline_mode = #tpu.pipeline_mode<synchronous>, transform_indices = @transform_11, window_bounds = array<i64: 2, 128, 256>}, {pipeline_mode = #tpu.pipeline_mode<synchronous>, transform_indices = @transform_12, window_bounds = array<i64: 2, 1, 256>}, {pipeline_mode = #tpu.pipeline_mode<synchronous>, transform_indices = @transform_13, window_bounds = array<i64: 2, 256, 128>}, {pipeline_mode = #tpu.pipeline_mode<synchronous>, transform_indices = @transform_14, window_bounds = array<i64: 2, 1, 128>}, {transform_indices = @transform_15, window_bounds = array<i64: 8, 64, 128>}]} {
    %c0 = arith.constant 0 : index
    %c0_0 = arith.constant 0 : index
    %c0_1 = arith.constant 0 : index
    %0 = vector.load %arg1[%c0, %c0_0, %c0_1] : memref<8x64x128xf32, #tpu.memory_space<vmem>>, vector<8x64x128xf32>
    %c0_2 = arith.constant 0 : index
    %c0_3 = arith.constant 0 : index
    %c0_4 = arith.constant 0 : index
    %1 = vector.load %arg2[%c0_2, %c0_3, %c0_4] : memref<2x1x128xf32, #tpu.memory_space<vmem>>, vector<1x1x128xf32>
    %2 = vector.shape_cast %1 : vector<1x1x128xf32> to vector<1x128xf32>
    %c0_5 = arith.constant 0 : index
    %c0_6 = arith.constant 0 : index
    %c0_7 = arith.constant 0 : index
    %3 = vector.load %arg3[%c0_5, %c0_6, %c0_7] : memref<2x1x128xf32, #tpu.memory_space<vmem>>, vector<1x1x128xf32>
    %4 = vector.shape_cast %3 : vector<1x1x128xf32> to vector<1x128xf32>
    %c0_8 = arith.constant 0 : index
    %c0_9 = arith.constant 0 : index
    %c0_10 = arith.constant 0 : index
    %5 = vector.load %arg4[%c0_8, %c0_9, %c0_10] : memref<2x1x128xf32, #tpu.memory_space<vmem>>, vector<1x1x128xf32>
    %6 = vector.shape_cast %5 : vector<1x1x128xf32> to vector<1x128xf32>
    %c0_11 = arith.constant 0 : index
    %c0_12 = arith.constant 0 : index
    %c0_13 = arith.constant 0 : index
    %7 = vector.load %arg5[%c0_11, %c0_12, %c0_13] : memref<2x1x1xf32, #tpu.memory_space<vmem>>, vector<1x1x1xf32>
    %8 = vector.shape_cast %7 : vector<1x1x1xf32> to vector<1x1xf32>
    %c0_14 = arith.constant 0 : index
    %c0_15 = arith.constant 0 : index
    %c0_16 = arith.constant 0 : index
    %9 = vector.load %arg6[%c0_14, %c0_15, %c0_16] : memref<2x128x256xbf16, #tpu.memory_space<vmem>>, vector<1x128x256xbf16>
    %10 = vector.shape_cast %9 : vector<1x128x256xbf16> to vector<128x256xbf16>
    %c0_17 = arith.constant 0 : index
    %c0_18 = arith.constant 0 : index
    %c0_19 = arith.constant 0 : index
    %11 = vector.load %arg7[%c0_17, %c0_18, %c0_19] : memref<2x1x256xf32, #tpu.memory_space<vmem>>, vector<1x1x256xf32>
    %12 = vector.shape_cast %11 : vector<1x1x256xf32> to vector<1x256xf32>
    %c0_20 = arith.constant 0 : index
    %c0_21 = arith.constant 0 : index
    %c0_22 = arith.constant 0 : index
    %13 = vector.load %arg8[%c0_20, %c0_21, %c0_22] : memref<2x128x128xbf16, #tpu.memory_space<vmem>>, vector<1x128x128xbf16>
    %14 = vector.shape_cast %13 : vector<1x128x128xbf16> to vector<128x128xbf16>
    %c0_23 = arith.constant 0 : index
    %c0_24 = arith.constant 0 : index
    %c0_25 = arith.constant 0 : index
    %15 = vector.load %arg9[%c0_23, %c0_24, %c0_25] : memref<2x1x128xf32, #tpu.memory_space<vmem>>, vector<1x1x128xf32>
    %16 = vector.shape_cast %15 : vector<1x1x128xf32> to vector<1x128xf32>
    %c0_26 = arith.constant 0 : index
    %c0_27 = arith.constant 0 : index
    %c0_28 = arith.constant 0 : index
    %17 = vector.load %arg10[%c0_26, %c0_27, %c0_28] : memref<2x1x128xf32, #tpu.memory_space<vmem>>, vector<1x1x128xf32>
    %18 = vector.shape_cast %17 : vector<1x1x128xf32> to vector<1x128xf32>
    %c0_29 = arith.constant 0 : index
    %c0_30 = arith.constant 0 : index
    %c0_31 = arith.constant 0 : index
    %19 = vector.load %arg11[%c0_29, %c0_30, %c0_31] : memref<2x1x128xf32, #tpu.memory_space<vmem>>, vector<1x1x128xf32>
    %20 = vector.shape_cast %19 : vector<1x1x128xf32> to vector<1x128xf32>
    %c0_32 = arith.constant 0 : index
    %c0_33 = arith.constant 0 : index
    %c0_34 = arith.constant 0 : index
    %21 = vector.load %arg12[%c0_32, %c0_33, %c0_34] : memref<2x128x256xbf16, #tpu.memory_space<vmem>>, vector<1x128x256xbf16>
    %22 = vector.shape_cast %21 : vector<1x128x256xbf16> to vector<128x256xbf16>
    %c0_35 = arith.constant 0 : index
    %c0_36 = arith.constant 0 : index
    %c0_37 = arith.constant 0 : index
    %23 = vector.load %arg13[%c0_35, %c0_36, %c0_37] : memref<2x1x256xf32, #tpu.memory_space<vmem>>, vector<1x1x256xf32>
    %24 = vector.shape_cast %23 : vector<1x1x256xf32> to vector<1x256xf32>
    %c0_38 = arith.constant 0 : index
    %c0_39 = arith.constant 0 : index
    %c0_40 = arith.constant 0 : index
    %25 = vector.load %arg14[%c0_38, %c0_39, %c0_40] : memref<2x256x128xbf16, #tpu.memory_space<vmem>>, vector<1x256x128xbf16>
    %26 = vector.shape_cast %25 : vector<1x256x128xbf16> to vector<256x128xbf16>
    %c0_41 = arith.constant 0 : index
    %c0_42 = arith.constant 0 : index
    %c0_43 = arith.constant 0 : index
    %27 = vector.load %arg15[%c0_41, %c0_42, %c0_43] : memref<2x1x128xf32, #tpu.memory_space<vmem>>, vector<1x1x128xf32>
    %28 = vector.shape_cast %27 : vector<1x1x128xf32> to vector<1x128xf32>
    %29 = vector.shape_cast %2 : vector<1x128xf32> to vector<1x1x128xf32>
    %30 = vector.broadcast %29 : vector<1x1x128xf32> to vector<8x64x128xf32>
    %31 = arith.mulf %0, %30 : vector<8x64x128xf32>
    %32 = vector.shape_cast %4 : vector<1x128xf32> to vector<1x1x128xf32>
    %33 = vector.broadcast %32 : vector<1x1x128xf32> to vector<8x64x128xf32>
    %34 = arith.addf %31, %33 : vector<8x64x128xf32>
    %35 = vector.shape_cast %34 : vector<8x64x128xf32> to vector<512x128xf32>
    %36 = arith.truncf %35 : vector<512x128xf32> to vector<512x128xbf16>
    %cst = arith.constant dense<0.000000e+00> : vector<512x256xf32>
    %37 = tpu.matmul %36, %10, %cst {dimension_numbers = #tpu.dot_dimension_numbers<[1], [0], [0], [1], [0, 0, 1, 1], [], []>} : vector<512x128xbf16>, vector<128x256xbf16>, vector<512x256xf32> -> vector<512x256xf32>
    %38 = vector.broadcast %12 : vector<1x256xf32> to vector<512x256xf32>
    %39 = arith.addf %37, %38 : vector<512x256xf32>
    %40 = vector.shape_cast %39 : vector<512x256xf32> to vector<8x64x256xf32>
    %41 = vector.extract_strided_slice %40 {offsets = [0, 0, 0], sizes = [8, 64, 128], strides = [1, 1, 1]} : vector<8x64x256xf32> to vector<8x64x128xf32>
    %42 = vector.extract_strided_slice %40 {offsets = [0, 0, 128], sizes = [8, 64, 128], strides = [1, 1, 1]} : vector<8x64x256xf32> to vector<8x64x128xf32>
    %43 = vector.shape_cast %6 : vector<1x128xf32> to vector<1x1x128xf32>
    %44 = vector.broadcast %43 : vector<1x1x128xf32> to vector<8x64x128xf32>
    %45 = arith.mulf %34, %44 : vector<8x64x128xf32>
    %cst_44 = arith.constant dense<0.000000e+00> : vector<8x64xf32>
    %46 = vector.multi_reduction <add>, %45, %cst_44 [2] : vector<8x64x128xf32> to vector<8x64xf32>
    %47 = vector.shape_cast %46 : vector<8x64xf32> to vector<8x64x1xf32>
    %48 = vector.shape_cast %8 : vector<1x1xf32> to vector<1x1x1xf32>
    %49 = vector.broadcast %48 : vector<1x1x1xf32> to vector<8x64x1xf32>
    %50 = arith.addf %47, %49 : vector<8x64x1xf32>
    %cst_45 = arith.constant dense<0xFF800000> : vector<8x1xf32>
    %51 = vector.multi_reduction <maximumf>, %50, %cst_45 [1] : vector<8x64x1xf32> to vector<8x1xf32>
    %52 = vector.shape_cast %51 : vector<8x1xf32> to vector<8x1x1xf32>
    %53 = vector.broadcast %52 : vector<8x1x1xf32> to vector<8x64x1xf32>
    %54 = arith.subf %50, %53 : vector<8x64x1xf32>
    %55 = math.exp %54 : vector<8x64x1xf32>
    %cst_46 = arith.constant dense<0.000000e+00> : vector<8x1xf32>
    %56 = vector.multi_reduction <add>, %55, %cst_46 [1] : vector<8x64x1xf32> to vector<8x1xf32>
    %57 = vector.shape_cast %56 : vector<8x1xf32> to vector<8x1x1xf32>
    %58 = vector.broadcast %57 : vector<8x1x1xf32> to vector<8x64x1xf32>
    %59 = arith.divf %55, %58 : vector<8x64x1xf32>
    %60 = vector.broadcast %59 : vector<8x64x1xf32> to vector<8x64x128xf32>
    %61 = arith.mulf %41, %60 : vector<8x64x128xf32>
    %cst_47 = arith.constant dense<0.000000e+00> : vector<8x128xf32>
    %62 = vector.multi_reduction <add>, %61, %cst_47 [1] : vector<8x64x128xf32> to vector<8x128xf32>
    %63 = vector.shape_cast %62 : vector<8x128xf32> to vector<8x1x128xf32>
    %cst_48 = arith.constant 0.000000e+00 : f32
    %64 = vector.broadcast %cst_48 : f32 to vector<8x64x128xf32>
    %65 = arith.maximumf %42, %64 : vector<8x64x128xf32>
    %66 = arith.truncf %65 : vector<8x64x128xf32> to vector<8x64x128xbf16>
    %67 = arith.truncf %63 : vector<8x1x128xf32> to vector<8x1x128xbf16>
    %68 = vector.broadcast %67 : vector<8x1x128xbf16> to vector<8x64x128xbf16>
    %69 = arith.mulf %66, %68 : vector<8x64x128xbf16>
    %70 = vector.shape_cast %69 : vector<8x64x128xbf16> to vector<512x128xbf16>
    %cst_49 = arith.constant dense<0.000000e+00> : vector<512x128xf32>
    %71 = tpu.matmul %70, %14, %cst_49 {dimension_numbers = #tpu.dot_dimension_numbers<[1], [0], [0], [1], [0, 0, 1, 1], [], []>} : vector<512x128xbf16>, vector<128x128xbf16>, vector<512x128xf32> -> vector<512x128xf32>
    %72 = vector.broadcast %16 : vector<1x128xf32> to vector<512x128xf32>
    %73 = arith.addf %71, %72 : vector<512x128xf32>
    %74 = vector.shape_cast %73 : vector<512x128xf32> to vector<8x64x128xf32>
    %75 = arith.addf %0, %74 : vector<8x64x128xf32>
    %76 = vector.shape_cast %18 : vector<1x128xf32> to vector<1x1x128xf32>
    %77 = vector.broadcast %76 : vector<1x1x128xf32> to vector<8x64x128xf32>
    %78 = arith.mulf %75, %77 : vector<8x64x128xf32>
    %79 = vector.shape_cast %20 : vector<1x128xf32> to vector<1x1x128xf32>
    %80 = vector.broadcast %79 : vector<1x1x128xf32> to vector<8x64x128xf32>
    %81 = arith.addf %78, %80 : vector<8x64x128xf32>
    %82 = vector.shape_cast %81 : vector<8x64x128xf32> to vector<512x128xf32>
    %83 = arith.truncf %82 : vector<512x128xf32> to vector<512x128xbf16>
    %cst_50 = arith.constant dense<0.000000e+00> : vector<512x256xf32>
    %84 = tpu.matmul %83, %22, %cst_50 {dimension_numbers = #tpu.dot_dimension_numbers<[1], [0], [0], [1], [0, 0, 1, 1], [], []>} : vector<512x128xbf16>, vector<128x256xbf16>, vector<512x256xf32> -> vector<512x256xf32>
    %85 = vector.broadcast %24 : vector<1x256xf32> to vector<512x256xf32>
    %86 = arith.addf %84, %85 : vector<512x256xf32>
    %cst_51 = arith.constant 0.000000e+00 : f32
    %87 = vector.broadcast %cst_51 : f32 to vector<512x256xf32>
    %88 = arith.maximumf %86, %87 : vector<512x256xf32>
    %89 = arith.truncf %88 : vector<512x256xf32> to vector<512x256xbf16>
    %cst_52 = arith.constant dense<0.000000e+00> : vector<512x128xf32>
    %90 = tpu.matmul %89, %26, %cst_52 {dimension_numbers = #tpu.dot_dimension_numbers<[1], [0], [0], [1], [0, 0, 1, 1], [], []>} : vector<512x256xbf16>, vector<256x128xbf16>, vector<512x128xf32> -> vector<512x128xf32>
    %91 = vector.broadcast %28 : vector<1x128xf32> to vector<512x128xf32>
    %92 = arith.addf %90, %91 : vector<512x128xf32>
    %93 = vector.shape_cast %92 : vector<512x128xf32> to vector<8x64x128xf32>
    %94 = arith.addf %75, %93 : vector<8x64x128xf32>
    %c1 = arith.constant 1 : index
    %c0_53 = arith.constant 0 : index
    %c0_54 = arith.constant 0 : index
    %95 = vector.load %arg2[%c1, %c0_53, %c0_54] : memref<2x1x128xf32, #tpu.memory_space<vmem>>, vector<1x1x128xf32>
    %96 = vector.shape_cast %95 : vector<1x1x128xf32> to vector<1x128xf32>
    %c1_55 = arith.constant 1 : index
    %c0_56 = arith.constant 0 : index
    %c0_57 = arith.constant 0 : index
    %97 = vector.load %arg3[%c1_55, %c0_56, %c0_57] : memref<2x1x128xf32, #tpu.memory_space<vmem>>, vector<1x1x128xf32>
    %98 = vector.shape_cast %97 : vector<1x1x128xf32> to vector<1x128xf32>
    %c1_58 = arith.constant 1 : index
    %c0_59 = arith.constant 0 : index
    %c0_60 = arith.constant 0 : index
    %99 = vector.load %arg4[%c1_58, %c0_59, %c0_60] : memref<2x1x128xf32, #tpu.memory_space<vmem>>, vector<1x1x128xf32>
    %100 = vector.shape_cast %99 : vector<1x1x128xf32> to vector<1x128xf32>
    %c1_61 = arith.constant 1 : index
    %c0_62 = arith.constant 0 : index
    %c0_63 = arith.constant 0 : index
    %101 = vector.load %arg5[%c1_61, %c0_62, %c0_63] : memref<2x1x1xf32, #tpu.memory_space<vmem>>, vector<1x1x1xf32>
    %102 = vector.shape_cast %101 : vector<1x1x1xf32> to vector<1x1xf32>
    %c1_64 = arith.constant 1 : index
    %c0_65 = arith.constant 0 : index
    %c0_66 = arith.constant 0 : index
    %103 = vector.load %arg6[%c1_64, %c0_65, %c0_66] : memref<2x128x256xbf16, #tpu.memory_space<vmem>>, vector<1x128x256xbf16>
    %104 = vector.shape_cast %103 : vector<1x128x256xbf16> to vector<128x256xbf16>
    %c1_67 = arith.constant 1 : index
    %c0_68 = arith.constant 0 : index
    %c0_69 = arith.constant 0 : index
    %105 = vector.load %arg7[%c1_67, %c0_68, %c0_69] : memref<2x1x256xf32, #tpu.memory_space<vmem>>, vector<1x1x256xf32>
    %106 = vector.shape_cast %105 : vector<1x1x256xf32> to vector<1x256xf32>
    %c1_70 = arith.constant 1 : index
    %c0_71 = arith.constant 0 : index
    %c0_72 = arith.constant 0 : index
    %107 = vector.load %arg8[%c1_70, %c0_71, %c0_72] : memref<2x128x128xbf16, #tpu.memory_space<vmem>>, vector<1x128x128xbf16>
    %108 = vector.shape_cast %107 : vector<1x128x128xbf16> to vector<128x128xbf16>
    %c1_73 = arith.constant 1 : index
    %c0_74 = arith.constant 0 : index
    %c0_75 = arith.constant 0 : index
    %109 = vector.load %arg9[%c1_73, %c0_74, %c0_75] : memref<2x1x128xf32, #tpu.memory_space<vmem>>, vector<1x1x128xf32>
    %110 = vector.shape_cast %109 : vector<1x1x128xf32> to vector<1x128xf32>
    %c1_76 = arith.constant 1 : index
    %c0_77 = arith.constant 0 : index
    %c0_78 = arith.constant 0 : index
    %111 = vector.load %arg10[%c1_76, %c0_77, %c0_78] : memref<2x1x128xf32, #tpu.memory_space<vmem>>, vector<1x1x128xf32>
    %112 = vector.shape_cast %111 : vector<1x1x128xf32> to vector<1x128xf32>
    %c1_79 = arith.constant 1 : index
    %c0_80 = arith.constant 0 : index
    %c0_81 = arith.constant 0 : index
    %113 = vector.load %arg11[%c1_79, %c0_80, %c0_81] : memref<2x1x128xf32, #tpu.memory_space<vmem>>, vector<1x1x128xf32>
    %114 = vector.shape_cast %113 : vector<1x1x128xf32> to vector<1x128xf32>
    %c1_82 = arith.constant 1 : index
    %c0_83 = arith.constant 0 : index
    %c0_84 = arith.constant 0 : index
    %115 = vector.load %arg12[%c1_82, %c0_83, %c0_84] : memref<2x128x256xbf16, #tpu.memory_space<vmem>>, vector<1x128x256xbf16>
    %116 = vector.shape_cast %115 : vector<1x128x256xbf16> to vector<128x256xbf16>
    %c1_85 = arith.constant 1 : index
    %c0_86 = arith.constant 0 : index
    %c0_87 = arith.constant 0 : index
    %117 = vector.load %arg13[%c1_85, %c0_86, %c0_87] : memref<2x1x256xf32, #tpu.memory_space<vmem>>, vector<1x1x256xf32>
    %118 = vector.shape_cast %117 : vector<1x1x256xf32> to vector<1x256xf32>
    %c1_88 = arith.constant 1 : index
    %c0_89 = arith.constant 0 : index
    %c0_90 = arith.constant 0 : index
    %119 = vector.load %arg14[%c1_88, %c0_89, %c0_90] : memref<2x256x128xbf16, #tpu.memory_space<vmem>>, vector<1x256x128xbf16>
    %120 = vector.shape_cast %119 : vector<1x256x128xbf16> to vector<256x128xbf16>
    %c1_91 = arith.constant 1 : index
    %c0_92 = arith.constant 0 : index
    %c0_93 = arith.constant 0 : index
    %121 = vector.load %arg15[%c1_91, %c0_92, %c0_93] : memref<2x1x128xf32, #tpu.memory_space<vmem>>, vector<1x1x128xf32>
    %122 = vector.shape_cast %121 : vector<1x1x128xf32> to vector<1x128xf32>
    %123 = vector.shape_cast %96 : vector<1x128xf32> to vector<1x1x128xf32>
    %124 = vector.broadcast %123 : vector<1x1x128xf32> to vector<8x64x128xf32>
    %125 = arith.mulf %94, %124 : vector<8x64x128xf32>
    %126 = vector.shape_cast %98 : vector<1x128xf32> to vector<1x1x128xf32>
    %127 = vector.broadcast %126 : vector<1x1x128xf32> to vector<8x64x128xf32>
    %128 = arith.addf %125, %127 : vector<8x64x128xf32>
    %129 = vector.shape_cast %128 : vector<8x64x128xf32> to vector<512x128xf32>
    %130 = arith.truncf %129 : vector<512x128xf32> to vector<512x128xbf16>
    %cst_94 = arith.constant dense<0.000000e+00> : vector<512x256xf32>
    %131 = tpu.matmul %130, %104, %cst_94 {dimension_numbers = #tpu.dot_dimension_numbers<[1], [0], [0], [1], [0, 0, 1, 1], [], []>} : vector<512x128xbf16>, vector<128x256xbf16>, vector<512x256xf32> -> vector<512x256xf32>
    %132 = vector.broadcast %106 : vector<1x256xf32> to vector<512x256xf32>
    %133 = arith.addf %131, %132 : vector<512x256xf32>
    %134 = vector.shape_cast %133 : vector<512x256xf32> to vector<8x64x256xf32>
    %135 = vector.extract_strided_slice %134 {offsets = [0, 0, 0], sizes = [8, 64, 128], strides = [1, 1, 1]} : vector<8x64x256xf32> to vector<8x64x128xf32>
    %136 = vector.extract_strided_slice %134 {offsets = [0, 0, 128], sizes = [8, 64, 128], strides = [1, 1, 1]} : vector<8x64x256xf32> to vector<8x64x128xf32>
    %137 = vector.shape_cast %100 : vector<1x128xf32> to vector<1x1x128xf32>
    %138 = vector.broadcast %137 : vector<1x1x128xf32> to vector<8x64x128xf32>
    %139 = arith.mulf %128, %138 : vector<8x64x128xf32>
    %cst_95 = arith.constant dense<0.000000e+00> : vector<8x64xf32>
    %140 = vector.multi_reduction <add>, %139, %cst_95 [2] : vector<8x64x128xf32> to vector<8x64xf32>
    %141 = vector.shape_cast %140 : vector<8x64xf32> to vector<8x64x1xf32>
    %142 = vector.shape_cast %102 : vector<1x1xf32> to vector<1x1x1xf32>
    %143 = vector.broadcast %142 : vector<1x1x1xf32> to vector<8x64x1xf32>
    %144 = arith.addf %141, %143 : vector<8x64x1xf32>
    %cst_96 = arith.constant dense<0xFF800000> : vector<8x1xf32>
    %145 = vector.multi_reduction <maximumf>, %144, %cst_96 [1] : vector<8x64x1xf32> to vector<8x1xf32>
    %146 = vector.shape_cast %145 : vector<8x1xf32> to vector<8x1x1xf32>
    %147 = vector.broadcast %146 : vector<8x1x1xf32> to vector<8x64x1xf32>
    %148 = arith.subf %144, %147 : vector<8x64x1xf32>
    %149 = math.exp %148 : vector<8x64x1xf32>
    %cst_97 = arith.constant dense<0.000000e+00> : vector<8x1xf32>
    %150 = vector.multi_reduction <add>, %149, %cst_97 [1] : vector<8x64x1xf32> to vector<8x1xf32>
    %151 = vector.shape_cast %150 : vector<8x1xf32> to vector<8x1x1xf32>
    %152 = vector.broadcast %151 : vector<8x1x1xf32> to vector<8x64x1xf32>
    %153 = arith.divf %149, %152 : vector<8x64x1xf32>
    %154 = vector.broadcast %153 : vector<8x64x1xf32> to vector<8x64x128xf32>
    %155 = arith.mulf %135, %154 : vector<8x64x128xf32>
    %cst_98 = arith.constant dense<0.000000e+00> : vector<8x128xf32>
    %156 = vector.multi_reduction <add>, %155, %cst_98 [1] : vector<8x64x128xf32> to vector<8x128xf32>
    %157 = vector.shape_cast %156 : vector<8x128xf32> to vector<8x1x128xf32>
    %cst_99 = arith.constant 0.000000e+00 : f32
    %158 = vector.broadcast %cst_99 : f32 to vector<8x64x128xf32>
    %159 = arith.maximumf %136, %158 : vector<8x64x128xf32>
    %160 = arith.truncf %159 : vector<8x64x128xf32> to vector<8x64x128xbf16>
    %161 = arith.truncf %157 : vector<8x1x128xf32> to vector<8x1x128xbf16>
    %162 = vector.broadcast %161 : vector<8x1x128xbf16> to vector<8x64x128xbf16>
    %163 = arith.mulf %160, %162 : vector<8x64x128xbf16>
    %164 = vector.shape_cast %163 : vector<8x64x128xbf16> to vector<512x128xbf16>
    %cst_100 = arith.constant dense<0.000000e+00> : vector<512x128xf32>
    %165 = tpu.matmul %164, %108, %cst_100 {dimension_numbers = #tpu.dot_dimension_numbers<[1], [0], [0], [1], [0, 0, 1, 1], [], []>} : vector<512x128xbf16>, vector<128x128xbf16>, vector<512x128xf32> -> vector<512x128xf32>
    %166 = vector.broadcast %110 : vector<1x128xf32> to vector<512x128xf32>
    %167 = arith.addf %165, %166 : vector<512x128xf32>
    %168 = vector.shape_cast %167 : vector<512x128xf32> to vector<8x64x128xf32>
    %169 = arith.addf %94, %168 : vector<8x64x128xf32>
    %170 = vector.shape_cast %112 : vector<1x128xf32> to vector<1x1x128xf32>
    %171 = vector.broadcast %170 : vector<1x1x128xf32> to vector<8x64x128xf32>
    %172 = arith.mulf %169, %171 : vector<8x64x128xf32>
    %173 = vector.shape_cast %114 : vector<1x128xf32> to vector<1x1x128xf32>
    %174 = vector.broadcast %173 : vector<1x1x128xf32> to vector<8x64x128xf32>
    %175 = arith.addf %172, %174 : vector<8x64x128xf32>
    %176 = vector.shape_cast %175 : vector<8x64x128xf32> to vector<512x128xf32>
    %177 = arith.truncf %176 : vector<512x128xf32> to vector<512x128xbf16>
    %cst_101 = arith.constant dense<0.000000e+00> : vector<512x256xf32>
    %178 = tpu.matmul %177, %116, %cst_101 {dimension_numbers = #tpu.dot_dimension_numbers<[1], [0], [0], [1], [0, 0, 1, 1], [], []>} : vector<512x128xbf16>, vector<128x256xbf16>, vector<512x256xf32> -> vector<512x256xf32>
    %179 = vector.broadcast %118 : vector<1x256xf32> to vector<512x256xf32>
    %180 = arith.addf %178, %179 : vector<512x256xf32>
    %cst_102 = arith.constant 0.000000e+00 : f32
    %181 = vector.broadcast %cst_102 : f32 to vector<512x256xf32>
    %182 = arith.maximumf %180, %181 : vector<512x256xf32>
    %183 = arith.truncf %182 : vector<512x256xf32> to vector<512x256xbf16>
    %cst_103 = arith.constant dense<0.000000e+00> : vector<512x128xf32>
    %184 = tpu.matmul %183, %120, %cst_103 {dimension_numbers = #tpu.dot_dimension_numbers<[1], [0], [0], [1], [0, 0, 1, 1], [], []>} : vector<512x256xbf16>, vector<256x128xbf16>, vector<512x128xf32> -> vector<512x128xf32>
    %185 = vector.broadcast %122 : vector<1x128xf32> to vector<512x128xf32>
    %186 = arith.addf %184, %185 : vector<512x128xf32>
    %187 = vector.shape_cast %186 : vector<512x128xf32> to vector<8x64x128xf32>
    %188 = arith.addf %169, %187 : vector<8x64x128xf32>
    %c0_104 = arith.constant 0 : index
    %c0_105 = arith.constant 0 : index
    %c0_106 = arith.constant 0 : index
    %189 = vector.load %arg16[%c0_104, %c0_105, %c0_106] : memref<8x64x128xf32, #tpu.memory_space<vmem>>, vector<8x64x128xf32>
    tpu.vector_store %arg16[%c0_104, %c0_105, %c0_106], %188 {strides = array<i32>} : memref<8x64x128xf32, #tpu.memory_space<vmem>>, vector<8x64x128xf32>,
    return
  }
  func.func @transform_0(%arg0: i32) -> (i32, i32, i32) {
    %c0_i32 = arith.constant 0 : i32
    %c0_i32_0 = arith.constant 0 : i32
    %c0_i32_1 = arith.constant 0 : i32
    return %arg0, %c0_i32, %c0_i32_0 : i32, i32, i32
  }
  func.func @transform_1(%arg0: i32) -> (i32, i32, i32) {
    %c0_i32 = arith.constant 0 : i32
    %c0_i32_0 = arith.constant 0 : i32
    %c0_i32_1 = arith.constant 0 : i32
    %c0_i32_2 = arith.constant 0 : i32
    return %c0_i32, %c0_i32_0, %c0_i32_1 : i32, i32, i32
  }
  func.func @transform_2(%arg0: i32) -> (i32, i32, i32) {
    %c0_i32 = arith.constant 0 : i32
    %c0_i32_0 = arith.constant 0 : i32
    %c0_i32_1 = arith.constant 0 : i32
    %c0_i32_2 = arith.constant 0 : i32
    return %c0_i32, %c0_i32_0, %c0_i32_1 : i32, i32, i32
  }
  func.func @transform_3(%arg0: i32) -> (i32, i32, i32) {
    %c0_i32 = arith.constant 0 : i32
    %c0_i32_0 = arith.constant 0 : i32
    %c0_i32_1 = arith.constant 0 : i32
    %c0_i32_2 = arith.constant 0 : i32
    return %c0_i32, %c0_i32_0, %c0_i32_1 : i32, i32, i32
  }
  func.func @transform_4(%arg0: i32) -> (i32, i32, i32) {
    %c0_i32 = arith.constant 0 : i32
    %c0_i32_0 = arith.constant 0 : i32
    %c0_i32_1 = arith.constant 0 : i32
    %c0_i32_2 = arith.constant 0 : i32
    return %c0_i32, %c0_i32_0, %c0_i32_1 : i32, i32, i32
  }
  func.func @transform_5(%arg0: i32) -> (i32, i32, i32) {
    %c0_i32 = arith.constant 0 : i32
    %c0_i32_0 = arith.constant 0 : i32
    %c0_i32_1 = arith.constant 0 : i32
    %c0_i32_2 = arith.constant 0 : i32
    return %c0_i32, %c0_i32_0, %c0_i32_1 : i32, i32, i32
  }
  func.func @transform_6(%arg0: i32) -> (i32, i32, i32) {
    %c0_i32 = arith.constant 0 : i32
    %c0_i32_0 = arith.constant 0 : i32
    %c0_i32_1 = arith.constant 0 : i32
    %c0_i32_2 = arith.constant 0 : i32
    return %c0_i32, %c0_i32_0, %c0_i32_1 : i32, i32, i32
  }
  func.func @transform_7(%arg0: i32) -> (i32, i32, i32) {
    %c0_i32 = arith.constant 0 : i32
    %c0_i32_0 = arith.constant 0 : i32
    %c0_i32_1 = arith.constant 0 : i32
    %c0_i32_2 = arith.constant 0 : i32
    return %c0_i32, %c0_i32_0, %c0_i32_1 : i32, i32, i32
  }
  func.func @transform_8(%arg0: i32) -> (i32, i32, i32) {
    %c0_i32 = arith.constant 0 : i32
    %c0_i32_0 = arith.constant 0 : i32
    %c0_i32_1 = arith.constant 0 : i32
    %c0_i32_2 = arith.constant 0 : i32
    return %c0_i32, %c0_i32_0, %c0_i32_1 : i32, i32, i32
  }
  func.func @transform_9(%arg0: i32) -> (i32, i32, i32) {
    %c0_i32 = arith.constant 0 : i32
    %c0_i32_0 = arith.constant 0 : i32
    %c0_i32_1 = arith.constant 0 : i32
    %c0_i32_2 = arith.constant 0 : i32
    return %c0_i32, %c0_i32_0, %c0_i32_1 : i32, i32, i32
  }
  func.func @transform_10(%arg0: i32) -> (i32, i32, i32) {
    %c0_i32 = arith.constant 0 : i32
    %c0_i32_0 = arith.constant 0 : i32
    %c0_i32_1 = arith.constant 0 : i32
    %c0_i32_2 = arith.constant 0 : i32
    return %c0_i32, %c0_i32_0, %c0_i32_1 : i32, i32, i32
  }
  func.func @transform_11(%arg0: i32) -> (i32, i32, i32) {
    %c0_i32 = arith.constant 0 : i32
    %c0_i32_0 = arith.constant 0 : i32
    %c0_i32_1 = arith.constant 0 : i32
    %c0_i32_2 = arith.constant 0 : i32
    return %c0_i32, %c0_i32_0, %c0_i32_1 : i32, i32, i32
  }
  func.func @transform_12(%arg0: i32) -> (i32, i32, i32) {
    %c0_i32 = arith.constant 0 : i32
    %c0_i32_0 = arith.constant 0 : i32
    %c0_i32_1 = arith.constant 0 : i32
    %c0_i32_2 = arith.constant 0 : i32
    return %c0_i32, %c0_i32_0, %c0_i32_1 : i32, i32, i32
  }
  func.func @transform_13(%arg0: i32) -> (i32, i32, i32) {
    %c0_i32 = arith.constant 0 : i32
    %c0_i32_0 = arith.constant 0 : i32
    %c0_i32_1 = arith.constant 0 : i32
    %c0_i32_2 = arith.constant 0 : i32
    return %c0_i32, %c0_i32_0, %c0_i32_1 : i32, i32, i32
  }
  func.func @transform_14(%arg0: i32) -> (i32, i32, i32) {
    %c0_i32 = arith.constant 0 : i32
    %c0_i32_0 = arith.constant 0 : i32
    %c0_i32_1 = arith.constant 0 : i32
    %c0_i32_2 = arith.constant 0 : i32
    return %c0_i32, %c0_i32_0, %c0_i32_1 : i32, i32, i32
  }
  func.func @transform_15(%arg0: i32) -> (i32, i32, i32) {
    %c0_i32 = arith.constant 0 : i32
    %c0_i32_0 = arith.constant 0 : i32
    %c0_i32_1 = arith.constant 0 : i32
    return %arg0, %c0_i32, %c0_i32_0 : i32, i32, i32
  }
}

</mosaic_0001>

<llo_original>
// kernel: linear_attn_ffn_forward.1
$region0: #{linear_attn_ffn_forward.1}
  #allocation0 [shape = 'u32[]', space=smem, size = 0x4, offset = 0x4, fixed_abs, tag = 'smem constant byte address 0x4 - core index']
  #allocation1 [shape = 'u32[144,128]{1,0:T(1,128)}', space=vmem, size = 0x12000, scoped, tag = 'internal scratch']
  %s0 = inlined_call_operand.hbm [shape: f32[32,64,128], index: 0, kind: input, shape index: {}]
  %s1 = inlined_call_operand.vmem [shape: f32[2,1,128], index: 1, kind: input, shape index: {}]
  %s2 = inlined_call_operand.hbm [shape: f32[2,1,128], index: 2, kind: input, shape index: {}]
  %s3 = inlined_call_operand.vmem [shape: f32[2,1,128], index: 3, kind: input, shape index: {}]
  %s4 = inlined_call_operand.vmem [shape: f32[2,1,1], index: 4, kind: input, shape index: {}]
  %s5 = inlined_call_operand.hbm [shape: bf16[2,128,256], index: 5, kind: input, shape index: {}]
  %s6 = inlined_call_operand.vmem [shape: f32[2,1,256], index: 6, kind: input, shape index: {}]
  %s7 = inlined_call_operand.hbm [shape: bf16[2,128,128], index: 7, kind: input, shape index: {}]
  %s8 = inlined_call_operand.vmem [shape: f32[2,1,128], index: 8, kind: input, shape index: {}]
  %s9 = inlined_call_operand.vmem [shape: f32[2,1,128], index: 9, kind: input, shape index: {}]
  %s10 = inlined_call_operand.hbm [shape: f32[2,1,128], index: 10, kind: input, shape index: {}]
  %s11 = inlined_call_operand.hbm [shape: bf16[2,128,256], index: 11, kind: input, shape index: {}]
  %s12 = inlined_call_operand.vmem [shape: f32[2,1,256], index: 12, kind: input, shape index: {}]
  %s13 = inlined_call_operand.hbm [shape: bf16[2,256,128], index: 13, kind: input, shape index: {}]
  %s14 = inlined_call_operand.vmem [shape: f32[2,1,128], index: 14, kind: input, shape index: {}]
  %s15 = inlined_call_operand.hbm [shape: f32[32,64,128], index: 15, kind: output, shape index: {}]
  %s16 = sld [smem:[#allocation0]]
  $region121: #{linear_attn_ffn_forward.1} parent=0
    _
  %s18 = ssub.s32 1, %s16
  %s19 = scalar_select 0, %s18, %s16
  $region1: #{linear_attn_ffn_forward.1} parent=0
    #allocation2 [shape = 'u8[524288]{0}', space=vmem, size = 0x80000, scoped, tag = 'input window, operand 0']
    #allocation3 [shape = 's32[2]{0}', space=sflag, size = 0x8, scoped, tag = 'scoped memory for linear_attn_ffn_forward.1']
    #allocation4 [shape = 's32[2]{0}', space=sflag, size = 0x8, scoped, tag = 'scoped memory for linear_attn_ffn_forward.1']
    #allocation5 [shape = 'u8[1024]{0}', space=vmem, size = 0x400, scoped, tag = 'input window, operand 2, single buffered']
    #allocation6 [shape = 's32[1]{0}', space=sflag, size = 0x4, scoped, tag = 'scoped memory for linear_attn_ffn_forward.1']
    #allocation7 [shape = 'u8[131072]{0}', space=vmem, size = 0x20000, scoped, tag = 'input window, operand 5, single buffered']
    #allocation8 [shape = 'u8[65536]{0}', space=vmem, size = 0x10000, scoped, tag = 'input window, operand 7, single buffered']
    #allocation9 [shape = 's32[1]{0}', space=sflag, size = 0x4, scoped, tag = 'scoped memory for linear_attn_ffn_forward.1']
    #allocation10 [shape = 'u8[1024]{0}', space=vmem, size = 0x400, scoped, tag = 'input window, operand 10, single buffered']
    #allocation11 [shape = 'u8[131072]{0}', space=vmem, size = 0x20000, scoped, tag = 'input window, operand 11, single buffered']
    #allocation12 [shape = 's32[1]{0}', space=sflag, size = 0x4, scoped, tag = 'scoped memory for linear_attn_ffn_forward.1']
    #allocation13 [shape = 'u8[131072]{0}', space=vmem, size = 0x20000, scoped, tag = 'input window, operand 13, single buffered']
    #allocation14 [shape = 'u8[524288]{0}', space=vmem, size = 0x80000, scoped, tag = 'output window, operand 0']
    %20 = vsyncpa [#allocation3], 0
    %s21 = scalar_lea.sflag [#allocation3], 1
    %22 = vsyncpa %s21, 0
    %23 = vsyncpa [#allocation6], 0
    %24 = vsyncpa [#allocation9], 0
    %25 = vsyncpa [#allocation12], 0
    %26 = vsyncpa [#allocation4], 0
    %s27 = scalar_lea.sflag [#allocation4], 1
    %28 = vsyncpa %s27, 0
    loop: start=0, step=1, limit=6
    $region2: #{linear_attn_ffn_forward.1} parent=1 // loop_pre_header
      _
    $region3: #{linear_attn_ffn_forward.1} parent=1 // loop_header
      %s30 = sphi 0, %s34
      %p31 = scmp.ge.s32.totalorder %s30, 6
      %s40 = sphi 0, %s42
      %s43 = sphi 0, %s40
      %s44 = sphi 0, %s43
      %s60 = sphi 0, %s44
      %s64 = sphi 0, %s64
      %s66 = sphi 0, %s64
      %s67 = sphi 0, %s66
      %s81 = sphi 0, %s67
      %s85 = sphi 0, %s85
      %s87 = sphi 0, %s85
      %s88 = sphi 0, %s87
      %s102 = sphi 0, %s88
      %s106 = sphi 0, %s106
      %s108 = sphi 0, %s106
      %s109 = sphi 0, %s108
      %s123 = sphi 0, %s109
      %s127 = sphi 0, %s127
      %s129 = sphi 0, %s127
      %s130 = sphi 0, %s129
      %s144 = sphi 0, %s130
      %s148 = sphi 0, %s148
      %s150 = sphi 0, %s148
      %s151 = sphi 0, %s150
      %s165 = sphi 0, %s151
      %s169 = sphi 0, %s169
      %s171 = sphi 0, %s169
      %s172 = sphi 0, %s171
      %s186 = sphi 0, %s172
      %s190 = sphi 0, %s190
      %s192 = sphi 0, %s190
      %s193 = sphi 0, %s192
      %s207 = sphi 0, %s193
      %s211 = sphi 0, %s211
      %s213 = sphi 0, %s211
      %s214 = sphi 0, %s213
      %s228 = sphi 0, %s214
      %s232 = sphi 0, %s232
      %s234 = sphi 0, %s232
      %s235 = sphi 0, %s234
      %s249 = sphi 0, %s235
      %s253 = sphi 0, %s253
      %s255 = sphi 0, %s253
      %s256 = sphi 0, %s255
      %s270 = sphi 0, %s256
      %s274 = sphi 0, %s274
      %s276 = sphi 0, %s274
      %s277 = sphi 0, %s276
      %s291 = sphi 0, %s277
      %s295 = sphi 0, %s295
      %s297 = sphi 0, %s295
      %s298 = sphi 0, %s297
      %s312 = sphi 0, %s298
      %s316 = sphi 0, %s316
      %s318 = sphi 0, %s316
      %s319 = sphi 0, %s318
      %s333 = sphi 0, %s319
      %s337 = sphi 0, %s337
      %s339 = sphi 0, %s337
      %s340 = sphi 0, %s339
      %s354 = sphi 0, %s340
      %s360 = sphi 0, %s362
      %s363 = sphi 0, %s360
      %s364 = sphi 0, %s363
      %s380 = sphi 0, %s364
    $region4: #{linear_attn_ffn_forward.1} parent=1 // loop_header_branch
      %33 = sbr.rel (%p31) target = $region8
    $region5: #{linear_attn_ffn_forward.1} parent=1 // loop_body
      %s35 = ssub.s32 %s30, 1
      %s36 = ssub.s32 %s30, 2
      %s37 = sadd.s32 %s30, 1
      %s38 = ssub.s32 %s30, %s37
      %p39 = scmp.eq.s32.totalorder %s38, 0
      %s41 = sadd.s32 %s40, 1
      %s42 = scalar_select %p39, %s40, %s41
      %p45 = pneg %p39
      %p46 = scmp.eq.s32.totalorder %s30, 3
      %p47 = por %p45, %p46
      %p48 = scmp.ne.s32.totalorder %s40, %s43
      %p49 = scmp.eq.s32.totalorder %s30, 0
      %p50 = por %p48, %p49
      %p51 = scmp.ne.s32.totalorder %s40, %s43
      %p52 = scmp.eq.s32.totalorder %s35, 3
      %p53 = por %p51, %p52
      %p54 = scmp.ne.s32.totalorder %s43, %s44
      %p55 = scmp.eq.s32.totalorder %s35, 0
      %p56 = por %p54, %p55
      %p57 = scmp.ne.s32.totalorder %s43, %s44
      %p58 = scmp.eq.s32.totalorder %s36, 3
      %p59 = por %p57, %p58
      %p61 = scmp.ne.s32.totalorder %s44, %s60
      %p62 = scmp.eq.s32.totalorder %s36, 0
      %p63 = por %p61, %p62
      %s65 = sadd.s32 %s64, 1
      %p68 = scmp.eq.s32.totalorder %s30, 3
      %p69 = scmp.ne.s32.totalorder %s64, %s66
      %p70 = scmp.eq.s32.totalorder %s30, 0
      %p71 = por %p69, %p70
      %p72 = scmp.ne.s32.totalorder %s64, %s66
      %p73 = scmp.eq.s32.totalorder %s35, 3
      %p74 = por %p72, %p73
      %p75 = scmp.ne.s32.totalorder %s66, %s67
      %p76 = scmp.eq.s32.totalorder %s35, 0
      %p77 = por %p75, %p76
      %p78 = scmp.ne.s32.totalorder %s66, %s67
      %p79 = scmp.eq.s32.totalorder %s36, 3
      %p80 = por %p78, %p79
      %p82 = scmp.ne.s32.totalorder %s67, %s81
      %p83 = scmp.eq.s32.totalorder %s36, 0
      %p84 = por %p82, %p83
      %s86 = sadd.s32 %s85, 1
      %p89 = scmp.eq.s32.totalorder %s30, 3
      %p90 = scmp.ne.s32.totalorder %s85, %s87
      %p91 = scmp.eq.s32.totalorder %s30, 0
      %p92 = por %p90, %p91
      %p93 = scmp.ne.s32.totalorder %s85, %s87
      %p94 = scmp.eq.s32.totalorder %s35, 3
      %p95 = por %p93, %p94
      %p96 = scmp.ne.s32.totalorder %s87, %s88
      %p97 = scmp.eq.s32.totalorder %s35, 0
      %p98 = por %p96, %p97
      %p99 = scmp.ne.s32.totalorder %s87, %s88
      %p100 = scmp.eq.s32.totalorder %s36, 3
      %p101 = por %p99, %p100
      %p103 = scmp.ne.s32.totalorder %s88, %s102
      %p104 = scmp.eq.s32.totalorder %s36, 0
      %p105 = por %p103, %p104
      %s107 = sadd.s32 %s106, 1
      %p110 = scmp.eq.s32.totalorder %s30, 3
      %p111 = scmp.ne.s32.totalorder %s106, %s108
      %p112 = scmp.eq.s32.totalorder %s30, 0
      %p113 = por %p111, %p112
      %p114 = scmp.ne.s32.totalorder %s106, %s108
      %p115 = scmp.eq.s32.totalorder %s35, 3
      %p116 = por %p114, %p115
      %p117 = scmp.ne.s32.totalorder %s108, %s109
      %p118 = scmp.eq.s32.totalorder %s35, 0
      %p119 = por %p117, %p118
      %p120 = scmp.ne.s32.totalorder %s108, %s109
      %p121 = scmp.eq.s32.totalorder %s36, 3
      %p122 = por %p120, %p121
      %p124 = scmp.ne.s32.totalorder %s109, %s123
      %p125 = scmp.eq.s32.totalorder %s36, 0
      %p126 = por %p124, %p125
      %s128 = sadd.s32 %s127, 1
      %p131 = scmp.eq.s32.totalorder %s30, 3
      %p132 = scmp.ne.s32.totalorder %s127, %s129
      %p133 = scmp.eq.s32.totalorder %s30, 0
      %p134 = por %p132, %p133
      %p135 = scmp.ne.s32.totalorder %s127, %s129
      %p136 = scmp.eq.s32.totalorder %s35, 3
      %p137 = por %p135, %p136
      %p138 = scmp.ne.s32.totalorder %s129, %s130
      %p139 = scmp.eq.s32.totalorder %s35, 0
      %p140 = por %p138, %p139
      %p141 = scmp.ne.s32.totalorder %s129, %s130
      %p142 = scmp.eq.s32.totalorder %s36, 3
      %p143 = por %p141, %p142
      %p145 = scmp.ne.s32.totalorder %s130, %s144
      %p146 = scmp.eq.s32.totalorder %s36, 0
      %p147 = por %p145, %p146
      %s149 = sadd.s32 %s148, 1
      %p152 = scmp.eq.s32.totalorder %s30, 3
      %p153 = scmp.ne.s32.totalorder %s148, %s150
      %p154 = scmp.eq.s32.totalorder %s30, 0
      %p155 = por %p153, %p154
      %p156 = scmp.ne.s32.totalorder %s148, %s150
      %p157 = scmp.eq.s32.totalorder %s35, 3
      %p158 = por %p156, %p157
      %p159 = scmp.ne.s32.totalorder %s150, %s151
      %p160 = scmp.eq.s32.totalorder %s35, 0
      %p161 = por %p159, %p160
      %p162 = scmp.ne.s32.totalorder %s150, %s151
      %p163 = scmp.eq.s32.totalorder %s36, 3
      %p164 = por %p162, %p163
      %p166 = scmp.ne.s32.totalorder %s151, %s165
      %p167 = scmp.eq.s32.totalorder %s36, 0
      %p168 = por %p166, %p167
      %s170 = sadd.s32 %s169, 1
      %p173 = scmp.eq.s32.totalorder %s30, 3
      %p174 = scmp.ne.s32.totalorder %s169, %s171
      %p175 = scmp.eq.s32.totalorder %s30, 0
      %p176 = por %p174, %p175
      %p177 = scmp.ne.s32.totalorder %s169, %s171
      %p178 = scmp.eq.s32.totalorder %s35, 3
      %p179 = por %p177, %p178
      %p180 = scmp.ne.s32.totalorder %s171, %s172
      %p181 = scmp.eq.s32.totalorder %s35, 0
      %p182 = por %p180, %p181
      %p183 = scmp.ne.s32.totalorder %s171, %s172
      %p184 = scmp.eq.s32.totalorder %s36, 3
      %p185 = por %p183, %p184
      %p187 = scmp.ne.s32.totalorder %s172, %s186
      %p188 = scmp.eq.s32.totalorder %s36, 0
      %p189 = por %p187, %p188
      %s191 = sadd.s32 %s190, 1
      %p194 = scmp.eq.s32.totalorder %s30, 3
      %p195 = scmp.ne.s32.totalorder %s190, %s192
      %p196 = scmp.eq.s32.totalorder %s30, 0
      %p197 = por %p195, %p196
      %p198 = scmp.ne.s32.totalorder %s190, %s192
      %p199 = scmp.eq.s32.totalorder %s35, 3
      %p200 = por %p198, %p199
      %p201 = scmp.ne.s32.totalorder %s192, %s193
      %p202 = scmp.eq.s32.totalorder %s35, 0
      %p203 = por %p201, %p202
      %p204 = scmp.ne.s32.totalorder %s192, %s193
      %p205 = scmp.eq.s32.totalorder %s36, 3
      %p206 = por %p204, %p205
      %p208 = scmp.ne.s32.totalorder %s193, %s207
      %p209 = scmp.eq.s32.totalorder %s36, 0
      %p210 = por %p208, %p209
      %s212 = sadd.s32 %s211, 1
      %p215 = scmp.eq.s32.totalorder %s30, 3
      %p216 = scmp.ne.s32.totalorder %s211, %s213
      %p217 = scmp.eq.s32.totalorder %s30, 0
      %p218 = por %p216, %p217
      %p219 = scmp.ne.s32.totalorder %s211, %s213
      %p220 = scmp.eq.s32.totalorder %s35, 3
      %p221 = por %p219, %p220
      %p222 = scmp.ne.s32.totalorder %s213, %s214
      %p223 = scmp.eq.s32.totalorder %s35, 0
      %p224 = por %p222, %p223
      %p225 = scmp.ne.s32.totalorder %s213, %s214
      %p226 = scmp.eq.s32.totalorder %s36, 3
      %p227 = por %p225, %p226
      %p229 = scmp.ne.s32.totalorder %s214, %s228
      %p230 = scmp.eq.s32.totalorder %s36, 0
      %p231 = por %p229, %p230
      %s233 = sadd.s32 %s232, 1
      %p236 = scmp.eq.s32.totalorder %s30, 3
      %p237 = scmp.ne.s32.totalorder %s232, %s234
      %p238 = scmp.eq.s32.totalorder %s30, 0
      %p239 = por %p237, %p238
      %p240 = scmp.ne.s32.totalorder %s232, %s234
      %p241 = scmp.eq.s32.totalorder %s35, 3
      %p242 = por %p240, %p241
      %p243 = scmp.ne.s32.totalorder %s234, %s235
      %p244 = scmp.eq.s32.totalorder %s35, 0
      %p245 = por %p243, %p244
      %p246 = scmp.ne.s32.totalorder %s234, %s235
      %p247 = scmp.eq.s32.totalorder %s36, 3
      %p248 = por %p246, %p247
      %p250 = scmp.ne.s32.totalorder %s235, %s249
      %p251 = scmp.eq.s32.totalorder %s36, 0
      %p252 = por %p250, %p251
      %s254 = sadd.s32 %s253, 1
      %p257 = scmp.eq.s32.totalorder %s30, 3
      %p258 = scmp.ne.s32.totalorder %s253, %s255
      %p259 = scmp.eq.s32.totalorder %s30, 0
      %p260 = por %p258, %p259
      %p261 = scmp.ne.s32.totalorder %s253, %s255
      %p262 = scmp.eq.s32.totalorder %s35, 3
      %p263 = por %p261, %p262
      %p264 = scmp.ne.s32.totalorder %s255, %s256
      %p265 = scmp.eq.s32.totalorder %s35, 0
      %p266 = por %p264, %p265
      %p267 = scmp.ne.s32.totalorder %s255, %s256
      %p268 = scmp.eq.s32.totalorder %s36, 3
      %p269 = por %p267, %p268
      %p271 = scmp.ne.s32.totalorder %s256, %s270
      %p272 = scmp.eq.s32.totalorder %s36, 0
      %p273 = por %p271, %p272
      %s275 = sadd.s32 %s274, 1
      %p278 = scmp.eq.s32.totalorder %s30, 3
      %p279 = scmp.ne.s32.totalorder %s274, %s276
      %p280 = scmp.eq.s32.totalorder %s30, 0
      %p281 = por %p279, %p280
      %p282 = scmp.ne.s32.totalorder %s274, %s276
      %p283 = scmp.eq.s32.totalorder %s35, 3
      %p284 = por %p282, %p283
      %p285 = scmp.ne.s32.totalorder %s276, %s277
      %p286 = scmp.eq.s32.totalorder %s35, 0
      %p287 = por %p285, %p286
      %p288 = scmp.ne.s32.totalorder %s276, %s277
      %p289 = scmp.eq.s32.totalorder %s36, 3
      %p290 = por %p288, %p289
      %p292 = scmp.ne.s32.totalorder %s277, %s291
      %p293 = scmp.eq.s32.totalorder %s36, 0
      %p294 = por %p292, %p293
      %s296 = sadd.s32 %s295, 1
      %p299 = scmp.eq.s32.totalorder %s30, 3
      %p300 = scmp.ne.s32.totalorder %s295, %s297
      %p301 = scmp.eq.s32.totalorder %s30, 0
      %p302 = por %p300, %p301
      %p303 = scmp.ne.s32.totalorder %s295, %s297
      %p304 = scmp.eq.s32.totalorder %s35, 3
      %p305 = por %p303, %p304
      %p306 = scmp.ne.s32.totalorder %s297, %s298
      %p307 = scmp.eq.s32.totalorder %s35, 0
      %p308 = por %p306, %p307
      %p309 = scmp.ne.s32.totalorder %s297, %s298
      %p310 = scmp.eq.s32.totalorder %s36, 3
      %p311 = por %p309, %p310
      %p313 = scmp.ne.s32.totalorder %s298, %s312
      %p314 = scmp.eq.s32.totalorder %s36, 0
      %p315 = por %p313, %p314
      %s317 = sadd.s32 %s316, 1
      %p320 = scmp.eq.s32.totalorder %s30, 3
      %p321 = scmp.ne.s32.totalorder %s316, %s318
      %p322 = scmp.eq.s32.totalorder %s30, 0
      %p323 = por %p321, %p322
      %p324 = scmp.ne.s32.totalorder %s316, %s318
      %p325 = scmp.eq.s32.totalorder %s35, 3
      %p326 = por %p324, %p325
      %p327 = scmp.ne.s32.totalorder %s318, %s319
      %p328 = scmp.eq.s32.totalorder %s35, 0
      %p329 = por %p327, %p328
      %p330 = scmp.ne.s32.totalorder %s318, %s319
      %p331 = scmp.eq.s32.totalorder %s36, 3
      %p332 = por %p330, %p331
      %p334 = scmp.ne.s32.totalorder %s319, %s333
      %p335 = scmp.eq.s32.totalorder %s36, 0
      %p336 = por %p334, %p335
      %s338 = sadd.s32 %s337, 1
      %p341 = scmp.eq.s32.totalorder %s30, 3
      %p342 = scmp.ne.s32.totalorder %s337, %s339
      %p343 = scmp.eq.s32.totalorder %s30, 0
      %p344 = por %p342, %p343
      %p345 = scmp.ne.s32.totalorder %s337, %s339
      %p346 = scmp.eq.s32.totalorder %s35, 3
      %p347 = por %p345, %p346
      %p348 = scmp.ne.s32.totalorder %s339, %s340
      %p349 = scmp.eq.s32.totalorder %s35, 0
      %p350 = por %p348, %p349
      %p351 = scmp.ne.s32.totalorder %s339, %s340
      %p352 = scmp.eq.s32.totalorder %s36, 3
      %p353 = por %p351, %p352
      %p355 = scmp.ne.s32.totalorder %s340, %s354
      %p356 = scmp.eq.s32.totalorder %s36, 0
      %p357 = por %p355, %p356
      %s358 = ssub.s32 %s30, %s37
      %p359 = scmp.eq.s32.totalorder %s358, 0
      %s361 = sadd.s32 %s360, 1
      %s362 = scalar_select %p359, %s360, %s361
      %p365 = pneg %p359
      %p366 = scmp.eq.s32.totalorder %s30, 3
      %p367 = por %p365, %p366
      %p368 = scmp.ne.s32.totalorder %s360, %s363
      %p369 = scmp.eq.s32.totalorder %s30, 0
      %p370 = por %p368, %p369
      %p371 = scmp.ne.s32.totalorder %s360, %s363
      %p372 = scmp.eq.s32.totalorder %s35, 3
      %p373 = por %p371, %p372
      %p374 = scmp.ne.s32.totalorder %s363, %s364
      %p375 = scmp.eq.s32.totalorder %s35, 0
      %p376 = por %p374, %p375
      %p377 = scmp.ne.s32.totalorder %s363, %s364
      %p378 = scmp.eq.s32.totalorder %s36, 3
      %p379 = por %p377, %p378
      %p381 = scmp.ne.s32.totalorder %s364, %s380
      %p382 = scmp.eq.s32.totalorder %s36, 0
      %p383 = por %p381, %p382
      %p384 = scmp.le.s32.totalorder 1, %s30
      %p385 = scmp.lt.s32.totalorder %s30, 5
      %p386 = pnand %p384, %p385
      %p387 = pneg %p386
      // Predicated region
      $region9: #{linear_attn_ffn_forward.1} parent=5 // pred_check
        _
      $region10: #{linear_attn_ffn_forward.1} parent=5 // pred_check_branch
        %389 = sbr.rel (%p386) target = $region12
      $region11: #{linear_attn_ffn_forward.1} parent=5 // pred_region
        %s390 = ssub.s32 %s30, 1
        // Predicated region
        $region13: #{linear_attn_ffn_forward.1} parent=11 // pred_check
          %p391 = pneg %p77
        $region14: #{linear_attn_ffn_forward.1} parent=11 // pred_check_branch
          %393 = sbr.rel (%p391) target = $region16
        $region15: #{linear_attn_ffn_forward.1} parent=11 // pred_region
          _
        $region16: #{linear_attn_ffn_forward.1} parent=11 // pred_fallthru
          _
        // Predicated region
        $region17: #{linear_attn_ffn_forward.1} parent=11 // pred_check
          %p394 = pneg %p98
        $region18: #{linear_attn_ffn_forward.1} parent=11 // pred_check_branch
          %396 = sbr.rel (%p394) target = $region20
        $region19: #{linear_attn_ffn_forward.1} parent=11 // pred_region
          %s398 = ssub.s32 32, 32
          %399 = vsyncadd [#allocation6], %s398
          %s400 = sshll.u32 [#allocation5], 4
          %s401 = int_to_ptr.vmem [resolvable:$true] %s400
          %406 = dma.hbm_to_vmem [thread:$0]  %s2, 32, %s401, [#allocation6], 16, 16, 1
        $region20: #{linear_attn_ffn_forward.1} parent=11 // pred_fallthru
          _
        // Predicated region
        $region21: #{linear_attn_ffn_forward.1} parent=11 // pred_check
          %p407 = pneg %p119
        $region22: #{linear_attn_ffn_forward.1} parent=11 // pred_check_branch
          %409 = sbr.rel (%p407) target = $region24
        $region23: #{linear_attn_ffn_forward.1} parent=11 // pred_region
          _
        $region24: #{linear_attn_ffn_forward.1} parent=11 // pred_fallthru
          _
        // Predicated region
        $region25: #{linear_attn_ffn_forward.1} parent=11 // pred_check
          %p410 = pneg %p140
        $region26: #{linear_attn_ffn_forward.1} parent=11 // pred_check_branch
          %412 = sbr.rel (%p410) target = $region28
        $region27: #{linear_attn_ffn_forward.1} parent=11 // pred_region
          _
        $region28: #{linear_attn_ffn_forward.1} parent=11 // pred_fallthru
          _
        // Predicated region
        $region29: #{linear_attn_ffn_forward.1} parent=11 // pred_check
          %p413 = pneg %p161
        $region30: #{linear_attn_ffn_forward.1} parent=11 // pred_check_branch
          %415 = sbr.rel (%p413) target = $region32
        $region31: #{linear_attn_ffn_forward.1} parent=11 // pred_region
          %s417 = ssub.s32 4096, 4096
          %418 = vsyncadd [#allocation6], %s417
          %s419 = sshll.u32 [#allocation7], 4
          %s420 = int_to_ptr.vmem [resolvable:$true] %s419
          %425 = dma.hbm_to_vmem [thread:$0]  %s5, 4096, %s420, [#allocation6], 128, 128, 8
        $region32: #{linear_attn_ffn_forward.1} parent=11 // pred_fallthru
          _
        // Predicated region
        $region33: #{linear_attn_ffn_forward.1} parent=11 // pred_check
          %p426 = pneg %p182
        $region34: #{linear_attn_ffn_forward.1} parent=11 // pred_check_branch
          %428 = sbr.rel (%p426) target = $region36
        $region35: #{linear_attn_ffn_forward.1} parent=11 // pred_region
          _
        $region36: #{linear_attn_ffn_forward.1} parent=11 // pred_fallthru
          _
        // Predicated region
        $region37: #{linear_attn_ffn_forward.1} parent=11 // pred_check
          %p429 = pneg %p203
        $region38: #{linear_attn_ffn_forward.1} parent=11 // pred_check_branch
          %431 = sbr.rel (%p429) target = $region40
        $region39: #{linear_attn_ffn_forward.1} parent=11 // pred_region
          %s433 = ssub.s32 2048, 2048
          %434 = vsyncadd [#allocation9], %s433
          %s435 = sshll.u32 [#allocation8], 4
          %s436 = int_to_ptr.vmem [resolvable:$true] %s435
          %441 = dma.hbm_to_vmem [thread:$0]  %s7, 2048, %s436, [#allocation9], 64, 64, 4
        $region40: #{linear_attn_ffn_forward.1} parent=11 // pred_fallthru
          _
        // Predicated region
        $region41: #{linear_attn_ffn_forward.1} parent=11 // pred_check
          %p442 = pneg %p224
        $region42: #{linear_attn_ffn_forward.1} parent=11 // pred_check_branch
          %444 = sbr.rel (%p442) target = $region44
        $region43: #{linear_attn_ffn_forward.1} parent=11 // pred_region
          _
        $region44: #{linear_attn_ffn_forward.1} parent=11 // pred_fallthru
          _
        // Predicated region
        $region45: #{linear_attn_ffn_forward.1} parent=11 // pred_check
          %p445 = pneg %p245
        $region46: #{linear_attn_ffn_forward.1} parent=11 // pred_check_branch
          %447 = sbr.rel (%p445) target = $region48
        $region47: #{linear_attn_ffn_forward.1} parent=11 // pred_region
          _
        $region48: #{linear_attn_ffn_forward.1} parent=11 // pred_fallthru
          _
        // Predicated region
        $region49: #{linear_attn_ffn_forward.1} parent=11 // pred_check
          %p448 = pneg %p266
        $region50: #{linear_attn_ffn_forward.1} parent=11 // pred_check_branch
          %450 = sbr.rel (%p448) target = $region52
        $region51: #{linear_attn_ffn_forward.1} parent=11 // pred_region
          %s452 = ssub.s32 32, 32
          %453 = vsyncadd [#allocation9], %s452
          %s454 = sshll.u32 [#allocation10], 4
          %s455 = int_to_ptr.vmem [resolvable:$true] %s454
          %460 = dma.hbm_to_vmem [thread:$0]  %s10, 32, %s455, [#allocation9], 16, 16, 1
        $region52: #{linear_attn_ffn_forward.1} parent=11 // pred_fallthru
          _
        // Predicated region
        $region53: #{linear_attn_ffn_forward.1} parent=11 // pred_check
          %p461 = pneg %p287
        $region54: #{linear_attn_ffn_forward.1} parent=11 // pred_check_branch
          %463 = sbr.rel (%p461) target = $region56
        $region55: #{linear_attn_ffn_forward.1} parent=11 // pred_region
          %s465 = ssub.s32 4096, 4096
          %466 = vsyncadd [#allocation12], %s465
          %s467 = sshll.u32 [#allocation11], 4
          %s468 = int_to_ptr.vmem [resolvable:$true] %s467
          %473 = dma.hbm_to_vmem [thread:$0]  %s11, 4096, %s468, [#allocation12], 128, 128, 8
        $region56: #{linear_attn_ffn_forward.1} parent=11 // pred_fallthru
          _
        // Predicated region
        $region57: #{linear_attn_ffn_forward.1} parent=11 // pred_check
          %p474 = pneg %p308
        $region58: #{linear_attn_ffn_forward.1} parent=11 // pred_check_branch
          %476 = sbr.rel (%p474) target = $region60
        $region59: #{linear_attn_ffn_forward.1} parent=11 // pred_region
          _
        $region60: #{linear_attn_ffn_forward.1} parent=11 // pred_fallthru
          _
        // Predicated region
        $region61: #{linear_attn_ffn_forward.1} parent=11 // pred_check
          %p477 = pneg %p329
        $region62: #{linear_attn_ffn_forward.1} parent=11 // pred_check_branch
          %479 = sbr.rel (%p477) target = $region64
        $region63: #{linear_attn_ffn_forward.1} parent=11 // pred_region
          %s481 = ssub.s32 4096, 4096
          %482 = vsyncadd [#allocation12], %s481
          %s483 = sshll.u32 [#allocation13], 4
          %s484 = int_to_ptr.vmem [resolvable:$true] %s483
          %489 = dma.hbm_to_vmem [thread:$0]  %s13, 4096, %s484, [#allocation12], 64, 64, 4
        $region64: #{linear_attn_ffn_forward.1} parent=11 // pred_fallthru
          _
        // Predicated region
        $region65: #{linear_attn_ffn_forward.1} parent=11 // pred_check
          %p490 = pneg %p350
        $region66: #{linear_attn_ffn_forward.1} parent=11 // pred_check_branch
          %492 = sbr.rel (%p490) target = $region68
        $region67: #{linear_attn_ffn_forward.1} parent=11 // pred_region
          _
        $region68: #{linear_attn_ffn_forward.1} parent=11 // pred_fallthru
          _
      $region12: #{linear_attn_ffn_forward.1} parent=5 // pred_fallthru
        _
      %p493 = scmp.lt.s32.totalorder %s30, 4
      // Predicated region
      $region69: #{linear_attn_ffn_forward.1} parent=5 // pred_check
        %p494 = pneg %p493
      $region70: #{linear_attn_ffn_forward.1} parent=5 // pred_check_branch
        %496 = sbr.rel (%p494) target = $region72
      $region71: #{linear_attn_ffn_forward.1} parent=5 // pred_region
        // Predicated region
        $region73: #{linear_attn_ffn_forward.1} parent=71 // pred_check
          %p497 = pneg %p50
        $region74: #{linear_attn_ffn_forward.1} parent=71 // pred_check_branch
          %499 = sbr.rel (%p497) target = $region76
        $region75: #{linear_attn_ffn_forward.1} parent=71 // pred_region
          %s500 = sand.u32 %s40, 1
          %s501 = scalar_lea.sflag [#allocation3], %s500
          %s502 = sand.u32 %s40, 1
          %s503 = smul.addr %s502, 512
          %s504 = scalar_lea.vmem [#allocation2], %s503
          %s505 = smul.u32 8, %s30
          %s507 = ssub.s32 8192, 8192
          %508 = vsyncadd %s501, %s507
          %s509 = smul.addr %s505, 8
          %s510 = smul.addr %s509, 128
          %s511 = scalar_lea.hbm %s0, %s510
          %s512 = sshll.u32 %s504, 4
          %s513 = int_to_ptr.vmem [resolvable:$true] %s512
          %518 = dma.hbm_to_vmem [thread:$0]  %s511, 8192, %s513, %s501, 128, 128, 8
        $region76: #{linear_attn_ffn_forward.1} parent=71 // pred_fallthru
          _
      $region72: #{linear_attn_ffn_forward.1} parent=5 // pred_fallthru
        _
      %p519 = scmp.le.s32.totalorder 1, %s30
      %p520 = scmp.lt.s32.totalorder %s30, 5
      %p521 = pnand %p519, %p520
      %p522 = pneg %p521
      // Predicated region
      $region77: #{linear_attn_ffn_forward.1} parent=5 // pred_check
        _
      $region78: #{linear_attn_ffn_forward.1} parent=5 // pred_check_branch
        %524 = sbr.rel (%p521) target = $region80
      $region79: #{linear_attn_ffn_forward.1} parent=5 // pred_region
        %s525 = ssub.s32 %s30, 1
        %s526 = sand.u32 %s43, 1
        %s527 = scalar_lea.sflag [#allocation3], %s526
        %s528 = sand.u32 %s43, 1
        %s529 = smul.addr %s528, 512
        %s530 = scalar_lea.vmem [#allocation2], %s529
        // Predicated region
        $region81: #{linear_attn_ffn_forward.1} parent=79 // pred_check
          %p531 = pneg %p56
        $region82: #{linear_attn_ffn_forward.1} parent=79 // pred_check_branch
          %533 = sbr.rel (%p531) target = $region84
        $region83: #{linear_attn_ffn_forward.1} parent=79 // pred_region
          %534 = dma.done %s527, 8192
        $region84: #{linear_attn_ffn_forward.1} parent=79 // pred_fallthru
          _
        // Predicated region
        $region85: #{linear_attn_ffn_forward.1} parent=79 // pred_check
          %p535 = pneg %p98
        $region86: #{linear_attn_ffn_forward.1} parent=79 // pred_check_branch
          %537 = sbr.rel (%p535) target = $region88
        $region87: #{linear_attn_ffn_forward.1} parent=79 // pred_region
          %538 = dma.done [#allocation6], 32
        $region88: #{linear_attn_ffn_forward.1} parent=79 // pred_fallthru
          _
        // Predicated region
        $region89: #{linear_attn_ffn_forward.1} parent=79 // pred_check
          %p539 = pneg %p161
        $region90: #{linear_attn_ffn_forward.1} parent=79 // pred_check_branch
          %541 = sbr.rel (%p539) target = $region92
        $region91: #{linear_attn_ffn_forward.1} parent=79 // pred_region
          %542 = dma.done [#allocation6], 4096
        $region92: #{linear_attn_ffn_forward.1} parent=79 // pred_fallthru
          _
        // Predicated region
        $region93: #{linear_attn_ffn_forward.1} parent=79 // pred_check
          %p543 = pneg %p203
        $region94: #{linear_attn_ffn_forward.1} parent=79 // pred_check_branch
          %545 = sbr.rel (%p543) target = $region96
        $region95: #{linear_attn_ffn_forward.1} parent=79 // pred_region
          %546 = dma.done [#allocation9], 2048
        $region96: #{linear_attn_ffn_forward.1} parent=79 // pred_fallthru
          _
        // Predicated region
        $region97: #{linear_attn_ffn_forward.1} parent=79 // pred_check
          %p547 = pneg %p266
        $region98: #{linear_attn_ffn_forward.1} parent=79 // pred_check_branch
          %549 = sbr.rel (%p547) target = $region100
        $region99: #{linear_attn_ffn_forward.1} parent=79 // pred_region
          %550 = dma.done [#allocation9], 32
        $region100: #{linear_attn_ffn_forward.1} parent=79 // pred_fallthru
          _
        // Predicated region
        $region101: #{linear_attn_ffn_forward.1} parent=79 // pred_check
          %p551 = pneg %p287
        $region102: #{linear_attn_ffn_forward.1} parent=79 // pred_check_branch
          %553 = sbr.rel (%p551) target = $region104
        $region103: #{linear_attn_ffn_forward.1} parent=79 // pred_region
          %554 = dma.done [#allocation12], 4096
        $region104: #{linear_attn_ffn_forward.1} parent=79 // pred_fallthru
          _
        // Predicated region
        $region105: #{linear_attn_ffn_forward.1} parent=79 // pred_check
          %p555 = pneg %p329
        $region106: #{linear_attn_ffn_forward.1} parent=79 // pred_check_branch
          %557 = sbr.rel (%p555) target = $region108
        $region107: #{linear_attn_ffn_forward.1} parent=79 // pred_region
          %558 = dma.done [#allocation12], 4096
        $region108: #{linear_attn_ffn_forward.1} parent=79 // pred_fallthru
          _
        %s559 = sand.u32 %s43, 1
        %s560 = scalar_lea.sflag [#allocation3], %s559
        %s561 = sand.u32 %s43, 1
        %s562 = smul.addr %s561, 512
        %s563 = scalar_lea.vmem [#allocation2], %s562
        %p564 = pneg %p56
        %p565 = pneg %p53
        %p566 = pneg %p77
        %p567 = pneg %p74
        %p568 = pneg %p98
        %p569 = pneg %p95
        %p570 = pneg %p119
        %p571 = pneg %p116
        %p572 = pneg %p140
        %p573 = pneg %p137
        %p574 = pneg %p161
        %p575 = pneg %p158
        %p576 = pneg %p182
        %p577 = pneg %p179
        %p578 = pneg %p203
        %p579 = pneg %p200
        %p580 = pneg %p224
        %p581 = pneg %p221
        %p582 = pneg %p245
        %p583 = pneg %p242
        %p584 = pneg %p266
        %p585 = pneg %p263
        %p586 = pneg %p287
        %p587 = pneg %p284
        %p588 = pneg %p308
        %p589 = pneg %p305
        %p590 = pneg %p329
        %p591 = pneg %p326
        %p592 = pneg %p350
        %p593 = pneg %p347
        %p594 = pneg %p376
        %p595 = pneg %p373
        %s596 = sand.u32 %s363, 1
        %s597 = scalar_lea.sflag [#allocation4], %s596
        %s598 = sand.u32 %s363, 1
        %s599 = smul.addr %s598, 512
        %s600 = scalar_lea.vmem [#allocation14], %s599
        %s601 = smul.u32 8, %s35
        %s602 = smul.u32 8, %s35
        %v604 = vld [vmem:[%s530] sm:$0xff]
        %v605 = vld [vmem:[%s530 + $0x8] sm:$0xff]
        %v606 = vld [vmem:[%s530 + $0x10] sm:$0xff]
        %v607 = vld [vmem:[%s530 + $0x18] sm:$0xff]
        %v608 = vld [vmem:[%s530 + $0x20] sm:$0xff]
        %v609 = vld [vmem:[%s530 + $0x28] sm:$0xff]
        %v610 = vld [vmem:[%s530 + $0x30] sm:$0xff]
        %v611 = vld [vmem:[%s530 + $0x38] sm:$0xff]
        %v612 = vld [vmem:[%s530 + $0x40] sm:$0xff]
        %v613 = vld [vmem:[%s530 + $0x48] sm:$0xff]
        %v614 = vld [vmem:[%s530 + $0x50] sm:$0xff]
        %v615 = vld [vmem:[%s530 + $0x58] sm:$0xff]
        %v616 = vld [vmem:[%s530 + $0x60] sm:$0xff]
        %v617 = vld [vmem:[%s530 + $0x68] sm:$0xff]
        %v618 = vld [vmem:[%s530 + $0x70] sm:$0xff]
        %v619 = vld [vmem:[%s530 + $0x78] sm:$0xff]
        %v620 = vld [vmem:[%s530 + $0x80] sm:$0xff]
        %v621 = vld [vmem:[%s530 + $0x88] sm:$0xff]
        %v622 = vld [vmem:[%s530 + $0x90] sm:$0xff]
        %v623 = vld [vmem:[%s530 + $0x98] sm:$0xff]
        %v624 = vld [vmem:[%s530 + $0xa0] sm:$0xff]
        %v625 = vld [vmem:[%s530 + $0xa8] sm:$0xff]
        %v626 = vld [vmem:[%s530 + $0xb0] sm:$0xff]
        %v627 = vld [vmem:[%s530 + $0xb8] sm:$0xff]
        %v628 = vld [vmem:[%s530 + $0xc0] sm:$0xff]
        %v629 = vld [vmem:[%s530 + $0xc8] sm:$0xff]
        %v630 = vld [vmem:[%s530 + $0xd0] sm:$0xff]
        %v631 = vld [vmem:[%s530 + $0xd8] sm:$0xff]
        %v632 = vld [vmem:[%s530 + $0xe0] sm:$0xff]
        %v633 = vld [vmem:[%s530 + $0xe8] sm:$0xff]
        %v634 = vld [vmem:[%s530 + $0xf0] sm:$0xff]
        %v635 = vld [vmem:[%s530 + $0xf8] sm:$0xff]
        %v636 = vld [vmem:[%s530 + $0x100] sm:$0xff]
        %v637 = vld [vmem:[%s530 + $0x108] sm:$0xff]
        %v638 = vld [vmem:[%s530 + $0x110] sm:$0xff]
        %v639 = vld [vmem:[%s530 + $0x118] sm:$0xff]
        %v640 = vld [vmem:[%s530 + $0x120] sm:$0xff]
        %v641 = vld [vmem:[%s530 + $0x128] sm:$0xff]
        %v642 = vld [vmem:[%s530 + $0x130] sm:$0xff]
        %v643 = vld [vmem:[%s530 + $0x138] sm:$0xff]
        %v644 = vld [vmem:[%s530 + $0x140] sm:$0xff]
        %v645 = vld [vmem:[%s530 + $0x148] sm:$0xff]
        %v646 = vld [vmem:[%s530 + $0x150] sm:$0xff]
        %v647 = vld [vmem:[%s530 + $0x158] sm:$0xff]
        %v648 = vld [vmem:[%s530 + $0x160] sm:$0xff]
        %v649 = vld [vmem:[%s530 + $0x168] sm:$0xff]
        %v650 = vld [vmem:[%s530 + $0x170] sm:$0xff]
        %v651 = vld [vmem:[%s530 + $0x178] sm:$0xff]
        %v652 = vld [vmem:[%s530 + $0x180] sm:$0xff]
        %v653 = vld [vmem:[%s530 + $0x188] sm:$0xff]
        %v654 = vld [vmem:[%s530 + $0x190] sm:$0xff]
        %v655 = vld [vmem:[%s530 + $0x198] sm:$0xff]
        %v656 = vld [vmem:[%s530 + $0x1a0] sm:$0xff]
        %v657 = vld [vmem:[%s530 + $0x1a8] sm:$0xff]
        %v658 = vld [vmem:[%s530 + $0x1b0] sm:$0xff]
        %v659 = vld [vmem:[%s530 + $0x1b8] sm:$0xff]
        %v660 = vld [vmem:[%s530 + $0x1c0] sm:$0xff]
        %v661 = vld [vmem:[%s530 + $0x1c8] sm:$0xff]
        %v662 = vld [vmem:[%s530 + $0x1d0] sm:$0xff]
        %v663 = vld [vmem:[%s530 + $0x1d8] sm:$0xff]
        %v664 = vld [vmem:[%s530 + $0x1e0] sm:$0xff]
        %v665 = vld [vmem:[%s530 + $0x1e8] sm:$0xff]
        %v666 = vld [vmem:[%s530 + $0x1f0] sm:$0xff]
        %v667 = vld [vmem:[%s530 + $0x1f8] sm:$0xff]
        %v668 = vld [vmem:[%s1] sm:$0x1]
        %v669 = vld [vmem:[#allocation5] sm:$0x1]
        %v670 = vld [vmem:[%s3] sm:$0x1]
        %v671 = vld [vmem:[%s4] sm:$0x1]
        %v672 = vld [vmem:[#allocation7] sm:$0xff]
        %v673 = vld [vmem:[#allocation7 + $0x8] sm:$0xff]
        %v674 = vld [vmem:[#allocation7 + $0x10] sm:$0xff]
        %v675 = vld [vmem:[#allocation7 + $0x18] sm:$0xff]
        %v676 = vld [vmem:[#allocation7 + $0x20] sm:$0xff]
        %v677 = vld [vmem:[#allocation7 + $0x28] sm:$0xff]
        %v678 = vld [vmem:[#allocation7 + $0x30] sm:$0xff]
        %v679 = vld [vmem:[#allocation7 + $0x38] sm:$0xff]
        %v680 = vld [vmem:[#allocation7 + $0x40] sm:$0xff]
        %v681 = vld [vmem:[#allocation7 + $0x48] sm:$0xff]
        %v682 = vld [vmem:[#allocation7 + $0x50] sm:$0xff]
        %v683 = vld [vmem:[#allocation7 + $0x58] sm:$0xff]
        %v684 = vld [vmem:[#allocation7 + $0x60] sm:$0xff]
        %v685 = vld [vmem:[#allocation7 + $0x68] sm:$0xff]
        %v686 = vld [vmem:[#allocation7 + $0x70] sm:$0xff]
        %v687 = vld [vmem:[#allocation7 + $0x78] sm:$0xff]
        %v688 = vld [vmem:[%s6] sm:$0x3]
        %v689 = vld [vmem:[#allocation8] sm:$0xf]
        %v690 = vld [vmem:[#allocation8 + $0x4] sm:$0xf]
        %v691 = vld [vmem:[#allocation8 + $0x8] sm:$0xf]
        %v692 = vld [vmem:[#allocation8 + $0xc] sm:$0xf]
        %v693 = vld [vmem:[#allocation8 + $0x10] sm:$0xf]
        %v694 = vld [vmem:[#allocation8 + $0x14] sm:$0xf]
        %v695 = vld [vmem:[#allocation8 + $0x18] sm:$0xf]
        %v696 = vld [vmem:[#allocation8 + $0x1c] sm:$0xf]
        %v697 = vld [vmem:[#allocation8 + $0x20] sm:$0xf]
        %v698 = vld [vmem:[#allocation8 + $0x24] sm:$0xf]
        %v699 = vld [vmem:[#allocation8 + $0x28] sm:$0xf]
        %v700 = vld [vmem:[#allocation8 + $0x2c] sm:$0xf]
        %v701 = vld [vmem:[#allocation8 + $0x30] sm:$0xf]
        %v702 = vld [vmem:[#allocation8 + $0x34] sm:$0xf]
        %v703 = vld [vmem:[#allocation8 + $0x38] sm:$0xf]
        %v704 = vld [vmem:[#allocation8 + $0x3c] sm:$0xf]
        %v705 = vld [vmem:[%s8] sm:$0x1]
        %v706 = vld [vmem:[%s9] sm:$0x1]
        %v707 = vld [vmem:[#allocation10] sm:$0x1]
        %v708 = vld [vmem:[#allocation11] sm:$0xff]
        %v709 = vld [vmem:[#allocation11 + $0x8] sm:$0xff]
        %v710 = vld [vmem:[#allocation11 + $0x10] sm:$0xff]
        %v711 = vld [vmem:[#allocation11 + $0x18] sm:$0xff]
        %v712 = vld [vmem:[#allocation11 + $0x20] sm:$0xff]
        %v713 = vld [vmem:[#allocation11 + $0x28] sm:$0xff]
        %v714 = vld [vmem:[#allocation11 + $0x30] sm:$0xff]
        %v715 = vld [vmem:[#allocation11 + $0x38] sm:$0xff]
        %v716 = vld [vmem:[#allocation11 + $0x40] sm:$0xff]
        %v717 = vld [vmem:[#allocation11 + $0x48] sm:$0xff]
        %v718 = vld [vmem:[#allocation11 + $0x50] sm:$0xff]
        %v719 = vld [vmem:[#allocation11 + $0x58] sm:$0xff]
        %v720 = vld [vmem:[#allocation11 + $0x60] sm:$0xff]
        %v721 = vld [vmem:[#allocation11 + $0x68] sm:$0xff]
        %v722 = vld [vmem:[#allocation11 + $0x70] sm:$0xff]
        %v723 = vld [vmem:[#allocation11 + $0x78] sm:$0xff]
        %v724 = vld [vmem:[%s12] sm:$0x3]
        %v725 = vld [vmem:[#allocation13] sm:$0xf]
        %v726 = vld [vmem:[#allocation13 + $0x4] sm:$0xf]
        %v727 = vld [vmem:[#allocation13 + $0x8] sm:$0xf]
        %v728 = vld [vmem:[#allocation13 + $0xc] sm:$0xf]
        %v729 = vld [vmem:[#allocation13 + $0x10] sm:$0xf]
        %v730 = vld [vmem:[#allocation13 + $0x14] sm:$0xf]
        %v731 = vld [vmem:[#allocation13 + $0x18] sm:$0xf]
        %v732 = vld [vmem:[#allocation13 + $0x1c] sm:$0xf]
        %v733 = vld [vmem:[#allocation13 + $0x20] sm:$0xf]
        %v734 = vld [vmem:[#allocation13 + $0x24] sm:$0xf]
        %v735 = vld [vmem:[#allocation13 + $0x28] sm:$0xf]
        %v736 = vld [vmem:[#allocation13 + $0x2c] sm:$0xf]
        %v737 = vld [vmem:[#allocation13 + $0x30] sm:$0xf]
        %v738 = vld [vmem:[#allocation13 + $0x34] sm:$0xf]
        %v739 = vld [vmem:[#allocation13 + $0x38] sm:$0xf]
        %v740 = vld [vmem:[#allocation13 + $0x3c] sm:$0xf]
        %v741 = vld [vmem:[#allocation13 + $0x40] sm:$0xf]
        %v742 = vld [vmem:[#allocation13 + $0x44] sm:$0xf]
        %v743 = vld [vmem:[#allocation13 + $0x48] sm:$0xf]
        %v744 = vld [vmem:[#allocation13 + $0x4c] sm:$0xf]
        %v745 = vld [vmem:[#allocation13 + $0x50] sm:$0xf]
        %v746 = vld [vmem:[#allocation13 + $0x54] sm:$0xf]
        %v747 = vld [vmem:[#allocation13 + $0x58] sm:$0xf]
        %v748 = vld [vmem:[#allocation13 + $0x5c] sm:$0xf]
        %v749 = vld [vmem:[#allocation13 + $0x60] sm:$0xf]
        %v750 = vld [vmem:[#allocation13 + $0x64] sm:$0xf]
        %v751 = vld [vmem:[#allocation13 + $0x68] sm:$0xf]
        %v752 = vld [vmem:[#allocation13 + $0x6c] sm:$0xf]
        %v753 = vld [vmem:[#allocation13 + $0x70] sm:$0xf]
        %v754 = vld [vmem:[#allocation13 + $0x74] sm:$0xf]
        %v755 = vld [vmem:[#allocation13 + $0x78] sm:$0xf]
        %v756 = vld [vmem:[#allocation13 + $0x7c] sm:$0xf]
        %v757 = vld [vmem:[%s14] sm:$0x1]
        %v759 = vlaneseq
        %v760 = vshrl.u32 %v759, 7
        %v761 = vsub.s32 0, %v760
        %v762 = vrot.slane %v668, %v761
        %v764 = vmul.f32 %v604, %v762
        %v765 = vmul.f32 %v605, %v762
        %v766 = vmul.f32 %v606, %v762
        %v767 = vmul.f32 %v607, %v762
        %v768 = vmul.f32 %v608, %v762
        %v769 = vmul.f32 %v609, %v762
        %v770 = vmul.f32 %v610, %v762
        %v771 = vmul.f32 %v611, %v762
        %v772 = vmul.f32 %v612, %v762
        %v773 = vmul.f32 %v613, %v762
        %v774 = vmul.f32 %v614, %v762
        %v775 = vmul.f32 %v615, %v762
        %v776 = vmul.f32 %v616, %v762
        %v777 = vmul.f32 %v617, %v762
        %v778 = vmul.f32 %v618, %v762
        %v779 = vmul.f32 %v619, %v762
        %v780 = vmul.f32 %v620, %v762
        %v781 = vmul.f32 %v621, %v762
        %v782 = vmul.f32 %v622, %v762
        %v783 = vmul.f32 %v623, %v762
        %v784 = vmul.f32 %v624, %v762
        %v785 = vmul.f32 %v625, %v762
        %v786 = vmul.f32 %v626, %v762
        %v787 = vmul.f32 %v627, %v762
        %v788 = vmul.f32 %v628, %v762
        %v789 = vmul.f32 %v629, %v762
        %v790 = vmul.f32 %v630, %v762
        %v791 = vmul.f32 %v631, %v762
        %v792 = vmul.f32 %v632, %v762
        %v793 = vmul.f32 %v633, %v762
        %v794 = vmul.f32 %v634, %v762
        %v795 = vmul.f32 %v635, %v762
        %v796 = vmul.f32 %v636, %v762
        %v797 = vmul.f32 %v637, %v762
        %v798 = vmul.f32 %v638, %v762
        %v799 = vmul.f32 %v639, %v762
        %v800 = vmul.f32 %v640, %v762
        %v801 = vmul.f32 %v641, %v762
        %v802 = vmul.f32 %v642, %v762
        %v803 = vmul.f32 %v643, %v762
        %v804 = vmul.f32 %v644, %v762
        %v805 = vmul.f32 %v645, %v762
        %v806 = vmul.f32 %v646, %v762
        %v807 = vmul.f32 %v647, %v762
        %v808 = vmul.f32 %v648, %v762
        %v809 = vmul.f32 %v649, %v762
        %v810 = vmul.f32 %v650, %v762
        %v811 = vmul.f32 %v651, %v762
        %v812 = vmul.f32 %v652, %v762
        %v813 = vmul.f32 %v653, %v762
        %v814 = vmul.f32 %v654, %v762
        %v815 = vmul.f32 %v655, %v762
        %v816 = vmul.f32 %v656, %v762
        %v817 = vmul.f32 %v657, %v762
        %v818 = vmul.f32 %v658, %v762
        %v819 = vmul.f32 %v659, %v762
        %v820 = vmul.f32 %v660, %v762
        %v821 = vmul.f32 %v661, %v762
        %v822 = vmul.f32 %v662, %v762
        %v823 = vmul.f32 %v663, %v762
        %v824 = vmul.f32 %v664, %v762
        %v825 = vmul.f32 %v665, %v762
        %v826 = vmul.f32 %v666, %v762
        %v827 = vmul.f32 %v667, %v762
        %v829 = vlaneseq
        %v830 = vshrl.u32 %v829, 7
        %v831 = vsub.s32 0, %v830
        %v832 = vrot.slane %v669, %v831
        %v834 = vadd.f32 %v764, %v832
        %v835 = vadd.f32 %v765, %v832
        %v836 = vadd.f32 %v766, %v832
        %v837 = vadd.f32 %v767, %v832
        %v838 = vadd.f32 %v768, %v832
        %v839 = vadd.f32 %v769, %v832
        %v840 = vadd.f32 %v770, %v832
        %v841 = vadd.f32 %v771, %v832
        %v842 = vadd.f32 %v772, %v832
        %v843 = vadd.f32 %v773, %v832
        %v844 = vadd.f32 %v774, %v832
        %v845 = vadd.f32 %v775, %v832
        %v846 = vadd.f32 %v776, %v832
        %v847 = vadd.f32 %v777, %v832
        %v848 = vadd.f32 %v778, %v832
        %v849 = vadd.f32 %v779, %v832
        %v850 = vadd.f32 %v780, %v832
        %v851 = vadd.f32 %v781, %v832
        %v852 = vadd.f32 %v782, %v832
        %v853 = vadd.f32 %v783, %v832
        %v854 = vadd.f32 %v784, %v832
        %v855 = vadd.f32 %v785, %v832
        %v856 = vadd.f32 %v786, %v832
        %v857 = vadd.f32 %v787, %v832
        %v858 = vadd.f32 %v788, %v832
        %v859 = vadd.f32 %v789, %v832
        %v860 = vadd.f32 %v790, %v832
        %v861 = vadd.f32 %v791, %v832
        %v862 = vadd.f32 %v792, %v832
        %v863 = vadd.f32 %v793, %v832
        %v864 = vadd.f32 %v794, %v832
        %v865 = vadd.f32 %v795, %v832
        %v866 = vadd.f32 %v796, %v832
        %v867 = vadd.f32 %v797, %v832
        %v868 = vadd.f32 %v798, %v832
        %v869 = vadd.f32 %v799, %v832
        %v870 = vadd.f32 %v800, %v832
        %v871 = vadd.f32 %v801, %v832
        %v872 = vadd.f32 %v802, %v832
        %v873 = vadd.f32 %v803, %v832
        %v874 = vadd.f32 %v804, %v832
        %v875 = vadd.f32 %v805, %v832
        %v876 = vadd.f32 %v806, %v832
        %v877 = vadd.f32 %v807, %v832
        %v878 = vadd.f32 %v808, %v832
        %v879 = vadd.f32 %v809, %v832
        %v880 = vadd.f32 %v810, %v832
        %v881 = vadd.f32 %v811, %v832
        %v882 = vadd.f32 %v812, %v832
        %v883 = vadd.f32 %v813, %v832
        %v884 = vadd.f32 %v814, %v832
        %v885 = vadd.f32 %v815, %v832
        %v886 = vadd.f32 %v816, %v832
        %v887 = vadd.f32 %v817, %v832
        %v888 = vadd.f32 %v818, %v832
        %v889 = vadd.f32 %v819, %v832
        %v890 = vadd.f32 %v820, %v832
        %v891 = vadd.f32 %v821, %v832
        %v892 = vadd.f32 %v822, %v832
        %v893 = vadd.f32 %v823, %v832
        %v894 = vadd.f32 %v824, %v832
        %v895 = vadd.f32 %v825, %v832
        %v896 = vadd.f32 %v826, %v832
        %v897 = vadd.f32 %v827, %v832
        %v898 = vpack.c.bf16 %v835, %v834
        %v899 = vpack.c.bf16 %v837, %v836
        %v900 = vpack.c.bf16 %v839, %v838
        %v901 = vpack.c.bf16 %v841, %v840
        %v902 = vpack.c.bf16 %v843, %v842
        %v903 = vpack.c.bf16 %v845, %v844
        %v904 = vpack.c.bf16 %v847, %v846
        %v905 = vpack.c.bf16 %v849, %v848
        %v906 = vpack.c.bf16 %v851, %v850
        %v907 = vpack.c.bf16 %v853, %v852
        %v908 = vpack.c.bf16 %v855, %v854
        %v909 = vpack.c.bf16 %v857, %v856
        %v910 = vpack.c.bf16 %v859, %v858
        %v911 = vpack.c.bf16 %v861, %v860
        %v912 = vpack.c.bf16 %v863, %v862
        %v913 = vpack.c.bf16 %v865, %v864
        %v914 = vpack.c.bf16 %v867, %v866
        %v915 = vpack.c.bf16 %v869, %v868
        %v916 = vpack.c.bf16 %v871, %v870
        %v917 = vpack.c.bf16 %v873, %v872
        %v918 = vpack.c.bf16 %v875, %v874
        %v919 = vpack.c.bf16 %v877, %v876
        %v920 = vpack.c.bf16 %v879, %v878
        %v921 = vpack.c.bf16 %v881, %v880
        %v922 = vpack.c.bf16 %v883, %v882
        %v923 = vpack.c.bf16 %v885, %v884
        %v924 = vpack.c.bf16 %v887, %v886
        %v925 = vpack.c.bf16 %v889, %v888
        %v926 = vpack.c.bf16 %v891, %v890
        %v927 = vpack.c.bf16 %v893, %v892
        %v928 = vpack.c.bf16 %v895, %v894
        %v929 = vpack.c.bf16 %v897, %v896
        %v931 = vlaneseq
        %v932 = vshrl.u32 %v931, 7
        %v933 = vsub.s32 0, %v932
        %v934 = vrot.slane %v688, %v933
        %v935 = vlaneseq
        %v936 = vshrl.u32 %v935, 7
        %v937 = vsub.s32 1, %v936
        %v938 = vrot.slane %v688, %v937
        %v957 = vunpack.c.l.b16 %v672
        %v958 = vunpack.c.h.b16 %v672
        %v959 = vunpack.c.l.b16 %v673
        %v960 = vunpack.c.h.b16 %v673
        %v961 = vunpack.c.l.b16 %v674
        %v962 = vunpack.c.h.b16 %v674
        %v963 = vunpack.c.l.b16 %v675
        %v964 = vunpack.c.h.b16 %v675
        %v965 = vunpack.c.l.b16 %v676
        %v966 = vunpack.c.h.b16 %v676
        %v967 = vunpack.c.l.b16 %v677
        %v968 = vunpack.c.h.b16 %v677
        %v969 = vunpack.c.l.b16 %v678
        %v970 = vunpack.c.h.b16 %v678
        %v971 = vunpack.c.l.b16 %v679
        %v972 = vunpack.c.h.b16 %v679
        %v973 = vunpack.c.l.b16 %v680
        %v974 = vunpack.c.h.b16 %v680
        %v975 = vunpack.c.l.b16 %v681
        %v976 = vunpack.c.h.b16 %v681
        %v977 = vunpack.c.l.b16 %v682
        %v978 = vunpack.c.h.b16 %v682
        %v979 = vunpack.c.l.b16 %v683
        %v980 = vunpack.c.h.b16 %v683
        %v981 = vunpack.c.l.b16 %v684
        %v982 = vunpack.c.h.b16 %v684
        %v983 = vunpack.c.l.b16 %v685
        %v984 = vunpack.c.h.b16 %v685
        %v985 = vunpack.c.l.b16 %v686
        %v986 = vunpack.c.h.b16 %v686
        %v987 = vunpack.c.l.b16 %v687
        %v988 = vunpack.c.h.b16 %v687
        %v989 = vpack.c.b16 %v959, %v957
        %v990 = vpack.c.b16 %v960, %v958
        %v991 = vpack.c.b16 %v963, %v961
        %v992 = vpack.c.b16 %v964, %v962
        %v993 = vpack.c.b16 %v967, %v965
        %v994 = vpack.c.b16 %v968, %v966
        %v995 = vpack.c.b16 %v971, %v969
        %v996 = vpack.c.b16 %v972, %v970
        %v997 = vpack.c.b16 %v975, %v973
        %v998 = vpack.c.b16 %v976, %v974
        %v999 = vpack.c.b16 %v979, %v977
        %v1000 = vpack.c.b16 %v980, %v978
        %v1001 = vpack.c.b16 %v983, %v981
        %v1002 = vpack.c.b16 %v984, %v982
        %v1003 = vpack.c.b16 %v987, %v985
        %v1004 = vpack.c.b16 %v988, %v986
        %1021 = vmatprep.subr.bf16.mxu0 %v990
        %1022 = vmatpush1.bf16.msra.mxu0 %v989
        %1023 = vmatprep.subr.bf16.mxu0 %v992
        %1024 = vmatpush1.bf16.msra.mxu0 %v991
        %1025 = vmatprep.subr.bf16.mxu0 %v994
        %1026 = vmatpush1.bf16.msra.mxu0 %v993
        %1027 = vmatprep.subr.bf16.mxu0 %v996
        %1028 = vmatpush1.bf16.msra.mxu0 %v995
        %1029 = vmatprep.subr.bf16.mxu0 %v998
        %1030 = vmatpush1.bf16.msra.mxu0 %v997
        %1031 = vmatprep.subr.bf16.mxu0 %v1000
        %1032 = vmatpush1.bf16.msra.mxu0 %v999
        %1033 = vmatprep.subr.bf16.mxu0 %v1002
        %1034 = vmatpush1.bf16.msra.mxu0 %v1001
        %1035 = vmatprep.subr.bf16.mxu0 %v1004
        %1036 = vmatpush1.bf16.msra.mxu0 %v1003
        %1037 = vmatprep.subr.bf16.mxu0 0
        %1038 = vmatpush1.bf16.msra.mxu0 0
        %1039 = vmatprep.subr.bf16.mxu0 0
        %1040 = vmatpush1.bf16.msra.mxu0 0
        %1041 = vmatprep.subr.bf16.mxu0 0
        %1042 = vmatpush1.bf16.msra.mxu0 0
        %1043 = vmatprep.subr.bf16.mxu0 0
        %1044 = vmatpush1.bf16.msra.mxu0 0
        %1045 = vmatprep.subr.bf16.mxu0 0
        %1046 = vmatpush1.bf16.msra.mxu0 0
        %1047 = vmatprep.subr.bf16.mxu0 0
        %1048 = vmatpush1.bf16.msra.mxu0 0
        %1049 = vmatprep.subr.bf16.mxu0 0
        %1050 = vmatpush1.bf16.msra.mxu0 0
        %1051 = vmatprep.subr.bf16.mxu0 0
        %1052 = vmatpush1.bf16.msra.mxu0 0
        %1053 = vmatprep.mubr.bf16.mxu0 0
        %1054 = vmatmul.mubr.bf16.gmra.mrb[0].mxu0 %v898
        %v1055 = vpop.f32.mrb[0].mxu0
        %v1056 = vadd.f32 %v934, %v1055
        %v1057 = vpop.f32.mrb[0].mxu0
        %v1058 = vadd.f32 %v938, %v1057
        %v1059 = vpop.f32.mrb[0].mxu0
        %v1060 = vadd.f32 %v934, %v1059
        %v1061 = vpop.f32.mrb[0].mxu0
        %v1062 = vadd.f32 %v938, %v1061
        %1063 = vmatprep.mubr.bf16.mxu0 0
        %1064 = vmatmul.mubr.bf16.gmra.mrb[0].mxu0 %v899
        %v1065 = vpop.f32.mrb[0].mxu0
        %v1066 = vadd.f32 %v934, %v1065
        %v1067 = vpop.f32.mrb[0].mxu0
        %v1068 = vadd.f32 %v938, %v1067
        %v1069 = vpop.f32.mrb[0].mxu0
        %v1070 = vadd.f32 %v934, %v1069
        %v1071 = vpop.f32.mrb[0].mxu0
        %v1072 = vadd.f32 %v938, %v1071
        %1073 = vmatprep.mubr.bf16.mxu0 0
        %1074 = vmatmul.mubr.bf16.gmra.mrb[0].mxu0 %v900
        %v1075 = vpop.f32.mrb[0].mxu0
        %v1076 = vadd.f32 %v934, %v1075
        %v1077 = vpop.f32.mrb[0].mxu0
        %v1078 = vadd.f32 %v938, %v1077
        %v1079 = vpop.f32.mrb[0].mxu0
        %v1080 = vadd.f32 %v934, %v1079
        %v1081 = vpop.f32.mrb[0].mxu0
        %v1082 = vadd.f32 %v938, %v1081
        %1083 = vmatprep.mubr.bf16.mxu0 0
        %1084 = vmatmul.mubr.bf16.gmra.mrb[0].mxu0 %v901
        %v1085 = vpop.f32.mrb[0].mxu0
        %v1086 = vadd.f32 %v934, %v1085
        %v1087 = vpop.f32.mrb[0].mxu0
        %v1088 = vadd.f32 %v938, %v1087
        %v1089 = vpop.f32.mrb[0].mxu0
        %v1090 = vadd.f32 %v934, %v1089
        %v1091 = vpop.f32.mrb[0].mxu0
        %v1092 = vadd.f32 %v938, %v1091
        %1093 = vmatprep.mubr.bf16.mxu0 0
        %1094 = vmatmul.mubr.bf16.gmra.mrb[0].mxu0 %v902
        %v1095 = vpop.f32.mrb[0].mxu0
        %v1096 = vadd.f32 %v934, %v1095
        %v1097 = vpop.f32.mrb[0].mxu0
        %v1098 = vadd.f32 %v938, %v1097
        %v1099 = vpop.f32.mrb[0].mxu0
        %v1100 = vadd.f32 %v934, %v1099
        %v1101 = vpop.f32.mrb[0].mxu0
        %v1102 = vadd.f32 %v938, %v1101
        %1103 = vmatprep.mubr.bf16.mxu0 0
        %1104 = vmatmul.mubr.bf16.gmra.mrb[0].mxu0 %v903
        %v1105 = vpop.f32.mrb[0].mxu0
        %v1106 = vadd.f32 %v934, %v1105
        %v1107 = vpop.f32.mrb[0].mxu0
        %v1108 = vadd.f32 %v938, %v1107
        %v1109 = vpop.f32.mrb[0].mxu0
        %v1110 = vadd.f32 %v934, %v1109
        %v1111 = vpop.f32.mrb[0].mxu0
        %v1112 = vadd.f32 %v938, %v1111
        %1113 = vmatprep.mubr.bf16.mxu0 0
        %1114 = vmatmul.mubr.bf16.gmra.mrb[0].mxu0 %v904
        %v1115 = vpop.f32.mrb[0].mxu0
        %v1116 = vadd.f32 %v934, %v1115
        %v1117 = vpop.f32.mrb[0].mxu0
        %v1118 = vadd.f32 %v938, %v1117
        %v1119 = vpop.f32.mrb[0].mxu0
        %v1120 = vadd.f32 %v934, %v1119
        %v1121 = vpop.f32.mrb[0].mxu0
        %v1122 = vadd.f32 %v938, %v1121
        %1123 = vmatprep.mubr.bf16.mxu0 0
        %1124 = vmatmul.mubr.bf16.gmra.mrb[0].mxu0 %v905
        %v1125 = vpop.f32.mrb[0].mxu0
        %v1126 = vadd.f32 %v934, %v1125
        %v1127 = vpop.f32.mrb[0].mxu0
        %v1128 = vadd.f32 %v938, %v1127
        %v1129 = vpop.f32.mrb[0].mxu0
        %v1130 = vadd.f32 %v934, %v1129
        %v1131 = vpop.f32.mrb[0].mxu0
        %v1132 = vadd.f32 %v938, %v1131
        %1133 = vmatprep.mubr.bf16.mxu0 0
        %1134 = vmatmul.mubr.bf16.gmra.mrb[0].mxu0 %v906
        %v1135 = vpop.f32.mrb[0].mxu0
        %v1136 = vadd.f32 %v934, %v1135
        %v1137 = vpop.f32.mrb[0].mxu0
        %v1138 = vadd.f32 %v938, %v1137
        %v1139 = vpop.f32.mrb[0].mxu0
        %v1140 = vadd.f32 %v934, %v1139
        %v1141 = vpop.f32.mrb[0].mxu0
        %v1142 = vadd.f32 %v938, %v1141
        %1143 = vmatprep.mubr.bf16.mxu0 0
        %1144 = vmatmul.mubr.bf16.gmra.mrb[0].mxu0 %v907
        %v1145 = vpop.f32.mrb[0].mxu0
        %v1146 = vadd.f32 %v934, %v1145
        %v1147 = vpop.f32.mrb[0].mxu0
        %v1148 = vadd.f32 %v938, %v1147
        %v1149 = vpop.f32.mrb[0].mxu0
        %v1150 = vadd.f32 %v934, %v1149
        %v1151 = vpop.f32.mrb[0].mxu0
        %v1152 = vadd.f32 %v938, %v1151
        %1153 = vmatprep.mubr.bf16.mxu0 0
        %1154 = vmatmul.mubr.bf16.gmra.mrb[0].mxu0 %v908
        %v1155 = vpop.f32.mrb[0].mxu0
        %v1156 = vadd.f32 %v934, %v1155
        %v1157 = vpop.f32.mrb[0].mxu0
        %v1158 = vadd.f32 %v938, %v1157
        %v1159 = vpop.f32.mrb[0].mxu0
        %v1160 = vadd.f32 %v934, %v1159
        %v1161 = vpop.f32.mrb[0].mxu0
        %v1162 = vadd.f32 %v938, %v1161
        %1163 = vmatprep.mubr.bf16.mxu0 0
        %1164 = vmatmul.mubr.bf16.gmra.mrb[0].mxu0 %v909
        %v1165 = vpop.f32.mrb[0].mxu0
        %v1166 = vadd.f32 %v934, %v1165
        %v1167 = vpop.f32.mrb[0].mxu0
        %v1168 = vadd.f32 %v938, %v1167
        %v1169 = vpop.f32.mrb[0].mxu0
        %v1170 = vadd.f32 %v934, %v1169
        %v1171 = vpop.f32.mrb[0].mxu0
        %v1172 = vadd.f32 %v938, %v1171
        %1173 = vmatprep.mubr.bf16.mxu0 0
        %1174 = vmatmul.mubr.bf16.gmra.mrb[0].mxu0 %v910
        %v1175 = vpop.f32.mrb[0].mxu0
        %v1176 = vadd.f32 %v934, %v1175
        %v1177 = vpop.f32.mrb[0].mxu0
        %v1178 = vadd.f32 %v938, %v1177
        %v1179 = vpop.f32.mrb[0].mxu0
        %v1180 = vadd.f32 %v934, %v1179
        %v1181 = vpop.f32.mrb[0].mxu0
        %v1182 = vadd.f32 %v938, %v1181
        %1183 = vmatprep.mubr.bf16.mxu0 0
        %1184 = vmatmul.mubr.bf16.gmra.mrb[0].mxu0 %v911
        %v1185 = vpop.f32.mrb[0].mxu0
        %v1186 = vadd.f32 %v934, %v1185
        %v1187 = vpop.f32.mrb[0].mxu0
        %v1188 = vadd.f32 %v938, %v1187
        %v1189 = vpop.f32.mrb[0].mxu0
        %v1190 = vadd.f32 %v934, %v1189
        %v1191 = vpop.f32.mrb[0].mxu0
        %v1192 = vadd.f32 %v938, %v1191
        %1193 = vmatprep.mubr.bf16.mxu0 0
        %1194 = vmatmul.mubr.bf16.gmra.mrb[0].mxu0 %v912
        %v1195 = vpop.f32.mrb[0].mxu0
        %v1196 = vadd.f32 %v934, %v1195
        %v1197 = vpop.f32.mrb[0].mxu0
        %v1198 = vadd.f32 %v938, %v1197
        %v1199 = vpop.f32.mrb[0].mxu0
        %v1200 = vadd.f32 %v934, %v1199
        %v1201 = vpop.f32.mrb[0].mxu0
        %v1202 = vadd.f32 %v938, %v1201
        %1203 = vmatprep.mubr.bf16.mxu0 0
        %1204 = vmatmul.mubr.bf16.gmra.mrb[0].mxu0 %v913
        %v1205 = vpop.f32.mrb[0].mxu0
        %v1206 = vadd.f32 %v934, %v1205
        %v1207 = vpop.f32.mrb[0].mxu0
        %v1208 = vadd.f32 %v938, %v1207
        %v1209 = vpop.f32.mrb[0].mxu0
        %v1210 = vadd.f32 %v934, %v1209
        %v1211 = vpop.f32.mrb[0].mxu0
        %v1212 = vadd.f32 %v938, %v1211
        %1213 = vmatprep.mubr.bf16.mxu0 0
        %1214 = vmatmul.mubr.bf16.gmra.mrb[0].mxu0 %v914
        %v1215 = vpop.f32.mrb[0].mxu0
        %v1216 = vadd.f32 %v934, %v1215
        %v1217 = vpop.f32.mrb[0].mxu0
        %v1218 = vadd.f32 %v938, %v1217
        %v1219 = vpop.f32.mrb[0].mxu0
        %v1220 = vadd.f32 %v934, %v1219
        %v1221 = vpop.f32.mrb[0].mxu0
        %v1222 = vadd.f32 %v938, %v1221
        %1223 = vmatprep.mubr.bf16.mxu0 0
        %1224 = vmatmul.mubr.bf16.gmra.mrb[0].mxu0 %v915
        %v1225 = vpop.f32.mrb[0].mxu0
        %v1226 = vadd.f32 %v934, %v1225
        %v1227 = vpop.f32.mrb[0].mxu0
        %v1228 = vadd.f32 %v938, %v1227
        %v1229 = vpop.f32.mrb[0].mxu0
        %v1230 = vadd.f32 %v934, %v1229
        %v1231 = vpop.f32.mrb[0].mxu0
        %v1232 = vadd.f32 %v938, %v1231
        %1233 = vmatprep.mubr.bf16.mxu0 0
        %1234 = vmatmul.mubr.bf16.gmra.mrb[0].mxu0 %v916
        %v1235 = vpop.f32.mrb[0].mxu0
        %v1236 = vadd.f32 %v934, %v1235
        %v1237 = vpop.f32.mrb[0].mxu0
        %v1238 = vadd.f32 %v938, %v1237
        %v1239 = vpop.f32.mrb[0].mxu0
        %v1240 = vadd.f32 %v934, %v1239
        %v1241 = vpop.f32.mrb[0].mxu0
        %v1242 = vadd.f32 %v938, %v1241
        %1243 = vmatprep.mubr.bf16.mxu0 0
        %1244 = vmatmul.mubr.bf16.gmra.mrb[0].mxu0 %v917
        %v1245 = vpop.f32.mrb[0].mxu0
        %v1246 = vadd.f32 %v934, %v1245
        %v1247 = vpop.f32.mrb[0].mxu0
        %v1248 = vadd.f32 %v938, %v1247
        %v1249 = vpop.f32.mrb[0].mxu0
        %v1250 = vadd.f32 %v934, %v1249
        %v1251 = vpop.f32.mrb[0].mxu0
        %v1252 = vadd.f32 %v938, %v1251
        %1253 = vmatprep.mubr.bf16.mxu0 0
        %1254 = vmatmul.mubr.bf16.gmra.mrb[0].mxu0 %v918
        %v1255 = vpop.f32.mrb[0].mxu0
        %v1256 = vadd.f32 %v934, %v1255
        %v1257 = vpop.f32.mrb[0].mxu0
        %v1258 = vadd.f32 %v938, %v1257
        %v1259 = vpop.f32.mrb[0].mxu0
        %v1260 = vadd.f32 %v934, %v1259
        %v1261 = vpop.f32.mrb[0].mxu0
        %v1262 = vadd.f32 %v938, %v1261
        %1263 = vmatprep.mubr.bf16.mxu0 0
        %1264 = vmatmul.mubr.bf16.gmra.mrb[0].mxu0 %v919
        %v1265 = vpop.f32.mrb[0].mxu0
        %v1266 = vadd.f32 %v934, %v1265
        %v1267 = vpop.f32.mrb[0].mxu0
        %v1268 = vadd.f32 %v938, %v1267
        %v1269 = vpop.f32.mrb[0].mxu0
        %v1270 = vadd.f32 %v934, %v1269
        %v1271 = vpop.f32.mrb[0].mxu0
        %v1272 = vadd.f32 %v938, %v1271
        %1273 = vmatprep.mubr.bf16.mxu0 0
        %1274 = vmatmul.mubr.bf16.gmra.mrb[0].mxu0 %v920
        %v1275 = vpop.f32.mrb[0].mxu0
        %v1276 = vadd.f32 %v934, %v1275
        %v1277 = vpop.f32.mrb[0].mxu0
        %v1278 = vadd.f32 %v938, %v1277
        %v1279 = vpop.f32.mrb[0].mxu0
        %v1280 = vadd.f32 %v934, %v1279
        %v1281 = vpop.f32.mrb[0].mxu0
        %v1282 = vadd.f32 %v938, %v1281
        %1283 = vmatprep.mubr.bf16.mxu0 0
        %1284 = vmatmul.mubr.bf16.gmra.mrb[0].mxu0 %v921
        %v1285 = vpop.f32.mrb[0].mxu0
        %v1286 = vadd.f32 %v934, %v1285
        %v1287 = vpop.f32.mrb[0].mxu0
        %v1288 = vadd.f32 %v938, %v1287
        %v1289 = vpop.f32.mrb[0].mxu0
        %v1290 = vadd.f32 %v934, %v1289
        %v1291 = vpop.f32.mrb[0].mxu0
        %v1292 = vadd.f32 %v938, %v1291
        %1293 = vmatprep.mubr.bf16.mxu0 0
        %1294 = vmatmul.mubr.bf16.gmra.mrb[0].mxu0 %v922
        %v1295 = vpop.f32.mrb[0].mxu0
        %v1296 = vadd.f32 %v934, %v1295
        %v1297 = vpop.f32.mrb[0].mxu0
        %v1298 = vadd.f32 %v938, %v1297
        %v1299 = vpop.f32.mrb[0].mxu0
        %v1300 = vadd.f32 %v934, %v1299
        %v1301 = vpop.f32.mrb[0].mxu0
        %v1302 = vadd.f32 %v938, %v1301
        %1303 = vmatprep.mubr.bf16.mxu0 0
        %1304 = vmatmul.mubr.bf16.gmra.mrb[0].mxu0 %v923
        %v1305 = vpop.f32.mrb[0].mxu0
        %v1306 = vadd.f32 %v934, %v1305
        %v1307 = vpop.f32.mrb[0].mxu0
        %v1308 = vadd.f32 %v938, %v1307
        %v1309 = vpop.f32.mrb[0].mxu0
        %v1310 = vadd.f32 %v934, %v1309
        %v1311 = vpop.f32.mrb[0].mxu0
        %v1312 = vadd.f32 %v938, %v1311
        %1313 = vmatprep.mubr.bf16.mxu0 0
        %1314 = vmatmul.mubr.bf16.gmra.mrb[0].mxu0 %v924
        %v1315 = vpop.f32.mrb[0].mxu0
        %v1316 = vadd.f32 %v934, %v1315
        %v1317 = vpop.f32.mrb[0].mxu0
        %v1318 = vadd.f32 %v938, %v1317
        %v1319 = vpop.f32.mrb[0].mxu0
        %v1320 = vadd.f32 %v934, %v1319
        %v1321 = vpop.f32.mrb[0].mxu0
        %v1322 = vadd.f32 %v938, %v1321
        %1323 = vmatprep.mubr.bf16.mxu0 0
        %1324 = vmatmul.mubr.bf16.gmra.mrb[0].mxu0 %v925
        %v1325 = vpop.f32.mrb[0].mxu0
        %v1326 = vadd.f32 %v934, %v1325
        %v1327 = vpop.f32.mrb[0].mxu0
        %v1328 = vadd.f32 %v938, %v1327
        %v1329 = vpop.f32.mrb[0].mxu0
        %v1330 = vadd.f32 %v934, %v1329
        %v1331 = vpop.f32.mrb[0].mxu0
        %v1332 = vadd.f32 %v938, %v1331
        %1333 = vmatprep.mubr.bf16.mxu0 0
        %1334 = vmatmul.mubr.bf16.gmra.mrb[0].mxu0 %v926
        %v1335 = vpop.f32.mrb[0].mxu0
        %v1336 = vadd.f32 %v934, %v1335
        %v1337 = vpop.f32.mrb[0].mxu0
        %v1338 = vadd.f32 %v938, %v1337
        %v1339 = vpop.f32.mrb[0].mxu0
        %v1340 = vadd.f32 %v934, %v1339
        %v1341 = vpop.f32.mrb[0].mxu0
        %v1342 = vadd.f32 %v938, %v1341
        %1343 = vmatprep.mubr.bf16.mxu0 0
        %1344 = vmatmul.mubr.bf16.gmra.mrb[0].mxu0 %v927
        %v1345 = vpop.f32.mrb[0].mxu0
        %v1346 = vadd.f32 %v934, %v1345
        %v1347 = vpop.f32.mrb[0].mxu0
        %v1348 = vadd.f32 %v938, %v1347
        %v1349 = vpop.f32.mrb[0].mxu0
        %v1350 = vadd.f32 %v934, %v1349
        %v1351 = vpop.f32.mrb[0].mxu0
        %v1352 = vadd.f32 %v938, %v1351
        %1353 = vmatprep.mubr.bf16.mxu0 0
        %1354 = vmatmul.mubr.bf16.gmra.mrb[0].mxu0 %v928
        %v1355 = vpop.f32.mrb[0].mxu0
        %v1356 = vadd.f32 %v934, %v1355
        %v1357 = vpop.f32.mrb[0].mxu0
        %v1358 = vadd.f32 %v938, %v1357
        %v1359 = vpop.f32.mrb[0].mxu0
        %v1360 = vadd.f32 %v934, %v1359
        %v1361 = vpop.f32.mrb[0].mxu0
        %v1362 = vadd.f32 %v938, %v1361
        %1363 = vmatprep.mubr.bf16.mxu0 0
        %1364 = vmatmul.mubr.bf16.gmra.mrb[0].mxu0 %v929
        %v1365 = vpop.f32.mrb[0].mxu0
        %v1366 = vadd.f32 %v934, %v1365
        %v1367 = vpop.f32.mrb[0].mxu0
        %v1368 = vadd.f32 %v938, %v1367
        %v1369 = vpop.f32.mrb[0].mxu0
        %v1370 = vadd.f32 %v934, %v1369
        %v1371 = vpop.f32.mrb[0].mxu0
        %v1372 = vadd.f32 %v938, %v1371
        %1373 = vdwg.mxu0
        %v1375 = vlaneseq
        %v1376 = vshrl.u32 %v1375, 7
        %v1377 = vsub.s32 0, %v1376
        %v1378 = vrot.slane %v670, %v1377
        %v1380 = vmul.f32 %v834, %v1378
        %v1381 = vmul.f32 %v835, %v1378
        %v1382 = vmul.f32 %v836, %v1378
        %v1383 = vmul.f32 %v837, %v1378
        %v1384 = vmul.f32 %v838, %v1378
        %v1385 = vmul.f32 %v839, %v1378
        %v1386 = vmul.f32 %v840, %v1378
        %v1387 = vmul.f32 %v841, %v1378
        %v1388 = vmul.f32 %v842, %v1378
        %v1389 = vmul.f32 %v843, %v1378
        %v1390 = vmul.f32 %v844, %v1378
        %v1391 = vmul.f32 %v845, %v1378
        %v1392 = vmul.f32 %v846, %v1378
        %v1393 = vmul.f32 %v847, %v1378
        %v1394 = vmul.f32 %v848, %v1378
        %v1395 = vmul.f32 %v849, %v1378
        %v1396 = vmul.f32 %v850, %v1378
        %v1397 = vmul.f32 %v851, %v1378
        %v1398 = vmul.f32 %v852, %v1378
        %v1399 = vmul.f32 %v853, %v1378
        %v1400 = vmul.f32 %v854, %v1378
        %v1401 = vmul.f32 %v855, %v1378
        %v1402 = vmul.f32 %v856, %v1378
        %v1403 = vmul.f32 %v857, %v1378
        %v1404 = vmul.f32 %v858, %v1378
        %v1405 = vmul.f32 %v859, %v1378
        %v1406 = vmul.f32 %v860, %v1378
        %v1407 = vmul.f32 %v861, %v1378
        %v1408 = vmul.f32 %v862, %v1378
        %v1409 = vmul.f32 %v863, %v1378
        %v1410 = vmul.f32 %v864, %v1378
        %v1411 = vmul.f32 %v865, %v1378
        %v1412 = vmul.f32 %v866, %v1378
        %v1413 = vmul.f32 %v867, %v1378
        %v1414 = vmul.f32 %v868, %v1378
        %v1415 = vmul.f32 %v869, %v1378
        %v1416 = vmul.f32 %v870, %v1378
        %v1417 = vmul.f32 %v871, %v1378
        %v1418 = vmul.f32 %v872, %v1378
        %v1419 = vmul.f32 %v873, %v1378
        %v1420 = vmul.f32 %v874, %v1378
        %v1421 = vmul.f32 %v875, %v1378
        %v1422 = vmul.f32 %v876, %v1378
        %v1423 = vmul.f32 %v877, %v1378
        %v1424 = vmul.f32 %v878, %v1378
        %v1425 = vmul.f32 %v879, %v1378
        %v1426 = vmul.f32 %v880, %v1378
        %v1427 = vmul.f32 %v881, %v1378
        %v1428 = vmul.f32 %v882, %v1378
        %v1429 = vmul.f32 %v883, %v1378
        %v1430 = vmul.f32 %v884, %v1378
        %v1431 = vmul.f32 %v885, %v1378
        %v1432 = vmul.f32 %v886, %v1378
        %v1433 = vmul.f32 %v887, %v1378
        %v1434 = vmul.f32 %v888, %v1378
        %v1435 = vmul.f32 %v889, %v1378
        %v1436 = vmul.f32 %v890, %v1378
        %v1437 = vmul.f32 %v891, %v1378
        %v1438 = vmul.f32 %v892, %v1378
        %v1439 = vmul.f32 %v893, %v1378
        %v1440 = vmul.f32 %v894, %v1378
        %v1441 = vmul.f32 %v895, %v1378
        %v1442 = vmul.f32 %v896, %v1378
        %v1443 = vmul.f32 %v897, %v1378
        %1444 = vadd.xlane.f32.xlu0 %v1380
        %v1445 = vpop.xlane.xlu0 %1444
        %1446 = vadd.xlane.f32.xlu0 %v1381
        %v1447 = vpop.xlane.xlu0 %1446
        %1448 = vadd.xlane.f32.xlu0 %v1382
        %v1449 = vpop.xlane.xlu0 %1448
        %1450 = vadd.xlane.f32.xlu0 %v1383
        %v1451 = vpop.xlane.xlu0 %1450
        %1452 = vadd.xlane.f32.xlu0 %v1384
        %v1453 = vpop.xlane.xlu0 %1452
        %1454 = vadd.xlane.f32.xlu0 %v1385
        %v1455 = vpop.xlane.xlu0 %1454
        %1456 = vadd.xlane.f32.xlu0 %v1386
        %v1457 = vpop.xlane.xlu0 %1456
        %1458 = vadd.xlane.f32.xlu0 %v1387
        %v1459 = vpop.xlane.xlu0 %1458
        %1460 = vadd.xlane.f32.xlu0 %v1388
        %v1461 = vpop.xlane.xlu0 %1460
        %1462 = vadd.xlane.f32.xlu0 %v1389
        %v1463 = vpop.xlane.xlu0 %1462
        %1464 = vadd.xlane.f32.xlu0 %v1390
        %v1465 = vpop.xlane.xlu0 %1464
        %1466 = vadd.xlane.f32.xlu0 %v1391
        %v1467 = vpop.xlane.xlu0 %1466
        %1468 = vadd.xlane.f32.xlu0 %v1392
        %v1469 = vpop.xlane.xlu0 %1468
        %1470 = vadd.xlane.f32.xlu0 %v1393
        %v1471 = vpop.xlane.xlu0 %1470
        %1472 = vadd.xlane.f32.xlu0 %v1394
        %v1473 = vpop.xlane.xlu0 %1472
        %1474 = vadd.xlane.f32.xlu0 %v1395
        %v1475 = vpop.xlane.xlu0 %1474
        %1476 = vadd.xlane.f32.xlu0 %v1396
        %v1477 = vpop.xlane.xlu0 %1476
        %1478 = vadd.xlane.f32.xlu0 %v1397
        %v1479 = vpop.xlane.xlu0 %1478
        %1480 = vadd.xlane.f32.xlu0 %v1398
        %v1481 = vpop.xlane.xlu0 %1480
        %1482 = vadd.xlane.f32.xlu0 %v1399
        %v1483 = vpop.xlane.xlu0 %1482
        %1484 = vadd.xlane.f32.xlu0 %v1400
        %v1485 = vpop.xlane.xlu0 %1484
        %1486 = vadd.xlane.f32.xlu0 %v1401
        %v1487 = vpop.xlane.xlu0 %1486
        %1488 = vadd.xlane.f32.xlu0 %v1402
        %v1489 = vpop.xlane.xlu0 %1488
        %1490 = vadd.xlane.f32.xlu0 %v1403
        %v1491 = vpop.xlane.xlu0 %1490
        %1492 = vadd.xlane.f32.xlu0 %v1404
        %v1493 = vpop.xlane.xlu0 %1492
        %1494 = vadd.xlane.f32.xlu0 %v1405
        %v1495 = vpop.xlane.xlu0 %1494
        %1496 = vadd.xlane.f32.xlu0 %v1406
        %v1497 = vpop.xlane.xlu0 %1496
        %1498 = vadd.xlane.f32.xlu0 %v1407
        %v1499 = vpop.xlane.xlu0 %1498
        %1500 = vadd.xlane.f32.xlu0 %v1408
        %v1501 = vpop.xlane.xlu0 %1500
        %1502 = vadd.xlane.f32.xlu0 %v1409
        %v1503 = vpop.xlane.xlu0 %1502
        %1504 = vadd.xlane.f32.xlu0 %v1410
        %v1505 = vpop.xlane.xlu0 %1504
        %1506 = vadd.xlane.f32.xlu0 %v1411
        %v1507 = vpop.xlane.xlu0 %1506
        %1508 = vadd.xlane.f32.xlu0 %v1412
        %v1509 = vpop.xlane.xlu0 %1508
        %1510 = vadd.xlane.f32.xlu0 %v1413
        %v1511 = vpop.xlane.xlu0 %1510
        %1512 = vadd.xlane.f32.xlu0 %v1414
        %v1513 = vpop.xlane.xlu0 %1512
        %1514 = vadd.xlane.f32.xlu0 %v1415
        %v1515 = vpop.xlane.xlu0 %1514
        %1516 = vadd.xlane.f32.xlu0 %v1416
        %v1517 = vpop.xlane.xlu0 %1516
        %1518 = vadd.xlane.f32.xlu0 %v1417
        %v1519 = vpop.xlane.xlu0 %1518
        %1520 = vadd.xlane.f32.xlu0 %v1418
        %v1521 = vpop.xlane.xlu0 %1520
        %1522 = vadd.xlane.f32.xlu0 %v1419
        %v1523 = vpop.xlane.xlu0 %1522
        %1524 = vadd.xlane.f32.xlu0 %v1420
        %v1525 = vpop.xlane.xlu0 %1524
        %1526 = vadd.xlane.f32.xlu0 %v1421
        %v1527 = vpop.xlane.xlu0 %1526
        %1528 = vadd.xlane.f32.xlu0 %v1422
        %v1529 = vpop.xlane.xlu0 %1528
        %1530 = vadd.xlane.f32.xlu0 %v1423
        %v1531 = vpop.xlane.xlu0 %1530
        %1532 = vadd.xlane.f32.xlu0 %v1424
        %v1533 = vpop.xlane.xlu0 %1532
        %1534 = vadd.xlane.f32.xlu0 %v1425
        %v1535 = vpop.xlane.xlu0 %1534
        %1536 = vadd.xlane.f32.xlu0 %v1426
        %v1537 = vpop.xlane.xlu0 %1536
        %1538 = vadd.xlane.f32.xlu0 %v1427
        %v1539 = vpop.xlane.xlu0 %1538
        %1540 = vadd.xlane.f32.xlu0 %v1428
        %v1541 = vpop.xlane.xlu0 %1540
        %1542 = vadd.xlane.f32.xlu0 %v1429
        %v1543 = vpop.xlane.xlu0 %1542
        %1544 = vadd.xlane.f32.xlu0 %v1430
        %v1545 = vpop.xlane.xlu0 %1544
        %1546 = vadd.xlane.f32.xlu0 %v1431
        %v1547 = vpop.xlane.xlu0 %1546
        %1548 = vadd.xlane.f32.xlu0 %v1432
        %v1549 = vpop.xlane.xlu0 %1548
        %1550 = vadd.xlane.f32.xlu0 %v1433
        %v1551 = vpop.xlane.xlu0 %1550
        %1552 = vadd.xlane.f32.xlu0 %v1434
        %v1553 = vpop.xlane.xlu0 %1552
        %1554 = vadd.xlane.f32.xlu0 %v1435
        %v1555 = vpop.xlane.xlu0 %1554
        %1556 = vadd.xlane.f32.xlu0 %v1436
        %v1557 = vpop.xlane.xlu0 %1556
        %1558 = vadd.xlane.f32.xlu0 %v1437
        %v1559 = vpop.xlane.xlu0 %1558
        %1560 = vadd.xlane.f32.xlu0 %v1438
        %v1561 = vpop.xlane.xlu0 %1560
        %1562 = vadd.xlane.f32.xlu0 %v1439
        %v1563 = vpop.xlane.xlu0 %1562
        %1564 = vadd.xlane.f32.xlu0 %v1440
        %v1565 = vpop.xlane.xlu0 %1564
        %1566 = vadd.xlane.f32.xlu0 %v1441
        %v1567 = vpop.xlane.xlu0 %1566
        %1568 = vadd.xlane.f32.xlu0 %v1442
        %v1569 = vpop.xlane.xlu0 %1568
        %1570 = vadd.xlane.f32.xlu0 %v1443
        %v1571 = vpop.xlane.xlu0 %1570
        %v1573 = vlaneseq
        %v1574 = vshrl.u32 %v1573, 7
        %v1575 = vsub.s32 0, %v1574
        %v1576 = vrot.slane %v671, %v1575
        %v1578 = vadd.f32 %v1445, %v1576
        %v1579 = vadd.f32 %v1447, %v1576
        %v1580 = vadd.f32 %v1449, %v1576
        %v1581 = vadd.f32 %v1451, %v1576
        %v1582 = vadd.f32 %v1453, %v1576
        %v1583 = vadd.f32 %v1455, %v1576
        %v1584 = vadd.f32 %v1457, %v1576
        %v1585 = vadd.f32 %v1459, %v1576
        %v1586 = vadd.f32 %v1461, %v1576
        %v1587 = vadd.f32 %v1463, %v1576
        %v1588 = vadd.f32 %v1465, %v1576
        %v1589 = vadd.f32 %v1467, %v1576
        %v1590 = vadd.f32 %v1469, %v1576
        %v1591 = vadd.f32 %v1471, %v1576
        %v1592 = vadd.f32 %v1473, %v1576
        %v1593 = vadd.f32 %v1475, %v1576
        %v1594 = vadd.f32 %v1477, %v1576
        %v1595 = vadd.f32 %v1479, %v1576
        %v1596 = vadd.f32 %v1481, %v1576
        %v1597 = vadd.f32 %v1483, %v1576
        %v1598 = vadd.f32 %v1485, %v1576
        %v1599 = vadd.f32 %v1487, %v1576
        %v1600 = vadd.f32 %v1489, %v1576
        %v1601 = vadd.f32 %v1491, %v1576
        %v1602 = vadd.f32 %v1493, %v1576
        %v1603 = vadd.f32 %v1495, %v1576
        %v1604 = vadd.f32 %v1497, %v1576
        %v1605 = vadd.f32 %v1499, %v1576
        %v1606 = vadd.f32 %v1501, %v1576
        %v1607 = vadd.f32 %v1503, %v1576
        %v1608 = vadd.f32 %v1505, %v1576
        %v1609 = vadd.f32 %v1507, %v1576
        %v1610 = vadd.f32 %v1509, %v1576
        %v1611 = vadd.f32 %v1511, %v1576
        %v1612 = vadd.f32 %v1513, %v1576
        %v1613 = vadd.f32 %v1515, %v1576
        %v1614 = vadd.f32 %v1517, %v1576
        %v1615 = vadd.f32 %v1519, %v1576
        %v1616 = vadd.f32 %v1521, %v1576
        %v1617 = vadd.f32 %v1523, %v1576
        %v1618 = vadd.f32 %v1525, %v1576
        %v1619 = vadd.f32 %v1527, %v1576
        %v1620 = vadd.f32 %v1529, %v1576
        %v1621 = vadd.f32 %v1531, %v1576
        %v1622 = vadd.f32 %v1533, %v1576
        %v1623 = vadd.f32 %v1535, %v1576
        %v1624 = vadd.f32 %v1537, %v1576
        %v1625 = vadd.f32 %v1539, %v1576
        %v1626 = vadd.f32 %v1541, %v1576
        %v1627 = vadd.f32 %v1543, %v1576
        %v1628 = vadd.f32 %v1545, %v1576
        %v1629 = vadd.f32 %v1547, %v1576
        %v1630 = vadd.f32 %v1549, %v1576
        %v1631 = vadd.f32 %v1551, %v1576
        %v1632 = vadd.f32 %v1553, %v1576
        %v1633 = vadd.f32 %v1555, %v1576
        %v1634 = vadd.f32 %v1557, %v1576
        %v1635 = vadd.f32 %v1559, %v1576
        %v1636 = vadd.f32 %v1561, %v1576
        %v1637 = vadd.f32 %v1563, %v1576
        %v1638 = vadd.f32 %v1565, %v1576
        %v1639 = vadd.f32 %v1567, %v1576
        %v1640 = vadd.f32 %v1569, %v1576
        %v1641 = vadd.f32 %v1571, %v1576
        %vm1642 = vcmask 7168
        %v1643 = vsel %vm1642, %v1578, -inf
        %v1644 = vsel %vm1642, %v1579, -inf
        %v1645 = vmax.f32 %v1643, %v1644
        %v1646 = vsel %vm1642, %v1580, -inf
        %v1647 = vmax.f32 %v1645, %v1646
        %v1648 = vsel %vm1642, %v1581, -inf
        %v1649 = vmax.f32 %v1647, %v1648
        %v1650 = vsel %vm1642, %v1582, -inf
        %v1651 = vmax.f32 %v1649, %v1650
        %v1652 = vsel %vm1642, %v1583, -inf
        %v1653 = vmax.f32 %v1651, %v1652
        %v1654 = vsel %vm1642, %v1584, -inf
        %v1655 = vmax.f32 %v1653, %v1654
        %v1656 = vsel %vm1642, %v1585, -inf
        %v1657 = vmax.f32 %v1655, %v1656
        %v1658 = vrot.slane %v1657, 4
        %v1659 = vmax.f32 %v1657, %v1658
        %v1660 = vrot.slane %v1659, 2
        %v1661 = vmax.f32 %v1659, %v1660
        %v1662 = vrot.slane %v1661, 1
        %v1663 = vmax.f32 %v1661, %v1662
        %v1664 = vsel %vm1642, %v1586, -inf
        %v1665 = vsel %vm1642, %v1587, -inf
        %v1666 = vmax.f32 %v1664, %v1665
        %v1667 = vsel %vm1642, %v1588, -inf
        %v1668 = vmax.f32 %v1666, %v1667
        %v1669 = vsel %vm1642, %v1589, -inf
        %v1670 = vmax.f32 %v1668, %v1669
        %v1671 = vsel %vm1642, %v1590, -inf
        %v1672 = vmax.f32 %v1670, %v1671
        %v1673 = vsel %vm1642, %v1591, -inf
        %v1674 = vmax.f32 %v1672, %v1673
        %v1675 = vsel %vm1642, %v1592, -inf
        %v1676 = vmax.f32 %v1674, %v1675
        %v1677 = vsel %vm1642, %v1593, -inf
        %v1678 = vmax.f32 %v1676, %v1677
        %v1679 = vrot.slane %v1678, 4
        %v1680 = vmax.f32 %v1678, %v1679
        %v1681 = vrot.slane %v1680, 2
        %v1682 = vmax.f32 %v1680, %v1681
        %v1683 = vrot.slane %v1682, 1
        %v1684 = vmax.f32 %v1682, %v1683
        %v1685 = vsel %vm1642, %v1594, -inf
        %v1686 = vsel %vm1642, %v1595, -inf
        %v1687 = vmax.f32 %v1685, %v1686
        %v1688 = vsel %vm1642, %v1596, -inf
        %v1689 = vmax.f32 %v1687, %v1688
        %v1690 = vsel %vm1642, %v1597, -inf
        %v1691 = vmax.f32 %v1689, %v1690
        %v1692 = vsel %vm1642, %v1598, -inf
        %v1693 = vmax.f32 %v1691, %v1692
        %v1694 = vsel %vm1642, %v1599, -inf
        %v1695 = vmax.f32 %v1693, %v1694
        %v1696 = vsel %vm1642, %v1600, -inf
        %v1697 = vmax.f32 %v1695, %v1696
        %v1698 = vsel %vm1642, %v1601, -inf
        %v1699 = vmax.f32 %v1697, %v1698
        %v1700 = vrot.slane %v1699, 4
        %v1701 = vmax.f32 %v1699, %v1700
        %v1702 = vrot.slane %v1701, 2
        %v1703 = vmax.f32 %v1701, %v1702
        %v1704 = vrot.slane %v1703, 1
        %v1705 = vmax.f32 %v1703, %v1704
        %v1706 = vsel %vm1642, %v1602, -inf
        %v1707 = vsel %vm1642, %v1603, -inf
        %v1708 = vmax.f32 %v1706, %v1707
        %v1709 = vsel %vm1642, %v1604, -inf
        %v1710 = vmax.f32 %v1708, %v1709
        %v1711 = vsel %vm1642, %v1605, -inf
        %v1712 = vmax.f32 %v1710, %v1711
        %v1713 = vsel %vm1642, %v1606, -inf
        %v1714 = vmax.f32 %v1712, %v1713
        %v1715 = vsel %vm1642, %v1607, -inf
        %v1716 = vmax.f32 %v1714, %v1715
        %v1717 = vsel %vm1642, %v1608, -inf
        %v1718 = vmax.f32 %v1716, %v1717
        %v1719 = vsel %vm1642, %v1609, -inf
        %v1720 = vmax.f32 %v1718, %v1719
        %v1721 = vrot.slane %v1720, 4
        %v1722 = vmax.f32 %v1720, %v1721
        %v1723 = vrot.slane %v1722, 2
        %v1724 = vmax.f32 %v1722, %v1723
        %v1725 = vrot.slane %v1724, 1
        %v1726 = vmax.f32 %v1724, %v1725
        %v1727 = vsel %vm1642, %v1610, -inf
        %v1728 = vsel %vm1642, %v1611, -inf
        %v1729 = vmax.f32 %v1727, %v1728
        %v1730 = vsel %vm1642, %v1612, -inf
        %v1731 = vmax.f32 %v1729, %v1730
        %v1732 = vsel %vm1642, %v1613, -inf
        %v1733 = vmax.f32 %v1731, %v1732
        %v1734 = vsel %vm1642, %v1614, -inf
        %v1735 = vmax.f32 %v1733, %v1734
        %v1736 = vsel %vm1642, %v1615, -inf
        %v1737 = vmax.f32 %v1735, %v1736
        %v1738 = vsel %vm1642, %v1616, -inf
        %v1739 = vmax.f32 %v1737, %v1738
        %v1740 = vsel %vm1642, %v1617, -inf
        %v1741 = vmax.f32 %v1739, %v1740
        %v1742 = vrot.slane %v1741, 4
        %v1743 = vmax.f32 %v1741, %v1742
        %v1744 = vrot.slane %v1743, 2
        %v1745 = vmax.f32 %v1743, %v1744
        %v1746 = vrot.slane %v1745, 1
        %v1747 = vmax.f32 %v1745, %v1746
        %v1748 = vsel %vm1642, %v1618, -inf
        %v1749 = vsel %vm1642, %v1619, -inf
        %v1750 = vmax.f32 %v1748, %v1749
        %v1751 = vsel %vm1642, %v1620, -inf
        %v1752 = vmax.f32 %v1750, %v1751
        %v1753 = vsel %vm1642, %v1621, -inf
        %v1754 = vmax.f32 %v1752, %v1753
        %v1755 = vsel %vm1642, %v1622, -inf
        %v1756 = vmax.f32 %v1754, %v1755
        %v1757 = vsel %vm1642, %v1623, -inf
        %v1758 = vmax.f32 %v1756, %v1757
        %v1759 = vsel %vm1642, %v1624, -inf
        %v1760 = vmax.f32 %v1758, %v1759
        %v1761 = vsel %vm1642, %v1625, -inf
        %v1762 = vmax.f32 %v1760, %v1761
        %v1763 = vrot.slane %v1762, 4
        %v1764 = vmax.f32 %v1762, %v1763
        %v1765 = vrot.slane %v1764, 2
        %v1766 = vmax.f32 %v1764, %v1765
        %v1767 = vrot.slane %v1766, 1
        %v1768 = vmax.f32 %v1766, %v1767
        %v1769 = vsel %vm1642, %v1626, -inf
        %v1770 = vsel %vm1642, %v1627, -inf
        %v1771 = vmax.f32 %v1769, %v1770
        %v1772 = vsel %vm1642, %v1628, -inf
        %v1773 = vmax.f32 %v1771, %v1772
        %v1774 = vsel %vm1642, %v1629, -inf
        %v1775 = vmax.f32 %v1773, %v1774
        %v1776 = vsel %vm1642, %v1630, -inf
        %v1777 = vmax.f32 %v1775, %v1776
        %v1778 = vsel %vm1642, %v1631, -inf
        %v1779 = vmax.f32 %v1777, %v1778
        %v1780 = vsel %vm1642, %v1632, -inf
        %v1781 = vmax.f32 %v1779, %v1780
        %v1782 = vsel %vm1642, %v1633, -inf
        %v1783 = vmax.f32 %v1781, %v1782
        %v1784 = vrot.slane %v1783, 4
        %v1785 = vmax.f32 %v1783, %v1784
        %v1786 = vrot.slane %v1785, 2
        %v1787 = vmax.f32 %v1785, %v1786
        %v1788 = vrot.slane %v1787, 1
        %v1789 = vmax.f32 %v1787, %v1788
        %v1790 = vsel %vm1642, %v1634, -inf
        %v1791 = vsel %vm1642, %v1635, -inf
        %v1792 = vmax.f32 %v1790, %v1791
        %v1793 = vsel %vm1642, %v1636, -inf
        %v1794 = vmax.f32 %v1792, %v1793
        %v1795 = vsel %vm1642, %v1637, -inf
        %v1796 = vmax.f32 %v1794, %v1795
        %v1797 = vsel %vm1642, %v1638, -inf
        %v1798 = vmax.f32 %v1796, %v1797
        %v1799 = vsel %vm1642, %v1639, -inf
        %v1800 = vmax.f32 %v1798, %v1799
        %v1801 = vsel %vm1642, %v1640, -inf
        %v1802 = vmax.f32 %v1800, %v1801
        %v1803 = vsel %vm1642, %v1641, -inf
        %v1804 = vmax.f32 %v1802, %v1803
        %v1805 = vrot.slane %v1804, 4
        %v1806 = vmax.f32 %v1804, %v1805
        %v1807 = vrot.slane %v1806, 2
        %v1808 = vmax.f32 %v1806, %v1807
        %v1809 = vrot.slane %v1808, 1
        %v1810 = vmax.f32 %v1808, %v1809
        %v1811 = vsub.f32 %v1578, %v1663
        %v1812 = vsub.f32 %v1579, %v1663
        %v1813 = vsub.f32 %v1580, %v1663
        %v1814 = vsub.f32 %v1581, %v1663
        %v1815 = vsub.f32 %v1582, %v1663
        %v1816 = vsub.f32 %v1583, %v1663
        %v1817 = vsub.f32 %v1584, %v1663
        %v1818 = vsub.f32 %v1585, %v1663
        %v1819 = vsub.f32 %v1586, %v1684
        %v1820 = vsub.f32 %v1587, %v1684
        %v1821 = vsub.f32 %v1588, %v1684
        %v1822 = vsub.f32 %v1589, %v1684
        %v1823 = vsub.f32 %v1590, %v1684
        %v1824 = vsub.f32 %v1591, %v1684
        %v1825 = vsub.f32 %v1592, %v1684
        %v1826 = vsub.f32 %v1593, %v1684
        %v1827 = vsub.f32 %v1594, %v1705
        %v1828 = vsub.f32 %v1595, %v1705
        %v1829 = vsub.f32 %v1596, %v1705
        %v1830 = vsub.f32 %v1597, %v1705
        %v1831 = vsub.f32 %v1598, %v1705
        %v1832 = vsub.f32 %v1599, %v1705
        %v1833 = vsub.f32 %v1600, %v1705
        %v1834 = vsub.f32 %v1601, %v1705
        %v1835 = vsub.f32 %v1602, %v1726
        %v1836 = vsub.f32 %v1603, %v1726
        %v1837 = vsub.f32 %v1604, %v1726
        %v1838 = vsub.f32 %v1605, %v1726
        %v1839 = vsub.f32 %v1606, %v1726
        %v1840 = vsub.f32 %v1607, %v1726
        %v1841 = vsub.f32 %v1608, %v1726
        %v1842 = vsub.f32 %v1609, %v1726
        %v1843 = vsub.f32 %v1610, %v1747
        %v1844 = vsub.f32 %v1611, %v1747
        %v1845 = vsub.f32 %v1612, %v1747
        %v1846 = vsub.f32 %v1613, %v1747
        %v1847 = vsub.f32 %v1614, %v1747
        %v1848 = vsub.f32 %v1615, %v1747
        %v1849 = vsub.f32 %v1616, %v1747
        %v1850 = vsub.f32 %v1617, %v1747
        %v1851 = vsub.f32 %v1618, %v1768
        %v1852 = vsub.f32 %v1619, %v1768
        %v1853 = vsub.f32 %v1620, %v1768
        %v1854 = vsub.f32 %v1621, %v1768
        %v1855 = vsub.f32 %v1622, %v1768
        %v1856 = vsub.f32 %v1623, %v1768
        %v1857 = vsub.f32 %v1624, %v1768
        %v1858 = vsub.f32 %v1625, %v1768
        %v1859 = vsub.f32 %v1626, %v1789
        %v1860 = vsub.f32 %v1627, %v1789
        %v1861 = vsub.f32 %v1628, %v1789
        %v1862 = vsub.f32 %v1629, %v1789
        %v1863 = vsub.f32 %v1630, %v1789
        %v1864 = vsub.f32 %v1631, %v1789
        %v1865 = vsub.f32 %v1632, %v1789
        %v1866 = vsub.f32 %v1633, %v1789
        %v1867 = vsub.f32 %v1634, %v1810
        %v1868 = vsub.f32 %v1635, %v1810
        %v1869 = vsub.f32 %v1636, %v1810
        %v1870 = vsub.f32 %v1637, %v1810
        %v1871 = vsub.f32 %v1638, %v1810
        %v1872 = vsub.f32 %v1639, %v1810
        %v1873 = vsub.f32 %v1640, %v1810
        %v1874 = vsub.f32 %v1641, %v1810
        %v1875 = vmul.f32 %v1811, 1.442695
        %v1876 = vpow.pop %v1875
        %v1877 = vmul.f32 %v1812, 1.442695
        %v1878 = vpow.pop %v1877
        %v1879 = vmul.f32 %v1813, 1.442695
        %v1880 = vpow.pop %v1879
        %v1881 = vmul.f32 %v1814, 1.442695
        %v1882 = vpow.pop %v1881
        %v1883 = vmul.f32 %v1815, 1.442695
        %v1884 = vpow.pop %v1883
        %v1885 = vmul.f32 %v1816, 1.442695
        %v1886 = vpow.pop %v1885
        %v1887 = vmul.f32 %v1817, 1.442695
        %v1888 = vpow.pop %v1887
        %v1889 = vmul.f32 %v1818, 1.442695
        %v1890 = vpow.pop %v1889
        %v1891 = vmul.f32 %v1819, 1.442695
        %v1892 = vpow.pop %v1891
        %v1893 = vmul.f32 %v1820, 1.442695
        %v1894 = vpow.pop %v1893
        %v1895 = vmul.f32 %v1821, 1.442695
        %v1896 = vpow.pop %v1895
        %v1897 = vmul.f32 %v1822, 1.442695
        %v1898 = vpow.pop %v1897
        %v1899 = vmul.f32 %v1823, 1.442695
        %v1900 = vpow.pop %v1899
        %v1901 = vmul.f32 %v1824, 1.442695
        %v1902 = vpow.pop %v1901
        %v1903 = vmul.f32 %v1825, 1.442695
        %v1904 = vpow.pop %v1903
        %v1905 = vmul.f32 %v1826, 1.442695
        %v1906 = vpow.pop %v1905
        %v1907 = vmul.f32 %v1827, 1.442695
        %v1908 = vpow.pop %v1907
        %v1909 = vmul.f32 %v1828, 1.442695
        %v1910 = vpow.pop %v1909
        %v1911 = vmul.f32 %v1829, 1.442695
        %v1912 = vpow.pop %v1911
        %v1913 = vmul.f32 %v1830, 1.442695
        %v1914 = vpow.pop %v1913
        %v1915 = vmul.f32 %v1831, 1.442695
        %v1916 = vpow.pop %v1915
        %v1917 = vmul.f32 %v1832, 1.442695
        %v1918 = vpow.pop %v1917
        %v1919 = vmul.f32 %v1833, 1.442695
        %v1920 = vpow.pop %v1919
        %v1921 = vmul.f32 %v1834, 1.442695
        %v1922 = vpow.pop %v1921
        %v1923 = vmul.f32 %v1835, 1.442695
        %v1924 = vpow.pop %v1923
        %v1925 = vmul.f32 %v1836, 1.442695
        %v1926 = vpow.pop %v1925
        %v1927 = vmul.f32 %v1837, 1.442695
        %v1928 = vpow.pop %v1927
        %v1929 = vmul.f32 %v1838, 1.442695
        %v1930 = vpow.pop %v1929
        %v1931 = vmul.f32 %v1839, 1.442695
        %v1932 = vpow.pop %v1931
        %v1933 = vmul.f32 %v1840, 1.442695
        %v1934 = vpow.pop %v1933
        %v1935 = vmul.f32 %v1841, 1.442695
        %v1936 = vpow.pop %v1935
        %v1937 = vmul.f32 %v1842, 1.442695
        %v1938 = vpow.pop %v1937
        %v1939 = vmul.f32 %v1843, 1.442695
        %v1940 = vpow.pop %v1939
        %v1941 = vmul.f32 %v1844, 1.442695
        %v1942 = vpow.pop %v1941
        %v1943 = vmul.f32 %v1845, 1.442695
        %v1944 = vpow.pop %v1943
        %v1945 = vmul.f32 %v1846, 1.442695
        %v1946 = vpow.pop %v1945
        %v1947 = vmul.f32 %v1847, 1.442695
        %v1948 = vpow.pop %v1947
        %v1949 = vmul.f32 %v1848, 1.442695
        %v1950 = vpow.pop %v1949
        %v1951 = vmul.f32 %v1849, 1.442695
        %v1952 = vpow.pop %v1951
        %v1953 = vmul.f32 %v1850, 1.442695
        %v1954 = vpow.pop %v1953
        %v1955 = vmul.f32 %v1851, 1.442695
        %v1956 = vpow.pop %v1955
        %v1957 = vmul.f32 %v1852, 1.442695
        %v1958 = vpow.pop %v1957
        %v1959 = vmul.f32 %v1853, 1.442695
        %v1960 = vpow.pop %v1959
        %v1961 = vmul.f32 %v1854, 1.442695
        %v1962 = vpow.pop %v1961
        %v1963 = vmul.f32 %v1855, 1.442695
        %v1964 = vpow.pop %v1963
        %v1965 = vmul.f32 %v1856, 1.442695
        %v1966 = vpow.pop %v1965
        %v1967 = vmul.f32 %v1857, 1.442695
        %v1968 = vpow.pop %v1967
        %v1969 = vmul.f32 %v1858, 1.442695
        %v1970 = vpow.pop %v1969
        %v1971 = vmul.f32 %v1859, 1.442695
        %v1972 = vpow.pop %v1971
        %v1973 = vmul.f32 %v1860, 1.442695
        %v1974 = vpow.pop %v1973
        %v1975 = vmul.f32 %v1861, 1.442695
        %v1976 = vpow.pop %v1975
        %v1977 = vmul.f32 %v1862, 1.442695
        %v1978 = vpow.pop %v1977
        %v1979 = vmul.f32 %v1863, 1.442695
        %v1980 = vpow.pop %v1979
        %v1981 = vmul.f32 %v1864, 1.442695
        %v1982 = vpow.pop %v1981
        %v1983 = vmul.f32 %v1865, 1.442695
        %v1984 = vpow.pop %v1983
        %v1985 = vmul.f32 %v1866, 1.442695
        %v1986 = vpow.pop %v1985
        %v1987 = vmul.f32 %v1867, 1.442695
        %v1988 = vpow.pop %v1987
        %v1989 = vmul.f32 %v1868, 1.442695
        %v1990 = vpow.pop %v1989
        %v1991 = vmul.f32 %v1869, 1.442695
        %v1992 = vpow.pop %v1991
        %v1993 = vmul.f32 %v1870, 1.442695
        %v1994 = vpow.pop %v1993
        %v1995 = vmul.f32 %v1871, 1.442695
        %v1996 = vpow.pop %v1995
        %v1997 = vmul.f32 %v1872, 1.442695
        %v1998 = vpow.pop %v1997
        %v1999 = vmul.f32 %v1873, 1.442695
        %v2000 = vpow.pop %v1999
        %v2001 = vmul.f32 %v1874, 1.442695
        %v2002 = vpow.pop %v2001
        %v2003 = vsel %vm1642, %v1876, 0.0
        %v2004 = vsel %vm1642, %v1878, 0.0
        %v2005 = vadd.f32 %v2003, %v2004
        %v2006 = vsel %vm1642, %v1880, 0.0
        %v2007 = vadd.f32 %v2005, %v2006
        %v2008 = vsel %vm1642, %v1882, 0.0
        %v2009 = vadd.f32 %v2007, %v2008
        %v2010 = vsel %vm1642, %v1884, 0.0
        %v2011 = vadd.f32 %v2009, %v2010
        %v2012 = vsel %vm1642, %v1886, 0.0
        %v2013 = vadd.f32 %v2011, %v2012
        %v2014 = vsel %vm1642, %v1888, 0.0
        %v2015 = vadd.f32 %v2013, %v2014
        %v2016 = vsel %vm1642, %v1890, 0.0
        %v2017 = vadd.f32 %v2015, %v2016
        %v2018 = vrot.slane %v2017, 4
        %v2019 = vadd.f32 %v2017, %v2018
        %v2020 = vrot.slane %v2019, 2
        %v2021 = vadd.f32 %v2019, %v2020
        %v2022 = vrot.slane %v2021, 1
        %v2023 = vadd.f32 %v2021, %v2022
        %v2024 = vsel %vm1642, %v1892, 0.0
        %v2025 = vsel %vm1642, %v1894, 0.0
        %v2026 = vadd.f32 %v2024, %v2025
        %v2027 = vsel %vm1642, %v1896, 0.0
        %v2028 = vadd.f32 %v2026, %v2027
        %v2029 = vsel %vm1642, %v1898, 0.0
        %v2030 = vadd.f32 %v2028, %v2029
        %v2031 = vsel %vm1642, %v1900, 0.0
        %v2032 = vadd.f32 %v2030, %v2031
        %v2033 = vsel %vm1642, %v1902, 0.0
        %v2034 = vadd.f32 %v2032, %v2033
        %v2035 = vsel %vm1642, %v1904, 0.0
        %v2036 = vadd.f32 %v2034, %v2035
        %v2037 = vsel %vm1642, %v1906, 0.0
        %v2038 = vadd.f32 %v2036, %v2037
        %v2039 = vrot.slane %v2038, 4
        %v2040 = vadd.f32 %v2038, %v2039
        %v2041 = vrot.slane %v2040, 2
        %v2042 = vadd.f32 %v2040, %v2041
        %v2043 = vrot.slane %v2042, 1
        %v2044 = vadd.f32 %v2042, %v2043
        %v2045 = vsel %vm1642, %v1908, 0.0
        %v2046 = vsel %vm1642, %v1910, 0.0
        %v2047 = vadd.f32 %v2045, %v2046
        %v2048 = vsel %vm1642, %v1912, 0.0
        %v2049 = vadd.f32 %v2047, %v2048
        %v2050 = vsel %vm1642, %v1914, 0.0
        %v2051 = vadd.f32 %v2049, %v2050
        %v2052 = vsel %vm1642, %v1916, 0.0
        %v2053 = vadd.f32 %v2051, %v2052
        %v2054 = vsel %vm1642, %v1918, 0.0
        %v2055 = vadd.f32 %v2053, %v2054
        %v2056 = vsel %vm1642, %v1920, 0.0
        %v2057 = vadd.f32 %v2055, %v2056
        %v2058 = vsel %vm1642, %v1922, 0.0
        %v2059 = vadd.f32 %v2057, %v2058
        %v2060 = vrot.slane %v2059, 4
        %v2061 = vadd.f32 %v2059, %v2060
        %v2062 = vrot.slane %v2061, 2
        %v2063 = vadd.f32 %v2061, %v2062
        %v2064 = vrot.slane %v2063, 1
        %v2065 = vadd.f32 %v2063, %v2064
        %v2066 = vsel %vm1642, %v1924, 0.0
        %v2067 = vsel %vm1642, %v1926, 0.0
        %v2068 = vadd.f32 %v2066, %v2067
        %v2069 = vsel %vm1642, %v1928, 0.0
        %v2070 = vadd.f32 %v2068, %v2069
        %v2071 = vsel %vm1642, %v1930, 0.0
        %v2072 = vadd.f32 %v2070, %v2071
        %v2073 = vsel %vm1642, %v1932, 0.0
        %v2074 = vadd.f32 %v2072, %v2073
        %v2075 = vsel %vm1642, %v1934, 0.0
        %v2076 = vadd.f32 %v2074, %v2075
        %v2077 = vsel %vm1642, %v1936, 0.0
        %v2078 = vadd.f32 %v2076, %v2077
        %v2079 = vsel %vm1642, %v1938, 0.0
        %v2080 = vadd.f32 %v2078, %v2079
        %v2081 = vrot.slane %v2080, 4
        %v2082 = vadd.f32 %v2080, %v2081
        %v2083 = vrot.slane %v2082, 2
        %v2084 = vadd.f32 %v2082, %v2083
        %v2085 = vrot.slane %v2084, 1
        %v2086 = vadd.f32 %v2084, %v2085
        %v2087 = vsel %vm1642, %v1940, 0.0
        %v2088 = vsel %vm1642, %v1942, 0.0
        %v2089 = vadd.f32 %v2087, %v2088
        %v2090 = vsel %vm1642, %v1944, 0.0
        %v2091 = vadd.f32 %v2089, %v2090
        %v2092 = vsel %vm1642, %v1946, 0.0
        %v2093 = vadd.f32 %v2091, %v2092
        %v2094 = vsel %vm1642, %v1948, 0.0
        %v2095 = vadd.f32 %v2093, %v2094
        %v2096 = vsel %vm1642, %v1950, 0.0
        %v2097 = vadd.f32 %v2095, %v2096
        %v2098 = vsel %vm1642, %v1952, 0.0
        %v2099 = vadd.f32 %v2097, %v2098
        %v2100 = vsel %vm1642, %v1954, 0.0
        %v2101 = vadd.f32 %v2099, %v2100
        %v2102 = vrot.slane %v2101, 4
        %v2103 = vadd.f32 %v2101, %v2102
        %v2104 = vrot.slane %v2103, 2
        %v2105 = vadd.f32 %v2103, %v2104
        %v2106 = vrot.slane %v2105, 1
        %v2107 = vadd.f32 %v2105, %v2106
        %v2108 = vsel %vm1642, %v1956, 0.0
        %v2109 = vsel %vm1642, %v1958, 0.0
        %v2110 = vadd.f32 %v2108, %v2109
        %v2111 = vsel %vm1642, %v1960, 0.0
        %v2112 = vadd.f32 %v2110, %v2111
        %v2113 = vsel %vm1642, %v1962, 0.0
        %v2114 = vadd.f32 %v2112, %v2113
        %v2115 = vsel %vm1642, %v1964, 0.0
        %v2116 = vadd.f32 %v2114, %v2115
        %v2117 = vsel %vm1642, %v1966, 0.0
        %v2118 = vadd.f32 %v2116, %v2117
        %v2119 = vsel %vm1642, %v1968, 0.0
        %v2120 = vadd.f32 %v2118, %v2119
        %v2121 = vsel %vm1642, %v1970, 0.0
        %v2122 = vadd.f32 %v2120, %v2121
        %v2123 = vrot.slane %v2122, 4
        %v2124 = vadd.f32 %v2122, %v2123
        %v2125 = vrot.slane %v2124, 2
        %v2126 = vadd.f32 %v2124, %v2125
        %v2127 = vrot.slane %v2126, 1
        %v2128 = vadd.f32 %v2126, %v2127
        %v2129 = vsel %vm1642, %v1972, 0.0
        %v2130 = vsel %vm1642, %v1974, 0.0
        %v2131 = vadd.f32 %v2129, %v2130
        %v2132 = vsel %vm1642, %v1976, 0.0
        %v2133 = vadd.f32 %v2131, %v2132
        %v2134 = vsel %vm1642, %v1978, 0.0
        %v2135 = vadd.f32 %v2133, %v2134
        %v2136 = vsel %vm1642, %v1980, 0.0
        %v2137 = vadd.f32 %v2135, %v2136
        %v2138 = vsel %vm1642, %v1982, 0.0
        %v2139 = vadd.f32 %v2137, %v2138
        %v2140 = vsel %vm1642, %v1984, 0.0
        %v2141 = vadd.f32 %v2139, %v2140
        %v2142 = vsel %vm1642, %v1986, 0.0
        %v2143 = vadd.f32 %v2141, %v2142
        %v2144 = vrot.slane %v2143, 4
        %v2145 = vadd.f32 %v2143, %v2144
        %v2146 = vrot.slane %v2145, 2
        %v2147 = vadd.f32 %v2145, %v2146
        %v2148 = vrot.slane %v2147, 1
        %v2149 = vadd.f32 %v2147, %v2148
        %v2150 = vsel %vm1642, %v1988, 0.0
        %v2151 = vsel %vm1642, %v1990, 0.0
        %v2152 = vadd.f32 %v2150, %v2151
        %v2153 = vsel %vm1642, %v1992, 0.0
        %v2154 = vadd.f32 %v2152, %v2153
        %v2155 = vsel %vm1642, %v1994, 0.0
        %v2156 = vadd.f32 %v2154, %v2155
        %v2157 = vsel %vm1642, %v1996, 0.0
        %v2158 = vadd.f32 %v2156, %v2157
        %v2159 = vsel %vm1642, %v1998, 0.0
        %v2160 = vadd.f32 %v2158, %v2159
        %v2161 = vsel %vm1642, %v2000, 0.0
        %v2162 = vadd.f32 %v2160, %v2161
        %v2163 = vsel %vm1642, %v2002, 0.0
        %v2164 = vadd.f32 %v2162, %v2163
        %v2165 = vrot.slane %v2164, 4
        %v2166 = vadd.f32 %v2164, %v2165
        %v2167 = vrot.slane %v2166, 2
        %v2168 = vadd.f32 %v2166, %v2167
        %v2169 = vrot.slane %v2168, 1
        %v2170 = vadd.f32 %v2168, %v2169
        %v2171 = vrcp.pop %v2023
        %v2172 = vmul.f32 %v1876, %v2171
        %v2173 = vmul.f32 %v1878, %v2171
        %v2174 = vmul.f32 %v1880, %v2171
        %v2175 = vmul.f32 %v1882, %v2171
        %v2176 = vmul.f32 %v1884, %v2171
        %v2177 = vmul.f32 %v1886, %v2171
        %v2178 = vmul.f32 %v1888, %v2171
        %v2179 = vmul.f32 %v1890, %v2171
        %v2180 = vrcp.pop %v2044
        %v2181 = vmul.f32 %v1892, %v2180
        %v2182 = vmul.f32 %v1894, %v2180
        %v2183 = vmul.f32 %v1896, %v2180
        %v2184 = vmul.f32 %v1898, %v2180
        %v2185 = vmul.f32 %v1900, %v2180
        %v2186 = vmul.f32 %v1902, %v2180
        %v2187 = vmul.f32 %v1904, %v2180
        %v2188 = vmul.f32 %v1906, %v2180
        %v2189 = vrcp.pop %v2065
        %v2190 = vmul.f32 %v1908, %v2189
        %v2191 = vmul.f32 %v1910, %v2189
        %v2192 = vmul.f32 %v1912, %v2189
        %v2193 = vmul.f32 %v1914, %v2189
        %v2194 = vmul.f32 %v1916, %v2189
        %v2195 = vmul.f32 %v1918, %v2189
        %v2196 = vmul.f32 %v1920, %v2189
        %v2197 = vmul.f32 %v1922, %v2189
        %v2198 = vrcp.pop %v2086
        %v2199 = vmul.f32 %v1924, %v2198
        %v2200 = vmul.f32 %v1926, %v2198
        %v2201 = vmul.f32 %v1928, %v2198
        %v2202 = vmul.f32 %v1930, %v2198
        %v2203 = vmul.f32 %v1932, %v2198
        %v2204 = vmul.f32 %v1934, %v2198
        %v2205 = vmul.f32 %v1936, %v2198
        %v2206 = vmul.f32 %v1938, %v2198
        %v2207 = vrcp.pop %v2107
        %v2208 = vmul.f32 %v1940, %v2207
        %v2209 = vmul.f32 %v1942, %v2207
        %v2210 = vmul.f32 %v1944, %v2207
        %v2211 = vmul.f32 %v1946, %v2207
        %v2212 = vmul.f32 %v1948, %v2207
        %v2213 = vmul.f32 %v1950, %v2207
        %v2214 = vmul.f32 %v1952, %v2207
        %v2215 = vmul.f32 %v1954, %v2207
        %v2216 = vrcp.pop %v2128
        %v2217 = vmul.f32 %v1956, %v2216
        %v2218 = vmul.f32 %v1958, %v2216
        %v2219 = vmul.f32 %v1960, %v2216
        %v2220 = vmul.f32 %v1962, %v2216
        %v2221 = vmul.f32 %v1964, %v2216
        %v2222 = vmul.f32 %v1966, %v2216
        %v2223 = vmul.f32 %v1968, %v2216
        %v2224 = vmul.f32 %v1970, %v2216
        %v2225 = vrcp.pop %v2149
        %v2226 = vmul.f32 %v1972, %v2225
        %v2227 = vmul.f32 %v1974, %v2225
        %v2228 = vmul.f32 %v1976, %v2225
        %v2229 = vmul.f32 %v1978, %v2225
        %v2230 = vmul.f32 %v1980, %v2225
        %v2231 = vmul.f32 %v1982, %v2225
        %v2232 = vmul.f32 %v1984, %v2225
        %v2233 = vmul.f32 %v1986, %v2225
        %v2234 = vrcp.pop %v2170
        %v2235 = vmul.f32 %v1988, %v2234
        %v2236 = vmul.f32 %v1990, %v2234
        %v2237 = vmul.f32 %v1992, %v2234
        %v2238 = vmul.f32 %v1994, %v2234
        %v2239 = vmul.f32 %v1996, %v2234
        %v2240 = vmul.f32 %v1998, %v2234
        %v2241 = vmul.f32 %v2000, %v2234
        %v2242 = vmul.f32 %v2002, %v2234
        %2244 = vset.pattern.permute.xlu0 0
        %2245 = vperm.xlu0 %2244, %v2172
        %v2246 = vpop.permute.xlu0 %2245
        %2249 = vset.pattern.permute.xlu0 0
        %2250 = vperm.xlu0 %2249, %v2173
        %v2251 = vpop.permute.xlu0 %2250
        %2254 = vset.pattern.permute.xlu0 0
        %2255 = vperm.xlu0 %2254, %v2174
        %v2256 = vpop.permute.xlu0 %2255
        %2259 = vset.pattern.permute.xlu0 0
        %2260 = vperm.xlu0 %2259, %v2175
        %v2261 = vpop.permute.xlu0 %2260
        %2264 = vset.pattern.permute.xlu0 0
        %2265 = vperm.xlu0 %2264, %v2176
        %v2266 = vpop.permute.xlu0 %2265
        %2269 = vset.pattern.permute.xlu0 0
        %2270 = vperm.xlu0 %2269, %v2177
        %v2271 = vpop.permute.xlu0 %2270
        %2274 = vset.pattern.permute.xlu0 0
        %2275 = vperm.xlu0 %2274, %v2178
        %v2276 = vpop.permute.xlu0 %2275
        %2279 = vset.pattern.permute.xlu0 0
        %2280 = vperm.xlu0 %2279, %v2179
        %v2281 = vpop.permute.xlu0 %2280
        %2284 = vset.pattern.permute.xlu0 0
        %2285 = vperm.xlu0 %2284, %v2181
        %v2286 = vpop.permute.xlu0 %2285
        %2289 = vset.pattern.permute.xlu0 0
        %2290 = vperm.xlu0 %2289, %v2182
        %v2291 = vpop.permute.xlu0 %2290
        %2294 = vset.pattern.permute.xlu0 0
        %2295 = vperm.xlu0 %2294, %v2183
        %v2296 = vpop.permute.xlu0 %2295
        %2299 = vset.pattern.permute.xlu0 0
        %2300 = vperm.xlu0 %2299, %v2184
        %v2301 = vpop.permute.xlu0 %2300
        %2304 = vset.pattern.permute.xlu0 0
        %2305 = vperm.xlu0 %2304, %v2185
        %v2306 = vpop.permute.xlu0 %2305
        %2309 = vset.pattern.permute.xlu0 0
        %2310 = vperm.xlu0 %2309, %v2186
        %v2311 = vpop.permute.xlu0 %2310
        %2314 = vset.pattern.permute.xlu0 0
        %2315 = vperm.xlu0 %2314, %v2187
        %v2316 = vpop.permute.xlu0 %2315
        %2319 = vset.pattern.permute.xlu0 0
        %2320 = vperm.xlu0 %2319, %v2188
        %v2321 = vpop.permute.xlu0 %2320
        %2324 = vset.pattern.permute.xlu0 0
        %2325 = vperm.xlu0 %2324, %v2190
        %v2326 = vpop.permute.xlu0 %2325
        %2329 = vset.pattern.permute.xlu0 0
        %2330 = vperm.xlu0 %2329, %v2191
        %v2331 = vpop.permute.xlu0 %2330
        %2334 = vset.pattern.permute.xlu0 0
        %2335 = vperm.xlu0 %2334, %v2192
        %v2336 = vpop.permute.xlu0 %2335
        %2339 = vset.pattern.permute.xlu0 0
        %2340 = vperm.xlu0 %2339, %v2193
        %v2341 = vpop.permute.xlu0 %2340
        %2344 = vset.pattern.permute.xlu0 0
        %2345 = vperm.xlu0 %2344, %v2194
        %v2346 = vpop.permute.xlu0 %2345
        %2349 = vset.pattern.permute.xlu0 0
        %2350 = vperm.xlu0 %2349, %v2195
        %v2351 = vpop.permute.xlu0 %2350
        %2354 = vset.pattern.permute.xlu0 0
        %2355 = vperm.xlu0 %2354, %v2196
        %v2356 = vpop.permute.xlu0 %2355
        %2359 = vset.pattern.permute.xlu0 0
        %2360 = vperm.xlu0 %2359, %v2197
        %v2361 = vpop.permute.xlu0 %2360
        %2364 = vset.pattern.permute.xlu0 0
        %2365 = vperm.xlu0 %2364, %v2199
        %v2366 = vpop.permute.xlu0 %2365
        %2369 = vset.pattern.permute.xlu0 0
        %2370 = vperm.xlu0 %2369, %v2200
        %v2371 = vpop.permute.xlu0 %2370
        %2374 = vset.pattern.permute.xlu0 0
        %2375 = vperm.xlu0 %2374, %v2201
        %v2376 = vpop.permute.xlu0 %2375
        %2379 = vset.pattern.permute.xlu0 0
        %2380 = vperm.xlu0 %2379, %v2202
        %v2381 = vpop.permute.xlu0 %2380
        %2384 = vset.pattern.permute.xlu0 0
        %2385 = vperm.xlu0 %2384, %v2203
        %v2386 = vpop.permute.xlu0 %2385
        %2389 = vset.pattern.permute.xlu0 0
        %2390 = vperm.xlu0 %2389, %v2204
        %v2391 = vpop.permute.xlu0 %2390
        %2394 = vset.pattern.permute.xlu0 0
        %2395 = vperm.xlu0 %2394, %v2205
        %v2396 = vpop.permute.xlu0 %2395
        %2399 = vset.pattern.permute.xlu0 0
        %2400 = vperm.xlu0 %2399, %v2206
        %v2401 = vpop.permute.xlu0 %2400
        %2404 = vset.pattern.permute.xlu0 0
        %2405 = vperm.xlu0 %2404, %v2208
        %v2406 = vpop.permute.xlu0 %2405
        %2409 = vset.pattern.permute.xlu0 0
        %2410 = vperm.xlu0 %2409, %v2209
        %v2411 = vpop.permute.xlu0 %2410
        %2414 = vset.pattern.permute.xlu0 0
        %2415 = vperm.xlu0 %2414, %v2210
        %v2416 = vpop.permute.xlu0 %2415
        %2419 = vset.pattern.permute.xlu0 0
        %2420 = vperm.xlu0 %2419, %v2211
        %v2421 = vpop.permute.xlu0 %2420
        %2424 = vset.pattern.permute.xlu0 0
        %2425 = vperm.xlu0 %2424, %v2212
        %v2426 = vpop.permute.xlu0 %2425
        %2429 = vset.pattern.permute.xlu0 0
        %2430 = vperm.xlu0 %2429, %v2213
        %v2431 = vpop.permute.xlu0 %2430
        %2434 = vset.pattern.permute.xlu0 0
        %2435 = vperm.xlu0 %2434, %v2214
        %v2436 = vpop.permute.xlu0 %2435
        %2439 = vset.pattern.permute.xlu0 0
        %2440 = vperm.xlu0 %2439, %v2215
        %v2441 = vpop.permute.xlu0 %2440
        %2444 = vset.pattern.permute.xlu0 0
        %2445 = vperm.xlu0 %2444, %v2217
        %v2446 = vpop.permute.xlu0 %2445
        %2449 = vset.pattern.permute.xlu0 0
        %2450 = vperm.xlu0 %2449, %v2218
        %v2451 = vpop.permute.xlu0 %2450
        %2454 = vset.pattern.permute.xlu0 0
        %2455 = vperm.xlu0 %2454, %v2219
        %v2456 = vpop.permute.xlu0 %2455
        %2459 = vset.pattern.permute.xlu0 0
        %2460 = vperm.xlu0 %2459, %v2220
        %v2461 = vpop.permute.xlu0 %2460
        %2464 = vset.pattern.permute.xlu0 0
        %2465 = vperm.xlu0 %2464, %v2221
        %v2466 = vpop.permute.xlu0 %2465
        %2469 = vset.pattern.permute.xlu0 0
        %2470 = vperm.xlu0 %2469, %v2222
        %v2471 = vpop.permute.xlu0 %2470
        %2474 = vset.pattern.permute.xlu0 0
        %2475 = vperm.xlu0 %2474, %v2223
        %v2476 = vpop.permute.xlu0 %2475
        %2479 = vset.pattern.permute.xlu0 0
        %2480 = vperm.xlu0 %2479, %v2224
        %v2481 = vpop.permute.xlu0 %2480
        %2484 = vset.pattern.permute.xlu0 0
        %2485 = vperm.xlu0 %2484, %v2226
        %v2486 = vpop.permute.xlu0 %2485
        %2489 = vset.pattern.permute.xlu0 0
        %2490 = vperm.xlu0 %2489, %v2227
        %v2491 = vpop.permute.xlu0 %2490
        %2494 = vset.pattern.permute.xlu0 0
        %2495 = vperm.xlu0 %2494, %v2228
        %v2496 = vpop.permute.xlu0 %2495
        %2499 = vset.pattern.permute.xlu0 0
        %2500 = vperm.xlu0 %2499, %v2229
        %v2501 = vpop.permute.xlu0 %2500
        %2504 = vset.pattern.permute.xlu0 0
        %2505 = vperm.xlu0 %2504, %v2230
        %v2506 = vpop.permute.xlu0 %2505
        %2509 = vset.pattern.permute.xlu0 0
        %2510 = vperm.xlu0 %2509, %v2231
        %v2511 = vpop.permute.xlu0 %2510
        %2514 = vset.pattern.permute.xlu0 0
        %2515 = vperm.xlu0 %2514, %v2232
        %v2516 = vpop.permute.xlu0 %2515
        %2519 = vset.pattern.permute.xlu0 0
        %2520 = vperm.xlu0 %2519, %v2233
        %v2521 = vpop.permute.xlu0 %2520
        %2524 = vset.pattern.permute.xlu0 0
        %2525 = vperm.xlu0 %2524, %v2235
        %v2526 = vpop.permute.xlu0 %2525
        %2529 = vset.pattern.permute.xlu0 0
        %2530 = vperm.xlu0 %2529, %v2236
        %v2531 = vpop.permute.xlu0 %2530
        %2534 = vset.pattern.permute.xlu0 0
        %2535 = vperm.xlu0 %2534, %v2237
        %v2536 = vpop.permute.xlu0 %2535
        %2539 = vset.pattern.permute.xlu0 0
        %2540 = vperm.xlu0 %2539, %v2238
        %v2541 = vpop.permute.xlu0 %2540
        %2544 = vset.pattern.permute.xlu0 0
        %2545 = vperm.xlu0 %2544, %v2239
        %v2546 = vpop.permute.xlu0 %2545
        %2549 = vset.pattern.permute.xlu0 0
        %2550 = vperm.xlu0 %2549, %v2240
        %v2551 = vpop.permute.xlu0 %2550
        %2554 = vset.pattern.permute.xlu0 0
        %2555 = vperm.xlu0 %2554, %v2241
        %v2556 = vpop.permute.xlu0 %2555
        %2559 = vset.pattern.permute.xlu0 0
        %2560 = vperm.xlu0 %2559, %v2242
        %v2561 = vpop.permute.xlu0 %2560
        %v2563 = vmul.f32 %v1056, %v2246
        %v2564 = vmul.f32 %v1060, %v2251
        %v2565 = vmul.f32 %v1066, %v2256
        %v2566 = vmul.f32 %v1070, %v2261
        %v2567 = vmul.f32 %v1076, %v2266
        %v2568 = vmul.f32 %v1080, %v2271
        %v2569 = vmul.f32 %v1086, %v2276
        %v2570 = vmul.f32 %v1090, %v2281
        %v2571 = vmul.f32 %v1096, %v2286
        %v2572 = vmul.f32 %v1100, %v2291
        %v2573 = vmul.f32 %v1106, %v2296
        %v2574 = vmul.f32 %v1110, %v2301
        %v2575 = vmul.f32 %v1116, %v2306
        %v2576 = vmul.f32 %v1120, %v2311
        %v2577 = vmul.f32 %v1126, %v2316
        %v2578 = vmul.f32 %v1130, %v2321
        %v2579 = vmul.f32 %v1136, %v2326
        %v2580 = vmul.f32 %v1140, %v2331
        %v2581 = vmul.f32 %v1146, %v2336
        %v2582 = vmul.f32 %v1150, %v2341
        %v2583 = vmul.f32 %v1156, %v2346
        %v2584 = vmul.f32 %v1160, %v2351
        %v2585 = vmul.f32 %v1166, %v2356
        %v2586 = vmul.f32 %v1170, %v2361
        %v2587 = vmul.f32 %v1176, %v2366
        %v2588 = vmul.f32 %v1180, %v2371
        %v2589 = vmul.f32 %v1186, %v2376
        %v2590 = vmul.f32 %v1190, %v2381
        %v2591 = vmul.f32 %v1196, %v2386
        %v2592 = vmul.f32 %v1200, %v2391
        %v2593 = vmul.f32 %v1206, %v2396
        %v2594 = vmul.f32 %v1210, %v2401
        %v2595 = vmul.f32 %v1216, %v2406
        %v2596 = vmul.f32 %v1220, %v2411
        %v2597 = vmul.f32 %v1226, %v2416
        %v2598 = vmul.f32 %v1230, %v2421
        %v2599 = vmul.f32 %v1236, %v2426
        %v2600 = vmul.f32 %v1240, %v2431
        %v2601 = vmul.f32 %v1246, %v2436
        %v2602 = vmul.f32 %v1250, %v2441
        %v2603 = vmul.f32 %v1256, %v2446
        %v2604 = vmul.f32 %v1260, %v2451
        %v2605 = vmul.f32 %v1266, %v2456
        %v2606 = vmul.f32 %v1270, %v2461
        %v2607 = vmul.f32 %v1276, %v2466
        %v2608 = vmul.f32 %v1280, %v2471
        %v2609 = vmul.f32 %v1286, %v2476
        %v2610 = vmul.f32 %v1290, %v2481
        %v2611 = vmul.f32 %v1296, %v2486
        %v2612 = vmul.f32 %v1300, %v2491
        %v2613 = vmul.f32 %v1306, %v2496
        %v2614 = vmul.f32 %v1310, %v2501
        %v2615 = vmul.f32 %v1316, %v2506
        %v2616 = vmul.f32 %v1320, %v2511
        %v2617 = vmul.f32 %v1326, %v2516
        %v2618 = vmul.f32 %v1330, %v2521
        %v2619 = vmul.f32 %v1336, %v2526
        %v2620 = vmul.f32 %v1340, %v2531
        %v2621 = vmul.f32 %v1346, %v2536
        %v2622 = vmul.f32 %v1350, %v2541
        %v2623 = vmul.f32 %v1356, %v2546
        %v2624 = vmul.f32 %v1360, %v2551
        %v2625 = vmul.f32 %v1366, %v2556
        %v2626 = vmul.f32 %v1370, %v2561
        %v2627 = vadd.f32 %v2563, %v2564
        %v2628 = vadd.f32 %v2627, %v2565
        %v2629 = vadd.f32 %v2628, %v2566
        %v2630 = vadd.f32 %v2629, %v2567
        %v2631 = vadd.f32 %v2630, %v2568
        %v2632 = vadd.f32 %v2631, %v2569
        %v2633 = vadd.f32 %v2632, %v2570
        %v2634 = vrot.slane %v2633, 4
        %v2635 = vadd.f32 %v2633, %v2634
        %v2636 = vrot.slane %v2635, 2
        %v2637 = vadd.f32 %v2635, %v2636
        %v2638 = vrot.slane %v2637, 1
        %v2639 = vadd.f32 %v2637, %v2638
        %v2640 = vadd.f32 %v2571, %v2572
        %v2641 = vadd.f32 %v2640, %v2573
        %v2642 = vadd.f32 %v2641, %v2574
        %v2643 = vadd.f32 %v2642, %v2575
        %v2644 = vadd.f32 %v2643, %v2576
        %v2645 = vadd.f32 %v2644, %v2577
        %v2646 = vadd.f32 %v2645, %v2578
        %v2647 = vrot.slane %v2646, 4
        %v2648 = vadd.f32 %v2646, %v2647
        %v2649 = vrot.slane %v2648, 2
        %v2650 = vadd.f32 %v2648, %v2649
        %v2651 = vrot.slane %v2650, 1
        %v2652 = vadd.f32 %v2650, %v2651
        %v2653 = vadd.f32 %v2579, %v2580
        %v2654 = vadd.f32 %v2653, %v2581
        %v2655 = vadd.f32 %v2654, %v2582
        %v2656 = vadd.f32 %v2655, %v2583
        %v2657 = vadd.f32 %v2656, %v2584
        %v2658 = vadd.f32 %v2657, %v2585
        %v2659 = vadd.f32 %v2658, %v2586
        %v2660 = vrot.slane %v2659, 4
        %v2661 = vadd.f32 %v2659, %v2660
        %v2662 = vrot.slane %v2661, 2
        %v2663 = vadd.f32 %v2661, %v2662
        %v2664 = vrot.slane %v2663, 1
        %v2665 = vadd.f32 %v2663, %v2664
        %v2666 = vadd.f32 %v2587, %v2588
        %v2667 = vadd.f32 %v2666, %v2589
        %v2668 = vadd.f32 %v2667, %v2590
        %v2669 = vadd.f32 %v2668, %v2591
        %v2670 = vadd.f32 %v2669, %v2592
        %v2671 = vadd.f32 %v2670, %v2593
        %v2672 = vadd.f32 %v2671, %v2594
        %v2673 = vrot.slane %v2672, 4
        %v2674 = vadd.f32 %v2672, %v2673
        %v2675 = vrot.slane %v2674, 2
        %v2676 = vadd.f32 %v2674, %v2675
        %v2677 = vrot.slane %v2676, 1
        %v2678 = vadd.f32 %v2676, %v2677
        %v2679 = vadd.f32 %v2595, %v2596
        %v2680 = vadd.f32 %v2679, %v2597
        %v2681 = vadd.f32 %v2680, %v2598
        %v2682 = vadd.f32 %v2681, %v2599
        %v2683 = vadd.f32 %v2682, %v2600
        %v2684 = vadd.f32 %v2683, %v2601
        %v2685 = vadd.f32 %v2684, %v2602
        %v2686 = vrot.slane %v2685, 4
        %v2687 = vadd.f32 %v2685, %v2686
        %v2688 = vrot.slane %v2687, 2
        %v2689 = vadd.f32 %v2687, %v2688
        %v2690 = vrot.slane %v2689, 1
        %v2691 = vadd.f32 %v2689, %v2690
        %v2692 = vadd.f32 %v2603, %v2604
        %v2693 = vadd.f32 %v2692, %v2605
        %v2694 = vadd.f32 %v2693, %v2606
        %v2695 = vadd.f32 %v2694, %v2607
        %v2696 = vadd.f32 %v2695, %v2608
        %v2697 = vadd.f32 %v2696, %v2609
        %v2698 = vadd.f32 %v2697, %v2610
        %v2699 = vrot.slane %v2698, 4
        %v2700 = vadd.f32 %v2698, %v2699
        %v2701 = vrot.slane %v2700, 2
        %v2702 = vadd.f32 %v2700, %v2701
        %v2703 = vrot.slane %v2702, 1
        %v2704 = vadd.f32 %v2702, %v2703
        %v2705 = vadd.f32 %v2611, %v2612
        %v2706 = vadd.f32 %v2705, %v2613
        %v2707 = vadd.f32 %v2706, %v2614
        %v2708 = vadd.f32 %v2707, %v2615
        %v2709 = vadd.f32 %v2708, %v2616
        %v2710 = vadd.f32 %v2709, %v2617
        %v2711 = vadd.f32 %v2710, %v2618
        %v2712 = vrot.slane %v2711, 4
        %v2713 = vadd.f32 %v2711, %v2712
        %v2714 = vrot.slane %v2713, 2
        %v2715 = vadd.f32 %v2713, %v2714
        %v2716 = vrot.slane %v2715, 1
        %v2717 = vadd.f32 %v2715, %v2716
        %v2718 = vadd.f32 %v2619, %v2620
        %v2719 = vadd.f32 %v2718, %v2621
        %v2720 = vadd.f32 %v2719, %v2622
        %v2721 = vadd.f32 %v2720, %v2623
        %v2722 = vadd.f32 %v2721, %v2624
        %v2723 = vadd.f32 %v2722, %v2625
        %v2724 = vadd.f32 %v2723, %v2626
        %v2725 = vrot.slane %v2724, 4
        %v2726 = vadd.f32 %v2724, %v2725
        %v2727 = vrot.slane %v2726, 2
        %v2728 = vadd.f32 %v2726, %v2727
        %v2729 = vrot.slane %v2728, 1
        %v2730 = vadd.f32 %v2728, %v2729
        %v2731 = vmax.f32 %v1058, 0.0
        %v2732 = vmax.f32 %v1062, 0.0
        %v2733 = vmax.f32 %v1068, 0.0
        %v2734 = vmax.f32 %v1072, 0.0
        %v2735 = vmax.f32 %v1078, 0.0
        %v2736 = vmax.f32 %v1082, 0.0
        %v2737 = vmax.f32 %v1088, 0.0
        %v2738 = vmax.f32 %v1092, 0.0
        %v2739 = vmax.f32 %v1098, 0.0
        %v2740 = vmax.f32 %v1102, 0.0
        %v2741 = vmax.f32 %v1108, 0.0
        %v2742 = vmax.f32 %v1112, 0.0
        %v2743 = vmax.f32 %v1118, 0.0
        %v2744 = vmax.f32 %v1122, 0.0
        %v2745 = vmax.f32 %v1128, 0.0
        %v2746 = vmax.f32 %v1132, 0.0
        %v2747 = vmax.f32 %v1138, 0.0
        %v2748 = vmax.f32 %v1142, 0.0
        %v2749 = vmax.f32 %v1148, 0.0
        %v2750 = vmax.f32 %v1152, 0.0
        %v2751 = vmax.f32 %v1158, 0.0
        %v2752 = vmax.f32 %v1162, 0.0
        %v2753 = vmax.f32 %v1168, 0.0
        %v2754 = vmax.f32 %v1172, 0.0
        %v2755 = vmax.f32 %v1178, 0.0
        %v2756 = vmax.f32 %v1182, 0.0
        %v2757 = vmax.f32 %v1188, 0.0
        %v2758 = vmax.f32 %v1192, 0.0
        %v2759 = vmax.f32 %v1198, 0.0
        %v2760 = vmax.f32 %v1202, 0.0
        %v2761 = vmax.f32 %v1208, 0.0
        %v2762 = vmax.f32 %v1212, 0.0
        %v2763 = vmax.f32 %v1218, 0.0
        %v2764 = vmax.f32 %v1222, 0.0
        %v2765 = vmax.f32 %v1228, 0.0
        %v2766 = vmax.f32 %v1232, 0.0
        %v2767 = vmax.f32 %v1238, 0.0
        %v2768 = vmax.f32 %v1242, 0.0
        %v2769 = vmax.f32 %v1248, 0.0
        %v2770 = vmax.f32 %v1252, 0.0
        %v2771 = vmax.f32 %v1258, 0.0
        %v2772 = vmax.f32 %v1262, 0.0
        %v2773 = vmax.f32 %v1268, 0.0
        %v2774 = vmax.f32 %v1272, 0.0
        %v2775 = vmax.f32 %v1278, 0.0
        %v2776 = vmax.f32 %v1282, 0.0
        %v2777 = vmax.f32 %v1288, 0.0
        %v2778 = vmax.f32 %v1292, 0.0
        %v2779 = vmax.f32 %v1298, 0.0
        %v2780 = vmax.f32 %v1302, 0.0
        %v2781 = vmax.f32 %v1308, 0.0
        %v2782 = vmax.f32 %v1312, 0.0
        %v2783 = vmax.f32 %v1318, 0.0
        %v2784 = vmax.f32 %v1322, 0.0
        %v2785 = vmax.f32 %v1328, 0.0
        %v2786 = vmax.f32 %v1332, 0.0
        %v2787 = vmax.f32 %v1338, 0.0
        %v2788 = vmax.f32 %v1342, 0.0
        %v2789 = vmax.f32 %v1348, 0.0
        %v2790 = vmax.f32 %v1352, 0.0
        %v2791 = vmax.f32 %v1358, 0.0
        %v2792 = vmax.f32 %v1362, 0.0
        %v2793 = vmax.f32 %v1368, 0.0
        %v2794 = vmax.f32 %v1372, 0.0
        %v2795 = vpack.c.bf16 %v2732, %v2731
        %v2796 = vpack.c.bf16 %v2734, %v2733
        %v2797 = vpack.c.bf16 %v2736, %v2735
        %v2798 = vpack.c.bf16 %v2738, %v2737
        %v2799 = vpack.c.bf16 %v2740, %v2739
        %v2800 = vpack.c.bf16 %v2742, %v2741
        %v2801 = vpack.c.bf16 %v2744, %v2743
        %v2802 = vpack.c.bf16 %v2746, %v2745
        %v2803 = vpack.c.bf16 %v2748, %v2747
        %v2804 = vpack.c.bf16 %v2750, %v2749
        %v2805 = vpack.c.bf16 %v2752, %v2751
        %v2806 = vpack.c.bf16 %v2754, %v2753
        %v2807 = vpack.c.bf16 %v2756, %v2755
        %v2808 = vpack.c.bf16 %v2758, %v2757
        %v2809 = vpack.c.bf16 %v2760, %v2759
        %v2810 = vpack.c.bf16 %v2762, %v2761
        %v2811 = vpack.c.bf16 %v2764, %v2763
        %v2812 = vpack.c.bf16 %v2766, %v2765
        %v2813 = vpack.c.bf16 %v2768, %v2767
        %v2814 = vpack.c.bf16 %v2770, %v2769
        %v2815 = vpack.c.bf16 %v2772, %v2771
        %v2816 = vpack.c.bf16 %v2774, %v2773
        %v2817 = vpack.c.bf16 %v2776, %v2775
        %v2818 = vpack.c.bf16 %v2778, %v2777
        %v2819 = vpack.c.bf16 %v2780, %v2779
        %v2820 = vpack.c.bf16 %v2782, %v2781
        %v2821 = vpack.c.bf16 %v2784, %v2783
        %v2822 = vpack.c.bf16 %v2786, %v2785
        %v2823 = vpack.c.bf16 %v2788, %v2787
        %v2824 = vpack.c.bf16 %v2790, %v2789
        %v2825 = vpack.c.bf16 %v2792, %v2791
        %v2826 = vpack.c.bf16 %v2794, %v2793
        %v2827 = vpack.c.bf16 %v2639, %v2639
        %v2828 = vpack.c.bf16 %v2652, %v2652
        %v2829 = vpack.c.bf16 %v2665, %v2665
        %v2830 = vpack.c.bf16 %v2678, %v2678
        %v2831 = vpack.c.bf16 %v2691, %v2691
        %v2832 = vpack.c.bf16 %v2704, %v2704
        %v2833 = vpack.c.bf16 %v2717, %v2717
        %v2834 = vpack.c.bf16 %v2730, %v2730
        %v2835 = vmul.bf16 %v2795, %v2827
        %v2836 = vmul.bf16 %v2796, %v2827
        %v2837 = vmul.bf16 %v2797, %v2827
        %v2838 = vmul.bf16 %v2798, %v2827
        %v2839 = vmul.bf16 %v2799, %v2828
        %v2840 = vmul.bf16 %v2800, %v2828
        %v2841 = vmul.bf16 %v2801, %v2828
        %v2842 = vmul.bf16 %v2802, %v2828
        %v2843 = vmul.bf16 %v2803, %v2829
        %v2844 = vmul.bf16 %v2804, %v2829
        %v2845 = vmul.bf16 %v2805, %v2829
        %v2846 = vmul.bf16 %v2806, %v2829
        %v2847 = vmul.bf16 %v2807, %v2830
        %v2848 = vmul.bf16 %v2808, %v2830
        %v2849 = vmul.bf16 %v2809, %v2830
        %v2850 = vmul.bf16 %v2810, %v2830
        %v2851 = vmul.bf16 %v2811, %v2831
        %v2852 = vmul.bf16 %v2812, %v2831
        %v2853 = vmul.bf16 %v2813, %v2831
        %v2854 = vmul.bf16 %v2814, %v2831
        %v2855 = vmul.bf16 %v2815, %v2832
        %v2856 = vmul.bf16 %v2816, %v2832
        %v2857 = vmul.bf16 %v2817, %v2832
        %v2858 = vmul.bf16 %v2818, %v2832
        %v2859 = vmul.bf16 %v2819, %v2833
        %v2860 = vmul.bf16 %v2820, %v2833
        %v2861 = vmul.bf16 %v2821, %v2833
        %v2862 = vmul.bf16 %v2822, %v2833
        %v2863 = vmul.bf16 %v2823, %v2834
        %v2864 = vmul.bf16 %v2824, %v2834
        %v2865 = vmul.bf16 %v2825, %v2834
        %v2866 = vmul.bf16 %v2826, %v2834
        %v2868 = vlaneseq
        %v2869 = vshrl.u32 %v2868, 7
        %v2870 = vsub.s32 0, %v2869
        %v2871 = vrot.slane %v705, %v2870
        %v2889 = vunpack.c.l.b16 %v689
        %v2890 = vunpack.c.l.b16 %v690
        %v2891 = vunpack.c.l.b16 %v691
        %v2892 = vunpack.c.l.b16 %v692
        %v2893 = vunpack.c.l.b16 %v693
        %v2894 = vunpack.c.l.b16 %v694
        %v2895 = vunpack.c.l.b16 %v695
        %v2896 = vunpack.c.l.b16 %v696
        %v2897 = vunpack.c.l.b16 %v697
        %v2898 = vunpack.c.l.b16 %v698
        %v2899 = vunpack.c.l.b16 %v699
        %v2900 = vunpack.c.l.b16 %v700
        %v2901 = vunpack.c.l.b16 %v701
        %v2902 = vunpack.c.l.b16 %v702
        %v2903 = vunpack.c.l.b16 %v703
        %v2904 = vunpack.c.l.b16 %v704
        %v2905 = vpack.c.b16 %v2890, %v2889
        %v2906 = vpack.c.b16 %v2892, %v2891
        %v2907 = vpack.c.b16 %v2894, %v2893
        %v2908 = vpack.c.b16 %v2896, %v2895
        %v2909 = vpack.c.b16 %v2898, %v2897
        %v2910 = vpack.c.b16 %v2900, %v2899
        %v2911 = vpack.c.b16 %v2902, %v2901
        %v2912 = vpack.c.b16 %v2904, %v2903
        %2921 = vmatprep.subr.bf16.mxu0 0
        %2922 = vmatpush1.bf16.msra.mxu0 %v2905
        %2923 = vmatprep.subr.bf16.mxu0 0
        %2924 = vmatpush1.bf16.msra.mxu0 %v2906
        %2925 = vmatprep.subr.bf16.mxu0 0
        %2926 = vmatpush1.bf16.msra.mxu0 %v2907
        %2927 = vmatprep.subr.bf16.mxu0 0
        %2928 = vmatpush1.bf16.msra.mxu0 %v2908
        %2929 = vmatprep.subr.bf16.mxu0 0
        %2930 = vmatpush1.bf16.msra.mxu0 %v2909
        %2931 = vmatprep.subr.bf16.mxu0 0
        %2932 = vmatpush1.bf16.msra.mxu0 %v2910
        %2933 = vmatprep.subr.bf16.mxu0 0
        %2934 = vmatpush1.bf16.msra.mxu0 %v2911
        %2935 = vmatprep.subr.bf16.mxu0 0
        %2936 = vmatpush1.bf16.msra.mxu0 %v2912
        %2937 = vmatprep.subr.bf16.mxu0 0
        %2938 = vmatpush1.bf16.msra.mxu0 0
        %2939 = vmatprep.subr.bf16.mxu0 0
        %2940 = vmatpush1.bf16.msra.mxu0 0
        %2941 = vmatprep.subr.bf16.mxu0 0
        %2942 = vmatpush1.bf16.msra.mxu0 0
        %2943 = vmatprep.subr.bf16.mxu0 0
        %2944 = vmatpush1.bf16.msra.mxu0 0
        %2945 = vmatprep.subr.bf16.mxu0 0
        %2946 = vmatpush1.bf16.msra.mxu0 0
        %2947 = vmatprep.subr.bf16.mxu0 0
        %2948 = vmatpush1.bf16.msra.mxu0 0
        %2949 = vmatprep.subr.bf16.mxu0 0
        %2950 = vmatpush1.bf16.msra.mxu0 0
        %2951 = vmatprep.subr.bf16.mxu0 0
        %2952 = vmatpush1.bf16.msra.mxu0 0
        %2953 = vmatprep.mubr.bf16.mxu0 0
        %2954 = vmatmul.mubr.bf16.gmra.mrb[0].mxu0 %v2835
        %v2955 = vpop.f32.mrb[0].mxu0
        %v2956 = vadd.f32 %v2871, %v2955
        %v2957 = vpop.f32.mrb[0].mxu0
        %v2958 = vpop.f32.mrb[0].mxu0
        %v2959 = vadd.f32 %v2871, %v2958
        %v2960 = vpop.f32.mrb[0].mxu0
        %2961 = vmatprep.mubr.bf16.mxu0 0
        %2962 = vmatmul.mubr.bf16.gmra.mrb[0].mxu0 %v2836
        %v2963 = vpop.f32.mrb[0].mxu0
        %v2964 = vadd.f32 %v2871, %v2963
        %v2965 = vpop.f32.mrb[0].mxu0
        %v2966 = vpop.f32.mrb[0].mxu0
        %v2967 = vadd.f32 %v2871, %v2966
        %v2968 = vpop.f32.mrb[0].mxu0
        %2969 = vmatprep.mubr.bf16.mxu0 0
        %2970 = vmatmul.mubr.bf16.gmra.mrb[0].mxu0 %v2837
        %v2971 = vpop.f32.mrb[0].mxu0
        %v2972 = vadd.f32 %v2871, %v2971
        %v2973 = vpop.f32.mrb[0].mxu0
        %v2974 = vpop.f32.mrb[0].mxu0
        %v2975 = vadd.f32 %v2871, %v2974
        %v2976 = vpop.f32.mrb[0].mxu0
        %2977 = vmatprep.mubr.bf16.mxu0 0
        %2978 = vmatmul.mubr.bf16.gmra.mrb[0].mxu0 %v2838
        %v2979 = vpop.f32.mrb[0].mxu0
        %v2980 = vadd.f32 %v2871, %v2979
        %v2981 = vpop.f32.mrb[0].mxu0
        %v2982 = vpop.f32.mrb[0].mxu0
        %v2983 = vadd.f32 %v2871, %v2982
        %v2984 = vpop.f32.mrb[0].mxu0
        %2985 = vmatprep.mubr.bf16.mxu0 0
        %2986 = vmatmul.mubr.bf16.gmra.mrb[0].mxu0 %v2839
        %v2987 = vpop.f32.mrb[0].mxu0
        %v2988 = vadd.f32 %v2871, %v2987
        %v2989 = vpop.f32.mrb[0].mxu0
        %v2990 = vpop.f32.mrb[0].mxu0
        %v2991 = vadd.f32 %v2871, %v2990
        %v2992 = vpop.f32.mrb[0].mxu0
        %2993 = vmatprep.mubr.bf16.mxu0 0
        %2994 = vmatmul.mubr.bf16.gmra.mrb[0].mxu0 %v2840
        %v2995 = vpop.f32.mrb[0].mxu0
        %v2996 = vadd.f32 %v2871, %v2995
        %v2997 = vpop.f32.mrb[0].mxu0
        %v2998 = vpop.f32.mrb[0].mxu0
        %v2999 = vadd.f32 %v2871, %v2998
        %v3000 = vpop.f32.mrb[0].mxu0
        %3001 = vmatprep.mubr.bf16.mxu0 0
        %3002 = vmatmul.mubr.bf16.gmra.mrb[0].mxu0 %v2841
        %v3003 = vpop.f32.mrb[0].mxu0
        %v3004 = vadd.f32 %v2871, %v3003
        %v3005 = vpop.f32.mrb[0].mxu0
        %v3006 = vpop.f32.mrb[0].mxu0
        %v3007 = vadd.f32 %v2871, %v3006
        %v3008 = vpop.f32.mrb[0].mxu0
        %3009 = vmatprep.mubr.bf16.mxu0 0
        %3010 = vmatmul.mubr.bf16.gmra.mrb[0].mxu0 %v2842
        %v3011 = vpop.f32.mrb[0].mxu0
        %v3012 = vadd.f32 %v2871, %v3011
        %v3013 = vpop.f32.mrb[0].mxu0
        %v3014 = vpop.f32.mrb[0].mxu0
        %v3015 = vadd.f32 %v2871, %v3014
        %v3016 = vpop.f32.mrb[0].mxu0
        %3017 = vmatprep.mubr.bf16.mxu0 0
        %3018 = vmatmul.mubr.bf16.gmra.mrb[0].mxu0 %v2843
        %v3019 = vpop.f32.mrb[0].mxu0
        %v3020 = vadd.f32 %v2871, %v3019
        %v3021 = vpop.f32.mrb[0].mxu0
        %v3022 = vpop.f32.mrb[0].mxu0
        %v3023 = vadd.f32 %v2871, %v3022
        %v3024 = vpop.f32.mrb[0].mxu0
        %3025 = vmatprep.mubr.bf16.mxu0 0
        %3026 = vmatmul.mubr.bf16.gmra.mrb[0].mxu0 %v2844
        %v3027 = vpop.f32.mrb[0].mxu0
        %v3028 = vadd.f32 %v2871, %v3027
        %v3029 = vpop.f32.mrb[0].mxu0
        %v3030 = vpop.f32.mrb[0].mxu0
        %v3031 = vadd.f32 %v2871, %v3030
        %v3032 = vpop.f32.mrb[0].mxu0
        %3033 = vmatprep.mubr.bf16.mxu0 0
        %3034 = vmatmul.mubr.bf16.gmra.mrb[0].mxu0 %v2845
        %v3035 = vpop.f32.mrb[0].mxu0
        %v3036 = vadd.f32 %v2871, %v3035
        %v3037 = vpop.f32.mrb[0].mxu0
        %v3038 = vpop.f32.mrb[0].mxu0
        %v3039 = vadd.f32 %v2871, %v3038
        %v3040 = vpop.f32.mrb[0].mxu0
        %3041 = vmatprep.mubr.bf16.mxu0 0
        %3042 = vmatmul.mubr.bf16.gmra.mrb[0].mxu0 %v2846
        %v3043 = vpop.f32.mrb[0].mxu0
        %v3044 = vadd.f32 %v2871, %v3043
        %v3045 = vpop.f32.mrb[0].mxu0
        %v3046 = vpop.f32.mrb[0].mxu0
        %v3047 = vadd.f32 %v2871, %v3046
        %v3048 = vpop.f32.mrb[0].mxu0
        %3049 = vmatprep.mubr.bf16.mxu0 0
        %3050 = vmatmul.mubr.bf16.gmra.mrb[0].mxu0 %v2847
        %v3051 = vpop.f32.mrb[0].mxu0
        %v3052 = vadd.f32 %v2871, %v3051
        %v3053 = vpop.f32.mrb[0].mxu0
        %v3054 = vpop.f32.mrb[0].mxu0
        %v3055 = vadd.f32 %v2871, %v3054
        %v3056 = vpop.f32.mrb[0].mxu0
        %3057 = vmatprep.mubr.bf16.mxu0 0
        %3058 = vmatmul.mubr.bf16.gmra.mrb[0].mxu0 %v2848
        %v3059 = vpop.f32.mrb[0].mxu0
        %v3060 = vadd.f32 %v2871, %v3059
        %v3061 = vpop.f32.mrb[0].mxu0
        %v3062 = vpop.f32.mrb[0].mxu0
        %v3063 = vadd.f32 %v2871, %v3062
        %v3064 = vpop.f32.mrb[0].mxu0
        %3065 = vmatprep.mubr.bf16.mxu0 0
        %3066 = vmatmul.mubr.bf16.gmra.mrb[0].mxu0 %v2849
        %v3067 = vpop.f32.mrb[0].mxu0
        %v3068 = vadd.f32 %v2871, %v3067
        %v3069 = vpop.f32.mrb[0].mxu0
        %v3070 = vpop.f32.mrb[0].mxu0
        %v3071 = vadd.f32 %v2871, %v3070
        %v3072 = vpop.f32.mrb[0].mxu0
        %3073 = vmatprep.mubr.bf16.mxu0 0
        %3074 = vmatmul.mubr.bf16.gmra.mrb[0].mxu0 %v2850
        %v3075 = vpop.f32.mrb[0].mxu0
        %v3076 = vadd.f32 %v2871, %v3075
        %v3077 = vpop.f32.mrb[0].mxu0
        %v3078 = vpop.f32.mrb[0].mxu0
        %v3079 = vadd.f32 %v2871, %v3078
        %v3080 = vpop.f32.mrb[0].mxu0
        %3081 = vmatprep.mubr.bf16.mxu0 0
        %3082 = vmatmul.mubr.bf16.gmra.mrb[0].mxu0 %v2851
        %v3083 = vpop.f32.mrb[0].mxu0
        %v3084 = vadd.f32 %v2871, %v3083
        %v3085 = vpop.f32.mrb[0].mxu0
        %v3086 = vpop.f32.mrb[0].mxu0
        %v3087 = vadd.f32 %v2871, %v3086
        %v3088 = vpop.f32.mrb[0].mxu0
        %3089 = vmatprep.mubr.bf16.mxu0 0
        %3090 = vmatmul.mubr.bf16.gmra.mrb[0].mxu0 %v2852
        %v3091 = vpop.f32.mrb[0].mxu0
        %v3092 = vadd.f32 %v2871, %v3091
        %v3093 = vpop.f32.mrb[0].mxu0
        %v3094 = vpop.f32.mrb[0].mxu0
        %v3095 = vadd.f32 %v2871, %v3094
        %v3096 = vpop.f32.mrb[0].mxu0
        %3097 = vmatprep.mubr.bf16.mxu0 0
        %3098 = vmatmul.mubr.bf16.gmra.mrb[0].mxu0 %v2853
        %v3099 = vpop.f32.mrb[0].mxu0
        %v3100 = vadd.f32 %v2871, %v3099
        %v3101 = vpop.f32.mrb[0].mxu0
        %v3102 = vpop.f32.mrb[0].mxu0
        %v3103 = vadd.f32 %v2871, %v3102
        %v3104 = vpop.f32.mrb[0].mxu0
        %3105 = vmatprep.mubr.bf16.mxu0 0
        %3106 = vmatmul.mubr.bf16.gmra.mrb[0].mxu0 %v2854
        %v3107 = vpop.f32.mrb[0].mxu0
        %v3108 = vadd.f32 %v2871, %v3107
        %v3109 = vpop.f32.mrb[0].mxu0
        %v3110 = vpop.f32.mrb[0].mxu0
        %v3111 = vadd.f32 %v2871, %v3110
        %v3112 = vpop.f32.mrb[0].mxu0
        %3113 = vmatprep.mubr.bf16.mxu0 0
        %3114 = vmatmul.mubr.bf16.gmra.mrb[0].mxu0 %v2855
        %v3115 = vpop.f32.mrb[0].mxu0
        %v3116 = vadd.f32 %v2871, %v3115
        %v3117 = vpop.f32.mrb[0].mxu0
        %v3118 = vpop.f32.mrb[0].mxu0
        %v3119 = vadd.f32 %v2871, %v3118
        %v3120 = vpop.f32.mrb[0].mxu0
        %3121 = vmatprep.mubr.bf16.mxu0 0
        %3122 = vmatmul.mubr.bf16.gmra.mrb[0].mxu0 %v2856
        %v3123 = vpop.f32.mrb[0].mxu0
        %v3124 = vadd.f32 %v2871, %v3123
        %v3125 = vpop.f32.mrb[0].mxu0
        %v3126 = vpop.f32.mrb[0].mxu0
        %v3127 = vadd.f32 %v2871, %v3126
        %v3128 = vpop.f32.mrb[0].mxu0
        %3129 = vmatprep.mubr.bf16.mxu0 0
        %3130 = vmatmul.mubr.bf16.gmra.mrb[0].mxu0 %v2857
        %v3131 = vpop.f32.mrb[0].mxu0
        %v3132 = vadd.f32 %v2871, %v3131
        %v3133 = vpop.f32.mrb[0].mxu0
        %v3134 = vpop.f32.mrb[0].mxu0
        %v3135 = vadd.f32 %v2871, %v3134
        %v3136 = vpop.f32.mrb[0].mxu0
        %3137 = vmatprep.mubr.bf16.mxu0 0
        %3138 = vmatmul.mubr.bf16.gmra.mrb[0].mxu0 %v2858
        %v3139 = vpop.f32.mrb[0].mxu0
        %v3140 = vadd.f32 %v2871, %v3139
        %v3141 = vpop.f32.mrb[0].mxu0
        %v3142 = vpop.f32.mrb[0].mxu0
        %v3143 = vadd.f32 %v2871, %v3142
        %v3144 = vpop.f32.mrb[0].mxu0
        %3145 = vmatprep.mubr.bf16.mxu0 0
        %3146 = vmatmul.mubr.bf16.gmra.mrb[0].mxu0 %v2859
        %v3147 = vpop.f32.mrb[0].mxu0
        %v3148 = vadd.f32 %v2871, %v3147
        %v3149 = vpop.f32.mrb[0].mxu0
        %v3150 = vpop.f32.mrb[0].mxu0
        %v3151 = vadd.f32 %v2871, %v3150
        %v3152 = vpop.f32.mrb[0].mxu0
        %3153 = vmatprep.mubr.bf16.mxu0 0
        %3154 = vmatmul.mubr.bf16.gmra.mrb[0].mxu0 %v2860
        %v3155 = vpop.f32.mrb[0].mxu0
        %v3156 = vadd.f32 %v2871, %v3155
        %v3157 = vpop.f32.mrb[0].mxu0
        %v3158 = vpop.f32.mrb[0].mxu0
        %v3159 = vadd.f32 %v2871, %v3158
        %v3160 = vpop.f32.mrb[0].mxu0
        %3161 = vmatprep.mubr.bf16.mxu0 0
        %3162 = vmatmul.mubr.bf16.gmra.mrb[0].mxu0 %v2861
        %v3163 = vpop.f32.mrb[0].mxu0
        %v3164 = vadd.f32 %v2871, %v3163
        %v3165 = vpop.f32.mrb[0].mxu0
        %v3166 = vpop.f32.mrb[0].mxu0
        %v3167 = vadd.f32 %v2871, %v3166
        %v3168 = vpop.f32.mrb[0].mxu0
        %3169 = vmatprep.mubr.bf16.mxu0 0
        %3170 = vmatmul.mubr.bf16.gmra.mrb[0].mxu0 %v2862
        %v3171 = vpop.f32.mrb[0].mxu0
        %v3172 = vadd.f32 %v2871, %v3171
        %v3173 = vpop.f32.mrb[0].mxu0
        %v3174 = vpop.f32.mrb[0].mxu0
        %v3175 = vadd.f32 %v2871, %v3174
        %v3176 = vpop.f32.mrb[0].mxu0
        %3177 = vmatprep.mubr.bf16.mxu0 0
        %3178 = vmatmul.mubr.bf16.gmra.mrb[0].mxu0 %v2863
        %v3179 = vpop.f32.mrb[0].mxu0
        %v3180 = vadd.f32 %v2871, %v3179
        %v3181 = vpop.f32.mrb[0].mxu0
        %v3182 = vpop.f32.mrb[0].mxu0
        %v3183 = vadd.f32 %v2871, %v3182
        %v3184 = vpop.f32.mrb[0].mxu0
        %3185 = vmatprep.mubr.bf16.mxu0 0
        %3186 = vmatmul.mubr.bf16.gmra.mrb[0].mxu0 %v2864
        %v3187 = vpop.f32.mrb[0].mxu0
        %v3188 = vadd.f32 %v2871, %v3187
        %v3189 = vpop.f32.mrb[0].mxu0
        %v3190 = vpop.f32.mrb[0].mxu0
        %v3191 = vadd.f32 %v2871, %v3190
        %v3192 = vpop.f32.mrb[0].mxu0
        %3193 = vmatprep.mubr.bf16.mxu0 0
        %3194 = vmatmul.mubr.bf16.gmra.mrb[0].mxu0 %v2865
        %v3195 = vpop.f32.mrb[0].mxu0
        %v3196 = vadd.f32 %v2871, %v3195
        %v3197 = vpop.f32.mrb[0].mxu0
        %v3198 = vpop.f32.mrb[0].mxu0
        %v3199 = vadd.f32 %v2871, %v3198
        %v3200 = vpop.f32.mrb[0].mxu0
        %3201 = vmatprep.mubr.bf16.mxu0 0
        %3202 = vmatmul.mubr.bf16.gmra.mrb[0].mxu0 %v2866
        %v3203 = vpop.f32.mrb[0].mxu0
        %v3204 = vadd.f32 %v2871, %v3203
        %v3205 = vpop.f32.mrb[0].mxu0
        %v3206 = vpop.f32.mrb[0].mxu0
        %v3207 = vadd.f32 %v2871, %v3206
        %v3208 = vpop.f32.mrb[0].mxu0
        %3209 = vdwg.mxu0
        %v3210 = vadd.f32 %v604, %v2956
        %v3211 = vadd.f32 %v605, %v2959
        %v3212 = vadd.f32 %v606, %v2964
        %v3213 = vadd.f32 %v607, %v2967
        %v3214 = vadd.f32 %v608, %v2972
        %v3215 = vadd.f32 %v609, %v2975
        %v3216 = vadd.f32 %v610, %v2980
        %v3217 = vadd.f32 %v611, %v2983
        %v3218 = vadd.f32 %v612, %v2988
        %v3219 = vadd.f32 %v613, %v2991
        %v3220 = vadd.f32 %v614, %v2996
        %v3221 = vadd.f32 %v615, %v2999
        %v3222 = vadd.f32 %v616, %v3004
        %v3223 = vadd.f32 %v617, %v3007
        %v3224 = vadd.f32 %v618, %v3012
        %v3225 = vadd.f32 %v619, %v3015
        %v3226 = vadd.f32 %v620, %v3020
        %v3227 = vadd.f32 %v621, %v3023
        %v3228 = vadd.f32 %v622, %v3028
        %v3229 = vadd.f32 %v623, %v3031
        %v3230 = vadd.f32 %v624, %v3036
        %v3231 = vadd.f32 %v625, %v3039
        %v3232 = vadd.f32 %v626, %v3044
        %v3233 = vadd.f32 %v627, %v3047
        %v3234 = vadd.f32 %v628, %v3052
        %v3235 = vadd.f32 %v629, %v3055
        %v3236 = vadd.f32 %v630, %v3060
        %v3237 = vadd.f32 %v631, %v3063
        %v3238 = vadd.f32 %v632, %v3068
        %v3239 = vadd.f32 %v633, %v3071
        %v3240 = vadd.f32 %v634, %v3076
        %v3241 = vadd.f32 %v635, %v3079
        %v3242 = vadd.f32 %v636, %v3084
        %v3243 = vadd.f32 %v637, %v3087
        %v3244 = vadd.f32 %v638, %v3092
        %v3245 = vadd.f32 %v639, %v3095
        %v3246 = vadd.f32 %v640, %v3100
        %v3247 = vadd.f32 %v641, %v3103
        %v3248 = vadd.f32 %v642, %v3108
        %v3249 = vadd.f32 %v643, %v3111
        %v3250 = vadd.f32 %v644, %v3116
        %v3251 = vadd.f32 %v645, %v3119
        %v3252 = vadd.f32 %v646, %v3124
        %v3253 = vadd.f32 %v647, %v3127
        %v3254 = vadd.f32 %v648, %v3132
        %v3255 = vadd.f32 %v649, %v3135
        %v3256 = vadd.f32 %v650, %v3140
        %v3257 = vadd.f32 %v651, %v3143
        %v3258 = vadd.f32 %v652, %v3148
        %v3259 = vadd.f32 %v653, %v3151
        %v3260 = vadd.f32 %v654, %v3156
        %v3261 = vadd.f32 %v655, %v3159
        %v3262 = vadd.f32 %v656, %v3164
        %v3263 = vadd.f32 %v657, %v3167
        %v3264 = vadd.f32 %v658, %v3172
        %v3265 = vadd.f32 %v659, %v3175
        %v3266 = vadd.f32 %v660, %v3180
        %v3267 = vadd.f32 %v661, %v3183
        %v3268 = vadd.f32 %v662, %v3188
        %v3269 = vadd.f32 %v663, %v3191
        %v3270 = vadd.f32 %v664, %v3196
        %v3271 = vadd.f32 %v665, %v3199
        %v3272 = vadd.f32 %v666, %v3204
        %v3273 = vadd.f32 %v667, %v3207
        %v3275 = vlaneseq
        %v3276 = vshrl.u32 %v3275, 7
        %v3277 = vsub.s32 0, %v3276
        %v3278 = vrot.slane %v706, %v3277
        %v3280 = vmul.f32 %v3210, %v3278
        %v3281 = vmul.f32 %v3211, %v3278
        %v3282 = vmul.f32 %v3212, %v3278
        %v3283 = vmul.f32 %v3213, %v3278
        %v3284 = vmul.f32 %v3214, %v3278
        %v3285 = vmul.f32 %v3215, %v3278
        %v3286 = vmul.f32 %v3216, %v3278
        %v3287 = vmul.f32 %v3217, %v3278
        %v3288 = vmul.f32 %v3218, %v3278
        %v3289 = vmul.f32 %v3219, %v3278
        %v3290 = vmul.f32 %v3220, %v3278
        %v3291 = vmul.f32 %v3221, %v3278
        %v3292 = vmul.f32 %v3222, %v3278
        %v3293 = vmul.f32 %v3223, %v3278
        %v3294 = vmul.f32 %v3224, %v3278
        %v3295 = vmul.f32 %v3225, %v3278
        %v3296 = vmul.f32 %v3226, %v3278
        %v3297 = vmul.f32 %v3227, %v3278
        %v3298 = vmul.f32 %v3228, %v3278
        %v3299 = vmul.f32 %v3229, %v3278
        %v3300 = vmul.f32 %v3230, %v3278
        %v3301 = vmul.f32 %v3231, %v3278
        %v3302 = vmul.f32 %v3232, %v3278
        %v3303 = vmul.f32 %v3233, %v3278
        %v3304 = vmul.f32 %v3234, %v3278
        %v3305 = vmul.f32 %v3235, %v3278
        %v3306 = vmul.f32 %v3236, %v3278
        %v3307 = vmul.f32 %v3237, %v3278
        %v3308 = vmul.f32 %v3238, %v3278
        %v3309 = vmul.f32 %v3239, %v3278
        %v3310 = vmul.f32 %v3240, %v3278
        %v3311 = vmul.f32 %v3241, %v3278
        %v3312 = vmul.f32 %v3242, %v3278
        %v3313 = vmul.f32 %v3243, %v3278
        %v3314 = vmul.f32 %v3244, %v3278
        %v3315 = vmul.f32 %v3245, %v3278
        %v3316 = vmul.f32 %v3246, %v3278
        %v3317 = vmul.f32 %v3247, %v3278
        %v3318 = vmul.f32 %v3248, %v3278
        %v3319 = vmul.f32 %v3249, %v3278
        %v3320 = vmul.f32 %v3250, %v3278
        %v3321 = vmul.f32 %v3251, %v3278
        %v3322 = vmul.f32 %v3252, %v3278
        %v3323 = vmul.f32 %v3253, %v3278
        %v3324 = vmul.f32 %v3254, %v3278
        %v3325 = vmul.f32 %v3255, %v3278
        %v3326 = vmul.f32 %v3256, %v3278
        %v3327 = vmul.f32 %v3257, %v3278
        %v3328 = vmul.f32 %v3258, %v3278
        %v3329 = vmul.f32 %v3259, %v3278
        %v3330 = vmul.f32 %v3260, %v3278
        %v3331 = vmul.f32 %v3261, %v3278
        %v3332 = vmul.f32 %v3262, %v3278
        %v3333 = vmul.f32 %v3263, %v3278
        %v3334 = vmul.f32 %v3264, %v3278
        %v3335 = vmul.f32 %v3265, %v3278
        %v3336 = vmul.f32 %v3266, %v3278
        %v3337 = vmul.f32 %v3267, %v3278
        %v3338 = vmul.f32 %v3268, %v3278
        %v3339 = vmul.f32 %v3269, %v3278
        %v3340 = vmul.f32 %v3270, %v3278
        %v3341 = vmul.f32 %v3271, %v3278
        %v3342 = vmul.f32 %v3272, %v3278
        %v3343 = vmul.f32 %v3273, %v3278
        %v3345 = vlaneseq
        %v3346 = vshrl.u32 %v3345, 7
        %v3347 = vsub.s32 0, %v3346
        %v3348 = vrot.slane %v707, %v3347
        %v3350 = vadd.f32 %v3280, %v3348
        %v3351 = vadd.f32 %v3281, %v3348
        %v3352 = vadd.f32 %v3282, %v3348
        %v3353 = vadd.f32 %v3283, %v3348
        %v3354 = vadd.f32 %v3284, %v3348
        %v3355 = vadd.f32 %v3285, %v3348
        %v3356 = vadd.f32 %v3286, %v3348
        %v3357 = vadd.f32 %v3287, %v3348
        %v3358 = vadd.f32 %v3288, %v3348
        %v3359 = vadd.f32 %v3289, %v3348
        %v3360 = vadd.f32 %v3290, %v3348
        %v3361 = vadd.f32 %v3291, %v3348
        %v3362 = vadd.f32 %v3292, %v3348
        %v3363 = vadd.f32 %v3293, %v3348
        %v3364 = vadd.f32 %v3294, %v3348
        %v3365 = vadd.f32 %v3295, %v3348
        %v3366 = vadd.f32 %v3296, %v3348
        %v3367 = vadd.f32 %v3297, %v3348
        %v3368 = vadd.f32 %v3298, %v3348
        %v3369 = vadd.f32 %v3299, %v3348
        %v3370 = vadd.f32 %v3300, %v3348
        %v3371 = vadd.f32 %v3301, %v3348
        %v3372 = vadd.f32 %v3302, %v3348
        %v3373 = vadd.f32 %v3303, %v3348
        %v3374 = vadd.f32 %v3304, %v3348
        %v3375 = vadd.f32 %v3305, %v3348
        %v3376 = vadd.f32 %v3306, %v3348
        %v3377 = vadd.f32 %v3307, %v3348
        %v3378 = vadd.f32 %v3308, %v3348
        %v3379 = vadd.f32 %v3309, %v3348
        %v3380 = vadd.f32 %v3310, %v3348
        %v3381 = vadd.f32 %v3311, %v3348
        %v3382 = vadd.f32 %v3312, %v3348
        %v3383 = vadd.f32 %v3313, %v3348
        %v3384 = vadd.f32 %v3314, %v3348
        %v3385 = vadd.f32 %v3315, %v3348
        %v3386 = vadd.f32 %v3316, %v3348
        %v3387 = vadd.f32 %v3317, %v3348
        %v3388 = vadd.f32 %v3318, %v3348
        %v3389 = vadd.f32 %v3319, %v3348
        %v3390 = vadd.f32 %v3320, %v3348
        %v3391 = vadd.f32 %v3321, %v3348
        %v3392 = vadd.f32 %v3322, %v3348
        %v3393 = vadd.f32 %v3323, %v3348
        %v3394 = vadd.f32 %v3324, %v3348
        %v3395 = vadd.f32 %v3325, %v3348
        %v3396 = vadd.f32 %v3326, %v3348
        %v3397 = vadd.f32 %v3327, %v3348
        %v3398 = vadd.f32 %v3328, %v3348
        %v3399 = vadd.f32 %v3329, %v3348
        %v3400 = vadd.f32 %v3330, %v3348
        %v3401 = vadd.f32 %v3331, %v3348
        %v3402 = vadd.f32 %v3332, %v3348
        %v3403 = vadd.f32 %v3333, %v3348
        %v3404 = vadd.f32 %v3334, %v3348
        %v3405 = vadd.f32 %v3335, %v3348
        %v3406 = vadd.f32 %v3336, %v3348
        %v3407 = vadd.f32 %v3337, %v3348
        %v3408 = vadd.f32 %v3338, %v3348
        %v3409 = vadd.f32 %v3339, %v3348
        %v3410 = vadd.f32 %v3340, %v3348
        %v3411 = vadd.f32 %v3341, %v3348
        %v3412 = vadd.f32 %v3342, %v3348
        %v3413 = vadd.f32 %v3343, %v3348
        %v3414 = vpack.c.bf16 %v3351, %v3350
        %v3415 = vpack.c.bf16 %v3353, %v3352
        %v3416 = vpack.c.bf16 %v3355, %v3354
        %v3417 = vpack.c.bf16 %v3357, %v3356
        %v3418 = vpack.c.bf16 %v3359, %v3358
        %v3419 = vpack.c.bf16 %v3361, %v3360
        %v3420 = vpack.c.bf16 %v3363, %v3362
        %v3421 = vpack.c.bf16 %v3365, %v3364
        %v3422 = vpack.c.bf16 %v3367, %v3366
        %v3423 = vpack.c.bf16 %v3369, %v3368
        %v3424 = vpack.c.bf16 %v3371, %v3370
        %v3425 = vpack.c.bf16 %v3373, %v3372
        %v3426 = vpack.c.bf16 %v3375, %v3374
        %v3427 = vpack.c.bf16 %v3377, %v3376
        %v3428 = vpack.c.bf16 %v3379, %v3378
        %v3429 = vpack.c.bf16 %v3381, %v3380
        %v3430 = vpack.c.bf16 %v3383, %v3382
        %v3431 = vpack.c.bf16 %v3385, %v3384
        %v3432 = vpack.c.bf16 %v3387, %v3386
        %v3433 = vpack.c.bf16 %v3389, %v3388
        %v3434 = vpack.c.bf16 %v3391, %v3390
        %v3435 = vpack.c.bf16 %v3393, %v3392
        %v3436 = vpack.c.bf16 %v3395, %v3394
        %v3437 = vpack.c.bf16 %v3397, %v3396
        %v3438 = vpack.c.bf16 %v3399, %v3398
        %v3439 = vpack.c.bf16 %v3401, %v3400
        %v3440 = vpack.c.bf16 %v3403, %v3402
        %v3441 = vpack.c.bf16 %v3405, %v3404
        %v3442 = vpack.c.bf16 %v3407, %v3406
        %v3443 = vpack.c.bf16 %v3409, %v3408
        %v3444 = vpack.c.bf16 %v3411, %v3410
        %v3445 = vpack.c.bf16 %v3413, %v3412
        %v3447 = vlaneseq
        %v3448 = vshrl.u32 %v3447, 7
        %v3449 = vsub.s32 0, %v3448
        %v3450 = vrot.slane %v724, %v3449
        %v3451 = vlaneseq
        %v3452 = vshrl.u32 %v3451, 7
        %v3453 = vsub.s32 1, %v3452
        %v3454 = vrot.slane %v724, %v3453
        %v3473 = vunpack.c.l.b16 %v708
        %v3474 = vunpack.c.h.b16 %v708
        %v3475 = vunpack.c.l.b16 %v709
        %v3476 = vunpack.c.h.b16 %v709
        %v3477 = vunpack.c.l.b16 %v710
        %v3478 = vunpack.c.h.b16 %v710
        %v3479 = vunpack.c.l.b16 %v711
        %v3480 = vunpack.c.h.b16 %v711
        %v3481 = vunpack.c.l.b16 %v712
        %v3482 = vunpack.c.h.b16 %v712
        %v3483 = vunpack.c.l.b16 %v713
        %v3484 = vunpack.c.h.b16 %v713
        %v3485 = vunpack.c.l.b16 %v714
        %v3486 = vunpack.c.h.b16 %v714
        %v3487 = vunpack.c.l.b16 %v715
        %v3488 = vunpack.c.h.b16 %v715
        %v3489 = vunpack.c.l.b16 %v716
        %v3490 = vunpack.c.h.b16 %v716
        %v3491 = vunpack.c.l.b16 %v717
        %v3492 = vunpack.c.h.b16 %v717
        %v3493 = vunpack.c.l.b16 %v718
        %v3494 = vunpack.c.h.b16 %v718
        %v3495 = vunpack.c.l.b16 %v719
        %v3496 = vunpack.c.h.b16 %v719
        %v3497 = vunpack.c.l.b16 %v720
        %v3498 = vunpack.c.h.b16 %v720
        %v3499 = vunpack.c.l.b16 %v721
        %v3500 = vunpack.c.h.b16 %v721
        %v3501 = vunpack.c.l.b16 %v722
        %v3502 = vunpack.c.h.b16 %v722
        %v3503 = vunpack.c.l.b16 %v723
        %v3504 = vunpack.c.h.b16 %v723
        %v3505 = vpack.c.b16 %v3475, %v3473
        %v3506 = vpack.c.b16 %v3476, %v3474
        %v3507 = vpack.c.b16 %v3479, %v3477
        %v3508 = vpack.c.b16 %v3480, %v3478
        %v3509 = vpack.c.b16 %v3483, %v3481
        %v3510 = vpack.c.b16 %v3484, %v3482
        %v3511 = vpack.c.b16 %v3487, %v3485
        %v3512 = vpack.c.b16 %v3488, %v3486
        %v3513 = vpack.c.b16 %v3491, %v3489
        %v3514 = vpack.c.b16 %v3492, %v3490
        %v3515 = vpack.c.b16 %v3495, %v3493
        %v3516 = vpack.c.b16 %v3496, %v3494
        %v3517 = vpack.c.b16 %v3499, %v3497
        %v3518 = vpack.c.b16 %v3500, %v3498
        %v3519 = vpack.c.b16 %v3503, %v3501
        %v3520 = vpack.c.b16 %v3504, %v3502
        %3537 = vmatprep.subr.bf16.mxu0 %v3506
        %3538 = vmatpush1.bf16.msra.mxu0 %v3505
        %3539 = vmatprep.subr.bf16.mxu0 %v3508
        %3540 = vmatpush1.bf16.msra.mxu0 %v3507
        %3541 = vmatprep.subr.bf16.mxu0 %v3510
        %3542 = vmatpush1.bf16.msra.mxu0 %v3509
        %3543 = vmatprep.subr.bf16.mxu0 %v3512
        %3544 = vmatpush1.bf16.msra.mxu0 %v3511
        %3545 = vmatprep.subr.bf16.mxu0 %v3514
        %3546 = vmatpush1.bf16.msra.mxu0 %v3513
        %3547 = vmatprep.subr.bf16.mxu0 %v3516
        %3548 = vmatpush1.bf16.msra.mxu0 %v3515
        %3549 = vmatprep.subr.bf16.mxu0 %v3518
        %3550 = vmatpush1.bf16.msra.mxu0 %v3517
        %3551 = vmatprep.subr.bf16.mxu0 %v3520
        %3552 = vmatpush1.bf16.msra.mxu0 %v3519
        %3553 = vmatprep.subr.bf16.mxu0 0
        %3554 = vmatpush1.bf16.msra.mxu0 0
        %3555 = vmatprep.subr.bf16.mxu0 0
        %3556 = vmatpush1.bf16.msra.mxu0 0
        %3557 = vmatprep.subr.bf16.mxu0 0
        %3558 = vmatpush1.bf16.msra.mxu0 0
        %3559 = vmatprep.subr.bf16.mxu0 0
        %3560 = vmatpush1.bf16.msra.mxu0 0
        %3561 = vmatprep.subr.bf16.mxu0 0
        %3562 = vmatpush1.bf16.msra.mxu0 0
        %3563 = vmatprep.subr.bf16.mxu0 0
        %3564 = vmatpush1.bf16.msra.mxu0 0
        %3565 = vmatprep.subr.bf16.mxu0 0
        %3566 = vmatpush1.bf16.msra.mxu0 0
        %3567 = vmatprep.subr.bf16.mxu0 0
        %3568 = vmatpush1.bf16.msra.mxu0 0
        %3569 = vmatprep.mubr.bf16.mxu0 0
        %3570 = vmatmul.mubr.bf16.gmra.mrb[0].mxu0 %v3414
        %v3571 = vpop.f32.mrb[0].mxu0
        %v3572 = vadd.f32 %v3450, %v3571
        %v3573 = vpop.f32.mrb[0].mxu0
        %v3574 = vadd.f32 %v3454, %v3573
        %v3575 = vpop.f32.mrb[0].mxu0
        %v3576 = vadd.f32 %v3450, %v3575
        %v3577 = vpop.f32.mrb[0].mxu0
        %v3578 = vadd.f32 %v3454, %v3577
        %3579 = vmatprep.mubr.bf16.mxu0 0
        %3580 = vmatmul.mubr.bf16.gmra.mrb[0].mxu0 %v3415
        %v3581 = vpop.f32.mrb[0].mxu0
        %v3582 = vadd.f32 %v3450, %v3581
        %v3583 = vpop.f32.mrb[0].mxu0
        %v3584 = vadd.f32 %v3454, %v3583
        %v3585 = vpop.f32.mrb[0].mxu0
        %v3586 = vadd.f32 %v3450, %v3585
        %v3587 = vpop.f32.mrb[0].mxu0
        %v3588 = vadd.f32 %v3454, %v3587
        %3589 = vmatprep.mubr.bf16.mxu0 0
        %3590 = vmatmul.mubr.bf16.gmra.mrb[0].mxu0 %v3416
        %v3591 = vpop.f32.mrb[0].mxu0
        %v3592 = vadd.f32 %v3450, %v3591
        %v3593 = vpop.f32.mrb[0].mxu0
        %v3594 = vadd.f32 %v3454, %v3593
        %v3595 = vpop.f32.mrb[0].mxu0
        %v3596 = vadd.f32 %v3450, %v3595
        %v3597 = vpop.f32.mrb[0].mxu0
        %v3598 = vadd.f32 %v3454, %v3597
        %3599 = vmatprep.mubr.bf16.mxu0 0
        %3600 = vmatmul.mubr.bf16.gmra.mrb[0].mxu0 %v3417
        %v3601 = vpop.f32.mrb[0].mxu0
        %v3602 = vadd.f32 %v3450, %v3601
        %v3603 = vpop.f32.mrb[0].mxu0
        %v3604 = vadd.f32 %v3454, %v3603
        %v3605 = vpop.f32.mrb[0].mxu0
        %v3606 = vadd.f32 %v3450, %v3605
        %v3607 = vpop.f32.mrb[0].mxu0
        %v3608 = vadd.f32 %v3454, %v3607
        %3609 = vmatprep.mubr.bf16.mxu0 0
        %3610 = vmatmul.mubr.bf16.gmra.mrb[0].mxu0 %v3418
        %v3611 = vpop.f32.mrb[0].mxu0
        %v3612 = vadd.f32 %v3450, %v3611
        %v3613 = vpop.f32.mrb[0].mxu0
        %v3614 = vadd.f32 %v3454, %v3613
        %v3615 = vpop.f32.mrb[0].mxu0
        %v3616 = vadd.f32 %v3450, %v3615
        %v3617 = vpop.f32.mrb[0].mxu0
        %v3618 = vadd.f32 %v3454, %v3617
        %3619 = vmatprep.mubr.bf16.mxu0 0
        %3620 = vmatmul.mubr.bf16.gmra.mrb[0].mxu0 %v3419
        %v3621 = vpop.f32.mrb[0].mxu0
        %v3622 = vadd.f32 %v3450, %v3621
        %v3623 = vpop.f32.mrb[0].mxu0
        %v3624 = vadd.f32 %v3454, %v3623
        %v3625 = vpop.f32.mrb[0].mxu0
        %v3626 = vadd.f32 %v3450, %v3625
        %v3627 = vpop.f32.mrb[0].mxu0
        %v3628 = vadd.f32 %v3454, %v3627
        %3629 = vmatprep.mubr.bf16.mxu0 0
        %3630 = vmatmul.mubr.bf16.gmra.mrb[0].mxu0 %v3420
        %v3631 = vpop.f32.mrb[0].mxu0
        %v3632 = vadd.f32 %v3450, %v3631
        %v3633 = vpop.f32.mrb[0].mxu0
        %v3634 = vadd.f32 %v3454, %v3633
        %v3635 = vpop.f32.mrb[0].mxu0
        %v3636 = vadd.f32 %v3450, %v3635
        %v3637 = vpop.f32.mrb[0].mxu0
        %v3638 = vadd.f32 %v3454, %v3637
        %3639 = vmatprep.mubr.bf16.mxu0 0
        %3640 = vmatmul.mubr.bf16.gmra.mrb[0].mxu0 %v3421
        %v3641 = vpop.f32.mrb[0].mxu0
        %v3642 = vadd.f32 %v3450, %v3641
        %v3643 = vpop.f32.mrb[0].mxu0
        %v3644 = vadd.f32 %v3454, %v3643
        %v3645 = vpop.f32.mrb[0].mxu0
        %v3646 = vadd.f32 %v3450, %v3645
        %v3647 = vpop.f32.mrb[0].mxu0
        %v3648 = vadd.f32 %v3454, %v3647
        %3649 = vmatprep.mubr.bf16.mxu0 0
        %3650 = vmatmul.mubr.bf16.gmra.mrb[0].mxu0 %v3422
        %v3651 = vpop.f32.mrb[0].mxu0
        %v3652 = vadd.f32 %v3450, %v3651
        %v3653 = vpop.f32.mrb[0].mxu0
        %v3654 = vadd.f32 %v3454, %v3653
        %v3655 = vpop.f32.mrb[0].mxu0
        %v3656 = vadd.f32 %v3450, %v3655
        %v3657 = vpop.f32.mrb[0].mxu0
        %v3658 = vadd.f32 %v3454, %v3657
        %3659 = vmatprep.mubr.bf16.mxu0 0
        %3660 = vmatmul.mubr.bf16.gmra.mrb[0].mxu0 %v3423
        %v3661 = vpop.f32.mrb[0].mxu0
        %v3662 = vadd.f32 %v3450, %v3661
        %v3663 = vpop.f32.mrb[0].mxu0
        %v3664 = vadd.f32 %v3454, %v3663
        %v3665 = vpop.f32.mrb[0].mxu0
        %v3666 = vadd.f32 %v3450, %v3665
        %v3667 = vpop.f32.mrb[0].mxu0
        %v3668 = vadd.f32 %v3454, %v3667
        %3669 = vmatprep.mubr.bf16.mxu0 0
        %3670 = vmatmul.mubr.bf16.gmra.mrb[0].mxu0 %v3424
        %v3671 = vpop.f32.mrb[0].mxu0
        %v3672 = vadd.f32 %v3450, %v3671
        %v3673 = vpop.f32.mrb[0].mxu0
        %v3674 = vadd.f32 %v3454, %v3673
        %v3675 = vpop.f32.mrb[0].mxu0
        %v3676 = vadd.f32 %v3450, %v3675
        %v3677 = vpop.f32.mrb[0].mxu0
        %v3678 = vadd.f32 %v3454, %v3677
        %3679 = vmatprep.mubr.bf16.mxu0 0
        %3680 = vmatmul.mubr.bf16.gmra.mrb[0].mxu0 %v3425
        %v3681 = vpop.f32.mrb[0].mxu0
        %v3682 = vadd.f32 %v3450, %v3681
        %v3683 = vpop.f32.mrb[0].mxu0
        %v3684 = vadd.f32 %v3454, %v3683
        %v3685 = vpop.f32.mrb[0].mxu0
        %v3686 = vadd.f32 %v3450, %v3685
        %v3687 = vpop.f32.mrb[0].mxu0
        %v3688 = vadd.f32 %v3454, %v3687
        %3689 = vmatprep.mubr.bf16.mxu0 0
        %3690 = vmatmul.mubr.bf16.gmra.mrb[0].mxu0 %v3426
        %v3691 = vpop.f32.mrb[0].mxu0
        %v3692 = vadd.f32 %v3450, %v3691
        %v3693 = vpop.f32.mrb[0].mxu0
        %v3694 = vadd.f32 %v3454, %v3693
        %v3695 = vpop.f32.mrb[0].mxu0
        %v3696 = vadd.f32 %v3450, %v3695
        %v3697 = vpop.f32.mrb[0].mxu0
        %v3698 = vadd.f32 %v3454, %v3697
        %3699 = vmatprep.mubr.bf16.mxu0 0
        %3700 = vmatmul.mubr.bf16.gmra.mrb[0].mxu0 %v3427
        %v3701 = vpop.f32.mrb[0].mxu0
        %v3702 = vadd.f32 %v3450, %v3701
        %v3703 = vpop.f32.mrb[0].mxu0
        %v3704 = vadd.f32 %v3454, %v3703
        %v3705 = vpop.f32.mrb[0].mxu0
        %v3706 = vadd.f32 %v3450, %v3705
        %v3707 = vpop.f32.mrb[0].mxu0
        %v3708 = vadd.f32 %v3454, %v3707
        %3709 = vmatprep.mubr.bf16.mxu0 0
        %3710 = vmatmul.mubr.bf16.gmra.mrb[0].mxu0 %v3428
        %v3711 = vpop.f32.mrb[0].mxu0
        %v3712 = vadd.f32 %v3450, %v3711
        %v3713 = vpop.f32.mrb[0].mxu0
        %v3714 = vadd.f32 %v3454, %v3713
        %v3715 = vpop.f32.mrb[0].mxu0
        %v3716 = vadd.f32 %v3450, %v3715
        %v3717 = vpop.f32.mrb[0].mxu0
        %v3718 = vadd.f32 %v3454, %v3717
        %3719 = vmatprep.mubr.bf16.mxu0 0
        %3720 = vmatmul.mubr.bf16.gmra.mrb[0].mxu0 %v3429
        %v3721 = vpop.f32.mrb[0].mxu0
        %v3722 = vadd.f32 %v3450, %v3721
        %v3723 = vpop.f32.mrb[0].mxu0
        %v3724 = vadd.f32 %v3454, %v3723
        %v3725 = vpop.f32.mrb[0].mxu0
        %v3726 = vadd.f32 %v3450, %v3725
        %v3727 = vpop.f32.mrb[0].mxu0
        %v3728 = vadd.f32 %v3454, %v3727
        %3729 = vmatprep.mubr.bf16.mxu0 0
        %3730 = vmatmul.mubr.bf16.gmra.mrb[0].mxu0 %v3430
        %v3731 = vpop.f32.mrb[0].mxu0
        %v3732 = vadd.f32 %v3450, %v3731
        %v3733 = vpop.f32.mrb[0].mxu0
        %v3734 = vadd.f32 %v3454, %v3733
        %v3735 = vpop.f32.mrb[0].mxu0
        %v3736 = vadd.f32 %v3450, %v3735
        %v3737 = vpop.f32.mrb[0].mxu0
        %v3738 = vadd.f32 %v3454, %v3737
        %3739 = vmatprep.mubr.bf16.mxu0 0
        %3740 = vmatmul.mubr.bf16.gmra.mrb[0].mxu0 %v3431
        %v3741 = vpop.f32.mrb[0].mxu0
        %v3742 = vadd.f32 %v3450, %v3741
        %v3743 = vpop.f32.mrb[0].mxu0
        %v3744 = vadd.f32 %v3454, %v3743
        %v3745 = vpop.f32.mrb[0].mxu0
        %v3746 = vadd.f32 %v3450, %v3745
        %v3747 = vpop.f32.mrb[0].mxu0
        %v3748 = vadd.f32 %v3454, %v3747
        %3749 = vmatprep.mubr.bf16.mxu0 0
        %3750 = vmatmul.mubr.bf16.gmra.mrb[0].mxu0 %v3432
        %v3751 = vpop.f32.mrb[0].mxu0
        %v3752 = vadd.f32 %v3450, %v3751
        %v3753 = vpop.f32.mrb[0].mxu0
        %v3754 = vadd.f32 %v3454, %v3753
        %v3755 = vpop.f32.mrb[0].mxu0
        %v3756 = vadd.f32 %v3450, %v3755
        %v3757 = vpop.f32.mrb[0].mxu0
        %v3758 = vadd.f32 %v3454, %v3757
        %3759 = vmatprep.mubr.bf16.mxu0 0
        %3760 = vmatmul.mubr.bf16.gmra.mrb[0].mxu0 %v3433
        %v3761 = vpop.f32.mrb[0].mxu0
        %v3762 = vadd.f32 %v3450, %v3761
        %v3763 = vpop.f32.mrb[0].mxu0
        %v3764 = vadd.f32 %v3454, %v3763
        %v3765 = vpop.f32.mrb[0].mxu0
        %v3766 = vadd.f32 %v3450, %v3765
        %v3767 = vpop.f32.mrb[0].mxu0
        %v3768 = vadd.f32 %v3454, %v3767
        %3769 = vmatprep.mubr.bf16.mxu0 0
        %3770 = vmatmul.mubr.bf16.gmra.mrb[0].mxu0 %v3434
        %v3771 = vpop.f32.mrb[0].mxu0
        %v3772 = vadd.f32 %v3450, %v3771
        %v3773 = vpop.f32.mrb[0].mxu0
        %v3774 = vadd.f32 %v3454, %v3773
        %v3775 = vpop.f32.mrb[0].mxu0
        %v3776 = vadd.f32 %v3450, %v3775
        %v3777 = vpop.f32.mrb[0].mxu0
        %v3778 = vadd.f32 %v3454, %v3777
        %3779 = vmatprep.mubr.bf16.mxu0 0
        %3780 = vmatmul.mubr.bf16.gmra.mrb[0].mxu0 %v3435
        %v3781 = vpop.f32.mrb[0].mxu0
        %v3782 = vadd.f32 %v3450, %v3781
        %v3783 = vpop.f32.mrb[0].mxu0
        %v3784 = vadd.f32 %v3454, %v3783
        %v3785 = vpop.f32.mrb[0].mxu0
        %v3786 = vadd.f32 %v3450, %v3785
        %v3787 = vpop.f32.mrb[0].mxu0
        %v3788 = vadd.f32 %v3454, %v3787
        %3789 = vmatprep.mubr.bf16.mxu0 0
        %3790 = vmatmul.mubr.bf16.gmra.mrb[0].mxu0 %v3436
        %v3791 = vpop.f32.mrb[0].mxu0
        %v3792 = vadd.f32 %v3450, %v3791
        %v3793 = vpop.f32.mrb[0].mxu0
        %v3794 = vadd.f32 %v3454, %v3793
        %v3795 = vpop.f32.mrb[0].mxu0
        %v3796 = vadd.f32 %v3450, %v3795
        %v3797 = vpop.f32.mrb[0].mxu0
        %v3798 = vadd.f32 %v3454, %v3797
        %3799 = vmatprep.mubr.bf16.mxu0 0
        %3800 = vmatmul.mubr.bf16.gmra.mrb[0].mxu0 %v3437
        %v3801 = vpop.f32.mrb[0].mxu0
        %v3802 = vadd.f32 %v3450, %v3801
        %v3803 = vpop.f32.mrb[0].mxu0
        %v3804 = vadd.f32 %v3454, %v3803
        %v3805 = vpop.f32.mrb[0].mxu0
        %v3806 = vadd.f32 %v3450, %v3805
        %v3807 = vpop.f32.mrb[0].mxu0
        %v3808 = vadd.f32 %v3454, %v3807
        %3809 = vmatprep.mubr.bf16.mxu0 0
        %3810 = vmatmul.mubr.bf16.gmra.mrb[0].mxu0 %v3438
        %v3811 = vpop.f32.mrb[0].mxu0
        %v3812 = vadd.f32 %v3450, %v3811
        %v3813 = vpop.f32.mrb[0].mxu0
        %v3814 = vadd.f32 %v3454, %v3813
        %v3815 = vpop.f32.mrb[0].mxu0
        %v3816 = vadd.f32 %v3450, %v3815
        %v3817 = vpop.f32.mrb[0].mxu0
        %v3818 = vadd.f32 %v3454, %v3817
        %3819 = vmatprep.mubr.bf16.mxu0 0
        %3820 = vmatmul.mubr.bf16.gmra.mrb[0].mxu0 %v3439
        %v3821 = vpop.f32.mrb[0].mxu0
        %v3822 = vadd.f32 %v3450, %v3821
        %v3823 = vpop.f32.mrb[0].mxu0
        %v3824 = vadd.f32 %v3454, %v3823
        %v3825 = vpop.f32.mrb[0].mxu0
        %v3826 = vadd.f32 %v3450, %v3825
        %v3827 = vpop.f32.mrb[0].mxu0
        %v3828 = vadd.f32 %v3454, %v3827
        %3829 = vmatprep.mubr.bf16.mxu0 0
        %3830 = vmatmul.mubr.bf16.gmra.mrb[0].mxu0 %v3440
        %v3831 = vpop.f32.mrb[0].mxu0
        %v3832 = vadd.f32 %v3450, %v3831
        %v3833 = vpop.f32.mrb[0].mxu0
        %v3834 = vadd.f32 %v3454, %v3833
        %v3835 = vpop.f32.mrb[0].mxu0
        %v3836 = vadd.f32 %v3450, %v3835
        %v3837 = vpop.f32.mrb[0].mxu0
        %v3838 = vadd.f32 %v3454, %v3837
        %3839 = vmatprep.mubr.bf16.mxu0 0
        %3840 = vmatmul.mubr.bf16.gmra.mrb[0].mxu0 %v3441
        %v3841 = vpop.f32.mrb[0].mxu0
        %v3842 = vadd.f32 %v3450, %v3841
        %v3843 = vpop.f32.mrb[0].mxu0
        %v3844 = vadd.f32 %v3454, %v3843
        %v3845 = vpop.f32.mrb[0].mxu0
        %v3846 = vadd.f32 %v3450, %v3845
        %v3847 = vpop.f32.mrb[0].mxu0
        %v3848 = vadd.f32 %v3454, %v3847
        %3849 = vmatprep.mubr.bf16.mxu0 0
        %3850 = vmatmul.mubr.bf16.gmra.mrb[0].mxu0 %v3442
        %v3851 = vpop.f32.mrb[0].mxu0
        %v3852 = vadd.f32 %v3450, %v3851
        %v3853 = vpop.f32.mrb[0].mxu0
        %v3854 = vadd.f32 %v3454, %v3853
        %v3855 = vpop.f32.mrb[0].mxu0
        %v3856 = vadd.f32 %v3450, %v3855
        %v3857 = vpop.f32.mrb[0].mxu0
        %v3858 = vadd.f32 %v3454, %v3857
        %3859 = vmatprep.mubr.bf16.mxu0 0
        %3860 = vmatmul.mubr.bf16.gmra.mrb[0].mxu0 %v3443
        %v3861 = vpop.f32.mrb[0].mxu0
        %v3862 = vadd.f32 %v3450, %v3861
        %v3863 = vpop.f32.mrb[0].mxu0
        %v3864 = vadd.f32 %v3454, %v3863
        %v3865 = vpop.f32.mrb[0].mxu0
        %v3866 = vadd.f32 %v3450, %v3865
        %v3867 = vpop.f32.mrb[0].mxu0
        %v3868 = vadd.f32 %v3454, %v3867
        %3869 = vmatprep.mubr.bf16.mxu0 0
        %3870 = vmatmul.mubr.bf16.gmra.mrb[0].mxu0 %v3444
        %v3871 = vpop.f32.mrb[0].mxu0
        %v3872 = vadd.f32 %v3450, %v3871
        %v3873 = vpop.f32.mrb[0].mxu0
        %v3874 = vadd.f32 %v3454, %v3873
        %v3875 = vpop.f32.mrb[0].mxu0
        %v3876 = vadd.f32 %v3450, %v3875
        %v3877 = vpop.f32.mrb[0].mxu0
        %v3878 = vadd.f32 %v3454, %v3877
        %3879 = vmatprep.mubr.bf16.mxu0 0
        %3880 = vmatmul.mubr.bf16.gmra.mrb[0].mxu0 %v3445
        %v3881 = vpop.f32.mrb[0].mxu0
        %v3882 = vadd.f32 %v3450, %v3881
        %v3883 = vpop.f32.mrb[0].mxu0
        %v3884 = vadd.f32 %v3454, %v3883
        %v3885 = vpop.f32.mrb[0].mxu0
        %v3886 = vadd.f32 %v3450, %v3885
        %v3887 = vpop.f32.mrb[0].mxu0
        %v3888 = vadd.f32 %v3454, %v3887
        %3889 = vdwg.mxu0
        %v3890 = vmax.f32 %v3572, 0.0
        %v3891 = vmax.f32 %v3574, 0.0
        %v3892 = vmax.f32 %v3576, 0.0
        %v3893 = vmax.f32 %v3578, 0.0
        %v3894 = vmax.f32 %v3582, 0.0
        %v3895 = vmax.f32 %v3584, 0.0
        %v3896 = vmax.f32 %v3586, 0.0
        %v3897 = vmax.f32 %v3588, 0.0
        %v3898 = vmax.f32 %v3592, 0.0
        %v3899 = vmax.f32 %v3594, 0.0
        %v3900 = vmax.f32 %v3596, 0.0
        %v3901 = vmax.f32 %v3598, 0.0
        %v3902 = vmax.f32 %v3602, 0.0
        %v3903 = vmax.f32 %v3604, 0.0
        %v3904 = vmax.f32 %v3606, 0.0
        %v3905 = vmax.f32 %v3608, 0.0
        %v3906 = vmax.f32 %v3612, 0.0
        %v3907 = vmax.f32 %v3614, 0.0
        %v3908 = vmax.f32 %v3616, 0.0
        %v3909 = vmax.f32 %v3618, 0.0
        %v3910 = vmax.f32 %v3622, 0.0
        %v3911 = vmax.f32 %v3624, 0.0
        %v3912 = vmax.f32 %v3626, 0.0
        %v3913 = vmax.f32 %v3628, 0.0
        %v3914 = vmax.f32 %v3632, 0.0
        %v3915 = vmax.f32 %v3634, 0.0
        %v3916 = vmax.f32 %v3636, 0.0
        %v3917 = vmax.f32 %v3638, 0.0
        %v3918 = vmax.f32 %v3642, 0.0
        %v3919 = vmax.f32 %v3644, 0.0
        %v3920 = vmax.f32 %v3646, 0.0
        %v3921 = vmax.f32 %v3648, 0.0
        %v3922 = vmax.f32 %v3652, 0.0
        %v3923 = vmax.f32 %v3654, 0.0
        %v3924 = vmax.f32 %v3656, 0.0
        %v3925 = vmax.f32 %v3658, 0.0
        %v3926 = vmax.f32 %v3662, 0.0
        %v3927 = vmax.f32 %v3664, 0.0
        %v3928 = vmax.f32 %v3666, 0.0
        %v3929 = vmax.f32 %v3668, 0.0
        %v3930 = vmax.f32 %v3672, 0.0
        %v3931 = vmax.f32 %v3674, 0.0
        %v3932 = vmax.f32 %v3676, 0.0
        %v3933 = vmax.f32 %v3678, 0.0
        %v3934 = vmax.f32 %v3682, 0.0
        %v3935 = vmax.f32 %v3684, 0.0
        %v3936 = vmax.f32 %v3686, 0.0
        %v3937 = vmax.f32 %v3688, 0.0
        %v3938 = vmax.f32 %v3692, 0.0
        %v3939 = vmax.f32 %v3694, 0.0
        %v3940 = vmax.f32 %v3696, 0.0
        %v3941 = vmax.f32 %v3698, 0.0
        %v3942 = vmax.f32 %v3702, 0.0
        %v3943 = vmax.f32 %v3704, 0.0
        %v3944 = vmax.f32 %v3706, 0.0
        %v3945 = vmax.f32 %v3708, 0.0
        %v3946 = vmax.f32 %v3712, 0.0
        %v3947 = vmax.f32 %v3714, 0.0
        %v3948 = vmax.f32 %v3716, 0.0
        %v3949 = vmax.f32 %v3718, 0.0
        %v3950 = vmax.f32 %v3722, 0.0
        %v3951 = vmax.f32 %v3724, 0.0
        %v3952 = vmax.f32 %v3726, 0.0
        %v3953 = vmax.f32 %v3728, 0.0
        %v3954 = vmax.f32 %v3732, 0.0
        %v3955 = vmax.f32 %v3734, 0.0
        %v3956 = vmax.f32 %v3736, 0.0
        %v3957 = vmax.f32 %v3738, 0.0
        %v3958 = vmax.f32 %v3742, 0.0
        %v3959 = vmax.f32 %v3744, 0.0
        %v3960 = vmax.f32 %v3746, 0.0
        %v3961 = vmax.f32 %v3748, 0.0
        %v3962 = vmax.f32 %v3752, 0.0
        %v3963 = vmax.f32 %v3754, 0.0
        %v3964 = vmax.f32 %v3756, 0.0
        %v3965 = vmax.f32 %v3758, 0.0
        %v3966 = vmax.f32 %v3762, 0.0
        %v3967 = vmax.f32 %v3764, 0.0
        %v3968 = vmax.f32 %v3766, 0.0
        %v3969 = vmax.f32 %v3768, 0.0
        %v3970 = vmax.f32 %v3772, 0.0
        %v3971 = vmax.f32 %v3774, 0.0
        %v3972 = vmax.f32 %v3776, 0.0
        %v3973 = vmax.f32 %v3778, 0.0
        %v3974 = vmax.f32 %v3782, 0.0
        %v3975 = vmax.f32 %v3784, 0.0
        %v3976 = vmax.f32 %v3786, 0.0
        %v3977 = vmax.f32 %v3788, 0.0
        %v3978 = vmax.f32 %v3792, 0.0
        %v3979 = vmax.f32 %v3794, 0.0
        %v3980 = vmax.f32 %v3796, 0.0
        %v3981 = vmax.f32 %v3798, 0.0
        %v3982 = vmax.f32 %v3802, 0.0
        %v3983 = vmax.f32 %v3804, 0.0
        %v3984 = vmax.f32 %v3806, 0.0
        %v3985 = vmax.f32 %v3808, 0.0
        %v3986 = vmax.f32 %v3812, 0.0
        %v3987 = vmax.f32 %v3814, 0.0
        %v3988 = vmax.f32 %v3816, 0.0
        %v3989 = vmax.f32 %v3818, 0.0
        %v3990 = vmax.f32 %v3822, 0.0
        %v3991 = vmax.f32 %v3824, 0.0
        %v3992 = vmax.f32 %v3826, 0.0
        %v3993 = vmax.f32 %v3828, 0.0
        %v3994 = vmax.f32 %v3832, 0.0
        %v3995 = vmax.f32 %v3834, 0.0
        %v3996 = vmax.f32 %v3836, 0.0
        %v3997 = vmax.f32 %v3838, 0.0
        %v3998 = vmax.f32 %v3842, 0.0
        %v3999 = vmax.f32 %v3844, 0.0
        %v4000 = vmax.f32 %v3846, 0.0
        %v4001 = vmax.f32 %v3848, 0.0
        %v4002 = vmax.f32 %v3852, 0.0
        %v4003 = vmax.f32 %v3854, 0.0
        %v4004 = vmax.f32 %v3856, 0.0
        %v4005 = vmax.f32 %v3858, 0.0
        %v4006 = vmax.f32 %v3862, 0.0
        %v4007 = vmax.f32 %v3864, 0.0
        %v4008 = vmax.f32 %v3866, 0.0
        %v4009 = vmax.f32 %v3868, 0.0
        %v4010 = vmax.f32 %v3872, 0.0
        %v4011 = vmax.f32 %v3874, 0.0
        %v4012 = vmax.f32 %v3876, 0.0
        %v4013 = vmax.f32 %v3878, 0.0
        %v4014 = vmax.f32 %v3882, 0.0
        %v4015 = vmax.f32 %v3884, 0.0
        %v4016 = vmax.f32 %v3886, 0.0
        %v4017 = vmax.f32 %v3888, 0.0
        %v4018 = vpack.c.bf16 %v3892, %v3890
        %v4019 = vpack.c.bf16 %v3893, %v3891
        %v4020 = vpack.c.bf16 %v3896, %v3894
        %v4021 = vpack.c.bf16 %v3897, %v3895
        %v4022 = vpack.c.bf16 %v3900, %v3898
        %v4023 = vpack.c.bf16 %v3901, %v3899
        %v4024 = vpack.c.bf16 %v3904, %v3902
        %v4025 = vpack.c.bf16 %v3905, %v3903
        %v4026 = vpack.c.bf16 %v3908, %v3906
        %v4027 = vpack.c.bf16 %v3909, %v3907
        %v4028 = vpack.c.bf16 %v3912, %v3910
        %v4029 = vpack.c.bf16 %v3913, %v3911
        %v4030 = vpack.c.bf16 %v3916, %v3914
        %v4031 = vpack.c.bf16 %v3917, %v3915
        %v4032 = vpack.c.bf16 %v3920, %v3918
        %v4033 = vpack.c.bf16 %v3921, %v3919
        %v4034 = vpack.c.bf16 %v3924, %v3922
        %v4035 = vpack.c.bf16 %v3925, %v3923
        %v4036 = vpack.c.bf16 %v3928, %v3926
        %v4037 = vpack.c.bf16 %v3929, %v3927
        %v4038 = vpack.c.bf16 %v3932, %v3930
        %v4039 = vpack.c.bf16 %v3933, %v3931
        %v4040 = vpack.c.bf16 %v3936, %v3934
        %v4041 = vpack.c.bf16 %v3937, %v3935
        %v4042 = vpack.c.bf16 %v3940, %v3938
        %v4043 = vpack.c.bf16 %v3941, %v3939
        %v4044 = vpack.c.bf16 %v3944, %v3942
        %v4045 = vpack.c.bf16 %v3945, %v3943
        %v4046 = vpack.c.bf16 %v3948, %v3946
        %v4047 = vpack.c.bf16 %v3949, %v3947
        %v4048 = vpack.c.bf16 %v3952, %v3950
        %v4049 = vpack.c.bf16 %v3953, %v3951
        %v4050 = vpack.c.bf16 %v3956, %v3954
        %v4051 = vpack.c.bf16 %v3957, %v3955
        %v4052 = vpack.c.bf16 %v3960, %v3958
        %v4053 = vpack.c.bf16 %v3961, %v3959
        %v4054 = vpack.c.bf16 %v3964, %v3962
        %v4055 = vpack.c.bf16 %v3965, %v3963
        %v4056 = vpack.c.bf16 %v3968, %v3966
        %v4057 = vpack.c.bf16 %v3969, %v3967
        %v4058 = vpack.c.bf16 %v3972, %v3970
        %v4059 = vpack.c.bf16 %v3973, %v3971
        %v4060 = vpack.c.bf16 %v3976, %v3974
        %v4061 = vpack.c.bf16 %v3977, %v3975
        %v4062 = vpack.c.bf16 %v3980, %v3978
        %v4063 = vpack.c.bf16 %v3981, %v3979
        %v4064 = vpack.c.bf16 %v3984, %v3982
        %v4065 = vpack.c.bf16 %v3985, %v3983
        %v4066 = vpack.c.bf16 %v3988, %v3986
        %v4067 = vpack.c.bf16 %v3989, %v3987
        %v4068 = vpack.c.bf16 %v3992, %v3990
        %v4069 = vpack.c.bf16 %v3993, %v3991
        %v4070 = vpack.c.bf16 %v3996, %v3994
        %v4071 = vpack.c.bf16 %v3997, %v3995
        %v4072 = vpack.c.bf16 %v4000, %v3998
        %v4073 = vpack.c.bf16 %v4001, %v3999
        %v4074 = vpack.c.bf16 %v4004, %v4002
        %v4075 = vpack.c.bf16 %v4005, %v4003
        %v4076 = vpack.c.bf16 %v4008, %v4006
        %v4077 = vpack.c.bf16 %v4009, %v4007
        %v4078 = vpack.c.bf16 %v4012, %v4010
        %v4079 = vpack.c.bf16 %v4013, %v4011
        %v4080 = vpack.c.bf16 %v4016, %v4014
        %v4081 = vpack.c.bf16 %v4017, %v4015
        %v4083 = vlaneseq
        %v4084 = vshrl.u32 %v4083, 7
        %v4085 = vsub.s32 0, %v4084
        %v4086 = vrot.slane %v757, %v4085
        %v4120 = vunpack.c.l.b16 %v725
        %v4121 = vunpack.c.l.b16 %v726
        %v4122 = vunpack.c.l.b16 %v727
        %v4123 = vunpack.c.l.b16 %v728
        %v4124 = vunpack.c.l.b16 %v729
        %v4125 = vunpack.c.l.b16 %v730
        %v4126 = vunpack.c.l.b16 %v731
        %v4127 = vunpack.c.l.b16 %v732
        %v4128 = vunpack.c.l.b16 %v733
        %v4129 = vunpack.c.l.b16 %v734
        %v4130 = vunpack.c.l.b16 %v735
        %v4131 = vunpack.c.l.b16 %v736
        %v4132 = vunpack.c.l.b16 %v737
        %v4133 = vunpack.c.l.b16 %v738
        %v4134 = vunpack.c.l.b16 %v739
        %v4135 = vunpack.c.l.b16 %v740
        %v4136 = vunpack.c.l.b16 %v741
        %v4137 = vunpack.c.l.b16 %v742
        %v4138 = vunpack.c.l.b16 %v743
        %v4139 = vunpack.c.l.b16 %v744
        %v4140 = vunpack.c.l.b16 %v745
        %v4141 = vunpack.c.l.b16 %v746
        %v4142 = vunpack.c.l.b16 %v747
        %v4143 = vunpack.c.l.b16 %v748
        %v4144 = vunpack.c.l.b16 %v749
        %v4145 = vunpack.c.l.b16 %v750
        %v4146 = vunpack.c.l.b16 %v751
        %v4147 = vunpack.c.l.b16 %v752
        %v4148 = vunpack.c.l.b16 %v753
        %v4149 = vunpack.c.l.b16 %v754
        %v4150 = vunpack.c.l.b16 %v755
        %v4151 = vunpack.c.l.b16 %v756
        %v4152 = vpack.c.b16 %v4121, %v4120
        %v4153 = vpack.c.b16 %v4123, %v4122
        %v4154 = vpack.c.b16 %v4125, %v4124
        %v4155 = vpack.c.b16 %v4127, %v4126
        %v4156 = vpack.c.b16 %v4129, %v4128
        %v4157 = vpack.c.b16 %v4131, %v4130
        %v4158 = vpack.c.b16 %v4133, %v4132
        %v4159 = vpack.c.b16 %v4135, %v4134
        %v4160 = vpack.c.b16 %v4137, %v4136
        %v4161 = vpack.c.b16 %v4139, %v4138
        %v4162 = vpack.c.b16 %v4141, %v4140
        %v4163 = vpack.c.b16 %v4143, %v4142
        %v4164 = vpack.c.b16 %v4145, %v4144
        %v4165 = vpack.c.b16 %v4147, %v4146
        %v4166 = vpack.c.b16 %v4149, %v4148
        %v4167 = vpack.c.b16 %v4151, %v4150
        %4184 = vmatprep.subr.bf16.mxu0 0
        %4185 = vmatpush1.bf16.msra.mxu0 %v4152
        %4186 = vmatprep.subr.bf16.mxu0 0
        %4187 = vmatpush1.bf16.msra.mxu0 %v4153
        %4188 = vmatprep.subr.bf16.mxu0 0
        %4189 = vmatpush1.bf16.msra.mxu0 %v4154
        %4190 = vmatprep.subr.bf16.mxu0 0
        %4191 = vmatpush1.bf16.msra.mxu0 %v4155
        %4192 = vmatprep.subr.bf16.mxu0 0
        %4193 = vmatpush1.bf16.msra.mxu0 %v4156
        %4194 = vmatprep.subr.bf16.mxu0 0
        %4195 = vmatpush1.bf16.msra.mxu0 %v4157
        %4196 = vmatprep.subr.bf16.mxu0 0
        %4197 = vmatpush1.bf16.msra.mxu0 %v4158
        %4198 = vmatprep.subr.bf16.mxu0 0
        %4199 = vmatpush1.bf16.msra.mxu0 %v4159
        %4200 = vmatprep.subr.bf16.mxu0 0
        %4201 = vmatpush1.bf16.msra.mxu0 %v4160
        %4202 = vmatprep.subr.bf16.mxu0 0
        %4203 = vmatpush1.bf16.msra.mxu0 %v4161
        %4204 = vmatprep.subr.bf16.mxu0 0
        %4205 = vmatpush1.bf16.msra.mxu0 %v4162
        %4206 = vmatprep.subr.bf16.mxu0 0
        %4207 = vmatpush1.bf16.msra.mxu0 %v4163
        %4208 = vmatprep.subr.bf16.mxu0 0
        %4209 = vmatpush1.bf16.msra.mxu0 %v4164
        %4210 = vmatprep.subr.bf16.mxu0 0
        %4211 = vmatpush1.bf16.msra.mxu0 %v4165
        %4212 = vmatprep.subr.bf16.mxu0 0
        %4213 = vmatpush1.bf16.msra.mxu0 %v4166
        %4214 = vmatprep.subr.bf16.mxu0 0
        %4215 = vmatpush1.bf16.msra.mxu0 %v4167
        %4216 = vmatprep.mubr.bf16.mxu0 %v4019
        %4217 = vmatmul.mubr.bf16.gmra.mrb[0].mxu0 %v4018
        %v4218 = vpop.f32.mrb[0].mxu0
        %v4219 = vadd.f32 %v4086, %v4218
        %v4220 = vpop.f32.mrb[0].mxu0
        %v4221 = vpop.f32.mrb[0].mxu0
        %v4222 = vadd.f32 %v4086, %v4221
        %v4223 = vpop.f32.mrb[0].mxu0
        %4224 = vmatprep.mubr.bf16.mxu0 %v4021
        %4225 = vmatmul.mubr.bf16.gmra.mrb[0].mxu0 %v4020
        %v4226 = vpop.f32.mrb[0].mxu0
        %v4227 = vadd.f32 %v4086, %v4226
        %v4228 = vpop.f32.mrb[0].mxu0
        %v4229 = vpop.f32.mrb[0].mxu0
        %v4230 = vadd.f32 %v4086, %v4229
        %v4231 = vpop.f32.mrb[0].mxu0
        %4232 = vmatprep.mubr.bf16.mxu0 %v4023
        %4233 = vmatmul.mubr.bf16.gmra.mrb[0].mxu0 %v4022
        %v4234 = vpop.f32.mrb[0].mxu0
        %v4235 = vadd.f32 %v4086, %v4234
        %v4236 = vpop.f32.mrb[0].mxu0
        %v4237 = vpop.f32.mrb[0].mxu0
        %v4238 = vadd.f32 %v4086, %v4237
        %v4239 = vpop.f32.mrb[0].mxu0
        %4240 = vmatprep.mubr.bf16.mxu0 %v4025
        %4241 = vmatmul.mubr.bf16.gmra.mrb[0].mxu0 %v4024
        %v4242 = vpop.f32.mrb[0].mxu0
        %v4243 = vadd.f32 %v4086, %v4242
        %v4244 = vpop.f32.mrb[0].mxu0
        %v4245 = vpop.f32.mrb[0].mxu0
        %v4246 = vadd.f32 %v4086, %v4245
        %v4247 = vpop.f32.mrb[0].mxu0
        %4248 = vmatprep.mubr.bf16.mxu0 %v4027
        %4249 = vmatmul.mubr.bf16.gmra.mrb[0].mxu0 %v4026
        %v4250 = vpop.f32.mrb[0].mxu0
        %v4251 = vadd.f32 %v4086, %v4250
        %v4252 = vpop.f32.mrb[0].mxu0
        %v4253 = vpop.f32.mrb[0].mxu0
        %v4254 = vadd.f32 %v4086, %v4253
        %v4255 = vpop.f32.mrb[0].mxu0
        %4256 = vmatprep.mubr.bf16.mxu0 %v4029
        %4257 = vmatmul.mubr.bf16.gmra.mrb[0].mxu0 %v4028
        %v4258 = vpop.f32.mrb[0].mxu0
        %v4259 = vadd.f32 %v4086, %v4258
        %v4260 = vpop.f32.mrb[0].mxu0
        %v4261 = vpop.f32.mrb[0].mxu0
        %v4262 = vadd.f32 %v4086, %v4261
        %v4263 = vpop.f32.mrb[0].mxu0
        %4264 = vmatprep.mubr.bf16.mxu0 %v4031
        %4265 = vmatmul.mubr.bf16.gmra.mrb[0].mxu0 %v4030
        %v4266 = vpop.f32.mrb[0].mxu0
        %v4267 = vadd.f32 %v4086, %v4266
        %v4268 = vpop.f32.mrb[0].mxu0
        %v4269 = vpop.f32.mrb[0].mxu0
        %v4270 = vadd.f32 %v4086, %v4269
        %v4271 = vpop.f32.mrb[0].mxu0
        %4272 = vmatprep.mubr.bf16.mxu0 %v4033
        %4273 = vmatmul.mubr.bf16.gmra.mrb[0].mxu0 %v4032
        %v4274 = vpop.f32.mrb[0].mxu0
        %v4275 = vadd.f32 %v4086, %v4274
        %v4276 = vpop.f32.mrb[0].mxu0
        %v4277 = vpop.f32.mrb[0].mxu0
        %v4278 = vadd.f32 %v4086, %v4277
        %v4279 = vpop.f32.mrb[0].mxu0
        %4280 = vmatprep.mubr.bf16.mxu0 %v4035
        %4281 = vmatmul.mubr.bf16.gmra.mrb[0].mxu0 %v4034
        %v4282 = vpop.f32.mrb[0].mxu0
        %v4283 = vadd.f32 %v4086, %v4282
        %v4284 = vpop.f32.mrb[0].mxu0
        %v4285 = vpop.f32.mrb[0].mxu0
        %v4286 = vadd.f32 %v4086, %v4285
        %v4287 = vpop.f32.mrb[0].mxu0
        %4288 = vmatprep.mubr.bf16.mxu0 %v4037
        %4289 = vmatmul.mubr.bf16.gmra.mrb[0].mxu0 %v4036
        %v4290 = vpop.f32.mrb[0].mxu0
        %v4291 = vadd.f32 %v4086, %v4290
        %v4292 = vpop.f32.mrb[0].mxu0
        %v4293 = vpop.f32.mrb[0].mxu0
        %v4294 = vadd.f32 %v4086, %v4293
        %v4295 = vpop.f32.mrb[0].mxu0
        %4296 = vmatprep.mubr.bf16.mxu0 %v4039
        %4297 = vmatmul.mubr.bf16.gmra.mrb[0].mxu0 %v4038
        %v4298 = vpop.f32.mrb[0].mxu0
        %v4299 = vadd.f32 %v4086, %v4298
        %v4300 = vpop.f32.mrb[0].mxu0
        %v4301 = vpop.f32.mrb[0].mxu0
        %v4302 = vadd.f32 %v4086, %v4301
        %v4303 = vpop.f32.mrb[0].mxu0
        %4304 = vmatprep.mubr.bf16.mxu0 %v4041
        %4305 = vmatmul.mubr.bf16.gmra.mrb[0].mxu0 %v4040
        %v4306 = vpop.f32.mrb[0].mxu0
        %v4307 = vadd.f32 %v4086, %v4306
        %v4308 = vpop.f32.mrb[0].mxu0
        %v4309 = vpop.f32.mrb[0].mxu0
        %v4310 = vadd.f32 %v4086, %v4309
        %v4311 = vpop.f32.mrb[0].mxu0
        %4312 = vmatprep.mubr.bf16.mxu0 %v4043
        %4313 = vmatmul.mubr.bf16.gmra.mrb[0].mxu0 %v4042
        %v4314 = vpop.f32.mrb[0].mxu0
        %v4315 = vadd.f32 %v4086, %v4314
        %v4316 = vpop.f32.mrb[0].mxu0
        %v4317 = vpop.f32.mrb[0].mxu0
        %v4318 = vadd.f32 %v4086, %v4317
        %v4319 = vpop.f32.mrb[0].mxu0
        %4320 = vmatprep.mubr.bf16.mxu0 %v4045
        %4321 = vmatmul.mubr.bf16.gmra.mrb[0].mxu0 %v4044
        %v4322 = vpop.f32.mrb[0].mxu0
        %v4323 = vadd.f32 %v4086, %v4322
        %v4324 = vpop.f32.mrb[0].mxu0
        %v4325 = vpop.f32.mrb[0].mxu0
        %v4326 = vadd.f32 %v4086, %v4325
        %v4327 = vpop.f32.mrb[0].mxu0
        %4328 = vmatprep.mubr.bf16.mxu0 %v4047
        %4329 = vmatmul.mubr.bf16.gmra.mrb[0].mxu0 %v4046
        %v4330 = vpop.f32.mrb[0].mxu0
        %v4331 = vadd.f32 %v4086, %v4330
        %v4332 = vpop.f32.mrb[0].mxu0
        %v4333 = vpop.f32.mrb[0].mxu0
        %v4334 = vadd.f32 %v4086, %v4333
        %v4335 = vpop.f32.mrb[0].mxu0
        %4336 = vmatprep.mubr.bf16.mxu0 %v4049
        %4337 = vmatmul.mubr.bf16.gmra.mrb[0].mxu0 %v4048
        %v4338 = vpop.f32.mrb[0].mxu0
        %v4339 = vadd.f32 %v4086, %v4338
        %v4340 = vpop.f32.mrb[0].mxu0
        %v4341 = vpop.f32.mrb[0].mxu0
        %v4342 = vadd.f32 %v4086, %v4341
        %v4343 = vpop.f32.mrb[0].mxu0
        %4344 = vmatprep.mubr.bf16.mxu0 %v4051
        %4345 = vmatmul.mubr.bf16.gmra.mrb[0].mxu0 %v4050
        %v4346 = vpop.f32.mrb[0].mxu0
        %v4347 = vadd.f32 %v4086, %v4346
        %v4348 = vpop.f32.mrb[0].mxu0
        %v4349 = vpop.f32.mrb[0].mxu0
        %v4350 = vadd.f32 %v4086, %v4349
        %v4351 = vpop.f32.mrb[0].mxu0
        %4352 = vmatprep.mubr.bf16.mxu0 %v4053
        %4353 = vmatmul.mubr.bf16.gmra.mrb[0].mxu0 %v4052
        %v4354 = vpop.f32.mrb[0].mxu0
        %v4355 = vadd.f32 %v4086, %v4354
        %v4356 = vpop.f32.mrb[0].mxu0
        %v4357 = vpop.f32.mrb[0].mxu0
        %v4358 = vadd.f32 %v4086, %v4357
        %v4359 = vpop.f32.mrb[0].mxu0
        %4360 = vmatprep.mubr.bf16.mxu0 %v4055
        %4361 = vmatmul.mubr.bf16.gmra.mrb[0].mxu0 %v4054
        %v4362 = vpop.f32.mrb[0].mxu0
        %v4363 = vadd.f32 %v4086, %v4362
        %v4364 = vpop.f32.mrb[0].mxu0
        %v4365 = vpop.f32.mrb[0].mxu0
        %v4366 = vadd.f32 %v4086, %v4365
        %v4367 = vpop.f32.mrb[0].mxu0
        %4368 = vmatprep.mubr.bf16.mxu0 %v4057
        %4369 = vmatmul.mubr.bf16.gmra.mrb[0].mxu0 %v4056
        %v4370 = vpop.f32.mrb[0].mxu0
        %v4371 = vadd.f32 %v4086, %v4370
        %v4372 = vpop.f32.mrb[0].mxu0
        %v4373 = vpop.f32.mrb[0].mxu0
        %v4374 = vadd.f32 %v4086, %v4373
        %v4375 = vpop.f32.mrb[0].mxu0
        %4376 = vmatprep.mubr.bf16.mxu0 %v4059
        %4377 = vmatmul.mubr.bf16.gmra.mrb[0].mxu0 %v4058
        %v4378 = vpop.f32.mrb[0].mxu0
        %v4379 = vadd.f32 %v4086, %v4378
        %v4380 = vpop.f32.mrb[0].mxu0
        %v4381 = vpop.f32.mrb[0].mxu0
        %v4382 = vadd.f32 %v4086, %v4381
        %v4383 = vpop.f32.mrb[0].mxu0
        %4384 = vmatprep.mubr.bf16.mxu0 %v4061
        %4385 = vmatmul.mubr.bf16.gmra.mrb[0].mxu0 %v4060
        %v4386 = vpop.f32.mrb[0].mxu0
        %v4387 = vadd.f32 %v4086, %v4386
        %v4388 = vpop.f32.mrb[0].mxu0
        %v4389 = vpop.f32.mrb[0].mxu0
        %v4390 = vadd.f32 %v4086, %v4389
        %v4391 = vpop.f32.mrb[0].mxu0
        %4392 = vmatprep.mubr.bf16.mxu0 %v4063
        %4393 = vmatmul.mubr.bf16.gmra.mrb[0].mxu0 %v4062
        %v4394 = vpop.f32.mrb[0].mxu0
        %v4395 = vadd.f32 %v4086, %v4394
        %v4396 = vpop.f32.mrb[0].mxu0
        %v4397 = vpop.f32.mrb[0].mxu0
        %v4398 = vadd.f32 %v4086, %v4397
        %v4399 = vpop.f32.mrb[0].mxu0
        %4400 = vmatprep.mubr.bf16.mxu0 %v4065
        %4401 = vmatmul.mubr.bf16.gmra.mrb[0].mxu0 %v4064
        %v4402 = vpop.f32.mrb[0].mxu0
        %v4403 = vadd.f32 %v4086, %v4402
        %v4404 = vpop.f32.mrb[0].mxu0
        %v4405 = vpop.f32.mrb[0].mxu0
        %v4406 = vadd.f32 %v4086, %v4405
        %v4407 = vpop.f32.mrb[0].mxu0
        %4408 = vmatprep.mubr.bf16.mxu0 %v4067
        %4409 = vmatmul.mubr.bf16.gmra.mrb[0].mxu0 %v4066
        %v4410 = vpop.f32.mrb[0].mxu0
        %v4411 = vadd.f32 %v4086, %v4410
        %v4412 = vpop.f32.mrb[0].mxu0
        %v4413 = vpop.f32.mrb[0].mxu0
        %v4414 = vadd.f32 %v4086, %v4413
        %v4415 = vpop.f32.mrb[0].mxu0
        %4416 = vmatprep.mubr.bf16.mxu0 %v4069
        %4417 = vmatmul.mubr.bf16.gmra.mrb[0].mxu0 %v4068
        %v4418 = vpop.f32.mrb[0].mxu0
        %v4419 = vadd.f32 %v4086, %v4418
        %v4420 = vpop.f32.mrb[0].mxu0
        %v4421 = vpop.f32.mrb[0].mxu0
        %v4422 = vadd.f32 %v4086, %v4421
        %v4423 = vpop.f32.mrb[0].mxu0
        %4424 = vmatprep.mubr.bf16.mxu0 %v4071
        %4425 = vmatmul.mubr.bf16.gmra.mrb[0].mxu0 %v4070
        %v4426 = vpop.f32.mrb[0].mxu0
        %v4427 = vadd.f32 %v4086, %v4426
        %v4428 = vpop.f32.mrb[0].mxu0
        %v4429 = vpop.f32.mrb[0].mxu0
        %v4430 = vadd.f32 %v4086, %v4429
        %v4431 = vpop.f32.mrb[0].mxu0
        %4432 = vmatprep.mubr.bf16.mxu0 %v4073
        %4433 = vmatmul.mubr.bf16.gmra.mrb[0].mxu0 %v4072
        %v4434 = vpop.f32.mrb[0].mxu0
        %v4435 = vadd.f32 %v4086, %v4434
        %v4436 = vpop.f32.mrb[0].mxu0
        %v4437 = vpop.f32.mrb[0].mxu0
        %v4438 = vadd.f32 %v4086, %v4437
        %v4439 = vpop.f32.mrb[0].mxu0
        %4440 = vmatprep.mubr.bf16.mxu0 %v4075
        %4441 = vmatmul.mubr.bf16.gmra.mrb[0].mxu0 %v4074
        %v4442 = vpop.f32.mrb[0].mxu0
        %v4443 = vadd.f32 %v4086, %v4442
        %v4444 = vpop.f32.mrb[0].mxu0
        %v4445 = vpop.f32.mrb[0].mxu0
        %v4446 = vadd.f32 %v4086, %v4445
        %v4447 = vpop.f32.mrb[0].mxu0
        %4448 = vmatprep.mubr.bf16.mxu0 %v4077
        %4449 = vmatmul.mubr.bf16.gmra.mrb[0].mxu0 %v4076
        %v4450 = vpop.f32.mrb[0].mxu0
        %v4451 = vadd.f32 %v4086, %v4450
        %v4452 = vpop.f32.mrb[0].mxu0
        %v4453 = vpop.f32.mrb[0].mxu0
        %v4454 = vadd.f32 %v4086, %v4453
        %v4455 = vpop.f32.mrb[0].mxu0
        %4456 = vmatprep.mubr.bf16.mxu0 %v4079
        %4457 = vmatmul.mubr.bf16.gmra.mrb[0].mxu0 %v4078
        %v4458 = vpop.f32.mrb[0].mxu0
        %v4459 = vadd.f32 %v4086, %v4458
        %v4460 = vpop.f32.mrb[0].mxu0
        %v4461 = vpop.f32.mrb[0].mxu0
        %v4462 = vadd.f32 %v4086, %v4461
        %v4463 = vpop.f32.mrb[0].mxu0
        %4464 = vmatprep.mubr.bf16.mxu0 %v4081
        %4465 = vmatmul.mubr.bf16.gmra.mrb[0].mxu0 %v4080
        %v4466 = vpop.f32.mrb[0].mxu0
        %v4467 = vadd.f32 %v4086, %v4466
        %v4468 = vpop.f32.mrb[0].mxu0
        %v4469 = vpop.f32.mrb[0].mxu0
        %v4470 = vadd.f32 %v4086, %v4469
        %v4471 = vpop.f32.mrb[0].mxu0
        %4472 = vdwg.mxu0
        %v4473 = vadd.f32 %v3210, %v4219
        %v4474 = vadd.f32 %v3211, %v4222
        %v4475 = vadd.f32 %v3212, %v4227
        %v4476 = vadd.f32 %v3213, %v4230
        %v4477 = vadd.f32 %v3214, %v4235
        %v4478 = vadd.f32 %v3215, %v4238
        %v4479 = vadd.f32 %v3216, %v4243
        %v4480 = vadd.f32 %v3217, %v4246
        %v4481 = vadd.f32 %v3218, %v4251
        %v4482 = vadd.f32 %v3219, %v4254
        %v4483 = vadd.f32 %v3220, %v4259
        %v4484 = vadd.f32 %v3221, %v4262
        %v4485 = vadd.f32 %v3222, %v4267
        %v4486 = vadd.f32 %v3223, %v4270
        %v4487 = vadd.f32 %v3224, %v4275
        %v4488 = vadd.f32 %v3225, %v4278
        %v4489 = vadd.f32 %v3226, %v4283
        %v4490 = vadd.f32 %v3227, %v4286
        %v4491 = vadd.f32 %v3228, %v4291
        %v4492 = vadd.f32 %v3229, %v4294
        %v4493 = vadd.f32 %v3230, %v4299
        %v4494 = vadd.f32 %v3231, %v4302
        %v4495 = vadd.f32 %v3232, %v4307
        %v4496 = vadd.f32 %v3233, %v4310
        %v4497 = vadd.f32 %v3234, %v4315
        %v4498 = vadd.f32 %v3235, %v4318
        %v4499 = vadd.f32 %v3236, %v4323
        %v4500 = vadd.f32 %v3237, %v4326
        %v4501 = vadd.f32 %v3238, %v4331
        %v4502 = vadd.f32 %v3239, %v4334
        %v4503 = vadd.f32 %v3240, %v4339
        %v4504 = vadd.f32 %v3241, %v4342
        %v4505 = vadd.f32 %v3242, %v4347
        %v4506 = vadd.f32 %v3243, %v4350
        %v4507 = vadd.f32 %v3244, %v4355
        %v4508 = vadd.f32 %v3245, %v4358
        %v4509 = vadd.f32 %v3246, %v4363
        %v4510 = vadd.f32 %v3247, %v4366
        %v4511 = vadd.f32 %v3248, %v4371
        %v4512 = vadd.f32 %v3249, %v4374
        %v4513 = vadd.f32 %v3250, %v4379
        %v4514 = vadd.f32 %v3251, %v4382
        %v4515 = vadd.f32 %v3252, %v4387
        %v4516 = vadd.f32 %v3253, %v4390
        %v4517 = vadd.f32 %v3254, %v4395
        %v4518 = vadd.f32 %v3255, %v4398
        %v4519 = vadd.f32 %v3256, %v4403
        %v4520 = vadd.f32 %v3257, %v4406
        %v4521 = vadd.f32 %v3258, %v4411
        %v4522 = vadd.f32 %v3259, %v4414
        %v4523 = vadd.f32 %v3260, %v4419
        %v4524 = vadd.f32 %v3261, %v4422
        %v4525 = vadd.f32 %v3262, %v4427
        %v4526 = vadd.f32 %v3263, %v4430
        %v4527 = vadd.f32 %v3264, %v4435
        %v4528 = vadd.f32 %v3265, %v4438
        %v4529 = vadd.f32 %v3266, %v4443
        %v4530 = vadd.f32 %v3267, %v4446
        %v4531 = vadd.f32 %v3268, %v4451
        %v4532 = vadd.f32 %v3269, %v4454
        %v4533 = vadd.f32 %v3270, %v4459
        %v4534 = vadd.f32 %v3271, %v4462
        %v4535 = vadd.f32 %v3272, %v4467
        %v4536 = vadd.f32 %v3273, %v4470
        %s4537 = scalar_lea.vmem %s1, 1
        %v4538 = vld [vmem:[%s4537] sm:$0x1]
        %s4539 = scalar_lea.vmem [#allocation5], 1
        %v4540 = vld [vmem:[%s4539] sm:$0x1]
        %s4541 = scalar_lea.vmem %s3, 1
        %v4542 = vld [vmem:[%s4541] sm:$0x1]
        %s4543 = scalar_lea.vmem %s4, 1
        %v4544 = vld [vmem:[%s4543] sm:$0x1]
        %s4545 = scalar_lea.vmem [#allocation7], 128
        %v4546 = vld [vmem:[%s4545] sm:$0xff]
        %v4547 = vld [vmem:[%s4545 + $0x8] sm:$0xff]
        %v4548 = vld [vmem:[%s4545 + $0x10] sm:$0xff]
        %v4549 = vld [vmem:[%s4545 + $0x18] sm:$0xff]
        %v4550 = vld [vmem:[%s4545 + $0x20] sm:$0xff]
        %v4551 = vld [vmem:[%s4545 + $0x28] sm:$0xff]
        %v4552 = vld [vmem:[%s4545 + $0x30] sm:$0xff]
        %v4553 = vld [vmem:[%s4545 + $0x38] sm:$0xff]
        %v4554 = vld [vmem:[%s4545 + $0x40] sm:$0xff]
        %v4555 = vld [vmem:[%s4545 + $0x48] sm:$0xff]
        %v4556 = vld [vmem:[%s4545 + $0x50] sm:$0xff]
        %v4557 = vld [vmem:[%s4545 + $0x58] sm:$0xff]
        %v4558 = vld [vmem:[%s4545 + $0x60] sm:$0xff]
        %v4559 = vld [vmem:[%s4545 + $0x68] sm:$0xff]
        %v4560 = vld [vmem:[%s4545 + $0x70] sm:$0xff]
        %v4561 = vld [vmem:[%s4545 + $0x78] sm:$0xff]
        %s4562 = scalar_lea.vmem %s6, 2
        %v4563 = vld [vmem:[%s4562] sm:$0x3]
        %s4564 = scalar_lea.vmem [#allocation8], 64
        %v4565 = vld [vmem:[%s4564] sm:$0xf]
        %v4566 = vld [vmem:[%s4564 + $0x4] sm:$0xf]
        %v4567 = vld [vmem:[%s4564 + $0x8] sm:$0xf]
        %v4568 = vld [vmem:[%s4564 + $0xc] sm:$0xf]
        %v4569 = vld [vmem:[%s4564 + $0x10] sm:$0xf]
        %v4570 = vld [vmem:[%s4564 + $0x14] sm:$0xf]
        %v4571 = vld [vmem:[%s4564 + $0x18] sm:$0xf]
        %v4572 = vld [vmem:[%s4564 + $0x1c] sm:$0xf]
        %v4573 = vld [vmem:[%s4564 + $0x20] sm:$0xf]
        %v4574 = vld [vmem:[%s4564 + $0x24] sm:$0xf]
        %v4575 = vld [vmem:[%s4564 + $0x28] sm:$0xf]
        %v4576 = vld [vmem:[%s4564 + $0x2c] sm:$0xf]
        %v4577 = vld [vmem:[%s4564 + $0x30] sm:$0xf]
        %v4578 = vld [vmem:[%s4564 + $0x34] sm:$0xf]
        %v4579 = vld [vmem:[%s4564 + $0x38] sm:$0xf]
        %v4580 = vld [vmem:[%s4564 + $0x3c] sm:$0xf]
        %s4581 = scalar_lea.vmem %s8, 1
        %v4582 = vld [vmem:[%s4581] sm:$0x1]
        %s4583 = scalar_lea.vmem %s9, 1
        %v4584 = vld [vmem:[%s4583] sm:$0x1]
        %s4585 = scalar_lea.vmem [#allocation10], 1
        %v4586 = vld [vmem:[%s4585] sm:$0x1]
        %s4587 = scalar_lea.vmem [#allocation11], 128
        %v4588 = vld [vmem:[%s4587] sm:$0xff]
        %v4589 = vld [vmem:[%s4587 + $0x8] sm:$0xff]
        %v4590 = vld [vmem:[%s4587 + $0x10] sm:$0xff]
        %v4591 = vld [vmem:[%s4587 + $0x18] sm:$0xff]
        %v4592 = vld [vmem:[%s4587 + $0x20] sm:$0xff]
        %v4593 = vld [vmem:[%s4587 + $0x28] sm:$0xff]
        %v4594 = vld [vmem:[%s4587 + $0x30] sm:$0xff]
        %v4595 = vld [vmem:[%s4587 + $0x38] sm:$0xff]
        %v4596 = vld [vmem:[%s4587 + $0x40] sm:$0xff]
        %v4597 = vld [vmem:[%s4587 + $0x48] sm:$0xff]
        %v4598 = vld [vmem:[%s4587 + $0x50] sm:$0xff]
        %v4599 = vld [vmem:[%s4587 + $0x58] sm:$0xff]
        %v4600 = vld [vmem:[%s4587 + $0x60] sm:$0xff]
        %v4601 = vld [vmem:[%s4587 + $0x68] sm:$0xff]
        %v4602 = vld [vmem:[%s4587 + $0x70] sm:$0xff]
        %v4603 = vld [vmem:[%s4587 + $0x78] sm:$0xff]
        %s4604 = scalar_lea.vmem %s12, 2
        %v4605 = vld [vmem:[%s4604] sm:$0x3]
        %s4606 = scalar_lea.vmem [#allocation13], 128
        %v4607 = vld [vmem:[%s4606] sm:$0xf]
        %v4608 = vld [vmem:[%s4606 + $0x4] sm:$0xf]
        %v4609 = vld [vmem:[%s4606 + $0x8] sm:$0xf]
        %v4610 = vld [vmem:[%s4606 + $0xc] sm:$0xf]
        %v4611 = vld [vmem:[%s4606 + $0x10] sm:$0xf]
        %v4612 = vld [vmem:[%s4606 + $0x14] sm:$0xf]
        %v4613 = vld [vmem:[%s4606 + $0x18] sm:$0xf]
        %v4614 = vld [vmem:[%s4606 + $0x1c] sm:$0xf]
        %v4615 = vld [vmem:[%s4606 + $0x20] sm:$0xf]
        %v4616 = vld [vmem:[%s4606 + $0x24] sm:$0xf]
        %v4617 = vld [vmem:[%s4606 + $0x28] sm:$0xf]
        %v4618 = vld [vmem:[%s4606 + $0x2c] sm:$0xf]
        %v4619 = vld [vmem:[%s4606 + $0x30] sm:$0xf]
        %v4620 = vld [vmem:[%s4606 + $0x34] sm:$0xf]
        %v4621 = vld [vmem:[%s4606 + $0x38] sm:$0xf]
        %v4622 = vld [vmem:[%s4606 + $0x3c] sm:$0xf]
        %v4623 = vld [vmem:[%s4606 + $0x40] sm:$0xf]
        %v4624 = vld [vmem:[%s4606 + $0x44] sm:$0xf]
        %v4625 = vld [vmem:[%s4606 + $0x48] sm:$0xf]
        %v4626 = vld [vmem:[%s4606 + $0x4c] sm:$0xf]
        %v4627 = vld [vmem:[%s4606 + $0x50] sm:$0xf]
        %v4628 = vld [vmem:[%s4606 + $0x54] sm:$0xf]
        %v4629 = vld [vmem:[%s4606 + $0x58] sm:$0xf]
        %v4630 = vld [vmem:[%s4606 + $0x5c] sm:$0xf]
        %v4631 = vld [vmem:[%s4606 + $0x60] sm:$0xf]
        %v4632 = vld [vmem:[%s4606 + $0x64] sm:$0xf]
        %v4633 = vld [vmem:[%s4606 + $0x68] sm:$0xf]
        %v4634 = vld [vmem:[%s4606 + $0x6c] sm:$0xf]
        %v4635 = vld [vmem:[%s4606 + $0x70] sm:$0xf]
        %v4636 = vld [vmem:[%s4606 + $0x74] sm:$0xf]
        %v4637 = vld [vmem:[%s4606 + $0x78] sm:$0xf]
        %v4638 = vld [vmem:[%s4606 + $0x7c] sm:$0xf]
        %s4639 = scalar_lea.vmem %s14, 1
        %v4640 = vld [vmem:[%s4639] sm:$0x1]
        %v4642 = vlaneseq
        %v4643 = vshrl.u32 %v4642, 7
        %v4644 = vsub.s32 0, %v4643
        %v4645 = vrot.slane %v4538, %v4644
        %v4647 = vmul.f32 %v4473, %v4645
        %v4648 = vmul.f32 %v4474, %v4645
        %v4649 = vmul.f32 %v4475, %v4645
        %v4650 = vmul.f32 %v4476, %v4645
        %v4651 = vmul.f32 %v4477, %v4645
        %v4652 = vmul.f32 %v4478, %v4645
        %v4653 = vmul.f32 %v4479, %v4645
        %v4654 = vmul.f32 %v4480, %v4645
        %v4655 = vmul.f32 %v4481, %v4645
        %v4656 = vmul.f32 %v4482, %v4645
        %v4657 = vmul.f32 %v4483, %v4645
        %v4658 = vmul.f32 %v4484, %v4645
        %v4659 = vmul.f32 %v4485, %v4645
        %v4660 = vmul.f32 %v4486, %v4645
        %v4661 = vmul.f32 %v4487, %v4645
        %v4662 = vmul.f32 %v4488, %v4645
        %v4663 = vmul.f32 %v4489, %v4645
        %v4664 = vmul.f32 %v4490, %v4645
        %v4665 = vmul.f32 %v4491, %v4645
        %v4666 = vmul.f32 %v4492, %v4645
        %v4667 = vmul.f32 %v4493, %v4645
        %v4668 = vmul.f32 %v4494, %v4645
        %v4669 = vmul.f32 %v4495, %v4645
        %v4670 = vmul.f32 %v4496, %v4645
        %v4671 = vmul.f32 %v4497, %v4645
        %v4672 = vmul.f32 %v4498, %v4645
        %v4673 = vmul.f32 %v4499, %v4645
        %v4674 = vmul.f32 %v4500, %v4645
        %v4675 = vmul.f32 %v4501, %v4645
        %v4676 = vmul.f32 %v4502, %v4645
        %v4677 = vmul.f32 %v4503, %v4645
        %v4678 = vmul.f32 %v4504, %v4645
        %v4679 = vmul.f32 %v4505, %v4645
        %v4680 = vmul.f32 %v4506, %v4645
        %v4681 = vmul.f32 %v4507, %v4645
        %v4682 = vmul.f32 %v4508, %v4645
        %v4683 = vmul.f32 %v4509, %v4645
        %v4684 = vmul.f32 %v4510, %v4645
        %v4685 = vmul.f32 %v4511, %v4645
        %v4686 = vmul.f32 %v4512, %v4645
        %v4687 = vmul.f32 %v4513, %v4645
        %v4688 = vmul.f32 %v4514, %v4645
        %v4689 = vmul.f32 %v4515, %v4645
        %v4690 = vmul.f32 %v4516, %v4645
        %v4691 = vmul.f32 %v4517, %v4645
        %v4692 = vmul.f32 %v4518, %v4645
        %v4693 = vmul.f32 %v4519, %v4645
        %v4694 = vmul.f32 %v4520, %v4645
        %v4695 = vmul.f32 %v4521, %v4645
        %v4696 = vmul.f32 %v4522, %v4645
        %v4697 = vmul.f32 %v4523, %v4645
        %v4698 = vmul.f32 %v4524, %v4645
        %v4699 = vmul.f32 %v4525, %v4645
        %v4700 = vmul.f32 %v4526, %v4645
        %v4701 = vmul.f32 %v4527, %v4645
        %v4702 = vmul.f32 %v4528, %v4645
        %v4703 = vmul.f32 %v4529, %v4645
        %v4704 = vmul.f32 %v4530, %v4645
        %v4705 = vmul.f32 %v4531, %v4645
        %v4706 = vmul.f32 %v4532, %v4645
        %v4707 = vmul.f32 %v4533, %v4645
        %v4708 = vmul.f32 %v4534, %v4645
        %v4709 = vmul.f32 %v4535, %v4645
        %v4710 = vmul.f32 %v4536, %v4645
        %v4712 = vlaneseq
        %v4713 = vshrl.u32 %v4712, 7
        %v4714 = vsub.s32 0, %v4713
        %v4715 = vrot.slane %v4540, %v4714
        %v4717 = vadd.f32 %v4647, %v4715
        %v4718 = vadd.f32 %v4648, %v4715
        %v4719 = vadd.f32 %v4649, %v4715
        %v4720 = vadd.f32 %v4650, %v4715
        %v4721 = vadd.f32 %v4651, %v4715
        %v4722 = vadd.f32 %v4652, %v4715
        %v4723 = vadd.f32 %v4653, %v4715
        %v4724 = vadd.f32 %v4654, %v4715
        %v4725 = vadd.f32 %v4655, %v4715
        %v4726 = vadd.f32 %v4656, %v4715
        %v4727 = vadd.f32 %v4657, %v4715
        %v4728 = vadd.f32 %v4658, %v4715
        %v4729 = vadd.f32 %v4659, %v4715
        %v4730 = vadd.f32 %v4660, %v4715
        %v4731 = vadd.f32 %v4661, %v4715
        %v4732 = vadd.f32 %v4662, %v4715
        %v4733 = vadd.f32 %v4663, %v4715
        %v4734 = vadd.f32 %v4664, %v4715
        %v4735 = vadd.f32 %v4665, %v4715
        %v4736 = vadd.f32 %v4666, %v4715
        %v4737 = vadd.f32 %v4667, %v4715
        %v4738 = vadd.f32 %v4668, %v4715
        %v4739 = vadd.f32 %v4669, %v4715
        %v4740 = vadd.f32 %v4670, %v4715
        %v4741 = vadd.f32 %v4671, %v4715
        %v4742 = vadd.f32 %v4672, %v4715
        %v4743 = vadd.f32 %v4673, %v4715
        %v4744 = vadd.f32 %v4674, %v4715
        %v4745 = vadd.f32 %v4675, %v4715
        %v4746 = vadd.f32 %v4676, %v4715
        %v4747 = vadd.f32 %v4677, %v4715
        %v4748 = vadd.f32 %v4678, %v4715
        %v4749 = vadd.f32 %v4679, %v4715
        %v4750 = vadd.f32 %v4680, %v4715
        %v4751 = vadd.f32 %v4681, %v4715
        %v4752 = vadd.f32 %v4682, %v4715
        %v4753 = vadd.f32 %v4683, %v4715
        %v4754 = vadd.f32 %v4684, %v4715
        %v4755 = vadd.f32 %v4685, %v4715
        %v4756 = vadd.f32 %v4686, %v4715
        %v4757 = vadd.f32 %v4687, %v4715
        %v4758 = vadd.f32 %v4688, %v4715
        %v4759 = vadd.f32 %v4689, %v4715
        %v4760 = vadd.f32 %v4690, %v4715
        %v4761 = vadd.f32 %v4691, %v4715
        %v4762 = vadd.f32 %v4692, %v4715
        %v4763 = vadd.f32 %v4693, %v4715
        %v4764 = vadd.f32 %v4694, %v4715
        %v4765 = vadd.f32 %v4695, %v4715
        %v4766 = vadd.f32 %v4696, %v4715
        %v4767 = vadd.f32 %v4697, %v4715
        %v4768 = vadd.f32 %v4698, %v4715
        %v4769 = vadd.f32 %v4699, %v4715
        %v4770 = vadd.f32 %v4700, %v4715
        %v4771 = vadd.f32 %v4701, %v4715
        %v4772 = vadd.f32 %v4702, %v4715
        %v4773 = vadd.f32 %v4703, %v4715
        %v4774 = vadd.f32 %v4704, %v4715
        %v4775 = vadd.f32 %v4705, %v4715
        %v4776 = vadd.f32 %v4706, %v4715
        %v4777 = vadd.f32 %v4707, %v4715
        %v4778 = vadd.f32 %v4708, %v4715
        %v4779 = vadd.f32 %v4709, %v4715
        %v4780 = vadd.f32 %v4710, %v4715
        %v4781 = vpack.c.bf16 %v4718, %v4717
        %v4782 = vpack.c.bf16 %v4720, %v4719
        %v4783 = vpack.c.bf16 %v4722, %v4721
        %v4784 = vpack.c.bf16 %v4724, %v4723
        %v4785 = vpack.c.bf16 %v4726, %v4725
        %v4786 = vpack.c.bf16 %v4728, %v4727
        %v4787 = vpack.c.bf16 %v4730, %v4729
        %v4788 = vpack.c.bf16 %v4732, %v4731
        %v4789 = vpack.c.bf16 %v4734, %v4733
        %v4790 = vpack.c.bf16 %v4736, %v4735
        %v4791 = vpack.c.bf16 %v4738, %v4737
        %v4792 = vpack.c.bf16 %v4740, %v4739
        %v4793 = vpack.c.bf16 %v4742, %v4741
        %v4794 = vpack.c.bf16 %v4744, %v4743
        %v4795 = vpack.c.bf16 %v4746, %v4745
        %v4796 = vpack.c.bf16 %v4748, %v4747
        %v4797 = vpack.c.bf16 %v4750, %v4749
        %v4798 = vpack.c.bf16 %v4752, %v4751
        %v4799 = vpack.c.bf16 %v4754, %v4753
        %v4800 = vpack.c.bf16 %v4756, %v4755
        %v4801 = vpack.c.bf16 %v4758, %v4757
        %v4802 = vpack.c.bf16 %v4760, %v4759
        %v4803 = vpack.c.bf16 %v4762, %v4761
        %v4804 = vpack.c.bf16 %v4764, %v4763
        %v4805 = vpack.c.bf16 %v4766, %v4765
        %v4806 = vpack.c.bf16 %v4768, %v4767
        %v4807 = vpack.c.bf16 %v4770, %v4769
        %v4808 = vpack.c.bf16 %v4772, %v4771
        %v4809 = vpack.c.bf16 %v4774, %v4773
        %v4810 = vpack.c.bf16 %v4776, %v4775
        %v4811 = vpack.c.bf16 %v4778, %v4777
        %v4812 = vpack.c.bf16 %v4780, %v4779
        %v4814 = vlaneseq
        %v4815 = vshrl.u32 %v4814, 7
        %v4816 = vsub.s32 0, %v4815
        %v4817 = vrot.slane %v4563, %v4816
        %v4818 = vlaneseq
        %v4819 = vshrl.u32 %v4818, 7
        %v4820 = vsub.s32 1, %v4819
        %v4821 = vrot.slane %v4563, %v4820
        %v4840 = vunpack.c.l.b16 %v4546
        %v4841 = vunpack.c.h.b16 %v4546
        %v4842 = vunpack.c.l.b16 %v4547
        %v4843 = vunpack.c.h.b16 %v4547
        %v4844 = vunpack.c.l.b16 %v4548
        %v4845 = vunpack.c.h.b16 %v4548
        %v4846 = vunpack.c.l.b16 %v4549
        %v4847 = vunpack.c.h.b16 %v4549
        %v4848 = vunpack.c.l.b16 %v4550
        %v4849 = vunpack.c.h.b16 %v4550
        %v4850 = vunpack.c.l.b16 %v4551
        %v4851 = vunpack.c.h.b16 %v4551
        %v4852 = vunpack.c.l.b16 %v4552
        %v4853 = vunpack.c.h.b16 %v4552
        %v4854 = vunpack.c.l.b16 %v4553
        %v4855 = vunpack.c.h.b16 %v4553
        %v4856 = vunpack.c.l.b16 %v4554
        %v4857 = vunpack.c.h.b16 %v4554
        %v4858 = vunpack.c.l.b16 %v4555
        %v4859 = vunpack.c.h.b16 %v4555
        %v4860 = vunpack.c.l.b16 %v4556
        %v4861 = vunpack.c.h.b16 %v4556
        %v4862 = vunpack.c.l.b16 %v4557
        %v4863 = vunpack.c.h.b16 %v4557
        %v4864 = vunpack.c.l.b16 %v4558
        %v4865 = vunpack.c.h.b16 %v4558
        %v4866 = vunpack.c.l.b16 %v4559
        %v4867 = vunpack.c.h.b16 %v4559
        %v4868 = vunpack.c.l.b16 %v4560
        %v4869 = vunpack.c.h.b16 %v4560
        %v4870 = vunpack.c.l.b16 %v4561
        %v4871 = vunpack.c.h.b16 %v4561
        %v4872 = vpack.c.b16 %v4842, %v4840
        %v4873 = vpack.c.b16 %v4843, %v4841
        %v4874 = vpack.c.b16 %v4846, %v4844
        %v4875 = vpack.c.b16 %v4847, %v4845
        %v4876 = vpack.c.b16 %v4850, %v4848
        %v4877 = vpack.c.b16 %v4851, %v4849
        %v4878 = vpack.c.b16 %v4854, %v4852
        %v4879 = vpack.c.b16 %v4855, %v4853
        %v4880 = vpack.c.b16 %v4858, %v4856
        %v4881 = vpack.c.b16 %v4859, %v4857
        %v4882 = vpack.c.b16 %v4862, %v4860
        %v4883 = vpack.c.b16 %v4863, %v4861
        %v4884 = vpack.c.b16 %v4866, %v4864
        %v4885 = vpack.c.b16 %v4867, %v4865
        %v4886 = vpack.c.b16 %v4870, %v4868
        %v4887 = vpack.c.b16 %v4871, %v4869
        %4904 = vmatprep.subr.bf16.mxu0 %v4873
        %4905 = vmatpush1.bf16.msra.mxu0 %v4872
        %4906 = vmatprep.subr.bf16.mxu0 %v4875
        %4907 = vmatpush1.bf16.msra.mxu0 %v4874
        %4908 = vmatprep.subr.bf16.mxu0 %v4877
        %4909 = vmatpush1.bf16.msra.mxu0 %v4876
        %4910 = vmatprep.subr.bf16.mxu0 %v4879
        %4911 = vmatpush1.bf16.msra.mxu0 %v4878
        %4912 = vmatprep.subr.bf16.mxu0 %v4881
        %4913 = vmatpush1.bf16.msra.mxu0 %v4880
        %4914 = vmatprep.subr.bf16.mxu0 %v4883
        %4915 = vmatpush1.bf16.msra.mxu0 %v4882
        %4916 = vmatprep.subr.bf16.mxu0 %v4885
        %4917 = vmatpush1.bf16.msra.mxu0 %v4884
        %4918 = vmatprep.subr.bf16.mxu0 %v4887
        %4919 = vmatpush1.bf16.msra.mxu0 %v4886
        %4920 = vmatprep.subr.bf16.mxu0 0
        %4921 = vmatpush1.bf16.msra.mxu0 0
        %4922 = vmatprep.subr.bf16.mxu0 0
        %4923 = vmatpush1.bf16.msra.mxu0 0
        %4924 = vmatprep.subr.bf16.mxu0 0
        %4925 = vmatpush1.bf16.msra.mxu0 0
        %4926 = vmatprep.subr.bf16.mxu0 0
        %4927 = vmatpush1.bf16.msra.mxu0 0
        %4928 = vmatprep.subr.bf16.mxu0 0
        %4929 = vmatpush1.bf16.msra.mxu0 0
        %4930 = vmatprep.subr.bf16.mxu0 0
        %4931 = vmatpush1.bf16.msra.mxu0 0
        %4932 = vmatprep.subr.bf16.mxu0 0
        %4933 = vmatpush1.bf16.msra.mxu0 0
        %4934 = vmatprep.subr.bf16.mxu0 0
        %4935 = vmatpush1.bf16.msra.mxu0 0
        %4936 = vmatprep.mubr.bf16.mxu0 0
        %4937 = vmatmul.mubr.bf16.gmra.mrb[0].mxu0 %v4781
        %v4938 = vpop.f32.mrb[0].mxu0
        %v4939 = vadd.f32 %v4817, %v4938
        %v4940 = vpop.f32.mrb[0].mxu0
        %v4941 = vadd.f32 %v4821, %v4940
        %v4942 = vpop.f32.mrb[0].mxu0
        %v4943 = vadd.f32 %v4817, %v4942
        %v4944 = vpop.f32.mrb[0].mxu0
        %v4945 = vadd.f32 %v4821, %v4944
        %4946 = vmatprep.mubr.bf16.mxu0 0
        %4947 = vmatmul.mubr.bf16.gmra.mrb[0].mxu0 %v4782
        %v4948 = vpop.f32.mrb[0].mxu0
        %v4949 = vadd.f32 %v4817, %v4948
        %v4950 = vpop.f32.mrb[0].mxu0
        %v4951 = vadd.f32 %v4821, %v4950
        %v4952 = vpop.f32.mrb[0].mxu0
        %v4953 = vadd.f32 %v4817, %v4952
        %v4954 = vpop.f32.mrb[0].mxu0
        %v4955 = vadd.f32 %v4821, %v4954
        %4956 = vmatprep.mubr.bf16.mxu0 0
        %4957 = vmatmul.mubr.bf16.gmra.mrb[0].mxu0 %v4783
        %v4958 = vpop.f32.mrb[0].mxu0
        %v4959 = vadd.f32 %v4817, %v4958
        %v4960 = vpop.f32.mrb[0].mxu0
        %v4961 = vadd.f32 %v4821, %v4960
        %v4962 = vpop.f32.mrb[0].mxu0
        %v4963 = vadd.f32 %v4817, %v4962
        %v4964 = vpop.f32.mrb[0].mxu0
        %v4965 = vadd.f32 %v4821, %v4964
        %4966 = vmatprep.mubr.bf16.mxu0 0
        %4967 = vmatmul.mubr.bf16.gmra.mrb[0].mxu0 %v4784
        %v4968 = vpop.f32.mrb[0].mxu0
        %v4969 = vadd.f32 %v4817, %v4968
        %v4970 = vpop.f32.mrb[0].mxu0
        %v4971 = vadd.f32 %v4821, %v4970
        %v4972 = vpop.f32.mrb[0].mxu0
        %v4973 = vadd.f32 %v4817, %v4972
        %v4974 = vpop.f32.mrb[0].mxu0
        %v4975 = vadd.f32 %v4821, %v4974
        %4976 = vmatprep.mubr.bf16.mxu0 0
        %4977 = vmatmul.mubr.bf16.gmra.mrb[0].mxu0 %v4785
        %v4978 = vpop.f32.mrb[0].mxu0
        %v4979 = vadd.f32 %v4817, %v4978
        %v4980 = vpop.f32.mrb[0].mxu0
        %v4981 = vadd.f32 %v4821, %v4980
        %v4982 = vpop.f32.mrb[0].mxu0
        %v4983 = vadd.f32 %v4817, %v4982
        %v4984 = vpop.f32.mrb[0].mxu0
        %v4985 = vadd.f32 %v4821, %v4984
        %4986 = vmatprep.mubr.bf16.mxu0 0
        %4987 = vmatmul.mubr.bf16.gmra.mrb[0].mxu0 %v4786
        %v4988 = vpop.f32.mrb[0].mxu0
        %v4989 = vadd.f32 %v4817, %v4988
        %v4990 = vpop.f32.mrb[0].mxu0
        %v4991 = vadd.f32 %v4821, %v4990
        %v4992 = vpop.f32.mrb[0].mxu0
        %v4993 = vadd.f32 %v4817, %v4992
        %v4994 = vpop.f32.mrb[0].mxu0
        %v4995 = vadd.f32 %v4821, %v4994
        %4996 = vmatprep.mubr.bf16.mxu0 0
        %4997 = vmatmul.mubr.bf16.gmra.mrb[0].mxu0 %v4787
        %v4998 = vpop.f32.mrb[0].mxu0
        %v4999 = vadd.f32 %v4817, %v4998
        %v5000 = vpop.f32.mrb[0].mxu0
        %v5001 = vadd.f32 %v4821, %v5000
        %v5002 = vpop.f32.mrb[0].mxu0
        %v5003 = vadd.f32 %v4817, %v5002
        %v5004 = vpop.f32.mrb[0].mxu0
        %v5005 = vadd.f32 %v4821, %v5004
        %5006 = vmatprep.mubr.bf16.mxu0 0
        %5007 = vmatmul.mubr.bf16.gmra.mrb[0].mxu0 %v4788
        %v5008 = vpop.f32.mrb[0].mxu0
        %v5009 = vadd.f32 %v4817, %v5008
        %v5010 = vpop.f32.mrb[0].mxu0
        %v5011 = vadd.f32 %v4821, %v5010
        %v5012 = vpop.f32.mrb[0].mxu0
        %v5013 = vadd.f32 %v4817, %v5012
        %v5014 = vpop.f32.mrb[0].mxu0
        %v5015 = vadd.f32 %v4821, %v5014
        %5016 = vmatprep.mubr.bf16.mxu0 0
        %5017 = vmatmul.mubr.bf16.gmra.mrb[0].mxu0 %v4789
        %v5018 = vpop.f32.mrb[0].mxu0
        %v5019 = vadd.f32 %v4817, %v5018
        %v5020 = vpop.f32.mrb[0].mxu0
        %v5021 = vadd.f32 %v4821, %v5020
        %v5022 = vpop.f32.mrb[0].mxu0
        %v5023 = vadd.f32 %v4817, %v5022
        %v5024 = vpop.f32.mrb[0].mxu0
        %v5025 = vadd.f32 %v4821, %v5024
        %5026 = vmatprep.mubr.bf16.mxu0 0
        %5027 = vmatmul.mubr.bf16.gmra.mrb[0].mxu0 %v4790
        %v5028 = vpop.f32.mrb[0].mxu0
        %v5029 = vadd.f32 %v4817, %v5028
        %v5030 = vpop.f32.mrb[0].mxu0
        %v5031 = vadd.f32 %v4821, %v5030
        %v5032 = vpop.f32.mrb[0].mxu0
        %v5033 = vadd.f32 %v4817, %v5032
        %v5034 = vpop.f32.mrb[0].mxu0
        %v5035 = vadd.f32 %v4821, %v5034
        %5036 = vmatprep.mubr.bf16.mxu0 0
        %5037 = vmatmul.mubr.bf16.gmra.mrb[0].mxu0 %v4791
        %v5038 = vpop.f32.mrb[0].mxu0
        %v5039 = vadd.f32 %v4817, %v5038
        %v5040 = vpop.f32.mrb[0].mxu0
        %v5041 = vadd.f32 %v4821, %v5040
        %v5042 = vpop.f32.mrb[0].mxu0
        %v5043 = vadd.f32 %v4817, %v5042
        %v5044 = vpop.f32.mrb[0].mxu0
        %v5045 = vadd.f32 %v4821, %v5044
        %5046 = vmatprep.mubr.bf16.mxu0 0
        %5047 = vmatmul.mubr.bf16.gmra.mrb[0].mxu0 %v4792
        %v5048 = vpop.f32.mrb[0].mxu0
        %v5049 = vadd.f32 %v4817, %v5048
        %v5050 = vpop.f32.mrb[0].mxu0
        %v5051 = vadd.f32 %v4821, %v5050
        %v5052 = vpop.f32.mrb[0].mxu0
        %v5053 = vadd.f32 %v4817, %v5052
        %v5054 = vpop.f32.mrb[0].mxu0
        %v5055 = vadd.f32 %v4821, %v5054
        %5056 = vmatprep.mubr.bf16.mxu0 0
        %5057 = vmatmul.mubr.bf16.gmra.mrb[0].mxu0 %v4793
        %v5058 = vpop.f32.mrb[0].mxu0
        %v5059 = vadd.f32 %v4817, %v5058
        %v5060 = vpop.f32.mrb[0].mxu0
        %v5061 = vadd.f32 %v4821, %v5060
        %v5062 = vpop.f32.mrb[0].mxu0
        %v5063 = vadd.f32 %v4817, %v5062
        %v5064 = vpop.f32.mrb[0].mxu0
        %v5065 = vadd.f32 %v4821, %v5064
        %5066 = vmatprep.mubr.bf16.mxu0 0
        %5067 = vmatmul.mubr.bf16.gmra.mrb[0].mxu0 %v4794
        %v5068 = vpop.f32.mrb[0].mxu0
        %v5069 = vadd.f32 %v4817, %v5068
        %v5070 = vpop.f32.mrb[0].mxu0
        %v5071 = vadd.f32 %v4821, %v5070
        %v5072 = vpop.f32.mrb[0].mxu0
        %v5073 = vadd.f32 %v4817, %v5072
        %v5074 = vpop.f32.mrb[0].mxu0
        %v5075 = vadd.f32 %v4821, %v5074
        %5076 = vmatprep.mubr.bf16.mxu0 0
        %5077 = vmatmul.mubr.bf16.gmra.mrb[0].mxu0 %v4795
        %v5078 = vpop.f32.mrb[0].mxu0
        %v5079 = vadd.f32 %v4817, %v5078
        %v5080 = vpop.f32.mrb[0].mxu0
        %v5081 = vadd.f32 %v4821, %v5080
        %v5082 = vpop.f32.mrb[0].mxu0
        %v5083 = vadd.f32 %v4817, %v5082
        %v5084 = vpop.f32.mrb[0].mxu0
        %v5085 = vadd.f32 %v4821, %v5084
        %5086 = vmatprep.mubr.bf16.mxu0 0
        %5087 = vmatmul.mubr.bf16.gmra.mrb[0].mxu0 %v4796
        %v5088 = vpop.f32.mrb[0].mxu0
        %v5089 = vadd.f32 %v4817, %v5088
        %v5090 = vpop.f32.mrb[0].mxu0
        %v5091 = vadd.f32 %v4821, %v5090
        %v5092 = vpop.f32.mrb[0].mxu0
        %v5093 = vadd.f32 %v4817, %v5092
        %v5094 = vpop.f32.mrb[0].mxu0
        %v5095 = vadd.f32 %v4821, %v5094
        %5096 = vmatprep.mubr.bf16.mxu0 0
        %5097 = vmatmul.mubr.bf16.gmra.mrb[0].mxu0 %v4797
        %v5098 = vpop.f32.mrb[0].mxu0
        %v5099 = vadd.f32 %v4817, %v5098
        %v5100 = vpop.f32.mrb[0].mxu0
        %v5101 = vadd.f32 %v4821, %v5100
        %v5102 = vpop.f32.mrb[0].mxu0
        %v5103 = vadd.f32 %v4817, %v5102
        %v5104 = vpop.f32.mrb[0].mxu0
        %v5105 = vadd.f32 %v4821, %v5104
        %5106 = vmatprep.mubr.bf16.mxu0 0
        %5107 = vmatmul.mubr.bf16.gmra.mrb[0].mxu0 %v4798
        %v5108 = vpop.f32.mrb[0].mxu0
        %v5109 = vadd.f32 %v4817, %v5108
        %v5110 = vpop.f32.mrb[0].mxu0
        %v5111 = vadd.f32 %v4821, %v5110
        %v5112 = vpop.f32.mrb[0].mxu0
        %v5113 = vadd.f32 %v4817, %v5112
        %v5114 = vpop.f32.mrb[0].mxu0
        %v5115 = vadd.f32 %v4821, %v5114
        %5116 = vmatprep.mubr.bf16.mxu0 0
        %5117 = vmatmul.mubr.bf16.gmra.mrb[0].mxu0 %v4799
        %v5118 = vpop.f32.mrb[0].mxu0
        %v5119 = vadd.f32 %v4817, %v5118
        %v5120 = vpop.f32.mrb[0].mxu0
        %v5121 = vadd.f32 %v4821, %v5120
        %v5122 = vpop.f32.mrb[0].mxu0
        %v5123 = vadd.f32 %v4817, %v5122
        %v5124 = vpop.f32.mrb[0].mxu0
        %v5125 = vadd.f32 %v4821, %v5124
        %5126 = vmatprep.mubr.bf16.mxu0 0
        %5127 = vmatmul.mubr.bf16.gmra.mrb[0].mxu0 %v4800
        %v5128 = vpop.f32.mrb[0].mxu0
        %v5129 = vadd.f32 %v4817, %v5128
        %v5130 = vpop.f32.mrb[0].mxu0
        %v5131 = vadd.f32 %v4821, %v5130
        %v5132 = vpop.f32.mrb[0].mxu0
        %v5133 = vadd.f32 %v4817, %v5132
        %v5134 = vpop.f32.mrb[0].mxu0
        %v5135 = vadd.f32 %v4821, %v5134
        %5136 = vmatprep.mubr.bf16.mxu0 0
        %5137 = vmatmul.mubr.bf16.gmra.mrb[0].mxu0 %v4801
        %v5138 = vpop.f32.mrb[0].mxu0
        %v5139 = vadd.f32 %v4817, %v5138
        %v5140 = vpop.f32.mrb[0].mxu0
        %v5141 = vadd.f32 %v4821, %v5140
        %v5142 = vpop.f32.mrb[0].mxu0
        %v5143 = vadd.f32 %v4817, %v5142
        %v5144 = vpop.f32.mrb[0].mxu0
        %v5145 = vadd.f32 %v4821, %v5144
        %5146 = vmatprep.mubr.bf16.mxu0 0
        %5147 = vmatmul.mubr.bf16.gmra.mrb[0].mxu0 %v4802
        %v5148 = vpop.f32.mrb[0].mxu0
        %v5149 = vadd.f32 %v4817, %v5148
        %v5150 = vpop.f32.mrb[0].mxu0
        %v5151 = vadd.f32 %v4821, %v5150
        %v5152 = vpop.f32.mrb[0].mxu0
        %v5153 = vadd.f32 %v4817, %v5152
        %v5154 = vpop.f32.mrb[0].mxu0
        %v5155 = vadd.f32 %v4821, %v5154
        %5156 = vmatprep.mubr.bf16.mxu0 0
        %5157 = vmatmul.mubr.bf16.gmra.mrb[0].mxu0 %v4803
        %v5158 = vpop.f32.mrb[0].mxu0
        %v5159 = vadd.f32 %v4817, %v5158
        %v5160 = vpop.f32.mrb[0].mxu0
        %v5161 = vadd.f32 %v4821, %v5160
        %v5162 = vpop.f32.mrb[0].mxu0
        %v5163 = vadd.f32 %v4817, %v5162
        %v5164 = vpop.f32.mrb[0].mxu0
        %v5165 = vadd.f32 %v4821, %v5164
        %5166 = vmatprep.mubr.bf16.mxu0 0
        %5167 = vmatmul.mubr.bf16.gmra.mrb[0].mxu0 %v4804
        %v5168 = vpop.f32.mrb[0].mxu0
        %v5169 = vadd.f32 %v4817, %v5168
        %v5170 = vpop.f32.mrb[0].mxu0
        %v5171 = vadd.f32 %v4821, %v5170
        %v5172 = vpop.f32.mrb[0].mxu0
        %v5173 = vadd.f32 %v4817, %v5172
        %v5174 = vpop.f32.mrb[0].mxu0
        %v5175 = vadd.f32 %v4821, %v5174
        %5176 = vmatprep.mubr.bf16.mxu0 0
        %5177 = vmatmul.mubr.bf16.gmra.mrb[0].mxu0 %v4805
        %v5178 = vpop.f32.mrb[0].mxu0
        %v5179 = vadd.f32 %v4817, %v5178
        %v5180 = vpop.f32.mrb[0].mxu0
        %v5181 = vadd.f32 %v4821, %v5180
        %v5182 = vpop.f32.mrb[0].mxu0
        %v5183 = vadd.f32 %v4817, %v5182
        %v5184 = vpop.f32.mrb[0].mxu0
        %v5185 = vadd.f32 %v4821, %v5184
        %5186 = vmatprep.mubr.bf16.mxu0 0
        %5187 = vmatmul.mubr.bf16.gmra.mrb[0].mxu0 %v4806
        %v5188 = vpop.f32.mrb[0].mxu0
        %v5189 = vadd.f32 %v4817, %v5188
        %v5190 = vpop.f32.mrb[0].mxu0
        %v5191 = vadd.f32 %v4821, %v5190
        %v5192 = vpop.f32.mrb[0].mxu0
        %v5193 = vadd.f32 %v4817, %v5192
        %v5194 = vpop.f32.mrb[0].mxu0
        %v5195 = vadd.f32 %v4821, %v5194
        %5196 = vmatprep.mubr.bf16.mxu0 0
        %5197 = vmatmul.mubr.bf16.gmra.mrb[0].mxu0 %v4807
        %v5198 = vpop.f32.mrb[0].mxu0
        %v5199 = vadd.f32 %v4817, %v5198
        %v5200 = vpop.f32.mrb[0].mxu0
        %v5201 = vadd.f32 %v4821, %v5200
        %v5202 = vpop.f32.mrb[0].mxu0
        %v5203 = vadd.f32 %v4817, %v5202
        %v5204 = vpop.f32.mrb[0].mxu0
        %v5205 = vadd.f32 %v4821, %v5204
        %5206 = vmatprep.mubr.bf16.mxu0 0
        %5207 = vmatmul.mubr.bf16.gmra.mrb[0].mxu0 %v4808
        %v5208 = vpop.f32.mrb[0].mxu0
        %v5209 = vadd.f32 %v4817, %v5208
        %v5210 = vpop.f32.mrb[0].mxu0
        %v5211 = vadd.f32 %v4821, %v5210
        %v5212 = vpop.f32.mrb[0].mxu0
        %v5213 = vadd.f32 %v4817, %v5212
        %v5214 = vpop.f32.mrb[0].mxu0
        %v5215 = vadd.f32 %v4821, %v5214
        %5216 = vmatprep.mubr.bf16.mxu0 0
        %5217 = vmatmul.mubr.bf16.gmra.mrb[0].mxu0 %v4809
        %v5218 = vpop.f32.mrb[0].mxu0
        %v5219 = vadd.f32 %v4817, %v5218
        %v5220 = vpop.f32.mrb[0].mxu0
        %v5221 = vadd.f32 %v4821, %v5220
        %v5222 = vpop.f32.mrb[0].mxu0
        %v5223 = vadd.f32 %v4817, %v5222
        %v5224 = vpop.f32.mrb[0].mxu0
        %v5225 = vadd.f32 %v4821, %v5224
        %5226 = vmatprep.mubr.bf16.mxu0 0
        %5227 = vmatmul.mubr.bf16.gmra.mrb[0].mxu0 %v4810
        %v5228 = vpop.f32.mrb[0].mxu0
        %v5229 = vadd.f32 %v4817, %v5228
        %v5230 = vpop.f32.mrb[0].mxu0
        %v5231 = vadd.f32 %v4821, %v5230
        %v5232 = vpop.f32.mrb[0].mxu0
        %v5233 = vadd.f32 %v4817, %v5232
        %v5234 = vpop.f32.mrb[0].mxu0
        %v5235 = vadd.f32 %v4821, %v5234
        %5236 = vmatprep.mubr.bf16.mxu0 0
        %5237 = vmatmul.mubr.bf16.gmra.mrb[0].mxu0 %v4811
        %v5238 = vpop.f32.mrb[0].mxu0
        %v5239 = vadd.f32 %v4817, %v5238
        %v5240 = vpop.f32.mrb[0].mxu0
        %v5241 = vadd.f32 %v4821, %v5240
        %v5242 = vpop.f32.mrb[0].mxu0
        %v5243 = vadd.f32 %v4817, %v5242
        %v5244 = vpop.f32.mrb[0].mxu0
        %v5245 = vadd.f32 %v4821, %v5244
        %5246 = vmatprep.mubr.bf16.mxu0 0
        %5247 = vmatmul.mubr.bf16.gmra.mrb[0].mxu0 %v4812
        %v5248 = vpop.f32.mrb[0].mxu0
        %v5249 = vadd.f32 %v4817, %v5248
        %v5250 = vpop.f32.mrb[0].mxu0
        %v5251 = vadd.f32 %v4821, %v5250
        %v5252 = vpop.f32.mrb[0].mxu0
        %v5253 = vadd.f32 %v4817, %v5252
        %v5254 = vpop.f32.mrb[0].mxu0
        %v5255 = vadd.f32 %v4821, %v5254
        %5256 = vdwg.mxu0
        %v5258 = vlaneseq
        %v5259 = vshrl.u32 %v5258, 7
        %v5260 = vsub.s32 0, %v5259
        %v5261 = vrot.slane %v4542, %v5260
        %v5263 = vmul.f32 %v4717, %v5261
        %v5264 = vmul.f32 %v4718, %v5261
        %v5265 = vmul.f32 %v4719, %v5261
        %v5266 = vmul.f32 %v4720, %v5261
        %v5267 = vmul.f32 %v4721, %v5261
        %v5268 = vmul.f32 %v4722, %v5261
        %v5269 = vmul.f32 %v4723, %v5261
        %v5270 = vmul.f32 %v4724, %v5261
        %v5271 = vmul.f32 %v4725, %v5261
        %v5272 = vmul.f32 %v4726, %v5261
        %v5273 = vmul.f32 %v4727, %v5261
        %v5274 = vmul.f32 %v4728, %v5261
        %v5275 = vmul.f32 %v4729, %v5261
        %v5276 = vmul.f32 %v4730, %v5261
        %v5277 = vmul.f32 %v4731, %v5261
        %v5278 = vmul.f32 %v4732, %v5261
        %v5279 = vmul.f32 %v4733, %v5261
        %v5280 = vmul.f32 %v4734, %v5261
        %v5281 = vmul.f32 %v4735, %v5261
        %v5282 = vmul.f32 %v4736, %v5261
        %v5283 = vmul.f32 %v4737, %v5261
        %v5284 = vmul.f32 %v4738, %v5261
        %v5285 = vmul.f32 %v4739, %v5261
        %v5286 = vmul.f32 %v4740, %v5261
        %v5287 = vmul.f32 %v4741, %v5261
        %v5288 = vmul.f32 %v4742, %v5261
        %v5289 = vmul.f32 %v4743, %v5261
        %v5290 = vmul.f32 %v4744, %v5261
        %v5291 = vmul.f32 %v4745, %v5261
        %v5292 = vmul.f32 %v4746, %v5261
        %v5293 = vmul.f32 %v4747, %v5261
        %v5294 = vmul.f32 %v4748, %v5261
        %v5295 = vmul.f32 %v4749, %v5261
        %v5296 = vmul.f32 %v4750, %v5261
        %v5297 = vmul.f32 %v4751, %v5261
        %v5298 = vmul.f32 %v4752, %v5261
        %v5299 = vmul.f32 %v4753, %v5261
        %v5300 = vmul.f32 %v4754, %v5261
        %v5301 = vmul.f32 %v4755, %v5261
        %v5302 = vmul.f32 %v4756, %v5261
        %v5303 = vmul.f32 %v4757, %v5261
        %v5304 = vmul.f32 %v4758, %v5261
        %v5305 = vmul.f32 %v4759, %v5261
        %v5306 = vmul.f32 %v4760, %v5261
        %v5307 = vmul.f32 %v4761, %v5261
        %v5308 = vmul.f32 %v4762, %v5261
        %v5309 = vmul.f32 %v4763, %v5261
        %v5310 = vmul.f32 %v4764, %v5261
        %v5311 = vmul.f32 %v4765, %v5261
        %v5312 = vmul.f32 %v4766, %v5261
        %v5313 = vmul.f32 %v4767, %v5261
        %v5314 = vmul.f32 %v4768, %v5261
        %v5315 = vmul.f32 %v4769, %v5261
        %v5316 = vmul.f32 %v4770, %v5261
        %v5317 = vmul.f32 %v4771, %v5261
        %v5318 = vmul.f32 %v4772, %v5261
        %v5319 = vmul.f32 %v4773, %v5261
        %v5320 = vmul.f32 %v4774, %v5261
        %v5321 = vmul.f32 %v4775, %v5261
        %v5322 = vmul.f32 %v4776, %v5261
        %v5323 = vmul.f32 %v4777, %v5261
        %v5324 = vmul.f32 %v4778, %v5261
        %v5325 = vmul.f32 %v4779, %v5261
        %v5326 = vmul.f32 %v4780, %v5261
        %5327 = vadd.xlane.f32.xlu0 %v5263
        %v5328 = vpop.xlane.xlu0 %5327
        %5329 = vadd.xlane.f32.xlu0 %v5264
        %v5330 = vpop.xlane.xlu0 %5329
        %5331 = vadd.xlane.f32.xlu0 %v5265
        %v5332 = vpop.xlane.xlu0 %5331
        %5333 = vadd.xlane.f32.xlu0 %v5266
        %v5334 = vpop.xlane.xlu0 %5333
        %5335 = vadd.xlane.f32.xlu0 %v5267
        %v5336 = vpop.xlane.xlu0 %5335
        %5337 = vadd.xlane.f32.xlu0 %v5268
        %v5338 = vpop.xlane.xlu0 %5337
        %5339 = vadd.xlane.f32.xlu0 %v5269
        %v5340 = vpop.xlane.xlu0 %5339
        %5341 = vadd.xlane.f32.xlu0 %v5270
        %v5342 = vpop.xlane.xlu0 %5341
        %5343 = vadd.xlane.f32.xlu0 %v5271
        %v5344 = vpop.xlane.xlu0 %5343
        %5345 = vadd.xlane.f32.xlu0 %v5272
        %v5346 = vpop.xlane.xlu0 %5345
        %5347 = vadd.xlane.f32.xlu0 %v5273
        %v5348 = vpop.xlane.xlu0 %5347
        %5349 = vadd.xlane.f32.xlu0 %v5274
        %v5350 = vpop.xlane.xlu0 %5349
        %5351 = vadd.xlane.f32.xlu0 %v5275
        %v5352 = vpop.xlane.xlu0 %5351
        %5353 = vadd.xlane.f32.xlu0 %v5276
        %v5354 = vpop.xlane.xlu0 %5353
        %5355 = vadd.xlane.f32.xlu0 %v5277
        %v5356 = vpop.xlane.xlu0 %5355
        %5357 = vadd.xlane.f32.xlu0 %v5278
        %v5358 = vpop.xlane.xlu0 %5357
        %5359 = vadd.xlane.f32.xlu0 %v5279
        %v5360 = vpop.xlane.xlu0 %5359
        %5361 = vadd.xlane.f32.xlu0 %v5280
        %v5362 = vpop.xlane.xlu0 %5361
        %5363 = vadd.xlane.f32.xlu0 %v5281
        %v5364 = vpop.xlane.xlu0 %5363
        %5365 = vadd.xlane.f32.xlu0 %v5282
        %v5366 = vpop.xlane.xlu0 %5365
        %5367 = vadd.xlane.f32.xlu0 %v5283
        %v5368 = vpop.xlane.xlu0 %5367
        %5369 = vadd.xlane.f32.xlu0 %v5284
        %v5370 = vpop.xlane.xlu0 %5369
        %5371 = vadd.xlane.f32.xlu0 %v5285
        %v5372 = vpop.xlane.xlu0 %5371
        %5373 = vadd.xlane.f32.xlu0 %v5286
        %v5374 = vpop.xlane.xlu0 %5373
        %5375 = vadd.xlane.f32.xlu0 %v5287
        %v5376 = vpop.xlane.xlu0 %5375
        %5377 = vadd.xlane.f32.xlu0 %v5288
        %v5378 = vpop.xlane.xlu0 %5377
        %5379 = vadd.xlane.f32.xlu0 %v5289
        %v5380 = vpop.xlane.xlu0 %5379
        %5381 = vadd.xlane.f32.xlu0 %v5290
        %v5382 = vpop.xlane.xlu0 %5381
        %5383 = vadd.xlane.f32.xlu0 %v5291
        %v5384 = vpop.xlane.xlu0 %5383
        %5385 = vadd.xlane.f32.xlu0 %v5292
        %v5386 = vpop.xlane.xlu0 %5385
        %5387 = vadd.xlane.f32.xlu0 %v5293
        %v5388 = vpop.xlane.xlu0 %5387
        %5389 = vadd.xlane.f32.xlu0 %v5294
        %v5390 = vpop.xlane.xlu0 %5389
        %5391 = vadd.xlane.f32.xlu0 %v5295
        %v5392 = vpop.xlane.xlu0 %5391
        %5393 = vadd.xlane.f32.xlu0 %v5296
        %v5394 = vpop.xlane.xlu0 %5393
        %5395 = vadd.xlane.f32.xlu0 %v5297
        %v5396 = vpop.xlane.xlu0 %5395
        %5397 = vadd.xlane.f32.xlu0 %v5298
        %v5398 = vpop.xlane.xlu0 %5397
        %5399 = vadd.xlane.f32.xlu0 %v5299
        %v5400 = vpop.xlane.xlu0 %5399
        %5401 = vadd.xlane.f32.xlu0 %v5300
        %v5402 = vpop.xlane.xlu0 %5401
        %5403 = vadd.xlane.f32.xlu0 %v5301
        %v5404 = vpop.xlane.xlu0 %5403
        %5405 = vadd.xlane.f32.xlu0 %v5302
        %v5406 = vpop.xlane.xlu0 %5405
        %5407 = vadd.xlane.f32.xlu0 %v5303
        %v5408 = vpop.xlane.xlu0 %5407
        %5409 = vadd.xlane.f32.xlu0 %v5304
        %v5410 = vpop.xlane.xlu0 %5409
        %5411 = vadd.xlane.f32.xlu0 %v5305
        %v5412 = vpop.xlane.xlu0 %5411
        %5413 = vadd.xlane.f32.xlu0 %v5306
        %v5414 = vpop.xlane.xlu0 %5413
        %5415 = vadd.xlane.f32.xlu0 %v5307
        %v5416 = vpop.xlane.xlu0 %5415
        %5417 = vadd.xlane.f32.xlu0 %v5308
        %v5418 = vpop.xlane.xlu0 %5417
        %5419 = vadd.xlane.f32.xlu0 %v5309
        %v5420 = vpop.xlane.xlu0 %5419
        %5421 = vadd.xlane.f32.xlu0 %v5310
        %v5422 = vpop.xlane.xlu0 %5421
        %5423 = vadd.xlane.f32.xlu0 %v5311
        %v5424 = vpop.xlane.xlu0 %5423
        %5425 = vadd.xlane.f32.xlu0 %v5312
        %v5426 = vpop.xlane.xlu0 %5425
        %5427 = vadd.xlane.f32.xlu0 %v5313
        %v5428 = vpop.xlane.xlu0 %5427
        %5429 = vadd.xlane.f32.xlu0 %v5314
        %v5430 = vpop.xlane.xlu0 %5429
        %5431 = vadd.xlane.f32.xlu0 %v5315
        %v5432 = vpop.xlane.xlu0 %5431
        %5433 = vadd.xlane.f32.xlu0 %v5316
        %v5434 = vpop.xlane.xlu0 %5433
        %5435 = vadd.xlane.f32.xlu0 %v5317
        %v5436 = vpop.xlane.xlu0 %5435
        %5437 = vadd.xlane.f32.xlu0 %v5318
        %v5438 = vpop.xlane.xlu0 %5437
        %5439 = vadd.xlane.f32.xlu0 %v5319
        %v5440 = vpop.xlane.xlu0 %5439
        %5441 = vadd.xlane.f32.xlu0 %v5320
        %v5442 = vpop.xlane.xlu0 %5441
        %5443 = vadd.xlane.f32.xlu0 %v5321
        %v5444 = vpop.xlane.xlu0 %5443
        %5445 = vadd.xlane.f32.xlu0 %v5322
        %v5446 = vpop.xlane.xlu0 %5445
        %5447 = vadd.xlane.f32.xlu0 %v5323
        %v5448 = vpop.xlane.xlu0 %5447
        %5449 = vadd.xlane.f32.xlu0 %v5324
        %v5450 = vpop.xlane.xlu0 %5449
        %5451 = vadd.xlane.f32.xlu0 %v5325
        %v5452 = vpop.xlane.xlu0 %5451
        %5453 = vadd.xlane.f32.xlu0 %v5326
        %v5454 = vpop.xlane.xlu0 %5453
        %v5456 = vlaneseq
        %v5457 = vshrl.u32 %v5456, 7
        %v5458 = vsub.s32 0, %v5457
        %v5459 = vrot.slane %v4544, %v5458
        %v5461 = vadd.f32 %v5328, %v5459
        %v5462 = vadd.f32 %v5330, %v5459
        %v5463 = vadd.f32 %v5332, %v5459
        %v5464 = vadd.f32 %v5334, %v5459
        %v5465 = vadd.f32 %v5336, %v5459
        %v5466 = vadd.f32 %v5338, %v5459
        %v5467 = vadd.f32 %v5340, %v5459
        %v5468 = vadd.f32 %v5342, %v5459
        %v5469 = vadd.f32 %v5344, %v5459
        %v5470 = vadd.f32 %v5346, %v5459
        %v5471 = vadd.f32 %v5348, %v5459
        %v5472 = vadd.f32 %v5350, %v5459
        %v5473 = vadd.f32 %v5352, %v5459
        %v5474 = vadd.f32 %v5354, %v5459
        %v5475 = vadd.f32 %v5356, %v5459
        %v5476 = vadd.f32 %v5358, %v5459
        %v5477 = vadd.f32 %v5360, %v5459
        %v5478 = vadd.f32 %v5362, %v5459
        %v5479 = vadd.f32 %v5364, %v5459
        %v5480 = vadd.f32 %v5366, %v5459
        %v5481 = vadd.f32 %v5368, %v5459
        %v5482 = vadd.f32 %v5370, %v5459
        %v5483 = vadd.f32 %v5372, %v5459
        %v5484 = vadd.f32 %v5374, %v5459
        %v5485 = vadd.f32 %v5376, %v5459
        %v5486 = vadd.f32 %v5378, %v5459
        %v5487 = vadd.f32 %v5380, %v5459
        %v5488 = vadd.f32 %v5382, %v5459
        %v5489 = vadd.f32 %v5384, %v5459
        %v5490 = vadd.f32 %v5386, %v5459
        %v5491 = vadd.f32 %v5388, %v5459
        %v5492 = vadd.f32 %v5390, %v5459
        %v5493 = vadd.f32 %v5392, %v5459
        %v5494 = vadd.f32 %v5394, %v5459
        %v5495 = vadd.f32 %v5396, %v5459
        %v5496 = vadd.f32 %v5398, %v5459
        %v5497 = vadd.f32 %v5400, %v5459
        %v5498 = vadd.f32 %v5402, %v5459
        %v5499 = vadd.f32 %v5404, %v5459
        %v5500 = vadd.f32 %v5406, %v5459
        %v5501 = vadd.f32 %v5408, %v5459
        %v5502 = vadd.f32 %v5410, %v5459
        %v5503 = vadd.f32 %v5412, %v5459
        %v5504 = vadd.f32 %v5414, %v5459
        %v5505 = vadd.f32 %v5416, %v5459
        %v5506 = vadd.f32 %v5418, %v5459
        %v5507 = vadd.f32 %v5420, %v5459
        %v5508 = vadd.f32 %v5422, %v5459
        %v5509 = vadd.f32 %v5424, %v5459
        %v5510 = vadd.f32 %v5426, %v5459
        %v5511 = vadd.f32 %v5428, %v5459
        %v5512 = vadd.f32 %v5430, %v5459
        %v5513 = vadd.f32 %v5432, %v5459
        %v5514 = vadd.f32 %v5434, %v5459
        %v5515 = vadd.f32 %v5436, %v5459
        %v5516 = vadd.f32 %v5438, %v5459
        %v5517 = vadd.f32 %v5440, %v5459
        %v5518 = vadd.f32 %v5442, %v5459
        %v5519 = vadd.f32 %v5444, %v5459
        %v5520 = vadd.f32 %v5446, %v5459
        %v5521 = vadd.f32 %v5448, %v5459
        %v5522 = vadd.f32 %v5450, %v5459
        %v5523 = vadd.f32 %v5452, %v5459
        %v5524 = vadd.f32 %v5454, %v5459
        %v5525 = vsel %vm1642, %v5461, -inf
        %v5526 = vsel %vm1642, %v5462, -inf
        %v5527 = vmax.f32 %v5525, %v5526
        %v5528 = vsel %vm1642, %v5463, -inf
        %v5529 = vmax.f32 %v5527, %v5528
        %v5530 = vsel %vm1642, %v5464, -inf
        %v5531 = vmax.f32 %v5529, %v5530
        %v5532 = vsel %vm1642, %v5465, -inf
        %v5533 = vmax.f32 %v5531, %v5532
        %v5534 = vsel %vm1642, %v5466, -inf
        %v5535 = vmax.f32 %v5533, %v5534
        %v5536 = vsel %vm1642, %v5467, -inf
        %v5537 = vmax.f32 %v5535, %v5536
        %v5538 = vsel %vm1642, %v5468, -inf
        %v5539 = vmax.f32 %v5537, %v5538
        %v5540 = vrot.slane %v5539, 4
        %v5541 = vmax.f32 %v5539, %v5540
        %v5542 = vrot.slane %v5541, 2
        %v5543 = vmax.f32 %v5541, %v5542
        %v5544 = vrot.slane %v5543, 1
        %v5545 = vmax.f32 %v5543, %v5544
        %v5546 = vsel %vm1642, %v5469, -inf
        %v5547 = vsel %vm1642, %v5470, -inf
        %v5548 = vmax.f32 %v5546, %v5547
        %v5549 = vsel %vm1642, %v5471, -inf
        %v5550 = vmax.f32 %v5548, %v5549
        %v5551 = vsel %vm1642, %v5472, -inf
        %v5552 = vmax.f32 %v5550, %v5551
        %v5553 = vsel %vm1642, %v5473, -inf
        %v5554 = vmax.f32 %v5552, %v5553
        %v5555 = vsel %vm1642, %v5474, -inf
        %v5556 = vmax.f32 %v5554, %v5555
        %v5557 = vsel %vm1642, %v5475, -inf
        %v5558 = vmax.f32 %v5556, %v5557
        %v5559 = vsel %vm1642, %v5476, -inf
        %v5560 = vmax.f32 %v5558, %v5559
        %v5561 = vrot.slane %v5560, 4
        %v5562 = vmax.f32 %v5560, %v5561
        %v5563 = vrot.slane %v5562, 2
        %v5564 = vmax.f32 %v5562, %v5563
        %v5565 = vrot.slane %v5564, 1
        %v5566 = vmax.f32 %v5564, %v5565
        %v5567 = vsel %vm1642, %v5477, -inf
        %v5568 = vsel %vm1642, %v5478, -inf
        %v5569 = vmax.f32 %v5567, %v5568
        %v5570 = vsel %vm1642, %v5479, -inf
        %v5571 = vmax.f32 %v5569, %v5570
        %v5572 = vsel %vm1642, %v5480, -inf
        %v5573 = vmax.f32 %v5571, %v5572
        %v5574 = vsel %vm1642, %v5481, -inf
        %v5575 = vmax.f32 %v5573, %v5574
        %v5576 = vsel %vm1642, %v5482, -inf
        %v5577 = vmax.f32 %v5575, %v5576
        %v5578 = vsel %vm1642, %v5483, -inf
        %v5579 = vmax.f32 %v5577, %v5578
        %v5580 = vsel %vm1642, %v5484, -inf
        %v5581 = vmax.f32 %v5579, %v5580
        %v5582 = vrot.slane %v5581, 4
        %v5583 = vmax.f32 %v5581, %v5582
        %v5584 = vrot.slane %v5583, 2
        %v5585 = vmax.f32 %v5583, %v5584
        %v5586 = vrot.slane %v5585, 1
        %v5587 = vmax.f32 %v5585, %v5586
        %v5588 = vsel %vm1642, %v5485, -inf
        %v5589 = vsel %vm1642, %v5486, -inf
        %v5590 = vmax.f32 %v5588, %v5589
        %v5591 = vsel %vm1642, %v5487, -inf
        %v5592 = vmax.f32 %v5590, %v5591
        %v5593 = vsel %vm1642, %v5488, -inf
        %v5594 = vmax.f32 %v5592, %v5593
        %v5595 = vsel %vm1642, %v5489, -inf
        %v5596 = vmax.f32 %v5594, %v5595
        %v5597 = vsel %vm1642, %v5490, -inf
        %v5598 = vmax.f32 %v5596, %v5597
        %v5599 = vsel %vm1642, %v5491, -inf
        %v5600 = vmax.f32 %v5598, %v5599
        %v5601 = vsel %vm1642, %v5492, -inf
        %v5602 = vmax.f32 %v5600, %v5601
        %v5603 = vrot.slane %v5602, 4
        %v5604 = vmax.f32 %v5602, %v5603
        %v5605 = vrot.slane %v5604, 2
        %v5606 = vmax.f32 %v5604, %v5605
        %v5607 = vrot.slane %v5606, 1
        %v5608 = vmax.f32 %v5606, %v5607
        %v5609 = vsel %vm1642, %v5493, -inf
        %v5610 = vsel %vm1642, %v5494, -inf
        %v5611 = vmax.f32 %v5609, %v5610
        %v5612 = vsel %vm1642, %v5495, -inf
        %v5613 = vmax.f32 %v5611, %v5612
        %v5614 = vsel %vm1642, %v5496, -inf
        %v5615 = vmax.f32 %v5613, %v5614
        %v5616 = vsel %vm1642, %v5497, -inf
        %v5617 = vmax.f32 %v5615, %v5616
        %v5618 = vsel %vm1642, %v5498, -inf
        %v5619 = vmax.f32 %v5617, %v5618
        %v5620 = vsel %vm1642, %v5499, -inf
        %v5621 = vmax.f32 %v5619, %v5620
        %v5622 = vsel %vm1642, %v5500, -inf
        %v5623 = vmax.f32 %v5621, %v5622
        %v5624 = vrot.slane %v5623, 4
        %v5625 = vmax.f32 %v5623, %v5624
        %v5626 = vrot.slane %v5625, 2
        %v5627 = vmax.f32 %v5625, %v5626
        %v5628 = vrot.slane %v5627, 1
        %v5629 = vmax.f32 %v5627, %v5628
        %v5630 = vsel %vm1642, %v5501, -inf
        %v5631 = vsel %vm1642, %v5502, -inf
        %v5632 = vmax.f32 %v5630, %v5631
        %v5633 = vsel %vm1642, %v5503, -inf
        %v5634 = vmax.f32 %v5632, %v5633
        %v5635 = vsel %vm1642, %v5504, -inf
        %v5636 = vmax.f32 %v5634, %v5635
        %v5637 = vsel %vm1642, %v5505, -inf
        %v5638 = vmax.f32 %v5636, %v5637
        %v5639 = vsel %vm1642, %v5506, -inf
        %v5640 = vmax.f32 %v5638, %v5639
        %v5641 = vsel %vm1642, %v5507, -inf
        %v5642 = vmax.f32 %v5640, %v5641
        %v5643 = vsel %vm1642, %v5508, -inf
        %v5644 = vmax.f32 %v5642, %v5643
        %v5645 = vrot.slane %v5644, 4
        %v5646 = vmax.f32 %v5644, %v5645
        %v5647 = vrot.slane %v5646, 2
        %v5648 = vmax.f32 %v5646, %v5647
        %v5649 = vrot.slane %v5648, 1
        %v5650 = vmax.f32 %v5648, %v5649
        %v5651 = vsel %vm1642, %v5509, -inf
        %v5652 = vsel %vm1642, %v5510, -inf
        %v5653 = vmax.f32 %v5651, %v5652
        %v5654 = vsel %vm1642, %v5511, -inf
        %v5655 = vmax.f32 %v5653, %v5654
        %v5656 = vsel %vm1642, %v5512, -inf
        %v5657 = vmax.f32 %v5655, %v5656
        %v5658 = vsel %vm1642, %v5513, -inf
        %v5659 = vmax.f32 %v5657, %v5658
        %v5660 = vsel %vm1642, %v5514, -inf
        %v5661 = vmax.f32 %v5659, %v5660
        %v5662 = vsel %vm1642, %v5515, -inf
        %v5663 = vmax.f32 %v5661, %v5662
        %v5664 = vsel %vm1642, %v5516, -inf
        %v5665 = vmax.f32 %v5663, %v5664
        %v5666 = vrot.slane %v5665, 4
        %v5667 = vmax.f32 %v5665, %v5666
        %v5668 = vrot.slane %v5667, 2
        %v5669 = vmax.f32 %v5667, %v5668
        %v5670 = vrot.slane %v5669, 1
        %v5671 = vmax.f32 %v5669, %v5670
        %v5672 = vsel %vm1642, %v5517, -inf
        %v5673 = vsel %vm1642, %v5518, -inf
        %v5674 = vmax.f32 %v5672, %v5673
        %v5675 = vsel %vm1642, %v5519, -inf
        %v5676 = vmax.f32 %v5674, %v5675
        %v5677 = vsel %vm1642, %v5520, -inf
        %v5678 = vmax.f32 %v5676, %v5677
        %v5679 = vsel %vm1642, %v5521, -inf
        %v5680 = vmax.f32 %v5678, %v5679
        %v5681 = vsel %vm1642, %v5522, -inf
        %v5682 = vmax.f32 %v5680, %v5681
        %v5683 = vsel %vm1642, %v5523, -inf
        %v5684 = vmax.f32 %v5682, %v5683
        %v5685 = vsel %vm1642, %v5524, -inf
        %v5686 = vmax.f32 %v5684, %v5685
        %v5687 = vrot.slane %v5686, 4
        %v5688 = vmax.f32 %v5686, %v5687
        %v5689 = vrot.slane %v5688, 2
        %v5690 = vmax.f32 %v5688, %v5689
        %v5691 = vrot.slane %v5690, 1
        %v5692 = vmax.f32 %v5690, %v5691
        %v5693 = vsub.f32 %v5461, %v5545
        %v5694 = vsub.f32 %v5462, %v5545
        %v5695 = vsub.f32 %v5463, %v5545
        %v5696 = vsub.f32 %v5464, %v5545
        %v5697 = vsub.f32 %v5465, %v5545
        %v5698 = vsub.f32 %v5466, %v5545
        %v5699 = vsub.f32 %v5467, %v5545
        %v5700 = vsub.f32 %v5468, %v5545
        %v5701 = vsub.f32 %v5469, %v5566
        %v5702 = vsub.f32 %v5470, %v5566
        %v5703 = vsub.f32 %v5471, %v5566
        %v5704 = vsub.f32 %v5472, %v5566
        %v5705 = vsub.f32 %v5473, %v5566
        %v5706 = vsub.f32 %v5474, %v5566
        %v5707 = vsub.f32 %v5475, %v5566
        %v5708 = vsub.f32 %v5476, %v5566
        %v5709 = vsub.f32 %v5477, %v5587
        %v5710 = vsub.f32 %v5478, %v5587
        %v5711 = vsub.f32 %v5479, %v5587
        %v5712 = vsub.f32 %v5480, %v5587
        %v5713 = vsub.f32 %v5481, %v5587
        %v5714 = vsub.f32 %v5482, %v5587
        %v5715 = vsub.f32 %v5483, %v5587
        %v5716 = vsub.f32 %v5484, %v5587
        %v5717 = vsub.f32 %v5485, %v5608
        %v5718 = vsub.f32 %v5486, %v5608
        %v5719 = vsub.f32 %v5487, %v5608
        %v5720 = vsub.f32 %v5488, %v5608
        %v5721 = vsub.f32 %v5489, %v5608
        %v5722 = vsub.f32 %v5490, %v5608
        %v5723 = vsub.f32 %v5491, %v5608
        %v5724 = vsub.f32 %v5492, %v5608
        %v5725 = vsub.f32 %v5493, %v5629
        %v5726 = vsub.f32 %v5494, %v5629
        %v5727 = vsub.f32 %v5495, %v5629
        %v5728 = vsub.f32 %v5496, %v5629
        %v5729 = vsub.f32 %v5497, %v5629
        %v5730 = vsub.f32 %v5498, %v5629
        %v5731 = vsub.f32 %v5499, %v5629
        %v5732 = vsub.f32 %v5500, %v5629
        %v5733 = vsub.f32 %v5501, %v5650
        %v5734 = vsub.f32 %v5502, %v5650
        %v5735 = vsub.f32 %v5503, %v5650
        %v5736 = vsub.f32 %v5504, %v5650
        %v5737 = vsub.f32 %v5505, %v5650
        %v5738 = vsub.f32 %v5506, %v5650
        %v5739 = vsub.f32 %v5507, %v5650
        %v5740 = vsub.f32 %v5508, %v5650
        %v5741 = vsub.f32 %v5509, %v5671
        %v5742 = vsub.f32 %v5510, %v5671
        %v5743 = vsub.f32 %v5511, %v5671
        %v5744 = vsub.f32 %v5512, %v5671
        %v5745 = vsub.f32 %v5513, %v5671
        %v5746 = vsub.f32 %v5514, %v5671
        %v5747 = vsub.f32 %v5515, %v5671
        %v5748 = vsub.f32 %v5516, %v5671
        %v5749 = vsub.f32 %v5517, %v5692
        %v5750 = vsub.f32 %v5518, %v5692
        %v5751 = vsub.f32 %v5519, %v5692
        %v5752 = vsub.f32 %v5520, %v5692
        %v5753 = vsub.f32 %v5521, %v5692
        %v5754 = vsub.f32 %v5522, %v5692
        %v5755 = vsub.f32 %v5523, %v5692
        %v5756 = vsub.f32 %v5524, %v5692
        %v5757 = vmul.f32 %v5693, 1.442695
        %v5758 = vpow.pop %v5757
        %v5759 = vmul.f32 %v5694, 1.442695
        %v5760 = vpow.pop %v5759
        %v5761 = vmul.f32 %v5695, 1.442695
        %v5762 = vpow.pop %v5761
        %v5763 = vmul.f32 %v5696, 1.442695
        %v5764 = vpow.pop %v5763
        %v5765 = vmul.f32 %v5697, 1.442695
        %v5766 = vpow.pop %v5765
        %v5767 = vmul.f32 %v5698, 1.442695
        %v5768 = vpow.pop %v5767
        %v5769 = vmul.f32 %v5699, 1.442695
        %v5770 = vpow.pop %v5769
        %v5771 = vmul.f32 %v5700, 1.442695
        %v5772 = vpow.pop %v5771
        %v5773 = vmul.f32 %v5701, 1.442695
        %v5774 = vpow.pop %v5773
        %v5775 = vmul.f32 %v5702, 1.442695
        %v5776 = vpow.pop %v5775
        %v5777 = vmul.f32 %v5703, 1.442695
        %v5778 = vpow.pop %v5777
        %v5779 = vmul.f32 %v5704, 1.442695
        %v5780 = vpow.pop %v5779
        %v5781 = vmul.f32 %v5705, 1.442695
        %v5782 = vpow.pop %v5781
        %v5783 = vmul.f32 %v5706, 1.442695
        %v5784 = vpow.pop %v5783
        %v5785 = vmul.f32 %v5707, 1.442695
        %v5786 = vpow.pop %v5785
        %v5787 = vmul.f32 %v5708, 1.442695
        %v5788 = vpow.pop %v5787
        %v5789 = vmul.f32 %v5709, 1.442695
        %v5790 = vpow.pop %v5789
        %v5791 = vmul.f32 %v5710, 1.442695
        %v5792 = vpow.pop %v5791
        %v5793 = vmul.f32 %v5711, 1.442695
        %v5794 = vpow.pop %v5793
        %v5795 = vmul.f32 %v5712, 1.442695
        %v5796 = vpow.pop %v5795
        %v5797 = vmul.f32 %v5713, 1.442695
        %v5798 = vpow.pop %v5797
        %v5799 = vmul.f32 %v5714, 1.442695
        %v5800 = vpow.pop %v5799
        %v5801 = vmul.f32 %v5715, 1.442695
        %v5802 = vpow.pop %v5801
        %v5803 = vmul.f32 %v5716, 1.442695
        %v5804 = vpow.pop %v5803
        %v5805 = vmul.f32 %v5717, 1.442695
        %v5806 = vpow.pop %v5805
        %v5807 = vmul.f32 %v5718, 1.442695
        %v5808 = vpow.pop %v5807
        %v5809 = vmul.f32 %v5719, 1.442695
        %v5810 = vpow.pop %v5809
        %v5811 = vmul.f32 %v5720, 1.442695
        %v5812 = vpow.pop %v5811
        %v5813 = vmul.f32 %v5721, 1.442695
        %v5814 = vpow.pop %v5813
        %v5815 = vmul.f32 %v5722, 1.442695
        %v5816 = vpow.pop %v5815
        %v5817 = vmul.f32 %v5723, 1.442695
        %v5818 = vpow.pop %v5817
        %v5819 = vmul.f32 %v5724, 1.442695
        %v5820 = vpow.pop %v5819
        %v5821 = vmul.f32 %v5725, 1.442695
        %v5822 = vpow.pop %v5821
        %v5823 = vmul.f32 %v5726, 1.442695
        %v5824 = vpow.pop %v5823
        %v5825 = vmul.f32 %v5727, 1.442695
        %v5826 = vpow.pop %v5825
        %v5827 = vmul.f32 %v5728, 1.442695
        %v5828 = vpow.pop %v5827
        %v5829 = vmul.f32 %v5729, 1.442695
        %v5830 = vpow.pop %v5829
        %v5831 = vmul.f32 %v5730, 1.442695
        %v5832 = vpow.pop %v5831
        %v5833 = vmul.f32 %v5731, 1.442695
        %v5834 = vpow.pop %v5833
        %v5835 = vmul.f32 %v5732, 1.442695
        %v5836 = vpow.pop %v5835
        %v5837 = vmul.f32 %v5733, 1.442695
        %v5838 = vpow.pop %v5837
        %v5839 = vmul.f32 %v5734, 1.442695
        %v5840 = vpow.pop %v5839
        %v5841 = vmul.f32 %v5735, 1.442695
        %v5842 = vpow.pop %v5841
        %v5843 = vmul.f32 %v5736, 1.442695
        %v5844 = vpow.pop %v5843
        %v5845 = vmul.f32 %v5737, 1.442695
        %v5846 = vpow.pop %v5845
        %v5847 = vmul.f32 %v5738, 1.442695
        %v5848 = vpow.pop %v5847
        %v5849 = vmul.f32 %v5739, 1.442695
        %v5850 = vpow.pop %v5849
        %v5851 = vmul.f32 %v5740, 1.442695
        %v5852 = vpow.pop %v5851
        %v5853 = vmul.f32 %v5741, 1.442695
        %v5854 = vpow.pop %v5853
        %v5855 = vmul.f32 %v5742, 1.442695
        %v5856 = vpow.pop %v5855
        %v5857 = vmul.f32 %v5743, 1.442695
        %v5858 = vpow.pop %v5857
        %v5859 = vmul.f32 %v5744, 1.442695
        %v5860 = vpow.pop %v5859
        %v5861 = vmul.f32 %v5745, 1.442695
        %v5862 = vpow.pop %v5861
        %v5863 = vmul.f32 %v5746, 1.442695
        %v5864 = vpow.pop %v5863
        %v5865 = vmul.f32 %v5747, 1.442695
        %v5866 = vpow.pop %v5865
        %v5867 = vmul.f32 %v5748, 1.442695
        %v5868 = vpow.pop %v5867
        %v5869 = vmul.f32 %v5749, 1.442695
        %v5870 = vpow.pop %v5869
        %v5871 = vmul.f32 %v5750, 1.442695
        %v5872 = vpow.pop %v5871
        %v5873 = vmul.f32 %v5751, 1.442695
        %v5874 = vpow.pop %v5873
        %v5875 = vmul.f32 %v5752, 1.442695
        %v5876 = vpow.pop %v5875
        %v5877 = vmul.f32 %v5753, 1.442695
        %v5878 = vpow.pop %v5877
        %v5879 = vmul.f32 %v5754, 1.442695
        %v5880 = vpow.pop %v5879
        %v5881 = vmul.f32 %v5755, 1.442695
        %v5882 = vpow.pop %v5881
        %v5883 = vmul.f32 %v5756, 1.442695
        %v5884 = vpow.pop %v5883
        %v5885 = vsel %vm1642, %v5758, 0.0
        %v5886 = vsel %vm1642, %v5760, 0.0
        %v5887 = vadd.f32 %v5885, %v5886
        %v5888 = vsel %vm1642, %v5762, 0.0
        %v5889 = vadd.f32 %v5887, %v5888
        %v5890 = vsel %vm1642, %v5764, 0.0
        %v5891 = vadd.f32 %v5889, %v5890
        %v5892 = vsel %vm1642, %v5766, 0.0
        %v5893 = vadd.f32 %v5891, %v5892
        %v5894 = vsel %vm1642, %v5768, 0.0
        %v5895 = vadd.f32 %v5893, %v5894
        %v5896 = vsel %vm1642, %v5770, 0.0
        %v5897 = vadd.f32 %v5895, %v5896
        %v5898 = vsel %vm1642, %v5772, 0.0
        %v5899 = vadd.f32 %v5897, %v5898
        %v5900 = vrot.slane %v5899, 4
        %v5901 = vadd.f32 %v5899, %v5900
        %v5902 = vrot.slane %v5901, 2
        %v5903 = vadd.f32 %v5901, %v5902
        %v5904 = vrot.slane %v5903, 1
        %v5905 = vadd.f32 %v5903, %v5904
        %v5906 = vsel %vm1642, %v5774, 0.0
        %v5907 = vsel %vm1642, %v5776, 0.0
        %v5908 = vadd.f32 %v5906, %v5907
        %v5909 = vsel %vm1642, %v5778, 0.0
        %v5910 = vadd.f32 %v5908, %v5909
        %v5911 = vsel %vm1642, %v5780, 0.0
        %v5912 = vadd.f32 %v5910, %v5911
        %v5913 = vsel %vm1642, %v5782, 0.0
        %v5914 = vadd.f32 %v5912, %v5913
        %v5915 = vsel %vm1642, %v5784, 0.0
        %v5916 = vadd.f32 %v5914, %v5915
        %v5917 = vsel %vm1642, %v5786, 0.0
        %v5918 = vadd.f32 %v5916, %v5917
        %v5919 = vsel %vm1642, %v5788, 0.0
        %v5920 = vadd.f32 %v5918, %v5919
        %v5921 = vrot.slane %v5920, 4
        %v5922 = vadd.f32 %v5920, %v5921
        %v5923 = vrot.slane %v5922, 2
        %v5924 = vadd.f32 %v5922, %v5923
        %v5925 = vrot.slane %v5924, 1
        %v5926 = vadd.f32 %v5924, %v5925
        %v5927 = vsel %vm1642, %v5790, 0.0
        %v5928 = vsel %vm1642, %v5792, 0.0
        %v5929 = vadd.f32 %v5927, %v5928
        %v5930 = vsel %vm1642, %v5794, 0.0
        %v5931 = vadd.f32 %v5929, %v5930
        %v5932 = vsel %vm1642, %v5796, 0.0
        %v5933 = vadd.f32 %v5931, %v5932
        %v5934 = vsel %vm1642, %v5798, 0.0
        %v5935 = vadd.f32 %v5933, %v5934
        %v5936 = vsel %vm1642, %v5800, 0.0
        %v5937 = vadd.f32 %v5935, %v5936
        %v5938 = vsel %vm1642, %v5802, 0.0
        %v5939 = vadd.f32 %v5937, %v5938
        %v5940 = vsel %vm1642, %v5804, 0.0
        %v5941 = vadd.f32 %v5939, %v5940
        %v5942 = vrot.slane %v5941, 4
        %v5943 = vadd.f32 %v5941, %v5942
        %v5944 = vrot.slane %v5943, 2
        %v5945 = vadd.f32 %v5943, %v5944
        %v5946 = vrot.slane %v5945, 1
        %v5947 = vadd.f32 %v5945, %v5946
        %v5948 = vsel %vm1642, %v5806, 0.0
        %v5949 = vsel %vm1642, %v5808, 0.0
        %v5950 = vadd.f32 %v5948, %v5949
        %v5951 = vsel %vm1642, %v5810, 0.0
        %v5952 = vadd.f32 %v5950, %v5951
        %v5953 = vsel %vm1642, %v5812, 0.0
        %v5954 = vadd.f32 %v5952, %v5953
        %v5955 = vsel %vm1642, %v5814, 0.0
        %v5956 = vadd.f32 %v5954, %v5955
        %v5957 = vsel %vm1642, %v5816, 0.0
        %v5958 = vadd.f32 %v5956, %v5957
        %v5959 = vsel %vm1642, %v5818, 0.0
        %v5960 = vadd.f32 %v5958, %v5959
        %v5961 = vsel %vm1642, %v5820, 0.0
        %v5962 = vadd.f32 %v5960, %v5961
        %v5963 = vrot.slane %v5962, 4
        %v5964 = vadd.f32 %v5962, %v5963
        %v5965 = vrot.slane %v5964, 2
        %v5966 = vadd.f32 %v5964, %v5965
        %v5967 = vrot.slane %v5966, 1
        %v5968 = vadd.f32 %v5966, %v5967
        %v5969 = vsel %vm1642, %v5822, 0.0
        %v5970 = vsel %vm1642, %v5824, 0.0
        %v5971 = vadd.f32 %v5969, %v5970
        %v5972 = vsel %vm1642, %v5826, 0.0
        %v5973 = vadd.f32 %v5971, %v5972
        %v5974 = vsel %vm1642, %v5828, 0.0
        %v5975 = vadd.f32 %v5973, %v5974
        %v5976 = vsel %vm1642, %v5830, 0.0
        %v5977 = vadd.f32 %v5975, %v5976
        %v5978 = vsel %vm1642, %v5832, 0.0
        %v5979 = vadd.f32 %v5977, %v5978
        %v5980 = vsel %vm1642, %v5834, 0.0
        %v5981 = vadd.f32 %v5979, %v5980
        %v5982 = vsel %vm1642, %v5836, 0.0
        %v5983 = vadd.f32 %v5981, %v5982
        %v5984 = vrot.slane %v5983, 4
        %v5985 = vadd.f32 %v5983, %v5984
        %v5986 = vrot.slane %v5985, 2
        %v5987 = vadd.f32 %v5985, %v5986
        %v5988 = vrot.slane %v5987, 1
        %v5989 = vadd.f32 %v5987, %v5988
        %v5990 = vsel %vm1642, %v5838, 0.0
        %v5991 = vsel %vm1642, %v5840, 0.0
        %v5992 = vadd.f32 %v5990, %v5991
        %v5993 = vsel %vm1642, %v5842, 0.0
        %v5994 = vadd.f32 %v5992, %v5993
        %v5995 = vsel %vm1642, %v5844, 0.0
        %v5996 = vadd.f32 %v5994, %v5995
        %v5997 = vsel %vm1642, %v5846, 0.0
        %v5998 = vadd.f32 %v5996, %v5997
        %v5999 = vsel %vm1642, %v5848, 0.0
        %v6000 = vadd.f32 %v5998, %v5999
        %v6001 = vsel %vm1642, %v5850, 0.0
        %v6002 = vadd.f32 %v6000, %v6001
        %v6003 = vsel %vm1642, %v5852, 0.0
        %v6004 = vadd.f32 %v6002, %v6003
        %v6005 = vrot.slane %v6004, 4
        %v6006 = vadd.f32 %v6004, %v6005
        %v6007 = vrot.slane %v6006, 2
        %v6008 = vadd.f32 %v6006, %v6007
        %v6009 = vrot.slane %v6008, 1
        %v6010 = vadd.f32 %v6008, %v6009
        %v6011 = vsel %vm1642, %v5854, 0.0
        %v6012 = vsel %vm1642, %v5856, 0.0
        %v6013 = vadd.f32 %v6011, %v6012
        %v6014 = vsel %vm1642, %v5858, 0.0
        %v6015 = vadd.f32 %v6013, %v6014
        %v6016 = vsel %vm1642, %v5860, 0.0
        %v6017 = vadd.f32 %v6015, %v6016
        %v6018 = vsel %vm1642, %v5862, 0.0
        %v6019 = vadd.f32 %v6017, %v6018
        %v6020 = vsel %vm1642, %v5864, 0.0
        %v6021 = vadd.f32 %v6019, %v6020
        %v6022 = vsel %vm1642, %v5866, 0.0
        %v6023 = vadd.f32 %v6021, %v6022
        %v6024 = vsel %vm1642, %v5868, 0.0
        %v6025 = vadd.f32 %v6023, %v6024
        %v6026 = vrot.slane %v6025, 4
        %v6027 = vadd.f32 %v6025, %v6026
        %v6028 = vrot.slane %v6027, 2
        %v6029 = vadd.f32 %v6027, %v6028
        %v6030 = vrot.slane %v6029, 1
        %v6031 = vadd.f32 %v6029, %v6030
        %v6032 = vsel %vm1642, %v5870, 0.0
        %v6033 = vsel %vm1642, %v5872, 0.0
        %v6034 = vadd.f32 %v6032, %v6033
        %v6035 = vsel %vm1642, %v5874, 0.0
        %v6036 = vadd.f32 %v6034, %v6035
        %v6037 = vsel %vm1642, %v5876, 0.0
        %v6038 = vadd.f32 %v6036, %v6037
        %v6039 = vsel %vm1642, %v5878, 0.0
        %v6040 = vadd.f32 %v6038, %v6039
        %v6041 = vsel %vm1642, %v5880, 0.0
        %v6042 = vadd.f32 %v6040, %v6041
        %v6043 = vsel %vm1642, %v5882, 0.0
        %v6044 = vadd.f32 %v6042, %v6043
        %v6045 = vsel %vm1642, %v5884, 0.0
        %v6046 = vadd.f32 %v6044, %v6045
        %v6047 = vrot.slane %v6046, 4
        %v6048 = vadd.f32 %v6046, %v6047
        %v6049 = vrot.slane %v6048, 2
        %v6050 = vadd.f32 %v6048, %v6049
        %v6051 = vrot.slane %v6050, 1
        %v6052 = vadd.f32 %v6050, %v6051
        %v6053 = vrcp.pop %v5905
        %v6054 = vmul.f32 %v5758, %v6053
        %v6055 = vmul.f32 %v5760, %v6053
        %v6056 = vmul.f32 %v5762, %v6053
        %v6057 = vmul.f32 %v5764, %v6053
        %v6058 = vmul.f32 %v5766, %v6053
        %v6059 = vmul.f32 %v5768, %v6053
        %v6060 = vmul.f32 %v5770, %v6053
        %v6061 = vmul.f32 %v5772, %v6053
        %v6062 = vrcp.pop %v5926
        %v6063 = vmul.f32 %v5774, %v6062
        %v6064 = vmul.f32 %v5776, %v6062
        %v6065 = vmul.f32 %v5778, %v6062
        %v6066 = vmul.f32 %v5780, %v6062
        %v6067 = vmul.f32 %v5782, %v6062
        %v6068 = vmul.f32 %v5784, %v6062
        %v6069 = vmul.f32 %v5786, %v6062
        %v6070 = vmul.f32 %v5788, %v6062
        %v6071 = vrcp.pop %v5947
        %v6072 = vmul.f32 %v5790, %v6071
        %v6073 = vmul.f32 %v5792, %v6071
        %v6074 = vmul.f32 %v5794, %v6071
        %v6075 = vmul.f32 %v5796, %v6071
        %v6076 = vmul.f32 %v5798, %v6071
        %v6077 = vmul.f32 %v5800, %v6071
        %v6078 = vmul.f32 %v5802, %v6071
        %v6079 = vmul.f32 %v5804, %v6071
        %v6080 = vrcp.pop %v5968
        %v6081 = vmul.f32 %v5806, %v6080
        %v6082 = vmul.f32 %v5808, %v6080
        %v6083 = vmul.f32 %v5810, %v6080
        %v6084 = vmul.f32 %v5812, %v6080
        %v6085 = vmul.f32 %v5814, %v6080
        %v6086 = vmul.f32 %v5816, %v6080
        %v6087 = vmul.f32 %v5818, %v6080
        %v6088 = vmul.f32 %v5820, %v6080
        %v6089 = vrcp.pop %v5989
        %v6090 = vmul.f32 %v5822, %v6089
        %v6091 = vmul.f32 %v5824, %v6089
        %v6092 = vmul.f32 %v5826, %v6089
        %v6093 = vmul.f32 %v5828, %v6089
        %v6094 = vmul.f32 %v5830, %v6089
        %v6095 = vmul.f32 %v5832, %v6089
        %v6096 = vmul.f32 %v5834, %v6089
        %v6097 = vmul.f32 %v5836, %v6089
        %v6098 = vrcp.pop %v6010
        %v6099 = vmul.f32 %v5838, %v6098
        %v6100 = vmul.f32 %v5840, %v6098
        %v6101 = vmul.f32 %v5842, %v6098
        %v6102 = vmul.f32 %v5844, %v6098
        %v6103 = vmul.f32 %v5846, %v6098
        %v6104 = vmul.f32 %v5848, %v6098
        %v6105 = vmul.f32 %v5850, %v6098
        %v6106 = vmul.f32 %v5852, %v6098
        %v6107 = vrcp.pop %v6031
        %v6108 = vmul.f32 %v5854, %v6107
        %v6109 = vmul.f32 %v5856, %v6107
        %v6110 = vmul.f32 %v5858, %v6107
        %v6111 = vmul.f32 %v5860, %v6107
        %v6112 = vmul.f32 %v5862, %v6107
        %v6113 = vmul.f32 %v5864, %v6107
        %v6114 = vmul.f32 %v5866, %v6107
        %v6115 = vmul.f32 %v5868, %v6107
        %v6116 = vrcp.pop %v6052
        %v6117 = vmul.f32 %v5870, %v6116
        %v6118 = vmul.f32 %v5872, %v6116
        %v6119 = vmul.f32 %v5874, %v6116
        %v6120 = vmul.f32 %v5876, %v6116
        %v6121 = vmul.f32 %v5878, %v6116
        %v6122 = vmul.f32 %v5880, %v6116
        %v6123 = vmul.f32 %v5882, %v6116
        %v6124 = vmul.f32 %v5884, %v6116
        %6126 = vset.pattern.permute.xlu0 0
        %6127 = vperm.xlu0 %6126, %v6054
        %v6128 = vpop.permute.xlu0 %6127
        %6131 = vset.pattern.permute.xlu0 0
        %6132 = vperm.xlu0 %6131, %v6055
        %v6133 = vpop.permute.xlu0 %6132
        %6136 = vset.pattern.permute.xlu0 0
        %6137 = vperm.xlu0 %6136, %v6056
        %v6138 = vpop.permute.xlu0 %6137
        %6141 = vset.pattern.permute.xlu0 0
        %6142 = vperm.xlu0 %6141, %v6057
        %v6143 = vpop.permute.xlu0 %6142
        %6146 = vset.pattern.permute.xlu0 0
        %6147 = vperm.xlu0 %6146, %v6058
        %v6148 = vpop.permute.xlu0 %6147
        %6151 = vset.pattern.permute.xlu0 0
        %6152 = vperm.xlu0 %6151, %v6059
        %v6153 = vpop.permute.xlu0 %6152
        %6156 = vset.pattern.permute.xlu0 0
        %6157 = vperm.xlu0 %6156, %v6060
        %v6158 = vpop.permute.xlu0 %6157
        %6161 = vset.pattern.permute.xlu0 0
        %6162 = vperm.xlu0 %6161, %v6061
        %v6163 = vpop.permute.xlu0 %6162
        %6166 = vset.pattern.permute.xlu0 0
        %6167 = vperm.xlu0 %6166, %v6063
        %v6168 = vpop.permute.xlu0 %6167
        %6171 = vset.pattern.permute.xlu0 0
        %6172 = vperm.xlu0 %6171, %v6064
        %v6173 = vpop.permute.xlu0 %6172
        %6176 = vset.pattern.permute.xlu0 0
        %6177 = vperm.xlu0 %6176, %v6065
        %v6178 = vpop.permute.xlu0 %6177
        %6181 = vset.pattern.permute.xlu0 0
        %6182 = vperm.xlu0 %6181, %v6066
        %v6183 = vpop.permute.xlu0 %6182
        %6186 = vset.pattern.permute.xlu0 0
        %6187 = vperm.xlu0 %6186, %v6067
        %v6188 = vpop.permute.xlu0 %6187
        %6191 = vset.pattern.permute.xlu0 0
        %6192 = vperm.xlu0 %6191, %v6068
        %v6193 = vpop.permute.xlu0 %6192
        %6196 = vset.pattern.permute.xlu0 0
        %6197 = vperm.xlu0 %6196, %v6069
        %v6198 = vpop.permute.xlu0 %6197
        %6201 = vset.pattern.permute.xlu0 0
        %6202 = vperm.xlu0 %6201, %v6070
        %v6203 = vpop.permute.xlu0 %6202
        %6206 = vset.pattern.permute.xlu0 0
        %6207 = vperm.xlu0 %6206, %v6072
        %v6208 = vpop.permute.xlu0 %6207
        %6211 = vset.pattern.permute.xlu0 0
        %6212 = vperm.xlu0 %6211, %v6073
        %v6213 = vpop.permute.xlu0 %6212
        %6216 = vset.pattern.permute.xlu0 0
        %6217 = vperm.xlu0 %6216, %v6074
        %v6218 = vpop.permute.xlu0 %6217
        %6221 = vset.pattern.permute.xlu0 0
        %6222 = vperm.xlu0 %6221, %v6075
        %v6223 = vpop.permute.xlu0 %6222
        %6226 = vset.pattern.permute.xlu0 0
        %6227 = vperm.xlu0 %6226, %v6076
        %v6228 = vpop.permute.xlu0 %6227
        %6231 = vset.pattern.permute.xlu0 0
        %6232 = vperm.xlu0 %6231, %v6077
        %v6233 = vpop.permute.xlu0 %6232
        %6236 = vset.pattern.permute.xlu0 0
        %6237 = vperm.xlu0 %6236, %v6078
        %v6238 = vpop.permute.xlu0 %6237
        %6241 = vset.pattern.permute.xlu0 0
        %6242 = vperm.xlu0 %6241, %v6079
        %v6243 = vpop.permute.xlu0 %6242
        %6246 = vset.pattern.permute.xlu0 0
        %6247 = vperm.xlu0 %6246, %v6081
        %v6248 = vpop.permute.xlu0 %6247
        %6251 = vset.pattern.permute.xlu0 0
        %6252 = vperm.xlu0 %6251, %v6082
        %v6253 = vpop.permute.xlu0 %6252
        %6256 = vset.pattern.permute.xlu0 0
        %6257 = vperm.xlu0 %6256, %v6083
        %v6258 = vpop.permute.xlu0 %6257
        %6261 = vset.pattern.permute.xlu0 0
        %6262 = vperm.xlu0 %6261, %v6084
        %v6263 = vpop.permute.xlu0 %6262
        %6266 = vset.pattern.permute.xlu0 0
        %6267 = vperm.xlu0 %6266, %v6085
        %v6268 = vpop.permute.xlu0 %6267
        %6271 = vset.pattern.permute.xlu0 0
        %6272 = vperm.xlu0 %6271, %v6086
        %v6273 = vpop.permute.xlu0 %6272
        %6276 = vset.pattern.permute.xlu0 0
        %6277 = vperm.xlu0 %6276, %v6087
        %v6278 = vpop.permute.xlu0 %6277
        %6281 = vset.pattern.permute.xlu0 0
        %6282 = vperm.xlu0 %6281, %v6088
        %v6283 = vpop.permute.xlu0 %6282
        %6286 = vset.pattern.permute.xlu0 0
        %6287 = vperm.xlu0 %6286, %v6090
        %v6288 = vpop.permute.xlu0 %6287
        %6291 = vset.pattern.permute.xlu0 0
        %6292 = vperm.xlu0 %6291, %v6091
        %v6293 = vpop.permute.xlu0 %6292
        %6296 = vset.pattern.permute.xlu0 0
        %6297 = vperm.xlu0 %6296, %v6092
        %v6298 = vpop.permute.xlu0 %6297
        %6301 = vset.pattern.permute.xlu0 0
        %6302 = vperm.xlu0 %6301, %v6093
        %v6303 = vpop.permute.xlu0 %6302
        %6306 = vset.pattern.permute.xlu0 0
        %6307 = vperm.xlu0 %6306, %v6094
        %v6308 = vpop.permute.xlu0 %6307
        %6311 = vset.pattern.permute.xlu0 0
        %6312 = vperm.xlu0 %6311, %v6095
        %v6313 = vpop.permute.xlu0 %6312
        %6316 = vset.pattern.permute.xlu0 0
        %6317 = vperm.xlu0 %6316, %v6096
        %v6318 = vpop.permute.xlu0 %6317
        %6321 = vset.pattern.permute.xlu0 0
        %6322 = vperm.xlu0 %6321, %v6097
        %v6323 = vpop.permute.xlu0 %6322
        %6326 = vset.pattern.permute.xlu0 0
        %6327 = vperm.xlu0 %6326, %v6099
        %v6328 = vpop.permute.xlu0 %6327
        %6331 = vset.pattern.permute.xlu0 0
        %6332 = vperm.xlu0 %6331, %v6100
        %v6333 = vpop.permute.xlu0 %6332
        %6336 = vset.pattern.permute.xlu0 0
        %6337 = vperm.xlu0 %6336, %v6101
        %v6338 = vpop.permute.xlu0 %6337
        %6341 = vset.pattern.permute.xlu0 0
        %6342 = vperm.xlu0 %6341, %v6102
        %v6343 = vpop.permute.xlu0 %6342
        %6346 = vset.pattern.permute.xlu0 0
        %6347 = vperm.xlu0 %6346, %v6103
        %v6348 = vpop.permute.xlu0 %6347
        %6351 = vset.pattern.permute.xlu0 0
        %6352 = vperm.xlu0 %6351, %v6104
        %v6353 = vpop.permute.xlu0 %6352
        %6356 = vset.pattern.permute.xlu0 0
        %6357 = vperm.xlu0 %6356, %v6105
        %v6358 = vpop.permute.xlu0 %6357
        %6361 = vset.pattern.permute.xlu0 0
        %6362 = vperm.xlu0 %6361, %v6106
        %v6363 = vpop.permute.xlu0 %6362
        %6366 = vset.pattern.permute.xlu0 0
        %6367 = vperm.xlu0 %6366, %v6108
        %v6368 = vpop.permute.xlu0 %6367
        %6371 = vset.pattern.permute.xlu0 0
        %6372 = vperm.xlu0 %6371, %v6109
        %v6373 = vpop.permute.xlu0 %6372
        %6376 = vset.pattern.permute.xlu0 0
        %6377 = vperm.xlu0 %6376, %v6110
        %v6378 = vpop.permute.xlu0 %6377
        %6381 = vset.pattern.permute.xlu0 0
        %6382 = vperm.xlu0 %6381, %v6111
        %v6383 = vpop.permute.xlu0 %6382
        %6386 = vset.pattern.permute.xlu0 0
        %6387 = vperm.xlu0 %6386, %v6112
        %v6388 = vpop.permute.xlu0 %6387
        %6391 = vset.pattern.permute.xlu0 0
        %6392 = vperm.xlu0 %6391, %v6113
        %v6393 = vpop.permute.xlu0 %6392
        %6396 = vset.pattern.permute.xlu0 0
        %6397 = vperm.xlu0 %6396, %v6114
        %v6398 = vpop.permute.xlu0 %6397
        %6401 = vset.pattern.permute.xlu0 0
        %6402 = vperm.xlu0 %6401, %v6115
        %v6403 = vpop.permute.xlu0 %6402
        %6406 = vset.pattern.permute.xlu0 0
        %6407 = vperm.xlu0 %6406, %v6117
        %v6408 = vpop.permute.xlu0 %6407
        %6411 = vset.pattern.permute.xlu0 0
        %6412 = vperm.xlu0 %6411, %v6118
        %v6413 = vpop.permute.xlu0 %6412
        %6416 = vset.pattern.permute.xlu0 0
        %6417 = vperm.xlu0 %6416, %v6119
        %v6418 = vpop.permute.xlu0 %6417
        %6421 = vset.pattern.permute.xlu0 0
        %6422 = vperm.xlu0 %6421, %v6120
        %v6423 = vpop.permute.xlu0 %6422
        %6426 = vset.pattern.permute.xlu0 0
        %6427 = vperm.xlu0 %6426, %v6121
        %v6428 = vpop.permute.xlu0 %6427
        %6431 = vset.pattern.permute.xlu0 0
        %6432 = vperm.xlu0 %6431, %v6122
        %v6433 = vpop.permute.xlu0 %6432
        %6436 = vset.pattern.permute.xlu0 0
        %6437 = vperm.xlu0 %6436, %v6123
        %v6438 = vpop.permute.xlu0 %6437
        %6441 = vset.pattern.permute.xlu0 0
        %6442 = vperm.xlu0 %6441, %v6124
        %v6443 = vpop.permute.xlu0 %6442
        %v6445 = vmul.f32 %v4939, %v6128
        %v6446 = vmul.f32 %v4943, %v6133
        %v6447 = vmul.f32 %v4949, %v6138
        %v6448 = vmul.f32 %v4953, %v6143
        %v6449 = vmul.f32 %v4959, %v6148
        %v6450 = vmul.f32 %v4963, %v6153
        %v6451 = vmul.f32 %v4969, %v6158
        %v6452 = vmul.f32 %v4973, %v6163
        %v6453 = vmul.f32 %v4979, %v6168
        %v6454 = vmul.f32 %v4983, %v6173
        %v6455 = vmul.f32 %v4989, %v6178
        %v6456 = vmul.f32 %v4993, %v6183
        %v6457 = vmul.f32 %v4999, %v6188
        %v6458 = vmul.f32 %v5003, %v6193
        %v6459 = vmul.f32 %v5009, %v6198
        %v6460 = vmul.f32 %v5013, %v6203
        %v6461 = vmul.f32 %v5019, %v6208
        %v6462 = vmul.f32 %v5023, %v6213
        %v6463 = vmul.f32 %v5029, %v6218
        %v6464 = vmul.f32 %v5033, %v6223
        %v6465 = vmul.f32 %v5039, %v6228
        %v6466 = vmul.f32 %v5043, %v6233
        %v6467 = vmul.f32 %v5049, %v6238
        %v6468 = vmul.f32 %v5053, %v6243
        %v6469 = vmul.f32 %v5059, %v6248
        %v6470 = vmul.f32 %v5063, %v6253
        %v6471 = vmul.f32 %v5069, %v6258
        %v6472 = vmul.f32 %v5073, %v6263
        %v6473 = vmul.f32 %v5079, %v6268
        %v6474 = vmul.f32 %v5083, %v6273
        %v6475 = vmul.f32 %v5089, %v6278
        %v6476 = vmul.f32 %v5093, %v6283
        %v6477 = vmul.f32 %v5099, %v6288
        %v6478 = vmul.f32 %v5103, %v6293
        %v6479 = vmul.f32 %v5109, %v6298
        %v6480 = vmul.f32 %v5113, %v6303
        %v6481 = vmul.f32 %v5119, %v6308
        %v6482 = vmul.f32 %v5123, %v6313
        %v6483 = vmul.f32 %v5129, %v6318
        %v6484 = vmul.f32 %v5133, %v6323
        %v6485 = vmul.f32 %v5139, %v6328
        %v6486 = vmul.f32 %v5143, %v6333
        %v6487 = vmul.f32 %v5149, %v6338
        %v6488 = vmul.f32 %v5153, %v6343
        %v6489 = vmul.f32 %v5159, %v6348
        %v6490 = vmul.f32 %v5163, %v6353
        %v6491 = vmul.f32 %v5169, %v6358
        %v6492 = vmul.f32 %v5173, %v6363
        %v6493 = vmul.f32 %v5179, %v6368
        %v6494 = vmul.f32 %v5183, %v6373
        %v6495 = vmul.f32 %v5189, %v6378
        %v6496 = vmul.f32 %v5193, %v6383
        %v6497 = vmul.f32 %v5199, %v6388
        %v6498 = vmul.f32 %v5203, %v6393
        %v6499 = vmul.f32 %v5209, %v6398
        %v6500 = vmul.f32 %v5213, %v6403
        %v6501 = vmul.f32 %v5219, %v6408
        %v6502 = vmul.f32 %v5223, %v6413
        %v6503 = vmul.f32 %v5229, %v6418
        %v6504 = vmul.f32 %v5233, %v6423
        %v6505 = vmul.f32 %v5239, %v6428
        %v6506 = vmul.f32 %v5243, %v6433
        %v6507 = vmul.f32 %v5249, %v6438
        %v6508 = vmul.f32 %v5253, %v6443
        %v6509 = vadd.f32 %v6445, %v6446
        %v6510 = vadd.f32 %v6509, %v6447
        %v6511 = vadd.f32 %v6510, %v6448
        %v6512 = vadd.f32 %v6511, %v6449
        %v6513 = vadd.f32 %v6512, %v6450
        %v6514 = vadd.f32 %v6513, %v6451
        %v6515 = vadd.f32 %v6514, %v6452
        %v6516 = vrot.slane %v6515, 4
        %v6517 = vadd.f32 %v6515, %v6516
        %v6518 = vrot.slane %v6517, 2
        %v6519 = vadd.f32 %v6517, %v6518
        %v6520 = vrot.slane %v6519, 1
        %v6521 = vadd.f32 %v6519, %v6520
        %v6522 = vadd.f32 %v6453, %v6454
        %v6523 = vadd.f32 %v6522, %v6455
        %v6524 = vadd.f32 %v6523, %v6456
        %v6525 = vadd.f32 %v6524, %v6457
        %v6526 = vadd.f32 %v6525, %v6458
        %v6527 = vadd.f32 %v6526, %v6459
        %v6528 = vadd.f32 %v6527, %v6460
        %v6529 = vrot.slane %v6528, 4
        %v6530 = vadd.f32 %v6528, %v6529
        %v6531 = vrot.slane %v6530, 2
        %v6532 = vadd.f32 %v6530, %v6531
        %v6533 = vrot.slane %v6532, 1
        %v6534 = vadd.f32 %v6532, %v6533
        %v6535 = vadd.f32 %v6461, %v6462
        %v6536 = vadd.f32 %v6535, %v6463
        %v6537 = vadd.f32 %v6536, %v6464
        %v6538 = vadd.f32 %v6537, %v6465
        %v6539 = vadd.f32 %v6538, %v6466
        %v6540 = vadd.f32 %v6539, %v6467
        %v6541 = vadd.f32 %v6540, %v6468
        %v6542 = vrot.slane %v6541, 4
        %v6543 = vadd.f32 %v6541, %v6542
        %v6544 = vrot.slane %v6543, 2
        %v6545 = vadd.f32 %v6543, %v6544
        %v6546 = vrot.slane %v6545, 1
        %v6547 = vadd.f32 %v6545, %v6546
        %v6548 = vadd.f32 %v6469, %v6470
        %v6549 = vadd.f32 %v6548, %v6471
        %v6550 = vadd.f32 %v6549, %v6472
        %v6551 = vadd.f32 %v6550, %v6473
        %v6552 = vadd.f32 %v6551, %v6474
        %v6553 = vadd.f32 %v6552, %v6475
        %v6554 = vadd.f32 %v6553, %v6476
        %v6555 = vrot.slane %v6554, 4
        %v6556 = vadd.f32 %v6554, %v6555
        %v6557 = vrot.slane %v6556, 2
        %v6558 = vadd.f32 %v6556, %v6557
        %v6559 = vrot.slane %v6558, 1
        %v6560 = vadd.f32 %v6558, %v6559
        %v6561 = vadd.f32 %v6477, %v6478
        %v6562 = vadd.f32 %v6561, %v6479
        %v6563 = vadd.f32 %v6562, %v6480
        %v6564 = vadd.f32 %v6563, %v6481
        %v6565 = vadd.f32 %v6564, %v6482
        %v6566 = vadd.f32 %v6565, %v6483
        %v6567 = vadd.f32 %v6566, %v6484
        %v6568 = vrot.slane %v6567, 4
        %v6569 = vadd.f32 %v6567, %v6568
        %v6570 = vrot.slane %v6569, 2
        %v6571 = vadd.f32 %v6569, %v6570
        %v6572 = vrot.slane %v6571, 1
        %v6573 = vadd.f32 %v6571, %v6572
        %v6574 = vadd.f32 %v6485, %v6486
        %v6575 = vadd.f32 %v6574, %v6487
        %v6576 = vadd.f32 %v6575, %v6488
        %v6577 = vadd.f32 %v6576, %v6489
        %v6578 = vadd.f32 %v6577, %v6490
        %v6579 = vadd.f32 %v6578, %v6491
        %v6580 = vadd.f32 %v6579, %v6492
        %v6581 = vrot.slane %v6580, 4
        %v6582 = vadd.f32 %v6580, %v6581
        %v6583 = vrot.slane %v6582, 2
        %v6584 = vadd.f32 %v6582, %v6583
        %v6585 = vrot.slane %v6584, 1
        %v6586 = vadd.f32 %v6584, %v6585
        %v6587 = vadd.f32 %v6493, %v6494
        %v6588 = vadd.f32 %v6587, %v6495
        %v6589 = vadd.f32 %v6588, %v6496
        %v6590 = vadd.f32 %v6589, %v6497
        %v6591 = vadd.f32 %v6590, %v6498
        %v6592 = vadd.f32 %v6591, %v6499
        %v6593 = vadd.f32 %v6592, %v6500
        %v6594 = vrot.slane %v6593, 4
        %v6595 = vadd.f32 %v6593, %v6594
        %v6596 = vrot.slane %v6595, 2
        %v6597 = vadd.f32 %v6595, %v6596
        %v6598 = vrot.slane %v6597, 1
        %v6599 = vadd.f32 %v6597, %v6598
        %v6600 = vadd.f32 %v6501, %v6502
        %v6601 = vadd.f32 %v6600, %v6503
        %v6602 = vadd.f32 %v6601, %v6504
        %v6603 = vadd.f32 %v6602, %v6505
        %v6604 = vadd.f32 %v6603, %v6506
        %v6605 = vadd.f32 %v6604, %v6507
        %v6606 = vadd.f32 %v6605, %v6508
        %v6607 = vrot.slane %v6606, 4
        %v6608 = vadd.f32 %v6606, %v6607
        %v6609 = vrot.slane %v6608, 2
        %v6610 = vadd.f32 %v6608, %v6609
        %v6611 = vrot.slane %v6610, 1
        %v6612 = vadd.f32 %v6610, %v6611
        %v6613 = vmax.f32 %v4941, 0.0
        %v6614 = vmax.f32 %v4945, 0.0
        %v6615 = vmax.f32 %v4951, 0.0
        %v6616 = vmax.f32 %v4955, 0.0
        %v6617 = vmax.f32 %v4961, 0.0
        %v6618 = vmax.f32 %v4965, 0.0
        %v6619 = vmax.f32 %v4971, 0.0
        %v6620 = vmax.f32 %v4975, 0.0
        %v6621 = vmax.f32 %v4981, 0.0
        %v6622 = vmax.f32 %v4985, 0.0
        %v6623 = vmax.f32 %v4991, 0.0
        %v6624 = vmax.f32 %v4995, 0.0
        %v6625 = vmax.f32 %v5001, 0.0
        %v6626 = vmax.f32 %v5005, 0.0
        %v6627 = vmax.f32 %v5011, 0.0
        %v6628 = vmax.f32 %v5015, 0.0
        %v6629 = vmax.f32 %v5021, 0.0
        %v6630 = vmax.f32 %v5025, 0.0
        %v6631 = vmax.f32 %v5031, 0.0
        %v6632 = vmax.f32 %v5035, 0.0
        %v6633 = vmax.f32 %v5041, 0.0
        %v6634 = vmax.f32 %v5045, 0.0
        %v6635 = vmax.f32 %v5051, 0.0
        %v6636 = vmax.f32 %v5055, 0.0
        %v6637 = vmax.f32 %v5061, 0.0
        %v6638 = vmax.f32 %v5065, 0.0
        %v6639 = vmax.f32 %v5071, 0.0
        %v6640 = vmax.f32 %v5075, 0.0
        %v6641 = vmax.f32 %v5081, 0.0
        %v6642 = vmax.f32 %v5085, 0.0
        %v6643 = vmax.f32 %v5091, 0.0
        %v6644 = vmax.f32 %v5095, 0.0
        %v6645 = vmax.f32 %v5101, 0.0
        %v6646 = vmax.f32 %v5105, 0.0
        %v6647 = vmax.f32 %v5111, 0.0
        %v6648 = vmax.f32 %v5115, 0.0
        %v6649 = vmax.f32 %v5121, 0.0
        %v6650 = vmax.f32 %v5125, 0.0
        %v6651 = vmax.f32 %v5131, 0.0
        %v6652 = vmax.f32 %v5135, 0.0
        %v6653 = vmax.f32 %v5141, 0.0
        %v6654 = vmax.f32 %v5145, 0.0
        %v6655 = vmax.f32 %v5151, 0.0
        %v6656 = vmax.f32 %v5155, 0.0
        %v6657 = vmax.f32 %v5161, 0.0
        %v6658 = vmax.f32 %v5165, 0.0
        %v6659 = vmax.f32 %v5171, 0.0
        %v6660 = vmax.f32 %v5175, 0.0
        %v6661 = vmax.f32 %v5181, 0.0
        %v6662 = vmax.f32 %v5185, 0.0
        %v6663 = vmax.f32 %v5191, 0.0
        %v6664 = vmax.f32 %v5195, 0.0
        %v6665 = vmax.f32 %v5201, 0.0
        %v6666 = vmax.f32 %v5205, 0.0
        %v6667 = vmax.f32 %v5211, 0.0
        %v6668 = vmax.f32 %v5215, 0.0
        %v6669 = vmax.f32 %v5221, 0.0
        %v6670 = vmax.f32 %v5225, 0.0
        %v6671 = vmax.f32 %v5231, 0.0
        %v6672 = vmax.f32 %v5235, 0.0
        %v6673 = vmax.f32 %v5241, 0.0
        %v6674 = vmax.f32 %v5245, 0.0
        %v6675 = vmax.f32 %v5251, 0.0
        %v6676 = vmax.f32 %v5255, 0.0
        %v6677 = vpack.c.bf16 %v6614, %v6613
        %v6678 = vpack.c.bf16 %v6616, %v6615
        %v6679 = vpack.c.bf16 %v6618, %v6617
        %v6680 = vpack.c.bf16 %v6620, %v6619
        %v6681 = vpack.c.bf16 %v6622, %v6621
        %v6682 = vpack.c.bf16 %v6624, %v6623
        %v6683 = vpack.c.bf16 %v6626, %v6625
        %v6684 = vpack.c.bf16 %v6628, %v6627
        %v6685 = vpack.c.bf16 %v6630, %v6629
        %v6686 = vpack.c.bf16 %v6632, %v6631
        %v6687 = vpack.c.bf16 %v6634, %v6633
        %v6688 = vpack.c.bf16 %v6636, %v6635
        %v6689 = vpack.c.bf16 %v6638, %v6637
        %v6690 = vpack.c.bf16 %v6640, %v6639
        %v6691 = vpack.c.bf16 %v6642, %v6641
        %v6692 = vpack.c.bf16 %v6644, %v6643
        %v6693 = vpack.c.bf16 %v6646, %v6645
        %v6694 = vpack.c.bf16 %v6648, %v6647
        %v6695 = vpack.c.bf16 %v6650, %v6649
        %v6696 = vpack.c.bf16 %v6652, %v6651
        %v6697 = vpack.c.bf16 %v6654, %v6653
        %v6698 = vpack.c.bf16 %v6656, %v6655
        %v6699 = vpack.c.bf16 %v6658, %v6657
        %v6700 = vpack.c.bf16 %v6660, %v6659
        %v6701 = vpack.c.bf16 %v6662, %v6661
        %v6702 = vpack.c.bf16 %v6664, %v6663
        %v6703 = vpack.c.bf16 %v6666, %v6665
        %v6704 = vpack.c.bf16 %v6668, %v6667
        %v6705 = vpack.c.bf16 %v6670, %v6669
        %v6706 = vpack.c.bf16 %v6672, %v6671
        %v6707 = vpack.c.bf16 %v6674, %v6673
        %v6708 = vpack.c.bf16 %v6676, %v6675
        %v6709 = vpack.c.bf16 %v6521, %v6521
        %v6710 = vpack.c.bf16 %v6534, %v6534
        %v6711 = vpack.c.bf16 %v6547, %v6547
        %v6712 = vpack.c.bf16 %v6560, %v6560
        %v6713 = vpack.c.bf16 %v6573, %v6573
        %v6714 = vpack.c.bf16 %v6586, %v6586
        %v6715 = vpack.c.bf16 %v6599, %v6599
        %v6716 = vpack.c.bf16 %v6612, %v6612
        %v6717 = vmul.bf16 %v6677, %v6709
        %v6718 = vmul.bf16 %v6678, %v6709
        %v6719 = vmul.bf16 %v6679, %v6709
        %v6720 = vmul.bf16 %v6680, %v6709
        %v6721 = vmul.bf16 %v6681, %v6710
        %v6722 = vmul.bf16 %v6682, %v6710
        %v6723 = vmul.bf16 %v6683, %v6710
        %v6724 = vmul.bf16 %v6684, %v6710
        %v6725 = vmul.bf16 %v6685, %v6711
        %v6726 = vmul.bf16 %v6686, %v6711
        %v6727 = vmul.bf16 %v6687, %v6711
        %v6728 = vmul.bf16 %v6688, %v6711
        %v6729 = vmul.bf16 %v6689, %v6712
        %v6730 = vmul.bf16 %v6690, %v6712
        %v6731 = vmul.bf16 %v6691, %v6712
        %v6732 = vmul.bf16 %v6692, %v6712
        %v6733 = vmul.bf16 %v6693, %v6713
        %v6734 = vmul.bf16 %v6694, %v6713
        %v6735 = vmul.bf16 %v6695, %v6713
        %v6736 = vmul.bf16 %v6696, %v6713
        %v6737 = vmul.bf16 %v6697, %v6714
        %v6738 = vmul.bf16 %v6698, %v6714
        %v6739 = vmul.bf16 %v6699, %v6714
        %v6740 = vmul.bf16 %v6700, %v6714
        %v6741 = vmul.bf16 %v6701, %v6715
        %v6742 = vmul.bf16 %v6702, %v6715
        %v6743 = vmul.bf16 %v6703, %v6715
        %v6744 = vmul.bf16 %v6704, %v6715
        %v6745 = vmul.bf16 %v6705, %v6716
        %v6746 = vmul.bf16 %v6706, %v6716
        %v6747 = vmul.bf16 %v6707, %v6716
        %v6748 = vmul.bf16 %v6708, %v6716
        %v6750 = vlaneseq
        %v6751 = vshrl.u32 %v6750, 7
        %v6752 = vsub.s32 0, %v6751
        %v6753 = vrot.slane %v4582, %v6752
        %v6771 = vunpack.c.l.b16 %v4565
        %v6772 = vunpack.c.l.b16 %v4566
        %v6773 = vunpack.c.l.b16 %v4567
        %v6774 = vunpack.c.l.b16 %v4568
        %v6775 = vunpack.c.l.b16 %v4569
        %v6776 = vunpack.c.l.b16 %v4570
        %v6777 = vunpack.c.l.b16 %v4571
        %v6778 = vunpack.c.l.b16 %v4572
        %v6779 = vunpack.c.l.b16 %v4573
        %v6780 = vunpack.c.l.b16 %v4574
        %v6781 = vunpack.c.l.b16 %v4575
        %v6782 = vunpack.c.l.b16 %v4576
        %v6783 = vunpack.c.l.b16 %v4577
        %v6784 = vunpack.c.l.b16 %v4578
        %v6785 = vunpack.c.l.b16 %v4579
        %v6786 = vunpack.c.l.b16 %v4580
        %v6787 = vpack.c.b16 %v6772, %v6771
        %v6788 = vpack.c.b16 %v6774, %v6773
        %v6789 = vpack.c.b16 %v6776, %v6775
        %v6790 = vpack.c.b16 %v6778, %v6777
        %v6791 = vpack.c.b16 %v6780, %v6779
        %v6792 = vpack.c.b16 %v6782, %v6781
        %v6793 = vpack.c.b16 %v6784, %v6783
        %v6794 = vpack.c.b16 %v6786, %v6785
        %6803 = vmatprep.subr.bf16.mxu0 0
        %6804 = vmatpush1.bf16.msra.mxu0 %v6787
        %6805 = vmatprep.subr.bf16.mxu0 0
        %6806 = vmatpush1.bf16.msra.mxu0 %v6788
        %6807 = vmatprep.subr.bf16.mxu0 0
        %6808 = vmatpush1.bf16.msra.mxu0 %v6789
        %6809 = vmatprep.subr.bf16.mxu0 0
        %6810 = vmatpush1.bf16.msra.mxu0 %v6790
        %6811 = vmatprep.subr.bf16.mxu0 0
        %6812 = vmatpush1.bf16.msra.mxu0 %v6791
        %6813 = vmatprep.subr.bf16.mxu0 0
        %6814 = vmatpush1.bf16.msra.mxu0 %v6792
        %6815 = vmatprep.subr.bf16.mxu0 0
        %6816 = vmatpush1.bf16.msra.mxu0 %v6793
        %6817 = vmatprep.subr.bf16.mxu0 0
        %6818 = vmatpush1.bf16.msra.mxu0 %v6794
        %6819 = vmatprep.subr.bf16.mxu0 0
        %6820 = vmatpush1.bf16.msra.mxu0 0
        %6821 = vmatprep.subr.bf16.mxu0 0
        %6822 = vmatpush1.bf16.msra.mxu0 0
        %6823 = vmatprep.subr.bf16.mxu0 0
        %6824 = vmatpush1.bf16.msra.mxu0 0
        %6825 = vmatprep.subr.bf16.mxu0 0
        %6826 = vmatpush1.bf16.msra.mxu0 0
        %6827 = vmatprep.subr.bf16.mxu0 0
        %6828 = vmatpush1.bf16.msra.mxu0 0
        %6829 = vmatprep.subr.bf16.mxu0 0
        %6830 = vmatpush1.bf16.msra.mxu0 0
        %6831 = vmatprep.subr.bf16.mxu0 0
        %6832 = vmatpush1.bf16.msra.mxu0 0
        %6833 = vmatprep.subr.bf16.mxu0 0
        %6834 = vmatpush1.bf16.msra.mxu0 0
        %6835 = vmatprep.mubr.bf16.mxu0 0
        %6836 = vmatmul.mubr.bf16.gmra.mrb[0].mxu0 %v6717
        %v6837 = vpop.f32.mrb[0].mxu0
        %v6838 = vadd.f32 %v6753, %v6837
        %v6839 = vpop.f32.mrb[0].mxu0
        %v6840 = vpop.f32.mrb[0].mxu0
        %v6841 = vadd.f32 %v6753, %v6840
        %v6842 = vpop.f32.mrb[0].mxu0
        %6843 = vmatprep.mubr.bf16.mxu0 0
        %6844 = vmatmul.mubr.bf16.gmra.mrb[0].mxu0 %v6718
        %v6845 = vpop.f32.mrb[0].mxu0
        %v6846 = vadd.f32 %v6753, %v6845
        %v6847 = vpop.f32.mrb[0].mxu0
        %v6848 = vpop.f32.mrb[0].mxu0
        %v6849 = vadd.f32 %v6753, %v6848
        %v6850 = vpop.f32.mrb[0].mxu0
        %6851 = vmatprep.mubr.bf16.mxu0 0
        %6852 = vmatmul.mubr.bf16.gmra.mrb[0].mxu0 %v6719
        %v6853 = vpop.f32.mrb[0].mxu0
        %v6854 = vadd.f32 %v6753, %v6853
        %v6855 = vpop.f32.mrb[0].mxu0
        %v6856 = vpop.f32.mrb[0].mxu0
        %v6857 = vadd.f32 %v6753, %v6856
        %v6858 = vpop.f32.mrb[0].mxu0
        %6859 = vmatprep.mubr.bf16.mxu0 0
        %6860 = vmatmul.mubr.bf16.gmra.mrb[0].mxu0 %v6720
        %v6861 = vpop.f32.mrb[0].mxu0
        %v6862 = vadd.f32 %v6753, %v6861
        %v6863 = vpop.f32.mrb[0].mxu0
        %v6864 = vpop.f32.mrb[0].mxu0
        %v6865 = vadd.f32 %v6753, %v6864
        %v6866 = vpop.f32.mrb[0].mxu0
        %6867 = vmatprep.mubr.bf16.mxu0 0
        %6868 = vmatmul.mubr.bf16.gmra.mrb[0].mxu0 %v6721
        %v6869 = vpop.f32.mrb[0].mxu0
        %v6870 = vadd.f32 %v6753, %v6869
        %v6871 = vpop.f32.mrb[0].mxu0
        %v6872 = vpop.f32.mrb[0].mxu0
        %v6873 = vadd.f32 %v6753, %v6872
        %v6874 = vpop.f32.mrb[0].mxu0
        %6875 = vmatprep.mubr.bf16.mxu0 0
        %6876 = vmatmul.mubr.bf16.gmra.mrb[0].mxu0 %v6722
        %v6877 = vpop.f32.mrb[0].mxu0
        %v6878 = vadd.f32 %v6753, %v6877
        %v6879 = vpop.f32.mrb[0].mxu0
        %v6880 = vpop.f32.mrb[0].mxu0
        %v6881 = vadd.f32 %v6753, %v6880
        %v6882 = vpop.f32.mrb[0].mxu0
        %6883 = vmatprep.mubr.bf16.mxu0 0
        %6884 = vmatmul.mubr.bf16.gmra.mrb[0].mxu0 %v6723
        %v6885 = vpop.f32.mrb[0].mxu0
        %v6886 = vadd.f32 %v6753, %v6885
        %v6887 = vpop.f32.mrb[0].mxu0
        %v6888 = vpop.f32.mrb[0].mxu0
        %v6889 = vadd.f32 %v6753, %v6888
        %v6890 = vpop.f32.mrb[0].mxu0
        %6891 = vmatprep.mubr.bf16.mxu0 0
        %6892 = vmatmul.mubr.bf16.gmra.mrb[0].mxu0 %v6724
        %v6893 = vpop.f32.mrb[0].mxu0
        %v6894 = vadd.f32 %v6753, %v6893
        %v6895 = vpop.f32.mrb[0].mxu0
        %v6896 = vpop.f32.mrb[0].mxu0
        %v6897 = vadd.f32 %v6753, %v6896
        %v6898 = vpop.f32.mrb[0].mxu0
        %6899 = vmatprep.mubr.bf16.mxu0 0
        %6900 = vmatmul.mubr.bf16.gmra.mrb[0].mxu0 %v6725
        %v6901 = vpop.f32.mrb[0].mxu0
        %v6902 = vadd.f32 %v6753, %v6901
        %v6903 = vpop.f32.mrb[0].mxu0
        %v6904 = vpop.f32.mrb[0].mxu0
        %v6905 = vadd.f32 %v6753, %v6904
        %v6906 = vpop.f32.mrb[0].mxu0
        %6907 = vmatprep.mubr.bf16.mxu0 0
        %6908 = vmatmul.mubr.bf16.gmra.mrb[0].mxu0 %v6726
        %v6909 = vpop.f32.mrb[0].mxu0
        %v6910 = vadd.f32 %v6753, %v6909
        %v6911 = vpop.f32.mrb[0].mxu0
        %v6912 = vpop.f32.mrb[0].mxu0
        %v6913 = vadd.f32 %v6753, %v6912
        %v6914 = vpop.f32.mrb[0].mxu0
        %6915 = vmatprep.mubr.bf16.mxu0 0
        %6916 = vmatmul.mubr.bf16.gmra.mrb[0].mxu0 %v6727
        %v6917 = vpop.f32.mrb[0].mxu0
        %v6918 = vadd.f32 %v6753, %v6917
        %v6919 = vpop.f32.mrb[0].mxu0
        %v6920 = vpop.f32.mrb[0].mxu0
        %v6921 = vadd.f32 %v6753, %v6920
        %v6922 = vpop.f32.mrb[0].mxu0
        %6923 = vmatprep.mubr.bf16.mxu0 0
        %6924 = vmatmul.mubr.bf16.gmra.mrb[0].mxu0 %v6728
        %v6925 = vpop.f32.mrb[0].mxu0
        %v6926 = vadd.f32 %v6753, %v6925
        %v6927 = vpop.f32.mrb[0].mxu0
        %v6928 = vpop.f32.mrb[0].mxu0
        %v6929 = vadd.f32 %v6753, %v6928
        %v6930 = vpop.f32.mrb[0].mxu0
        %6931 = vmatprep.mubr.bf16.mxu0 0
        %6932 = vmatmul.mubr.bf16.gmra.mrb[0].mxu0 %v6729
        %v6933 = vpop.f32.mrb[0].mxu0
        %v6934 = vadd.f32 %v6753, %v6933
        %v6935 = vpop.f32.mrb[0].mxu0
        %v6936 = vpop.f32.mrb[0].mxu0
        %v6937 = vadd.f32 %v6753, %v6936
        %v6938 = vpop.f32.mrb[0].mxu0
        %6939 = vmatprep.mubr.bf16.mxu0 0
        %6940 = vmatmul.mubr.bf16.gmra.mrb[0].mxu0 %v6730
        %v6941 = vpop.f32.mrb[0].mxu0
        %v6942 = vadd.f32 %v6753, %v6941
        %v6943 = vpop.f32.mrb[0].mxu0
        %v6944 = vpop.f32.mrb[0].mxu0
        %v6945 = vadd.f32 %v6753, %v6944
        %v6946 = vpop.f32.mrb[0].mxu0
        %6947 = vmatprep.mubr.bf16.mxu0 0
        %6948 = vmatmul.mubr.bf16.gmra.mrb[0].mxu0 %v6731
        %v6949 = vpop.f32.mrb[0].mxu0
        %v6950 = vadd.f32 %v6753, %v6949
        %v6951 = vpop.f32.mrb[0].mxu0
        %v6952 = vpop.f32.mrb[0].mxu0
        %v6953 = vadd.f32 %v6753, %v6952
        %v6954 = vpop.f32.mrb[0].mxu0
        %6955 = vmatprep.mubr.bf16.mxu0 0
        %6956 = vmatmul.mubr.bf16.gmra.mrb[0].mxu0 %v6732
        %v6957 = vpop.f32.mrb[0].mxu0
        %v6958 = vadd.f32 %v6753, %v6957
        %v6959 = vpop.f32.mrb[0].mxu0
        %v6960 = vpop.f32.mrb[0].mxu0
        %v6961 = vadd.f32 %v6753, %v6960
        %v6962 = vpop.f32.mrb[0].mxu0
        %6963 = vmatprep.mubr.bf16.mxu0 0
        %6964 = vmatmul.mubr.bf16.gmra.mrb[0].mxu0 %v6733
        %v6965 = vpop.f32.mrb[0].mxu0
        %v6966 = vadd.f32 %v6753, %v6965
        %v6967 = vpop.f32.mrb[0].mxu0
        %v6968 = vpop.f32.mrb[0].mxu0
        %v6969 = vadd.f32 %v6753, %v6968
        %v6970 = vpop.f32.mrb[0].mxu0
        %6971 = vmatprep.mubr.bf16.mxu0 0
        %6972 = vmatmul.mubr.bf16.gmra.mrb[0].mxu0 %v6734
        %v6973 = vpop.f32.mrb[0].mxu0
        %v6974 = vadd.f32 %v6753, %v6973
        %v6975 = vpop.f32.mrb[0].mxu0
        %v6976 = vpop.f32.mrb[0].mxu0
        %v6977 = vadd.f32 %v6753, %v6976
        %v6978 = vpop.f32.mrb[0].mxu0
        %6979 = vmatprep.mubr.bf16.mxu0 0
        %6980 = vmatmul.mubr.bf16.gmra.mrb[0].mxu0 %v6735
        %v6981 = vpop.f32.mrb[0].mxu0
        %v6982 = vadd.f32 %v6753, %v6981
        %v6983 = vpop.f32.mrb[0].mxu0
        %v6984 = vpop.f32.mrb[0].mxu0
        %v6985 = vadd.f32 %v6753, %v6984
        %v6986 = vpop.f32.mrb[0].mxu0
        %6987 = vmatprep.mubr.bf16.mxu0 0
        %6988 = vmatmul.mubr.bf16.gmra.mrb[0].mxu0 %v6736
        %v6989 = vpop.f32.mrb[0].mxu0
        %v6990 = vadd.f32 %v6753, %v6989
        %v6991 = vpop.f32.mrb[0].mxu0
        %v6992 = vpop.f32.mrb[0].mxu0
        %v6993 = vadd.f32 %v6753, %v6992
        %v6994 = vpop.f32.mrb[0].mxu0
        %6995 = vmatprep.mubr.bf16.mxu0 0
        %6996 = vmatmul.mubr.bf16.gmra.mrb[0].mxu0 %v6737
        %v6997 = vpop.f32.mrb[0].mxu0
        %v6998 = vadd.f32 %v6753, %v6997
        %v6999 = vpop.f32.mrb[0].mxu0
        %v7000 = vpop.f32.mrb[0].mxu0
        %v7001 = vadd.f32 %v6753, %v7000
        %v7002 = vpop.f32.mrb[0].mxu0
        %7003 = vmatprep.mubr.bf16.mxu0 0
        %7004 = vmatmul.mubr.bf16.gmra.mrb[0].mxu0 %v6738
        %v7005 = vpop.f32.mrb[0].mxu0
        %v7006 = vadd.f32 %v6753, %v7005
        %v7007 = vpop.f32.mrb[0].mxu0
        %v7008 = vpop.f32.mrb[0].mxu0
        %v7009 = vadd.f32 %v6753, %v7008
        %v7010 = vpop.f32.mrb[0].mxu0
        %7011 = vmatprep.mubr.bf16.mxu0 0
        %7012 = vmatmul.mubr.bf16.gmra.mrb[0].mxu0 %v6739
        %v7013 = vpop.f32.mrb[0].mxu0
        %v7014 = vadd.f32 %v6753, %v7013
        %v7015 = vpop.f32.mrb[0].mxu0
        %v7016 = vpop.f32.mrb[0].mxu0
        %v7017 = vadd.f32 %v6753, %v7016
        %v7018 = vpop.f32.mrb[0].mxu0
        %7019 = vmatprep.mubr.bf16.mxu0 0
        %7020 = vmatmul.mubr.bf16.gmra.mrb[0].mxu0 %v6740
        %v7021 = vpop.f32.mrb[0].mxu0
        %v7022 = vadd.f32 %v6753, %v7021
        %v7023 = vpop.f32.mrb[0].mxu0
        %v7024 = vpop.f32.mrb[0].mxu0
        %v7025 = vadd.f32 %v6753, %v7024
        %v7026 = vpop.f32.mrb[0].mxu0
        %7027 = vmatprep.mubr.bf16.mxu0 0
        %7028 = vmatmul.mubr.bf16.gmra.mrb[0].mxu0 %v6741
        %v7029 = vpop.f32.mrb[0].mxu0
        %v7030 = vadd.f32 %v6753, %v7029
        %v7031 = vpop.f32.mrb[0].mxu0
        %v7032 = vpop.f32.mrb[0].mxu0
        %v7033 = vadd.f32 %v6753, %v7032
        %v7034 = vpop.f32.mrb[0].mxu0
        %7035 = vmatprep.mubr.bf16.mxu0 0
        %7036 = vmatmul.mubr.bf16.gmra.mrb[0].mxu0 %v6742
        %v7037 = vpop.f32.mrb[0].mxu0
        %v7038 = vadd.f32 %v6753, %v7037
        %v7039 = vpop.f32.mrb[0].mxu0
        %v7040 = vpop.f32.mrb[0].mxu0
        %v7041 = vadd.f32 %v6753, %v7040
        %v7042 = vpop.f32.mrb[0].mxu0
        %7043 = vmatprep.mubr.bf16.mxu0 0
        %7044 = vmatmul.mubr.bf16.gmra.mrb[0].mxu0 %v6743
        %v7045 = vpop.f32.mrb[0].mxu0
        %v7046 = vadd.f32 %v6753, %v7045
        %v7047 = vpop.f32.mrb[0].mxu0
        %v7048 = vpop.f32.mrb[0].mxu0
        %v7049 = vadd.f32 %v6753, %v7048
        %v7050 = vpop.f32.mrb[0].mxu0
        %7051 = vmatprep.mubr.bf16.mxu0 0
        %7052 = vmatmul.mubr.bf16.gmra.mrb[0].mxu0 %v6744
        %v7053 = vpop.f32.mrb[0].mxu0
        %v7054 = vadd.f32 %v6753, %v7053
        %v7055 = vpop.f32.mrb[0].mxu0
        %v7056 = vpop.f32.mrb[0].mxu0
        %v7057 = vadd.f32 %v6753, %v7056
        %v7058 = vpop.f32.mrb[0].mxu0
        %7059 = vmatprep.mubr.bf16.mxu0 0
        %7060 = vmatmul.mubr.bf16.gmra.mrb[0].mxu0 %v6745
        %v7061 = vpop.f32.mrb[0].mxu0
        %v7062 = vadd.f32 %v6753, %v7061
        %v7063 = vpop.f32.mrb[0].mxu0
        %v7064 = vpop.f32.mrb[0].mxu0
        %v7065 = vadd.f32 %v6753, %v7064
        %v7066 = vpop.f32.mrb[0].mxu0
        %7067 = vmatprep.mubr.bf16.mxu0 0
        %7068 = vmatmul.mubr.bf16.gmra.mrb[0].mxu0 %v6746
        %v7069 = vpop.f32.mrb[0].mxu0
        %v7070 = vadd.f32 %v6753, %v7069
        %v7071 = vpop.f32.mrb[0].mxu0
        %v7072 = vpop.f32.mrb[0].mxu0
        %v7073 = vadd.f32 %v6753, %v7072
        %v7074 = vpop.f32.mrb[0].mxu0
        %7075 = vmatprep.mubr.bf16.mxu0 0
        %7076 = vmatmul.mubr.bf16.gmra.mrb[0].mxu0 %v6747
        %v7077 = vpop.f32.mrb[0].mxu0
        %v7078 = vadd.f32 %v6753, %v7077
        %v7079 = vpop.f32.mrb[0].mxu0
        %v7080 = vpop.f32.mrb[0].mxu0
        %v7081 = vadd.f32 %v6753, %v7080
        %v7082 = vpop.f32.mrb[0].mxu0
        %7083 = vmatprep.mubr.bf16.mxu0 0
        %7084 = vmatmul.mubr.bf16.gmra.mrb[0].mxu0 %v6748
        %v7085 = vpop.f32.mrb[0].mxu0
        %v7086 = vadd.f32 %v6753, %v7085
        %v7087 = vpop.f32.mrb[0].mxu0
        %v7088 = vpop.f32.mrb[0].mxu0
        %v7089 = vadd.f32 %v6753, %v7088
        %v7090 = vpop.f32.mrb[0].mxu0
        %7091 = vdwg.mxu0
        %v7092 = vadd.f32 %v4473, %v6838
        %v7093 = vadd.f32 %v4474, %v6841
        %v7094 = vadd.f32 %v4475, %v6846
        %v7095 = vadd.f32 %v4476, %v6849
        %v7096 = vadd.f32 %v4477, %v6854
        %v7097 = vadd.f32 %v4478, %v6857
        %v7098 = vadd.f32 %v4479, %v6862
        %v7099 = vadd.f32 %v4480, %v6865
        %v7100 = vadd.f32 %v4481, %v6870
        %v7101 = vadd.f32 %v4482, %v6873
        %v7102 = vadd.f32 %v4483, %v6878
        %v7103 = vadd.f32 %v4484, %v6881
        %v7104 = vadd.f32 %v4485, %v6886
        %v7105 = vadd.f32 %v4486, %v6889
        %v7106 = vadd.f32 %v4487, %v6894
        %v7107 = vadd.f32 %v4488, %v6897
        %v7108 = vadd.f32 %v4489, %v6902
        %v7109 = vadd.f32 %v4490, %v6905
        %v7110 = vadd.f32 %v4491, %v6910
        %v7111 = vadd.f32 %v4492, %v6913
        %v7112 = vadd.f32 %v4493, %v6918
        %v7113 = vadd.f32 %v4494, %v6921
        %v7114 = vadd.f32 %v4495, %v6926
        %v7115 = vadd.f32 %v4496, %v6929
        %v7116 = vadd.f32 %v4497, %v6934
        %v7117 = vadd.f32 %v4498, %v6937
        %v7118 = vadd.f32 %v4499, %v6942
        %v7119 = vadd.f32 %v4500, %v6945
        %v7120 = vadd.f32 %v4501, %v6950
        %v7121 = vadd.f32 %v4502, %v6953
        %v7122 = vadd.f32 %v4503, %v6958
        %v7123 = vadd.f32 %v4504, %v6961
        %v7124 = vadd.f32 %v4505, %v6966
        %v7125 = vadd.f32 %v4506, %v6969
        %v7126 = vadd.f32 %v4507, %v6974
        %v7127 = vadd.f32 %v4508, %v6977
        %v7128 = vadd.f32 %v4509, %v6982
        %v7129 = vadd.f32 %v4510, %v6985
        %v7130 = vadd.f32 %v4511, %v6990
        %v7131 = vadd.f32 %v4512, %v6993
        %v7132 = vadd.f32 %v4513, %v6998
        %v7133 = vadd.f32 %v4514, %v7001
        %v7134 = vadd.f32 %v4515, %v7006
        %v7135 = vadd.f32 %v4516, %v7009
        %v7136 = vadd.f32 %v4517, %v7014
        %v7137 = vadd.f32 %v4518, %v7017
        %v7138 = vadd.f32 %v4519, %v7022
        %v7139 = vadd.f32 %v4520, %v7025
        %v7140 = vadd.f32 %v4521, %v7030
        %v7141 = vadd.f32 %v4522, %v7033
        %v7142 = vadd.f32 %v4523, %v7038
        %v7143 = vadd.f32 %v4524, %v7041
        %v7144 = vadd.f32 %v4525, %v7046
        %v7145 = vadd.f32 %v4526, %v7049
        %v7146 = vadd.f32 %v4527, %v7054
        %v7147 = vadd.f32 %v4528, %v7057
        %v7148 = vadd.f32 %v4529, %v7062
        %v7149 = vadd.f32 %v4530, %v7065
        %v7150 = vadd.f32 %v4531, %v7070
        %v7151 = vadd.f32 %v4532, %v7073
        %v7152 = vadd.f32 %v4533, %v7078
        %v7153 = vadd.f32 %v4534, %v7081
        %v7154 = vadd.f32 %v4535, %v7086
        %v7155 = vadd.f32 %v4536, %v7089
        %v7157 = vlaneseq
        %v7158 = vshrl.u32 %v7157, 7
        %v7159 = vsub.s32 0, %v7158
        %v7160 = vrot.slane %v4584, %v7159
        %v7162 = vmul.f32 %v7092, %v7160
        %v7163 = vmul.f32 %v7093, %v7160
        %v7164 = vmul.f32 %v7094, %v7160
        %v7165 = vmul.f32 %v7095, %v7160
        %v7166 = vmul.f32 %v7096, %v7160
        %v7167 = vmul.f32 %v7097, %v7160
        %v7168 = vmul.f32 %v7098, %v7160
        %v7169 = vmul.f32 %v7099, %v7160
        %v7170 = vmul.f32 %v7100, %v7160
        %v7171 = vmul.f32 %v7101, %v7160
        %v7172 = vmul.f32 %v7102, %v7160
        %v7173 = vmul.f32 %v7103, %v7160
        %v7174 = vmul.f32 %v7104, %v7160
        %v7175 = vmul.f32 %v7105, %v7160
        %v7176 = vmul.f32 %v7106, %v7160
        %v7177 = vmul.f32 %v7107, %v7160
        %v7178 = vmul.f32 %v7108, %v7160
        %v7179 = vmul.f32 %v7109, %v7160
        %v7180 = vmul.f32 %v7110, %v7160
        %v7181 = vmul.f32 %v7111, %v7160
        %v7182 = vmul.f32 %v7112, %v7160
        %v7183 = vmul.f32 %v7113, %v7160
        %v7184 = vmul.f32 %v7114, %v7160
        %v7185 = vmul.f32 %v7115, %v7160
        %v7186 = vmul.f32 %v7116, %v7160
        %v7187 = vmul.f32 %v7117, %v7160
        %v7188 = vmul.f32 %v7118, %v7160
        %v7189 = vmul.f32 %v7119, %v7160
        %v7190 = vmul.f32 %v7120, %v7160
        %v7191 = vmul.f32 %v7121, %v7160
        %v7192 = vmul.f32 %v7122, %v7160
        %v7193 = vmul.f32 %v7123, %v7160
        %v7194 = vmul.f32 %v7124, %v7160
        %v7195 = vmul.f32 %v7125, %v7160
        %v7196 = vmul.f32 %v7126, %v7160
        %v7197 = vmul.f32 %v7127, %v7160
        %v7198 = vmul.f32 %v7128, %v7160
        %v7199 = vmul.f32 %v7129, %v7160
        %v7200 = vmul.f32 %v7130, %v7160
        %v7201 = vmul.f32 %v7131, %v7160
        %v7202 = vmul.f32 %v7132, %v7160
        %v7203 = vmul.f32 %v7133, %v7160
        %v7204 = vmul.f32 %v7134, %v7160
        %v7205 = vmul.f32 %v7135, %v7160
        %v7206 = vmul.f32 %v7136, %v7160
        %v7207 = vmul.f32 %v7137, %v7160
        %v7208 = vmul.f32 %v7138, %v7160
        %v7209 = vmul.f32 %v7139, %v7160
        %v7210 = vmul.f32 %v7140, %v7160
        %v7211 = vmul.f32 %v7141, %v7160
        %v7212 = vmul.f32 %v7142, %v7160
        %v7213 = vmul.f32 %v7143, %v7160
        %v7214 = vmul.f32 %v7144, %v7160
        %v7215 = vmul.f32 %v7145, %v7160
        %v7216 = vmul.f32 %v7146, %v7160
        %v7217 = vmul.f32 %v7147, %v7160
        %v7218 = vmul.f32 %v7148, %v7160
        %v7219 = vmul.f32 %v7149, %v7160
        %v7220 = vmul.f32 %v7150, %v7160
        %v7221 = vmul.f32 %v7151, %v7160
        %v7222 = vmul.f32 %v7152, %v7160
        %v7223 = vmul.f32 %v7153, %v7160
        %v7224 = vmul.f32 %v7154, %v7160
        %v7225 = vmul.f32 %v7155, %v7160
        %v7227 = vlaneseq
        %v7228 = vshrl.u32 %v7227, 7
        %v7229 = vsub.s32 0, %v7228
        %v7230 = vrot.slane %v4586, %v7229
        %v7232 = vadd.f32 %v7162, %v7230
        %v7233 = vadd.f32 %v7163, %v7230
        %v7234 = vadd.f32 %v7164, %v7230
        %v7235 = vadd.f32 %v7165, %v7230
        %v7236 = vadd.f32 %v7166, %v7230
        %v7237 = vadd.f32 %v7167, %v7230
        %v7238 = vadd.f32 %v7168, %v7230
        %v7239 = vadd.f32 %v7169, %v7230
        %v7240 = vadd.f32 %v7170, %v7230
        %v7241 = vadd.f32 %v7171, %v7230
        %v7242 = vadd.f32 %v7172, %v7230
        %v7243 = vadd.f32 %v7173, %v7230
        %v7244 = vadd.f32 %v7174, %v7230
        %v7245 = vadd.f32 %v7175, %v7230
        %v7246 = vadd.f32 %v7176, %v7230
        %v7247 = vadd.f32 %v7177, %v7230
        %v7248 = vadd.f32 %v7178, %v7230
        %v7249 = vadd.f32 %v7179, %v7230
        %v7250 = vadd.f32 %v7180, %v7230
        %v7251 = vadd.f32 %v7181, %v7230
        %v7252 = vadd.f32 %v7182, %v7230
        %v7253 = vadd.f32 %v7183, %v7230
        %v7254 = vadd.f32 %v7184, %v7230
        %v7255 = vadd.f32 %v7185, %v7230
        %v7256 = vadd.f32 %v7186, %v7230
        %v7257 = vadd.f32 %v7187, %v7230
        %v7258 = vadd.f32 %v7188, %v7230
        %v7259 = vadd.f32 %v7189, %v7230
        %v7260 = vadd.f32 %v7190, %v7230
        %v7261 = vadd.f32 %v7191, %v7230
        %v7262 = vadd.f32 %v7192, %v7230
        %v7263 = vadd.f32 %v7193, %v7230
        %v7264 = vadd.f32 %v7194, %v7230
        %v7265 = vadd.f32 %v7195, %v7230
        %v7266 = vadd.f32 %v7196, %v7230
        %v7267 = vadd.f32 %v7197, %v7230
        %v7268 = vadd.f32 %v7198, %v7230
        %v7269 = vadd.f32 %v7199, %v7230
        %v7270 = vadd.f32 %v7200, %v7230
        %v7271 = vadd.f32 %v7201, %v7230
        %v7272 = vadd.f32 %v7202, %v7230
        %v7273 = vadd.f32 %v7203, %v7230
        %v7274 = vadd.f32 %v7204, %v7230
        %v7275 = vadd.f32 %v7205, %v7230
        %v7276 = vadd.f32 %v7206, %v7230
        %v7277 = vadd.f32 %v7207, %v7230
        %v7278 = vadd.f32 %v7208, %v7230
        %v7279 = vadd.f32 %v7209, %v7230
        %v7280 = vadd.f32 %v7210, %v7230
        %v7281 = vadd.f32 %v7211, %v7230
        %v7282 = vadd.f32 %v7212, %v7230
        %v7283 = vadd.f32 %v7213, %v7230
        %v7284 = vadd.f32 %v7214, %v7230
        %v7285 = vadd.f32 %v7215, %v7230
        %v7286 = vadd.f32 %v7216, %v7230
        %v7287 = vadd.f32 %v7217, %v7230
        %v7288 = vadd.f32 %v7218, %v7230
        %v7289 = vadd.f32 %v7219, %v7230
        %v7290 = vadd.f32 %v7220, %v7230
        %v7291 = vadd.f32 %v7221, %v7230
        %v7292 = vadd.f32 %v7222, %v7230
        %v7293 = vadd.f32 %v7223, %v7230
        %v7294 = vadd.f32 %v7224, %v7230
        %v7295 = vadd.f32 %v7225, %v7230
        %v7296 = vpack.c.bf16 %v7233, %v7232
        %v7297 = vpack.c.bf16 %v7235, %v7234
        %v7298 = vpack.c.bf16 %v7237, %v7236
        %v7299 = vpack.c.bf16 %v7239, %v7238
        %v7300 = vpack.c.bf16 %v7241, %v7240
        %v7301 = vpack.c.bf16 %v7243, %v7242
        %v7302 = vpack.c.bf16 %v7245, %v7244
        %v7303 = vpack.c.bf16 %v7247, %v7246
        %v7304 = vpack.c.bf16 %v7249, %v7248
        %v7305 = vpack.c.bf16 %v7251, %v7250
        %v7306 = vpack.c.bf16 %v7253, %v7252
        %v7307 = vpack.c.bf16 %v7255, %v7254
        %v7308 = vpack.c.bf16 %v7257, %v7256
        %v7309 = vpack.c.bf16 %v7259, %v7258
        %v7310 = vpack.c.bf16 %v7261, %v7260
        %v7311 = vpack.c.bf16 %v7263, %v7262
        %v7312 = vpack.c.bf16 %v7265, %v7264
        %v7313 = vpack.c.bf16 %v7267, %v7266
        %v7314 = vpack.c.bf16 %v7269, %v7268
        %v7315 = vpack.c.bf16 %v7271, %v7270
        %v7316 = vpack.c.bf16 %v7273, %v7272
        %v7317 = vpack.c.bf16 %v7275, %v7274
        %v7318 = vpack.c.bf16 %v7277, %v7276
        %v7319 = vpack.c.bf16 %v7279, %v7278
        %v7320 = vpack.c.bf16 %v7281, %v7280
        %v7321 = vpack.c.bf16 %v7283, %v7282
        %v7322 = vpack.c.bf16 %v7285, %v7284
        %v7323 = vpack.c.bf16 %v7287, %v7286
        %v7324 = vpack.c.bf16 %v7289, %v7288
        %v7325 = vpack.c.bf16 %v7291, %v7290
        %v7326 = vpack.c.bf16 %v7293, %v7292
        %v7327 = vpack.c.bf16 %v7295, %v7294
        %v7329 = vlaneseq
        %v7330 = vshrl.u32 %v7329, 7
        %v7331 = vsub.s32 0, %v7330
        %v7332 = vrot.slane %v4605, %v7331
        %v7333 = vlaneseq
        %v7334 = vshrl.u32 %v7333, 7
        %v7335 = vsub.s32 1, %v7334
        %v7336 = vrot.slane %v4605, %v7335
        %v7355 = vunpack.c.l.b16 %v4588
        %v7356 = vunpack.c.h.b16 %v4588
        %v7357 = vunpack.c.l.b16 %v4589
        %v7358 = vunpack.c.h.b16 %v4589
        %v7359 = vunpack.c.l.b16 %v4590
        %v7360 = vunpack.c.h.b16 %v4590
        %v7361 = vunpack.c.l.b16 %v4591
        %v7362 = vunpack.c.h.b16 %v4591
        %v7363 = vunpack.c.l.b16 %v4592
        %v7364 = vunpack.c.h.b16 %v4592
        %v7365 = vunpack.c.l.b16 %v4593
        %v7366 = vunpack.c.h.b16 %v4593
        %v7367 = vunpack.c.l.b16 %v4594
        %v7368 = vunpack.c.h.b16 %v4594
        %v7369 = vunpack.c.l.b16 %v4595
        %v7370 = vunpack.c.h.b16 %v4595
        %v7371 = vunpack.c.l.b16 %v4596
        %v7372 = vunpack.c.h.b16 %v4596
        %v7373 = vunpack.c.l.b16 %v4597
        %v7374 = vunpack.c.h.b16 %v4597
        %v7375 = vunpack.c.l.b16 %v4598
        %v7376 = vunpack.c.h.b16 %v4598
        %v7377 = vunpack.c.l.b16 %v4599
        %v7378 = vunpack.c.h.b16 %v4599
        %v7379 = vunpack.c.l.b16 %v4600
        %v7380 = vunpack.c.h.b16 %v4600
        %v7381 = vunpack.c.l.b16 %v4601
        %v7382 = vunpack.c.h.b16 %v4601
        %v7383 = vunpack.c.l.b16 %v4602
        %v7384 = vunpack.c.h.b16 %v4602
        %v7385 = vunpack.c.l.b16 %v4603
        %v7386 = vunpack.c.h.b16 %v4603
        %v7387 = vpack.c.b16 %v7357, %v7355
        %v7388 = vpack.c.b16 %v7358, %v7356
        %v7389 = vpack.c.b16 %v7361, %v7359
        %v7390 = vpack.c.b16 %v7362, %v7360
        %v7391 = vpack.c.b16 %v7365, %v7363
        %v7392 = vpack.c.b16 %v7366, %v7364
        %v7393 = vpack.c.b16 %v7369, %v7367
        %v7394 = vpack.c.b16 %v7370, %v7368
        %v7395 = vpack.c.b16 %v7373, %v7371
        %v7396 = vpack.c.b16 %v7374, %v7372
        %v7397 = vpack.c.b16 %v7377, %v7375
        %v7398 = vpack.c.b16 %v7378, %v7376
        %v7399 = vpack.c.b16 %v7381, %v7379
        %v7400 = vpack.c.b16 %v7382, %v7380
        %v7401 = vpack.c.b16 %v7385, %v7383
        %v7402 = vpack.c.b16 %v7386, %v7384
        %7419 = vmatprep.subr.bf16.mxu0 %v7388
        %7420 = vmatpush1.bf16.msra.mxu0 %v7387
        %7421 = vmatprep.subr.bf16.mxu0 %v7390
        %7422 = vmatpush1.bf16.msra.mxu0 %v7389
        %7423 = vmatprep.subr.bf16.mxu0 %v7392
        %7424 = vmatpush1.bf16.msra.mxu0 %v7391
        %7425 = vmatprep.subr.bf16.mxu0 %v7394
        %7426 = vmatpush1.bf16.msra.mxu0 %v7393
        %7427 = vmatprep.subr.bf16.mxu0 %v7396
        %7428 = vmatpush1.bf16.msra.mxu0 %v7395
        %7429 = vmatprep.subr.bf16.mxu0 %v7398
        %7430 = vmatpush1.bf16.msra.mxu0 %v7397
        %7431 = vmatprep.subr.bf16.mxu0 %v7400
        %7432 = vmatpush1.bf16.msra.mxu0 %v7399
        %7433 = vmatprep.subr.bf16.mxu0 %v7402
        %7434 = vmatpush1.bf16.msra.mxu0 %v7401
        %7435 = vmatprep.subr.bf16.mxu0 0
        %7436 = vmatpush1.bf16.msra.mxu0 0
        %7437 = vmatprep.subr.bf16.mxu0 0
        %7438 = vmatpush1.bf16.msra.mxu0 0
        %7439 = vmatprep.subr.bf16.mxu0 0
        %7440 = vmatpush1.bf16.msra.mxu0 0
        %7441 = vmatprep.subr.bf16.mxu0 0
        %7442 = vmatpush1.bf16.msra.mxu0 0
        %7443 = vmatprep.subr.bf16.mxu0 0
        %7444 = vmatpush1.bf16.msra.mxu0 0
        %7445 = vmatprep.subr.bf16.mxu0 0
        %7446 = vmatpush1.bf16.msra.mxu0 0
        %7447 = vmatprep.subr.bf16.mxu0 0
        %7448 = vmatpush1.bf16.msra.mxu0 0
        %7449 = vmatprep.subr.bf16.mxu0 0
        %7450 = vmatpush1.bf16.msra.mxu0 0
        %7451 = vmatprep.mubr.bf16.mxu0 0
        %7452 = vmatmul.mubr.bf16.gmra.mrb[0].mxu0 %v7296
        %v7453 = vpop.f32.mrb[0].mxu0
        %v7454 = vadd.f32 %v7332, %v7453
        %v7455 = vpop.f32.mrb[0].mxu0
        %v7456 = vadd.f32 %v7336, %v7455
        %v7457 = vpop.f32.mrb[0].mxu0
        %v7458 = vadd.f32 %v7332, %v7457
        %v7459 = vpop.f32.mrb[0].mxu0
        %v7460 = vadd.f32 %v7336, %v7459
        %7461 = vmatprep.mubr.bf16.mxu0 0
        %7462 = vmatmul.mubr.bf16.gmra.mrb[0].mxu0 %v7297
        %v7463 = vpop.f32.mrb[0].mxu0
        %v7464 = vadd.f32 %v7332, %v7463
        %v7465 = vpop.f32.mrb[0].mxu0
        %v7466 = vadd.f32 %v7336, %v7465
        %v7467 = vpop.f32.mrb[0].mxu0
        %v7468 = vadd.f32 %v7332, %v7467
        %v7469 = vpop.f32.mrb[0].mxu0
        %v7470 = vadd.f32 %v7336, %v7469
        %7471 = vmatprep.mubr.bf16.mxu0 0
        %7472 = vmatmul.mubr.bf16.gmra.mrb[0].mxu0 %v7298
        %v7473 = vpop.f32.mrb[0].mxu0
        %v7474 = vadd.f32 %v7332, %v7473
        %v7475 = vpop.f32.mrb[0].mxu0
        %v7476 = vadd.f32 %v7336, %v7475
        %v7477 = vpop.f32.mrb[0].mxu0
        %v7478 = vadd.f32 %v7332, %v7477
        %v7479 = vpop.f32.mrb[0].mxu0
        %v7480 = vadd.f32 %v7336, %v7479
        %7481 = vmatprep.mubr.bf16.mxu0 0
        %7482 = vmatmul.mubr.bf16.gmra.mrb[0].mxu0 %v7299
        %v7483 = vpop.f32.mrb[0].mxu0
        %v7484 = vadd.f32 %v7332, %v7483
        %v7485 = vpop.f32.mrb[0].mxu0
        %v7486 = vadd.f32 %v7336, %v7485
        %v7487 = vpop.f32.mrb[0].mxu0
        %v7488 = vadd.f32 %v7332, %v7487
        %v7489 = vpop.f32.mrb[0].mxu0
        %v7490 = vadd.f32 %v7336, %v7489
        %7491 = vmatprep.mubr.bf16.mxu0 0
        %7492 = vmatmul.mubr.bf16.gmra.mrb[0].mxu0 %v7300
        %v7493 = vpop.f32.mrb[0].mxu0
        %v7494 = vadd.f32 %v7332, %v7493
        %v7495 = vpop.f32.mrb[0].mxu0
        %v7496 = vadd.f32 %v7336, %v7495
        %v7497 = vpop.f32.mrb[0].mxu0
        %v7498 = vadd.f32 %v7332, %v7497
        %v7499 = vpop.f32.mrb[0].mxu0
        %v7500 = vadd.f32 %v7336, %v7499
        %7501 = vmatprep.mubr.bf16.mxu0 0
        %7502 = vmatmul.mubr.bf16.gmra.mrb[0].mxu0 %v7301
        %v7503 = vpop.f32.mrb[0].mxu0
        %v7504 = vadd.f32 %v7332, %v7503
        %v7505 = vpop.f32.mrb[0].mxu0
        %v7506 = vadd.f32 %v7336, %v7505
        %v7507 = vpop.f32.mrb[0].mxu0
        %v7508 = vadd.f32 %v7332, %v7507
        %v7509 = vpop.f32.mrb[0].mxu0
        %v7510 = vadd.f32 %v7336, %v7509
        %7511 = vmatprep.mubr.bf16.mxu0 0
        %7512 = vmatmul.mubr.bf16.gmra.mrb[0].mxu0 %v7302
        %v7513 = vpop.f32.mrb[0].mxu0
        %v7514 = vadd.f32 %v7332, %v7513
        %v7515 = vpop.f32.mrb[0].mxu0
        %v7516 = vadd.f32 %v7336, %v7515
        %v7517 = vpop.f32.mrb[0].mxu0
        %v7518 = vadd.f32 %v7332, %v7517
        %v7519 = vpop.f32.mrb[0].mxu0
        %v7520 = vadd.f32 %v7336, %v7519
        %7521 = vmatprep.mubr.bf16.mxu0 0
        %7522 = vmatmul.mubr.bf16.gmra.mrb[0].mxu0 %v7303
        %v7523 = vpop.f32.mrb[0].mxu0
        %v7524 = vadd.f32 %v7332, %v7523
        %v7525 = vpop.f32.mrb[0].mxu0
        %v7526 = vadd.f32 %v7336, %v7525
        %v7527 = vpop.f32.mrb[0].mxu0
        %v7528 = vadd.f32 %v7332, %v7527
        %v7529 = vpop.f32.mrb[0].mxu0
        %v7530 = vadd.f32 %v7336, %v7529
        %7531 = vmatprep.mubr.bf16.mxu0 0
        %7532 = vmatmul.mubr.bf16.gmra.mrb[0].mxu0 %v7304
        %v7533 = vpop.f32.mrb[0].mxu0
        %v7534 = vadd.f32 %v7332, %v7533
        %v7535 = vpop.f32.mrb[0].mxu0
        %v7536 = vadd.f32 %v7336, %v7535
        %v7537 = vpop.f32.mrb[0].mxu0
        %v7538 = vadd.f32 %v7332, %v7537
        %v7539 = vpop.f32.mrb[0].mxu0
        %v7540 = vadd.f32 %v7336, %v7539
        %7541 = vmatprep.mubr.bf16.mxu0 0
        %7542 = vmatmul.mubr.bf16.gmra.mrb[0].mxu0 %v7305
        %v7543 = vpop.f32.mrb[0].mxu0
        %v7544 = vadd.f32 %v7332, %v7543
        %v7545 = vpop.f32.mrb[0].mxu0
        %v7546 = vadd.f32 %v7336, %v7545
        %v7547 = vpop.f32.mrb[0].mxu0
        %v7548 = vadd.f32 %v7332, %v7547
        %v7549 = vpop.f32.mrb[0].mxu0
        %v7550 = vadd.f32 %v7336, %v7549
        %7551 = vmatprep.mubr.bf16.mxu0 0
        %7552 = vmatmul.mubr.bf16.gmra.mrb[0].mxu0 %v7306
        %v7553 = vpop.f32.mrb[0].mxu0
        %v7554 = vadd.f32 %v7332, %v7553
        %v7555 = vpop.f32.mrb[0].mxu0
        %v7556 = vadd.f32 %v7336, %v7555
        %v7557 = vpop.f32.mrb[0].mxu0
        %v7558 = vadd.f32 %v7332, %v7557
        %v7559 = vpop.f32.mrb[0].mxu0
        %v7560 = vadd.f32 %v7336, %v7559
        %7561 = vmatprep.mubr.bf16.mxu0 0
        %7562 = vmatmul.mubr.bf16.gmra.mrb[0].mxu0 %v7307
        %v7563 = vpop.f32.mrb[0].mxu0
        %v7564 = vadd.f32 %v7332, %v7563
        %v7565 = vpop.f32.mrb[0].mxu0
        %v7566 = vadd.f32 %v7336, %v7565
        %v7567 = vpop.f32.mrb[0].mxu0
        %v7568 = vadd.f32 %v7332, %v7567
        %v7569 = vpop.f32.mrb[0].mxu0
        %v7570 = vadd.f32 %v7336, %v7569
        %7571 = vmatprep.mubr.bf16.mxu0 0
        %7572 = vmatmul.mubr.bf16.gmra.mrb[0].mxu0 %v7308
        %v7573 = vpop.f32.mrb[0].mxu0
        %v7574 = vadd.f32 %v7332, %v7573
        %v7575 = vpop.f32.mrb[0].mxu0
        %v7576 = vadd.f32 %v7336, %v7575
        %v7577 = vpop.f32.mrb[0].mxu0
        %v7578 = vadd.f32 %v7332, %v7577
        %v7579 = vpop.f32.mrb[0].mxu0
        %v7580 = vadd.f32 %v7336, %v7579
        %7581 = vmatprep.mubr.bf16.mxu0 0
        %7582 = vmatmul.mubr.bf16.gmra.mrb[0].mxu0 %v7309
        %v7583 = vpop.f32.mrb[0].mxu0
        %v7584 = vadd.f32 %v7332, %v7583
        %v7585 = vpop.f32.mrb[0].mxu0
        %v7586 = vadd.f32 %v7336, %v7585
        %v7587 = vpop.f32.mrb[0].mxu0
        %v7588 = vadd.f32 %v7332, %v7587
        %v7589 = vpop.f32.mrb[0].mxu0
        %v7590 = vadd.f32 %v7336, %v7589
        %7591 = vmatprep.mubr.bf16.mxu0 0
        %7592 = vmatmul.mubr.bf16.gmra.mrb[0].mxu0 %v7310
        %v7593 = vpop.f32.mrb[0].mxu0
        %v7594 = vadd.f32 %v7332, %v7593
        %v7595 = vpop.f32.mrb[0].mxu0
        %v7596 = vadd.f32 %v7336, %v7595
        %v7597 = vpop.f32.mrb[0].mxu0
        %v7598 = vadd.f32 %v7332, %v7597
        %v7599 = vpop.f32.mrb[0].mxu0
        %v7600 = vadd.f32 %v7336, %v7599
        %7601 = vmatprep.mubr.bf16.mxu0 0
        %7602 = vmatmul.mubr.bf16.gmra.mrb[0].mxu0 %v7311
        %v7603 = vpop.f32.mrb[0].mxu0
        %v7604 = vadd.f32 %v7332, %v7603
        %v7605 = vpop.f32.mrb[0].mxu0
        %v7606 = vadd.f32 %v7336, %v7605
        %v7607 = vpop.f32.mrb[0].mxu0
        %v7608 = vadd.f32 %v7332, %v7607
        %v7609 = vpop.f32.mrb[0].mxu0
        %v7610 = vadd.f32 %v7336, %v7609
        %7611 = vmatprep.mubr.bf16.mxu0 0
        %7612 = vmatmul.mubr.bf16.gmra.mrb[0].mxu0 %v7312
        %v7613 = vpop.f32.mrb[0].mxu0
        %v7614 = vadd.f32 %v7332, %v7613
        %v7615 = vpop.f32.mrb[0].mxu0
        %v7616 = vadd.f32 %v7336, %v7615
        %v7617 = vpop.f32.mrb[0].mxu0
        %v7618 = vadd.f32 %v7332, %v7617
        %v7619 = vpop.f32.mrb[0].mxu0
        %v7620 = vadd.f32 %v7336, %v7619
        %7621 = vmatprep.mubr.bf16.mxu0 0
        %7622 = vmatmul.mubr.bf16.gmra.mrb[0].mxu0 %v7313
        %v7623 = vpop.f32.mrb[0].mxu0
        %v7624 = vadd.f32 %v7332, %v7623
        %v7625 = vpop.f32.mrb[0].mxu0
        %v7626 = vadd.f32 %v7336, %v7625
        %v7627 = vpop.f32.mrb[0].mxu0
        %v7628 = vadd.f32 %v7332, %v7627
        %v7629 = vpop.f32.mrb[0].mxu0
        %v7630 = vadd.f32 %v7336, %v7629
        %7631 = vmatprep.mubr.bf16.mxu0 0
        %7632 = vmatmul.mubr.bf16.gmra.mrb[0].mxu0 %v7314
        %v7633 = vpop.f32.mrb[0].mxu0
        %v7634 = vadd.f32 %v7332, %v7633
        %v7635 = vpop.f32.mrb[0].mxu0
        %v7636 = vadd.f32 %v7336, %v7635
        %v7637 = vpop.f32.mrb[0].mxu0
        %v7638 = vadd.f32 %v7332, %v7637
        %v7639 = vpop.f32.mrb[0].mxu0
        %v7640 = vadd.f32 %v7336, %v7639
        %7641 = vmatprep.mubr.bf16.mxu0 0
        %7642 = vmatmul.mubr.bf16.gmra.mrb[0].mxu0 %v7315
        %v7643 = vpop.f32.mrb[0].mxu0
        %v7644 = vadd.f32 %v7332, %v7643
        %v7645 = vpop.f32.mrb[0].mxu0
        %v7646 = vadd.f32 %v7336, %v7645
        %v7647 = vpop.f32.mrb[0].mxu0
        %v7648 = vadd.f32 %v7332, %v7647
        %v7649 = vpop.f32.mrb[0].mxu0
        %v7650 = vadd.f32 %v7336, %v7649
        %7651 = vmatprep.mubr.bf16.mxu0 0
        %7652 = vmatmul.mubr.bf16.gmra.mrb[0].mxu0 %v7316
        %v7653 = vpop.f32.mrb[0].mxu0
        %v7654 = vadd.f32 %v7332, %v7653
        %v7655 = vpop.f32.mrb[0].mxu0
        %v7656 = vadd.f32 %v7336, %v7655
        %v7657 = vpop.f32.mrb[0].mxu0
        %v7658 = vadd.f32 %v7332, %v7657
        %v7659 = vpop.f32.mrb[0].mxu0
        %v7660 = vadd.f32 %v7336, %v7659
        %7661 = vmatprep.mubr.bf16.mxu0 0
        %7662 = vmatmul.mubr.bf16.gmra.mrb[0].mxu0 %v7317
        %v7663 = vpop.f32.mrb[0].mxu0
        %v7664 = vadd.f32 %v7332, %v7663
        %v7665 = vpop.f32.mrb[0].mxu0
        %v7666 = vadd.f32 %v7336, %v7665
        %v7667 = vpop.f32.mrb[0].mxu0
        %v7668 = vadd.f32 %v7332, %v7667
        %v7669 = vpop.f32.mrb[0].mxu0
        %v7670 = vadd.f32 %v7336, %v7669
        %7671 = vmatprep.mubr.bf16.mxu0 0
        %7672 = vmatmul.mubr.bf16.gmra.mrb[0].mxu0 %v7318
        %v7673 = vpop.f32.mrb[0].mxu0
        %v7674 = vadd.f32 %v7332, %v7673
        %v7675 = vpop.f32.mrb[0].mxu0
        %v7676 = vadd.f32 %v7336, %v7675
        %v7677 = vpop.f32.mrb[0].mxu0
        %v7678 = vadd.f32 %v7332, %v7677
        %v7679 = vpop.f32.mrb[0].mxu0
        %v7680 = vadd.f32 %v7336, %v7679
        %7681 = vmatprep.mubr.bf16.mxu0 0
        %7682 = vmatmul.mubr.bf16.gmra.mrb[0].mxu0 %v7319
        %v7683 = vpop.f32.mrb[0].mxu0
        %v7684 = vadd.f32 %v7332, %v7683
        %v7685 = vpop.f32.mrb[0].mxu0
        %v7686 = vadd.f32 %v7336, %v7685
        %v7687 = vpop.f32.mrb[0].mxu0
        %v7688 = vadd.f32 %v7332, %v7687
        %v7689 = vpop.f32.mrb[0].mxu0
        %v7690 = vadd.f32 %v7336, %v7689
        %7691 = vmatprep.mubr.bf16.mxu0 0
        %7692 = vmatmul.mubr.bf16.gmra.mrb[0].mxu0 %v7320
        %v7693 = vpop.f32.mrb[0].mxu0
        %v7694 = vadd.f32 %v7332, %v7693
        %v7695 = vpop.f32.mrb[0].mxu0
        %v7696 = vadd.f32 %v7336, %v7695
        %v7697 = vpop.f32.mrb[0].mxu0
        %v7698 = vadd.f32 %v7332, %v7697
        %v7699 = vpop.f32.mrb[0].mxu0
        %v7700 = vadd.f32 %v7336, %v7699
        %7701 = vmatprep.mubr.bf16.mxu0 0
        %7702 = vmatmul.mubr.bf16.gmra.mrb[0].mxu0 %v7321
        %v7703 = vpop.f32.mrb[0].mxu0
        %v7704 = vadd.f32 %v7332, %v7703
        %v7705 = vpop.f32.mrb[0].mxu0
        %v7706 = vadd.f32 %v7336, %v7705
        %v7707 = vpop.f32.mrb[0].mxu0
        %v7708 = vadd.f32 %v7332, %v7707
        %v7709 = vpop.f32.mrb[0].mxu0
        %v7710 = vadd.f32 %v7336, %v7709
        %7711 = vmatprep.mubr.bf16.mxu0 0
        %7712 = vmatmul.mubr.bf16.gmra.mrb[0].mxu0 %v7322
        %v7713 = vpop.f32.mrb[0].mxu0
        %v7714 = vadd.f32 %v7332, %v7713
        %v7715 = vpop.f32.mrb[0].mxu0
        %v7716 = vadd.f32 %v7336, %v7715
        %v7717 = vpop.f32.mrb[0].mxu0
        %v7718 = vadd.f32 %v7332, %v7717
        %v7719 = vpop.f32.mrb[0].mxu0
        %v7720 = vadd.f32 %v7336, %v7719
        %7721 = vmatprep.mubr.bf16.mxu0 0
        %7722 = vmatmul.mubr.bf16.gmra.mrb[0].mxu0 %v7323
        %v7723 = vpop.f32.mrb[0].mxu0
        %v7724 = vadd.f32 %v7332, %v7723
        %v7725 = vpop.f32.mrb[0].mxu0
        %v7726 = vadd.f32 %v7336, %v7725
        %v7727 = vpop.f32.mrb[0].mxu0
        %v7728 = vadd.f32 %v7332, %v7727
        %v7729 = vpop.f32.mrb[0].mxu0
        %v7730 = vadd.f32 %v7336, %v7729
        %7731 = vmatprep.mubr.bf16.mxu0 0
        %7732 = vmatmul.mubr.bf16.gmra.mrb[0].mxu0 %v7324
        %v7733 = vpop.f32.mrb[0].mxu0
        %v7734 = vadd.f32 %v7332, %v7733
        %v7735 = vpop.f32.mrb[0].mxu0
        %v7736 = vadd.f32 %v7336, %v7735
        %v7737 = vpop.f32.mrb[0].mxu0
        %v7738 = vadd.f32 %v7332, %v7737
        %v7739 = vpop.f32.mrb[0].mxu0
        %v7740 = vadd.f32 %v7336, %v7739
        %7741 = vmatprep.mubr.bf16.mxu0 0
        %7742 = vmatmul.mubr.bf16.gmra.mrb[0].mxu0 %v7325
        %v7743 = vpop.f32.mrb[0].mxu0
        %v7744 = vadd.f32 %v7332, %v7743
        %v7745 = vpop.f32.mrb[0].mxu0
        %v7746 = vadd.f32 %v7336, %v7745
        %v7747 = vpop.f32.mrb[0].mxu0
        %v7748 = vadd.f32 %v7332, %v7747
        %v7749 = vpop.f32.mrb[0].mxu0
        %v7750 = vadd.f32 %v7336, %v7749
        %7751 = vmatprep.mubr.bf16.mxu0 0
        %7752 = vmatmul.mubr.bf16.gmra.mrb[0].mxu0 %v7326
        %v7753 = vpop.f32.mrb[0].mxu0
        %v7754 = vadd.f32 %v7332, %v7753
        %v7755 = vpop.f32.mrb[0].mxu0
        %v7756 = vadd.f32 %v7336, %v7755
        %v7757 = vpop.f32.mrb[0].mxu0
        %v7758 = vadd.f32 %v7332, %v7757
        %v7759 = vpop.f32.mrb[0].mxu0
        %v7760 = vadd.f32 %v7336, %v7759
        %7761 = vmatprep.mubr.bf16.mxu0 0
        %7762 = vmatmul.mubr.bf16.gmra.mrb[0].mxu0 %v7327
        %v7763 = vpop.f32.mrb[0].mxu0
        %v7764 = vadd.f32 %v7332, %v7763
        %v7765 = vpop.f32.mrb[0].mxu0
        %v7766 = vadd.f32 %v7336, %v7765
        %v7767 = vpop.f32.mrb[0].mxu0
        %v7768 = vadd.f32 %v7332, %v7767
        %v7769 = vpop.f32.mrb[0].mxu0
        %v7770 = vadd.f32 %v7336, %v7769
        %7771 = vdwg.mxu0
        %v7772 = vmax.f32 %v7454, 0.0
        %v7773 = vmax.f32 %v7456, 0.0
        %v7774 = vmax.f32 %v7458, 0.0
        %v7775 = vmax.f32 %v7460, 0.0
        %v7776 = vmax.f32 %v7464, 0.0
        %v7777 = vmax.f32 %v7466, 0.0
        %v7778 = vmax.f32 %v7468, 0.0
        %v7779 = vmax.f32 %v7470, 0.0
        %v7780 = vmax.f32 %v7474, 0.0
        %v7781 = vmax.f32 %v7476, 0.0
        %v7782 = vmax.f32 %v7478, 0.0
        %v7783 = vmax.f32 %v7480, 0.0
        %v7784 = vmax.f32 %v7484, 0.0
        %v7785 = vmax.f32 %v7486, 0.0
        %v7786 = vmax.f32 %v7488, 0.0
        %v7787 = vmax.f32 %v7490, 0.0
        %v7788 = vmax.f32 %v7494, 0.0
        %v7789 = vmax.f32 %v7496, 0.0
        %v7790 = vmax.f32 %v7498, 0.0
        %v7791 = vmax.f32 %v7500, 0.0
        %v7792 = vmax.f32 %v7504, 0.0
        %v7793 = vmax.f32 %v7506, 0.0
        %v7794 = vmax.f32 %v7508, 0.0
        %v7795 = vmax.f32 %v7510, 0.0
        %v7796 = vmax.f32 %v7514, 0.0
        %v7797 = vmax.f32 %v7516, 0.0
        %v7798 = vmax.f32 %v7518, 0.0
        %v7799 = vmax.f32 %v7520, 0.0
        %v7800 = vmax.f32 %v7524, 0.0
        %v7801 = vmax.f32 %v7526, 0.0
        %v7802 = vmax.f32 %v7528, 0.0
        %v7803 = vmax.f32 %v7530, 0.0
        %v7804 = vmax.f32 %v7534, 0.0
        %v7805 = vmax.f32 %v7536, 0.0
        %v7806 = vmax.f32 %v7538, 0.0
        %v7807 = vmax.f32 %v7540, 0.0
        %v7808 = vmax.f32 %v7544, 0.0
        %v7809 = vmax.f32 %v7546, 0.0
        %v7810 = vmax.f32 %v7548, 0.0
        %v7811 = vmax.f32 %v7550, 0.0
        %v7812 = vmax.f32 %v7554, 0.0
        %v7813 = vmax.f32 %v7556, 0.0
        %v7814 = vmax.f32 %v7558, 0.0
        %v7815 = vmax.f32 %v7560, 0.0
        %v7816 = vmax.f32 %v7564, 0.0
        %v7817 = vmax.f32 %v7566, 0.0
        %v7818 = vmax.f32 %v7568, 0.0
        %v7819 = vmax.f32 %v7570, 0.0
        %v7820 = vmax.f32 %v7574, 0.0
        %v7821 = vmax.f32 %v7576, 0.0
        %v7822 = vmax.f32 %v7578, 0.0
        %v7823 = vmax.f32 %v7580, 0.0
        %v7824 = vmax.f32 %v7584, 0.0
        %v7825 = vmax.f32 %v7586, 0.0
        %v7826 = vmax.f32 %v7588, 0.0
        %v7827 = vmax.f32 %v7590, 0.0
        %v7828 = vmax.f32 %v7594, 0.0
        %v7829 = vmax.f32 %v7596, 0.0
        %v7830 = vmax.f32 %v7598, 0.0
        %v7831 = vmax.f32 %v7600, 0.0
        %v7832 = vmax.f32 %v7604, 0.0
        %v7833 = vmax.f32 %v7606, 0.0
        %v7834 = vmax.f32 %v7608, 0.0
        %v7835 = vmax.f32 %v7610, 0.0
        %v7836 = vmax.f32 %v7614, 0.0
        %v7837 = vmax.f32 %v7616, 0.0
        %v7838 = vmax.f32 %v7618, 0.0
        %v7839 = vmax.f32 %v7620, 0.0
        %v7840 = vmax.f32 %v7624, 0.0
        %v7841 = vmax.f32 %v7626, 0.0
        %v7842 = vmax.f32 %v7628, 0.0
        %v7843 = vmax.f32 %v7630, 0.0
        %v7844 = vmax.f32 %v7634, 0.0
        %v7845 = vmax.f32 %v7636, 0.0
        %v7846 = vmax.f32 %v7638, 0.0
        %v7847 = vmax.f32 %v7640, 0.0
        %v7848 = vmax.f32 %v7644, 0.0
        %v7849 = vmax.f32 %v7646, 0.0
        %v7850 = vmax.f32 %v7648, 0.0
        %v7851 = vmax.f32 %v7650, 0.0
        %v7852 = vmax.f32 %v7654, 0.0
        %v7853 = vmax.f32 %v7656, 0.0
        %v7854 = vmax.f32 %v7658, 0.0
        %v7855 = vmax.f32 %v7660, 0.0
        %v7856 = vmax.f32 %v7664, 0.0
        %v7857 = vmax.f32 %v7666, 0.0
        %v7858 = vmax.f32 %v7668, 0.0
        %v7859 = vmax.f32 %v7670, 0.0
        %v7860 = vmax.f32 %v7674, 0.0
        %v7861 = vmax.f32 %v7676, 0.0
        %v7862 = vmax.f32 %v7678, 0.0
        %v7863 = vmax.f32 %v7680, 0.0
        %v7864 = vmax.f32 %v7684, 0.0
        %v7865 = vmax.f32 %v7686, 0.0
        %v7866 = vmax.f32 %v7688, 0.0
        %v7867 = vmax.f32 %v7690, 0.0
        %v7868 = vmax.f32 %v7694, 0.0
        %v7869 = vmax.f32 %v7696, 0.0
        %v7870 = vmax.f32 %v7698, 0.0
        %v7871 = vmax.f32 %v7700, 0.0
        %v7872 = vmax.f32 %v7704, 0.0
        %v7873 = vmax.f32 %v7706, 0.0
        %v7874 = vmax.f32 %v7708, 0.0
        %v7875 = vmax.f32 %v7710, 0.0
        %v7876 = vmax.f32 %v7714, 0.0
        %v7877 = vmax.f32 %v7716, 0.0
        %v7878 = vmax.f32 %v7718, 0.0
        %v7879 = vmax.f32 %v7720, 0.0
        %v7880 = vmax.f32 %v7724, 0.0
        %v7881 = vmax.f32 %v7726, 0.0
        %v7882 = vmax.f32 %v7728, 0.0
        %v7883 = vmax.f32 %v7730, 0.0
        %v7884 = vmax.f32 %v7734, 0.0
        %v7885 = vmax.f32 %v7736, 0.0
        %v7886 = vmax.f32 %v7738, 0.0
        %v7887 = vmax.f32 %v7740, 0.0
        %v7888 = vmax.f32 %v7744, 0.0
        %v7889 = vmax.f32 %v7746, 0.0
        %v7890 = vmax.f32 %v7748, 0.0
        %v7891 = vmax.f32 %v7750, 0.0
        %v7892 = vmax.f32 %v7754, 0.0
        %v7893 = vmax.f32 %v7756, 0.0
        %v7894 = vmax.f32 %v7758, 0.0
        %v7895 = vmax.f32 %v7760, 0.0
        %v7896 = vmax.f32 %v7764, 0.0
        %v7897 = vmax.f32 %v7766, 0.0
        %v7898 = vmax.f32 %v7768, 0.0
        %v7899 = vmax.f32 %v7770, 0.0
        %v7900 = vpack.c.bf16 %v7774, %v7772
        %v7901 = vpack.c.bf16 %v7775, %v7773
        %v7902 = vpack.c.bf16 %v7778, %v7776
        %v7903 = vpack.c.bf16 %v7779, %v7777
        %v7904 = vpack.c.bf16 %v7782, %v7780
        %v7905 = vpack.c.bf16 %v7783, %v7781
        %v7906 = vpack.c.bf16 %v7786, %v7784
        %v7907 = vpack.c.bf16 %v7787, %v7785
        %v7908 = vpack.c.bf16 %v7790, %v7788
        %v7909 = vpack.c.bf16 %v7791, %v7789
        %v7910 = vpack.c.bf16 %v7794, %v7792
        %v7911 = vpack.c.bf16 %v7795, %v7793
        %v7912 = vpack.c.bf16 %v7798, %v7796
        %v7913 = vpack.c.bf16 %v7799, %v7797
        %v7914 = vpack.c.bf16 %v7802, %v7800
        %v7915 = vpack.c.bf16 %v7803, %v7801
        %v7916 = vpack.c.bf16 %v7806, %v7804
        %v7917 = vpack.c.bf16 %v7807, %v7805
        %v7918 = vpack.c.bf16 %v7810, %v7808
        %v7919 = vpack.c.bf16 %v7811, %v7809
        %v7920 = vpack.c.bf16 %v7814, %v7812
        %v7921 = vpack.c.bf16 %v7815, %v7813
        %v7922 = vpack.c.bf16 %v7818, %v7816
        %v7923 = vpack.c.bf16 %v7819, %v7817
        %v7924 = vpack.c.bf16 %v7822, %v7820
        %v7925 = vpack.c.bf16 %v7823, %v7821
        %v7926 = vpack.c.bf16 %v7826, %v7824
        %v7927 = vpack.c.bf16 %v7827, %v7825
        %v7928 = vpack.c.bf16 %v7830, %v7828
        %v7929 = vpack.c.bf16 %v7831, %v7829
        %v7930 = vpack.c.bf16 %v7834, %v7832
        %v7931 = vpack.c.bf16 %v7835, %v7833
        %v7932 = vpack.c.bf16 %v7838, %v7836
        %v7933 = vpack.c.bf16 %v7839, %v7837
        %v7934 = vpack.c.bf16 %v7842, %v7840
        %v7935 = vpack.c.bf16 %v7843, %v7841
        %v7936 = vpack.c.bf16 %v7846, %v7844
        %v7937 = vpack.c.bf16 %v7847, %v7845
        %v7938 = vpack.c.bf16 %v7850, %v7848
        %v7939 = vpack.c.bf16 %v7851, %v7849
        %v7940 = vpack.c.bf16 %v7854, %v7852
        %v7941 = vpack.c.bf16 %v7855, %v7853
        %v7942 = vpack.c.bf16 %v7858, %v7856
        %v7943 = vpack.c.bf16 %v7859, %v7857
        %v7944 = vpack.c.bf16 %v7862, %v7860
        %v7945 = vpack.c.bf16 %v7863, %v7861
        %v7946 = vpack.c.bf16 %v7866, %v7864
        %v7947 = vpack.c.bf16 %v7867, %v7865
        %v7948 = vpack.c.bf16 %v7870, %v7868
        %v7949 = vpack.c.bf16 %v7871, %v7869
        %v7950 = vpack.c.bf16 %v7874, %v7872
        %v7951 = vpack.c.bf16 %v7875, %v7873
        %v7952 = vpack.c.bf16 %v7878, %v7876
        %v7953 = vpack.c.bf16 %v7879, %v7877
        %v7954 = vpack.c.bf16 %v7882, %v7880
        %v7955 = vpack.c.bf16 %v7883, %v7881
        %v7956 = vpack.c.bf16 %v7886, %v7884
        %v7957 = vpack.c.bf16 %v7887, %v7885
        %v7958 = vpack.c.bf16 %v7890, %v7888
        %v7959 = vpack.c.bf16 %v7891, %v7889
        %v7960 = vpack.c.bf16 %v7894, %v7892
        %v7961 = vpack.c.bf16 %v7895, %v7893
        %v7962 = vpack.c.bf16 %v7898, %v7896
        %v7963 = vpack.c.bf16 %v7899, %v7897
        %v7965 = vlaneseq
        %v7966 = vshrl.u32 %v7965, 7
        %v7967 = vsub.s32 0, %v7966
        %v7968 = vrot.slane %v4640, %v7967
        %v8002 = vunpack.c.l.b16 %v4607
        %v8003 = vunpack.c.l.b16 %v4608
        %v8004 = vunpack.c.l.b16 %v4609
        %v8005 = vunpack.c.l.b16 %v4610
        %v8006 = vunpack.c.l.b16 %v4611
        %v8007 = vunpack.c.l.b16 %v4612
        %v8008 = vunpack.c.l.b16 %v4613
        %v8009 = vunpack.c.l.b16 %v4614
        %v8010 = vunpack.c.l.b16 %v4615
        %v8011 = vunpack.c.l.b16 %v4616
        %v8012 = vunpack.c.l.b16 %v4617
        %v8013 = vunpack.c.l.b16 %v4618
        %v8014 = vunpack.c.l.b16 %v4619
        %v8015 = vunpack.c.l.b16 %v4620
        %v8016 = vunpack.c.l.b16 %v4621
        %v8017 = vunpack.c.l.b16 %v4622
        %v8018 = vunpack.c.l.b16 %v4623
        %v8019 = vunpack.c.l.b16 %v4624
        %v8020 = vunpack.c.l.b16 %v4625
        %v8021 = vunpack.c.l.b16 %v4626
        %v8022 = vunpack.c.l.b16 %v4627
        %v8023 = vunpack.c.l.b16 %v4628
        %v8024 = vunpack.c.l.b16 %v4629
        %v8025 = vunpack.c.l.b16 %v4630
        %v8026 = vunpack.c.l.b16 %v4631
        %v8027 = vunpack.c.l.b16 %v4632
        %v8028 = vunpack.c.l.b16 %v4633
        %v8029 = vunpack.c.l.b16 %v4634
        %v8030 = vunpack.c.l.b16 %v4635
        %v8031 = vunpack.c.l.b16 %v4636
        %v8032 = vunpack.c.l.b16 %v4637
        %v8033 = vunpack.c.l.b16 %v4638
        %v8034 = vpack.c.b16 %v8003, %v8002
        %v8035 = vpack.c.b16 %v8005, %v8004
        %v8036 = vpack.c.b16 %v8007, %v8006
        %v8037 = vpack.c.b16 %v8009, %v8008
        %v8038 = vpack.c.b16 %v8011, %v8010
        %v8039 = vpack.c.b16 %v8013, %v8012
        %v8040 = vpack.c.b16 %v8015, %v8014
        %v8041 = vpack.c.b16 %v8017, %v8016
        %v8042 = vpack.c.b16 %v8019, %v8018
        %v8043 = vpack.c.b16 %v8021, %v8020
        %v8044 = vpack.c.b16 %v8023, %v8022
        %v8045 = vpack.c.b16 %v8025, %v8024
        %v8046 = vpack.c.b16 %v8027, %v8026
        %v8047 = vpack.c.b16 %v8029, %v8028
        %v8048 = vpack.c.b16 %v8031, %v8030
        %v8049 = vpack.c.b16 %v8033, %v8032
        %8066 = vmatprep.subr.bf16.mxu0 0
        %8067 = vmatpush1.bf16.msra.mxu0 %v8034
        %8068 = vmatprep.subr.bf16.mxu0 0
        %8069 = vmatpush1.bf16.msra.mxu0 %v8035
        %8070 = vmatprep.subr.bf16.mxu0 0
        %8071 = vmatpush1.bf16.msra.mxu0 %v8036
        %8072 = vmatprep.subr.bf16.mxu0 0
        %8073 = vmatpush1.bf16.msra.mxu0 %v8037
        %8074 = vmatprep.subr.bf16.mxu0 0
        %8075 = vmatpush1.bf16.msra.mxu0 %v8038
        %8076 = vmatprep.subr.bf16.mxu0 0
        %8077 = vmatpush1.bf16.msra.mxu0 %v8039
        %8078 = vmatprep.subr.bf16.mxu0 0
        %8079 = vmatpush1.bf16.msra.mxu0 %v8040
        %8080 = vmatprep.subr.bf16.mxu0 0
        %8081 = vmatpush1.bf16.msra.mxu0 %v8041
        %8082 = vmatprep.subr.bf16.mxu0 0
        %8083 = vmatpush1.bf16.msra.mxu0 %v8042
        %8084 = vmatprep.subr.bf16.mxu0 0
        %8085 = vmatpush1.bf16.msra.mxu0 %v8043
        %8086 = vmatprep.subr.bf16.mxu0 0
        %8087 = vmatpush1.bf16.msra.mxu0 %v8044
        %8088 = vmatprep.subr.bf16.mxu0 0
        %8089 = vmatpush1.bf16.msra.mxu0 %v8045
        %8090 = vmatprep.subr.bf16.mxu0 0
        %8091 = vmatpush1.bf16.msra.mxu0 %v8046
        %8092 = vmatprep.subr.bf16.mxu0 0
        %8093 = vmatpush1.bf16.msra.mxu0 %v8047
        %8094 = vmatprep.subr.bf16.mxu0 0
        %8095 = vmatpush1.bf16.msra.mxu0 %v8048
        %8096 = vmatprep.subr.bf16.mxu0 0
        %8097 = vmatpush1.bf16.msra.mxu0 %v8049
        %8098 = vmatprep.mubr.bf16.mxu0 %v7901
        %8099 = vmatmul.mubr.bf16.gmra.mrb[0].mxu0 %v7900
        %v8100 = vpop.f32.mrb[0].mxu0
        %v8101 = vadd.f32 %v7968, %v8100
        %v8102 = vpop.f32.mrb[0].mxu0
        %v8103 = vpop.f32.mrb[0].mxu0
        %v8104 = vadd.f32 %v7968, %v8103
        %v8105 = vpop.f32.mrb[0].mxu0
        %8106 = vmatprep.mubr.bf16.mxu0 %v7903
        %8107 = vmatmul.mubr.bf16.gmra.mrb[0].mxu0 %v7902
        %v8108 = vpop.f32.mrb[0].mxu0
        %v8109 = vadd.f32 %v7968, %v8108
        %v8110 = vpop.f32.mrb[0].mxu0
        %v8111 = vpop.f32.mrb[0].mxu0
        %v8112 = vadd.f32 %v7968, %v8111
        %v8113 = vpop.f32.mrb[0].mxu0
        %8114 = vmatprep.mubr.bf16.mxu0 %v7905
        %8115 = vmatmul.mubr.bf16.gmra.mrb[0].mxu0 %v7904
        %v8116 = vpop.f32.mrb[0].mxu0
        %v8117 = vadd.f32 %v7968, %v8116
        %v8118 = vpop.f32.mrb[0].mxu0
        %v8119 = vpop.f32.mrb[0].mxu0
        %v8120 = vadd.f32 %v7968, %v8119
        %v8121 = vpop.f32.mrb[0].mxu0
        %8122 = vmatprep.mubr.bf16.mxu0 %v7907
        %8123 = vmatmul.mubr.bf16.gmra.mrb[0].mxu0 %v7906
        %v8124 = vpop.f32.mrb[0].mxu0
        %v8125 = vadd.f32 %v7968, %v8124
        %v8126 = vpop.f32.mrb[0].mxu0
        %v8127 = vpop.f32.mrb[0].mxu0
        %v8128 = vadd.f32 %v7968, %v8127
        %v8129 = vpop.f32.mrb[0].mxu0
        %8130 = vmatprep.mubr.bf16.mxu0 %v7909
        %8131 = vmatmul.mubr.bf16.gmra.mrb[0].mxu0 %v7908
        %v8132 = vpop.f32.mrb[0].mxu0
        %v8133 = vadd.f32 %v7968, %v8132
        %v8134 = vpop.f32.mrb[0].mxu0
        %v8135 = vpop.f32.mrb[0].mxu0
        %v8136 = vadd.f32 %v7968, %v8135
        %v8137 = vpop.f32.mrb[0].mxu0
        %8138 = vmatprep.mubr.bf16.mxu0 %v7911
        %8139 = vmatmul.mubr.bf16.gmra.mrb[0].mxu0 %v7910
        %v8140 = vpop.f32.mrb[0].mxu0
        %v8141 = vadd.f32 %v7968, %v8140
        %v8142 = vpop.f32.mrb[0].mxu0
        %v8143 = vpop.f32.mrb[0].mxu0
        %v8144 = vadd.f32 %v7968, %v8143
        %v8145 = vpop.f32.mrb[0].mxu0
        %8146 = vmatprep.mubr.bf16.mxu0 %v7913
        %8147 = vmatmul.mubr.bf16.gmra.mrb[0].mxu0 %v7912
        %v8148 = vpop.f32.mrb[0].mxu0
        %v8149 = vadd.f32 %v7968, %v8148
        %v8150 = vpop.f32.mrb[0].mxu0
        %v8151 = vpop.f32.mrb[0].mxu0
        %v8152 = vadd.f32 %v7968, %v8151
        %v8153 = vpop.f32.mrb[0].mxu0
        %8154 = vmatprep.mubr.bf16.mxu0 %v7915
        %8155 = vmatmul.mubr.bf16.gmra.mrb[0].mxu0 %v7914
        %v8156 = vpop.f32.mrb[0].mxu0
        %v8157 = vadd.f32 %v7968, %v8156
        %v8158 = vpop.f32.mrb[0].mxu0
        %v8159 = vpop.f32.mrb[0].mxu0
        %v8160 = vadd.f32 %v7968, %v8159
        %v8161 = vpop.f32.mrb[0].mxu0
        %8162 = vmatprep.mubr.bf16.mxu0 %v7917
        %8163 = vmatmul.mubr.bf16.gmra.mrb[0].mxu0 %v7916
        %v8164 = vpop.f32.mrb[0].mxu0
        %v8165 = vadd.f32 %v7968, %v8164
        %v8166 = vpop.f32.mrb[0].mxu0
        %v8167 = vpop.f32.mrb[0].mxu0
        %v8168 = vadd.f32 %v7968, %v8167
        %v8169 = vpop.f32.mrb[0].mxu0
        %8170 = vmatprep.mubr.bf16.mxu0 %v7919
        %8171 = vmatmul.mubr.bf16.gmra.mrb[0].mxu0 %v7918
        %v8172 = vpop.f32.mrb[0].mxu0
        %v8173 = vadd.f32 %v7968, %v8172
        %v8174 = vpop.f32.mrb[0].mxu0
        %v8175 = vpop.f32.mrb[0].mxu0
        %v8176 = vadd.f32 %v7968, %v8175
        %v8177 = vpop.f32.mrb[0].mxu0
        %8178 = vmatprep.mubr.bf16.mxu0 %v7921
        %8179 = vmatmul.mubr.bf16.gmra.mrb[0].mxu0 %v7920
        %v8180 = vpop.f32.mrb[0].mxu0
        %v8181 = vadd.f32 %v7968, %v8180
        %v8182 = vpop.f32.mrb[0].mxu0
        %v8183 = vpop.f32.mrb[0].mxu0
        %v8184 = vadd.f32 %v7968, %v8183
        %v8185 = vpop.f32.mrb[0].mxu0
        %8186 = vmatprep.mubr.bf16.mxu0 %v7923
        %8187 = vmatmul.mubr.bf16.gmra.mrb[0].mxu0 %v7922
        %v8188 = vpop.f32.mrb[0].mxu0
        %v8189 = vadd.f32 %v7968, %v8188
        %v8190 = vpop.f32.mrb[0].mxu0
        %v8191 = vpop.f32.mrb[0].mxu0
        %v8192 = vadd.f32 %v7968, %v8191
        %v8193 = vpop.f32.mrb[0].mxu0
        %8194 = vmatprep.mubr.bf16.mxu0 %v7925
        %8195 = vmatmul.mubr.bf16.gmra.mrb[0].mxu0 %v7924
        %v8196 = vpop.f32.mrb[0].mxu0
        %v8197 = vadd.f32 %v7968, %v8196
        %v8198 = vpop.f32.mrb[0].mxu0
        %v8199 = vpop.f32.mrb[0].mxu0
        %v8200 = vadd.f32 %v7968, %v8199
        %v8201 = vpop.f32.mrb[0].mxu0
        %8202 = vmatprep.mubr.bf16.mxu0 %v7927
        %8203 = vmatmul.mubr.bf16.gmra.mrb[0].mxu0 %v7926
        %v8204 = vpop.f32.mrb[0].mxu0
        %v8205 = vadd.f32 %v7968, %v8204
        %v8206 = vpop.f32.mrb[0].mxu0
        %v8207 = vpop.f32.mrb[0].mxu0
        %v8208 = vadd.f32 %v7968, %v8207
        %v8209 = vpop.f32.mrb[0].mxu0
        %8210 = vmatprep.mubr.bf16.mxu0 %v7929
        %8211 = vmatmul.mubr.bf16.gmra.mrb[0].mxu0 %v7928
        %v8212 = vpop.f32.mrb[0].mxu0
        %v8213 = vadd.f32 %v7968, %v8212
        %v8214 = vpop.f32.mrb[0].mxu0
        %v8215 = vpop.f32.mrb[0].mxu0
        %v8216 = vadd.f32 %v7968, %v8215
        %v8217 = vpop.f32.mrb[0].mxu0
        %8218 = vmatprep.mubr.bf16.mxu0 %v7931
        %8219 = vmatmul.mubr.bf16.gmra.mrb[0].mxu0 %v7930
        %v8220 = vpop.f32.mrb[0].mxu0
        %v8221 = vadd.f32 %v7968, %v8220
        %v8222 = vpop.f32.mrb[0].mxu0
        %v8223 = vpop.f32.mrb[0].mxu0
        %v8224 = vadd.f32 %v7968, %v8223
        %v8225 = vpop.f32.mrb[0].mxu0
        %8226 = vmatprep.mubr.bf16.mxu0 %v7933
        %8227 = vmatmul.mubr.bf16.gmra.mrb[0].mxu0 %v7932
        %v8228 = vpop.f32.mrb[0].mxu0
        %v8229 = vadd.f32 %v7968, %v8228
        %v8230 = vpop.f32.mrb[0].mxu0
        %v8231 = vpop.f32.mrb[0].mxu0
        %v8232 = vadd.f32 %v7968, %v8231
        %v8233 = vpop.f32.mrb[0].mxu0
        %8234 = vmatprep.mubr.bf16.mxu0 %v7935
        %8235 = vmatmul.mubr.bf16.gmra.mrb[0].mxu0 %v7934
        %v8236 = vpop.f32.mrb[0].mxu0
        %v8237 = vadd.f32 %v7968, %v8236
        %v8238 = vpop.f32.mrb[0].mxu0
        %v8239 = vpop.f32.mrb[0].mxu0
        %v8240 = vadd.f32 %v7968, %v8239
        %v8241 = vpop.f32.mrb[0].mxu0
        %8242 = vmatprep.mubr.bf16.mxu0 %v7937
        %8243 = vmatmul.mubr.bf16.gmra.mrb[0].mxu0 %v7936
        %v8244 = vpop.f32.mrb[0].mxu0
        %v8245 = vadd.f32 %v7968, %v8244
        %v8246 = vpop.f32.mrb[0].mxu0
        %v8247 = vpop.f32.mrb[0].mxu0
        %v8248 = vadd.f32 %v7968, %v8247
        %v8249 = vpop.f32.mrb[0].mxu0
        %8250 = vmatprep.mubr.bf16.mxu0 %v7939
        %8251 = vmatmul.mubr.bf16.gmra.mrb[0].mxu0 %v7938
        %v8252 = vpop.f32.mrb[0].mxu0
        %v8253 = vadd.f32 %v7968, %v8252
        %v8254 = vpop.f32.mrb[0].mxu0
        %v8255 = vpop.f32.mrb[0].mxu0
        %v8256 = vadd.f32 %v7968, %v8255
        %v8257 = vpop.f32.mrb[0].mxu0
        %8258 = vmatprep.mubr.bf16.mxu0 %v7941
        %8259 = vmatmul.mubr.bf16.gmra.mrb[0].mxu0 %v7940
        %v8260 = vpop.f32.mrb[0].mxu0
        %v8261 = vadd.f32 %v7968, %v8260
        %v8262 = vpop.f32.mrb[0].mxu0
        %v8263 = vpop.f32.mrb[0].mxu0
        %v8264 = vadd.f32 %v7968, %v8263
        %v8265 = vpop.f32.mrb[0].mxu0
        %8266 = vmatprep.mubr.bf16.mxu0 %v7943
        %8267 = vmatmul.mubr.bf16.gmra.mrb[0].mxu0 %v7942
        %v8268 = vpop.f32.mrb[0].mxu0
        %v8269 = vadd.f32 %v7968, %v8268
        %v8270 = vpop.f32.mrb[0].mxu0
        %v8271 = vpop.f32.mrb[0].mxu0
        %v8272 = vadd.f32 %v7968, %v8271
        %v8273 = vpop.f32.mrb[0].mxu0
        %8274 = vmatprep.mubr.bf16.mxu0 %v7945
        %8275 = vmatmul.mubr.bf16.gmra.mrb[0].mxu0 %v7944
        %v8276 = vpop.f32.mrb[0].mxu0
        %v8277 = vadd.f32 %v7968, %v8276
        %v8278 = vpop.f32.mrb[0].mxu0
        %v8279 = vpop.f32.mrb[0].mxu0
        %v8280 = vadd.f32 %v7968, %v8279
        %v8281 = vpop.f32.mrb[0].mxu0
        %8282 = vmatprep.mubr.bf16.mxu0 %v7947
        %8283 = vmatmul.mubr.bf16.gmra.mrb[0].mxu0 %v7946
        %v8284 = vpop.f32.mrb[0].mxu0
        %v8285 = vadd.f32 %v7968, %v8284
        %v8286 = vpop.f32.mrb[0].mxu0
        %v8287 = vpop.f32.mrb[0].mxu0
        %v8288 = vadd.f32 %v7968, %v8287
        %v8289 = vpop.f32.mrb[0].mxu0
        %8290 = vmatprep.mubr.bf16.mxu0 %v7949
        %8291 = vmatmul.mubr.bf16.gmra.mrb[0].mxu0 %v7948
        %v8292 = vpop.f32.mrb[0].mxu0
        %v8293 = vadd.f32 %v7968, %v8292
        %v8294 = vpop.f32.mrb[0].mxu0
        %v8295 = vpop.f32.mrb[0].mxu0
        %v8296 = vadd.f32 %v7968, %v8295
        %v8297 = vpop.f32.mrb[0].mxu0
        %8298 = vmatprep.mubr.bf16.mxu0 %v7951
        %8299 = vmatmul.mubr.bf16.gmra.mrb[0].mxu0 %v7950
        %v8300 = vpop.f32.mrb[0].mxu0
        %v8301 = vadd.f32 %v7968, %v8300
        %v8302 = vpop.f32.mrb[0].mxu0
        %v8303 = vpop.f32.mrb[0].mxu0
        %v8304 = vadd.f32 %v7968, %v8303
        %v8305 = vpop.f32.mrb[0].mxu0
        %8306 = vmatprep.mubr.bf16.mxu0 %v7953
        %8307 = vmatmul.mubr.bf16.gmra.mrb[0].mxu0 %v7952
        %v8308 = vpop.f32.mrb[0].mxu0
        %v8309 = vadd.f32 %v7968, %v8308
        %v8310 = vpop.f32.mrb[0].mxu0
        %v8311 = vpop.f32.mrb[0].mxu0
        %v8312 = vadd.f32 %v7968, %v8311
        %v8313 = vpop.f32.mrb[0].mxu0
        %8314 = vmatprep.mubr.bf16.mxu0 %v7955
        %8315 = vmatmul.mubr.bf16.gmra.mrb[0].mxu0 %v7954
        %v8316 = vpop.f32.mrb[0].mxu0
        %v8317 = vadd.f32 %v7968, %v8316
        %v8318 = vpop.f32.mrb[0].mxu0
        %v8319 = vpop.f32.mrb[0].mxu0
        %v8320 = vadd.f32 %v7968, %v8319
        %v8321 = vpop.f32.mrb[0].mxu0
        %8322 = vmatprep.mubr.bf16.mxu0 %v7957
        %8323 = vmatmul.mubr.bf16.gmra.mrb[0].mxu0 %v7956
        %v8324 = vpop.f32.mrb[0].mxu0
        %v8325 = vadd.f32 %v7968, %v8324
        %v8326 = vpop.f32.mrb[0].mxu0
        %v8327 = vpop.f32.mrb[0].mxu0
        %v8328 = vadd.f32 %v7968, %v8327
        %v8329 = vpop.f32.mrb[0].mxu0
        %8330 = vmatprep.mubr.bf16.mxu0 %v7959
        %8331 = vmatmul.mubr.bf16.gmra.mrb[0].mxu0 %v7958
        %v8332 = vpop.f32.mrb[0].mxu0
        %v8333 = vadd.f32 %v7968, %v8332
        %v8334 = vpop.f32.mrb[0].mxu0
        %v8335 = vpop.f32.mrb[0].mxu0
        %v8336 = vadd.f32 %v7968, %v8335
        %v8337 = vpop.f32.mrb[0].mxu0
        %8338 = vmatprep.mubr.bf16.mxu0 %v7961
        %8339 = vmatmul.mubr.bf16.gmra.mrb[0].mxu0 %v7960
        %v8340 = vpop.f32.mrb[0].mxu0
        %v8341 = vadd.f32 %v7968, %v8340
        %v8342 = vpop.f32.mrb[0].mxu0
        %v8343 = vpop.f32.mrb[0].mxu0
        %v8344 = vadd.f32 %v7968, %v8343
        %v8345 = vpop.f32.mrb[0].mxu0
        %8346 = vmatprep.mubr.bf16.mxu0 %v7963
        %8347 = vmatmul.mubr.bf16.gmra.mrb[0].mxu0 %v7962
        %v8348 = vpop.f32.mrb[0].mxu0
        %v8349 = vadd.f32 %v7968, %v8348
        %v8350 = vpop.f32.mrb[0].mxu0
        %v8351 = vpop.f32.mrb[0].mxu0
        %v8352 = vadd.f32 %v7968, %v8351
        %v8353 = vpop.f32.mrb[0].mxu0
        %8354 = vdwg.mxu0
        %v8355 = vadd.f32 %v7092, %v8101
        %v8356 = vadd.f32 %v7093, %v8104
        %v8357 = vadd.f32 %v7094, %v8109
        %v8358 = vadd.f32 %v7095, %v8112
        %v8359 = vadd.f32 %v7096, %v8117
        %v8360 = vadd.f32 %v7097, %v8120
        %v8361 = vadd.f32 %v7098, %v8125
        %v8362 = vadd.f32 %v7099, %v8128
        %v8363 = vadd.f32 %v7100, %v8133
        %v8364 = vadd.f32 %v7101, %v8136
        %v8365 = vadd.f32 %v7102, %v8141
        %v8366 = vadd.f32 %v7103, %v8144
        %v8367 = vadd.f32 %v7104, %v8149
        %v8368 = vadd.f32 %v7105, %v8152
        %v8369 = vadd.f32 %v7106, %v8157
        %v8370 = vadd.f32 %v7107, %v8160
        %v8371 = vadd.f32 %v7108, %v8165
        %v8372 = vadd.f32 %v7109, %v8168
        %v8373 = vadd.f32 %v7110, %v8173
        %v8374 = vadd.f32 %v7111, %v8176
        %v8375 = vadd.f32 %v7112, %v8181
        %v8376 = vadd.f32 %v7113, %v8184
        %v8377 = vadd.f32 %v7114, %v8189
        %v8378 = vadd.f32 %v7115, %v8192
        %v8379 = vadd.f32 %v7116, %v8197
        %v8380 = vadd.f32 %v7117, %v8200
        %v8381 = vadd.f32 %v7118, %v8205
        %v8382 = vadd.f32 %v7119, %v8208
        %v8383 = vadd.f32 %v7120, %v8213
        %v8384 = vadd.f32 %v7121, %v8216
        %v8385 = vadd.f32 %v7122, %v8221
        %v8386 = vadd.f32 %v7123, %v8224
        %v8387 = vadd.f32 %v7124, %v8229
        %v8388 = vadd.f32 %v7125, %v8232
        %v8389 = vadd.f32 %v7126, %v8237
        %v8390 = vadd.f32 %v7127, %v8240
        %v8391 = vadd.f32 %v7128, %v8245
        %v8392 = vadd.f32 %v7129, %v8248
        %v8393 = vadd.f32 %v7130, %v8253
        %v8394 = vadd.f32 %v7131, %v8256
        %v8395 = vadd.f32 %v7132, %v8261
        %v8396 = vadd.f32 %v7133, %v8264
        %v8397 = vadd.f32 %v7134, %v8269
        %v8398 = vadd.f32 %v7135, %v8272
        %v8399 = vadd.f32 %v7136, %v8277
        %v8400 = vadd.f32 %v7137, %v8280
        %v8401 = vadd.f32 %v7138, %v8285
        %v8402 = vadd.f32 %v7139, %v8288
        %v8403 = vadd.f32 %v7140, %v8293
        %v8404 = vadd.f32 %v7141, %v8296
        %v8405 = vadd.f32 %v7142, %v8301
        %v8406 = vadd.f32 %v7143, %v8304
        %v8407 = vadd.f32 %v7144, %v8309
        %v8408 = vadd.f32 %v7145, %v8312
        %v8409 = vadd.f32 %v7146, %v8317
        %v8410 = vadd.f32 %v7147, %v8320
        %v8411 = vadd.f32 %v7148, %v8325
        %v8412 = vadd.f32 %v7149, %v8328
        %v8413 = vadd.f32 %v7150, %v8333
        %v8414 = vadd.f32 %v7151, %v8336
        %v8415 = vadd.f32 %v7152, %v8341
        %v8416 = vadd.f32 %v7153, %v8344
        %v8417 = vadd.f32 %v7154, %v8349
        %v8418 = vadd.f32 %v7155, %v8352
        %8419 = vst [vmem:[%s600] sm:$0xff] %v8355
        %8420 = vst [vmem:[%s600 + $0x8] sm:$0xff] %v8356
        %8421 = vst [vmem:[%s600 + $0x10] sm:$0xff] %v8357
        %8422 = vst [vmem:[%s600 + $0x18] sm:$0xff] %v8358
        %8423 = vst [vmem:[%s600 + $0x20] sm:$0xff] %v8359
        %8424 = vst [vmem:[%s600 + $0x28] sm:$0xff] %v8360
        %8425 = vst [vmem:[%s600 + $0x30] sm:$0xff] %v8361
        %8426 = vst [vmem:[%s600 + $0x38] sm:$0xff] %v8362
        %8427 = vst [vmem:[%s600 + $0x40] sm:$0xff] %v8363
        %8428 = vst [vmem:[%s600 + $0x48] sm:$0xff] %v8364
        %8429 = vst [vmem:[%s600 + $0x50] sm:$0xff] %v8365
        %8430 = vst [vmem:[%s600 + $0x58] sm:$0xff] %v8366
        %8431 = vst [vmem:[%s600 + $0x60] sm:$0xff] %v8367
        %8432 = vst [vmem:[%s600 + $0x68] sm:$0xff] %v8368
        %8433 = vst [vmem:[%s600 + $0x70] sm:$0xff] %v8369
        %8434 = vst [vmem:[%s600 + $0x78] sm:$0xff] %v8370
        %8435 = vst [vmem:[%s600 + $0x80] sm:$0xff] %v8371
        %8436 = vst [vmem:[%s600 + $0x88] sm:$0xff] %v8372
        %8437 = vst [vmem:[%s600 + $0x90] sm:$0xff] %v8373
        %8438 = vst [vmem:[%s600 + $0x98] sm:$0xff] %v8374
        %8439 = vst [vmem:[%s600 + $0xa0] sm:$0xff] %v8375
        %8440 = vst [vmem:[%s600 + $0xa8] sm:$0xff] %v8376
        %8441 = vst [vmem:[%s600 + $0xb0] sm:$0xff] %v8377
        %8442 = vst [vmem:[%s600 + $0xb8] sm:$0xff] %v8378
        %8443 = vst [vmem:[%s600 + $0xc0] sm:$0xff] %v8379
        %8444 = vst [vmem:[%s600 + $0xc8] sm:$0xff] %v8380
        %8445 = vst [vmem:[%s600 + $0xd0] sm:$0xff] %v8381
        %8446 = vst [vmem:[%s600 + $0xd8] sm:$0xff] %v8382
        %8447 = vst [vmem:[%s600 + $0xe0] sm:$0xff] %v8383
        %8448 = vst [vmem:[%s600 + $0xe8] sm:$0xff] %v8384
        %8449 = vst [vmem:[%s600 + $0xf0] sm:$0xff] %v8385
        %8450 = vst [vmem:[%s600 + $0xf8] sm:$0xff] %v8386
        %8451 = vst [vmem:[%s600 + $0x100] sm:$0xff] %v8387
        %8452 = vst [vmem:[%s600 + $0x108] sm:$0xff] %v8388
        %8453 = vst [vmem:[%s600 + $0x110] sm:$0xff] %v8389
        %8454 = vst [vmem:[%s600 + $0x118] sm:$0xff] %v8390
        %8455 = vst [vmem:[%s600 + $0x120] sm:$0xff] %v8391
        %8456 = vst [vmem:[%s600 + $0x128] sm:$0xff] %v8392
        %8457 = vst [vmem:[%s600 + $0x130] sm:$0xff] %v8393
        %8458 = vst [vmem:[%s600 + $0x138] sm:$0xff] %v8394
        %8459 = vst [vmem:[%s600 + $0x140] sm:$0xff] %v8395
        %8460 = vst [vmem:[%s600 + $0x148] sm:$0xff] %v8396
        %8461 = vst [vmem:[%s600 + $0x150] sm:$0xff] %v8397
        %8462 = vst [vmem:[%s600 + $0x158] sm:$0xff] %v8398
        %8463 = vst [vmem:[%s600 + $0x160] sm:$0xff] %v8399
        %8464 = vst [vmem:[%s600 + $0x168] sm:$0xff] %v8400
        %8465 = vst [vmem:[%s600 + $0x170] sm:$0xff] %v8401
        %8466 = vst [vmem:[%s600 + $0x178] sm:$0xff] %v8402
        %8467 = vst [vmem:[%s600 + $0x180] sm:$0xff] %v8403
        %8468 = vst [vmem:[%s600 + $0x188] sm:$0xff] %v8404
        %8469 = vst [vmem:[%s600 + $0x190] sm:$0xff] %v8405
        %8470 = vst [vmem:[%s600 + $0x198] sm:$0xff] %v8406
        %8471 = vst [vmem:[%s600 + $0x1a0] sm:$0xff] %v8407
        %8472 = vst [vmem:[%s600 + $0x1a8] sm:$0xff] %v8408
        %8473 = vst [vmem:[%s600 + $0x1b0] sm:$0xff] %v8409
        %8474 = vst [vmem:[%s600 + $0x1b8] sm:$0xff] %v8410
        %8475 = vst [vmem:[%s600 + $0x1c0] sm:$0xff] %v8411
        %8476 = vst [vmem:[%s600 + $0x1c8] sm:$0xff] %v8412
        %8477 = vst [vmem:[%s600 + $0x1d0] sm:$0xff] %v8413
        %8478 = vst [vmem:[%s600 + $0x1d8] sm:$0xff] %v8414
        %8479 = vst [vmem:[%s600 + $0x1e0] sm:$0xff] %v8415
        %8480 = vst [vmem:[%s600 + $0x1e8] sm:$0xff] %v8416
        %8481 = vst [vmem:[%s600 + $0x1f0] sm:$0xff] %v8417
        %8482 = vst [vmem:[%s600 + $0x1f8] sm:$0xff] %v8418
        %s8483 = sand.u32 %s363, 1
        %s8484 = scalar_lea.sflag [#allocation4], %s8483
        %s8485 = sand.u32 %s363, 1
        %s8486 = smul.addr %s8485, 512
        %s8487 = scalar_lea.vmem [#allocation14], %s8486
        // Predicated region
        $region109: #{linear_attn_ffn_forward.1} parent=79 // pred_check
          %p8488 = pneg %p373
        $region110: #{linear_attn_ffn_forward.1} parent=79 // pred_check_branch
          %8490 = sbr.rel (%p8488) target = $region112
        $region111: #{linear_attn_ffn_forward.1} parent=79 // pred_region
          %s8491 = smul.u32 8, %s35
          %s8493 = ssub.s32 8192, 8192
          %8494 = vsyncadd %s8484, %s8493
          %s8495 = smul.addr %s8491, 8
          %s8496 = smul.addr %s8495, 128
          %s8497 = scalar_lea.hbm %s15, %s8496
          %s8498 = sshll.u32 %s8487, 4
          %s8499 = int_to_ptr.vmem [resolvable:$true] %s8498
          %8504 = dma.vmem_to_hbm [thread:$0]  %s8499, 8192, %s8497, %s8484, 128, 128, 8
        $region112: #{linear_attn_ffn_forward.1} parent=79 // pred_fallthru
          _
      $region80: #{linear_attn_ffn_forward.1} parent=5 // pred_fallthru
        _
      %p8505 = scmp.le.s32.totalorder 2, %s30
      // Predicated region
      $region113: #{linear_attn_ffn_forward.1} parent=5 // pred_check
        %p8506 = pneg %p8505
      $region114: #{linear_attn_ffn_forward.1} parent=5 // pred_check_branch
        %8508 = sbr.rel (%p8506) target = $region116
      $region115: #{linear_attn_ffn_forward.1} parent=5 // pred_region
        %s8509 = ssub.s32 %s30, 2
        // Predicated region
        $region117: #{linear_attn_ffn_forward.1} parent=115 // pred_check
          %p8510 = pneg %p379
        $region118: #{linear_attn_ffn_forward.1} parent=115 // pred_check_branch
          %8512 = sbr.rel (%p8510) target = $region120
        $region119: #{linear_attn_ffn_forward.1} parent=115 // pred_region
          %s8513 = sand.u32 %s364, 1
          %s8514 = scalar_lea.sflag [#allocation4], %s8513
          %s8515 = sand.u32 %s364, 1
          %s8516 = smul.addr %s8515, 512
          %s8517 = scalar_lea.vmem [#allocation14], %s8516
          %8518 = dma.done %s8514, 8192
        $region120: #{linear_attn_ffn_forward.1} parent=115 // pred_fallthru
          _
      $region116: #{linear_attn_ffn_forward.1} parent=5 // pred_fallthru
        _
    $region6: #{linear_attn_ffn_forward.1} parent=1 // loop_footer
      %s34 = sadd.s32 1, %s30
    $region7: #{linear_attn_ffn_forward.1} parent=1 // loop_footer_branch
      %29 = sbr.rel target = $region3
    $region8: #{linear_attn_ffn_forward.1} parent=1 // loop_exit
      _
    %8519 = vsyncpa [#allocation3], 1
    %s8520 = scalar_lea.sflag [#allocation3], 1
    %8521 = vsyncpa %s8520, 1
    %8522 = vsyncpa [#allocation6], 1
    %8523 = vsyncpa [#allocation9], 1
    %8524 = vsyncpa [#allocation12], 1
    %8525 = vsyncpa [#allocation4], 1
    %s8526 = scalar_lea.sflag [#allocation4], 1
    %8527 = vsyncpa %s8526, 1

</llo_original>
